<compile_context>
chip_gen: v7x
topology: tpu7x:2x2x1
jax: 0.10.0
libtpu: 0.0.40
codegen_flags: <defaults>
</compile_context>

<pallas_src>
import functools

import jax
import jax.numpy as jnp
from jax.experimental import pallas as pl
from jax.experimental.pallas import tpu as pltpu

VMEM_LIMIT = 32 * 1024 * 1024


# ---------------------------------------------------------------------------
# helpers
# ---------------------------------------------------------------------------
def _row_tile(m, min_steps=4, align=8, max_tile=512):
    """Largest divisor of m (multiple of `align`, <= max_tile) giving at least
    `min_steps` grid steps; falls back to the full dim."""
    best = m
    for t in range(align, min(m, max_tile) + 1, align):
        if m % t == 0 and m // t >= min_steps:
            best = t
    return best


def _erf_poly(x):
    """Abramowitz & Stegun 7.1.26 erf approximation (max abs err ~1.5e-7)."""
    a1, a2, a3, a4, a5 = (0.254829592, -0.284496736, 1.421413741,
                          -1.453152027, 1.061405429)
    p = 0.3275911
    sgn = jnp.where(x >= 0.0, 1.0, -1.0)
    ax = jnp.abs(x)
    t = 1.0 / (1.0 + p * ax)
    poly = ((((a5 * t + a4) * t + a3) * t + a2) * t + a1) * t
    return sgn * (1.0 - poly * jnp.exp(-ax * ax))


def _gelu_exact(x):
    # exact-erf GELU (PyTorch nn.GELU default) via the polynomial erf above
    return 0.5 * x * (1.0 + _erf_poly(x * 0.7071067811865476))


# ---------------------------------------------------------------------------
# fused down chain: h = relu(relu(x @ w1) @ w2), q = h @ wq (intermediates in VMEM)
# ---------------------------------------------------------------------------
def _down_chain_kernel(x_ref, w1_ref, w2_ref, wq_ref, h_ref, q_ref):
    x = x_ref[...].astype(jnp.bfloat16)
    h1 = jnp.dot(x, w1_ref[...], preferred_element_type=jnp.float32)
    h1 = jnp.maximum(h1, 0.0).astype(jnp.bfloat16)
    h2 = jnp.dot(h1, w2_ref[...], preferred_element_type=jnp.float32)
    h2 = jnp.maximum(h2, 0.0).astype(jnp.bfloat16)
    q = jnp.dot(h2, wq_ref[...], preferred_element_type=jnp.float32)
    h_ref[...] = h2
    q_ref[...] = q.astype(q_ref.dtype)


def down_chain(x2d, w1, w2, wq):
    M, K = x2d.shape
    n1, n2, nq = w1.shape[1], w2.shape[1], wq.shape[1]
    tm = _row_tile(M)
    return pl.pallas_call(
        _down_chain_kernel,
        out_shape=(jax.ShapeDtypeStruct((M, n2), jnp.bfloat16),
                   jax.ShapeDtypeStruct((M, nq), jnp.bfloat16)),
        grid=(M // tm,),
        in_specs=[
            pl.BlockSpec((tm, K), lambda m: (m, 0)),
            pl.BlockSpec((K, n1), lambda m: (0, 0)),
            pl.BlockSpec((n1, n2), lambda m: (0, 0)),
            pl.BlockSpec((n2, nq), lambda m: (0, 0)),
        ],
        out_specs=(pl.BlockSpec((tm, n2), lambda m: (m, 0)),
                   pl.BlockSpec((tm, nq), lambda m: (m, 0))),
        compiler_params=pltpu.CompilerParams(
            dimension_semantics=("parallel",), vmem_limit_bytes=VMEM_LIMIT),
    )(x2d, w1, w2, wq)


# ---------------------------------------------------------------------------
# fused up chain: relu(attn @ wo + bo) -> relu(@ w3) -> (@ w4 + residual) -> relu
# ---------------------------------------------------------------------------
def _up_chain_kernel(a_ref, wo_ref, bo_ref, w3_ref, w4_ref, r_ref, o_ref):
    y = jnp.dot(a_ref[...], wo_ref[...], preferred_element_type=jnp.float32)
    y = jnp.maximum(y + bo_ref[...], 0.0).astype(jnp.bfloat16)
    y = jnp.dot(y, w3_ref[...], preferred_element_type=jnp.float32)
    y = jnp.maximum(y, 0.0).astype(jnp.bfloat16)
    y = jnp.dot(y, w4_ref[...], preferred_element_type=jnp.float32)
    o_ref[...] = jnp.maximum(y + r_ref[...], 0.0)


def up_chain(a2d, wo, bo, w3, w4, residual):
    M, K = a2d.shape
    n_o, n3, n4 = wo.shape[1], w3.shape[1], w4.shape[1]
    tm = _row_tile(M)
    return pl.pallas_call(
        _up_chain_kernel,
        out_shape=jax.ShapeDtypeStruct((M, n4), jnp.float32),
        grid=(M // tm,),
        in_specs=[
            pl.BlockSpec((tm, K), lambda m: (m, 0)),
            pl.BlockSpec((K, n_o), lambda m: (0, 0)),
            pl.BlockSpec((1, n_o), lambda m: (0, 0)),
            pl.BlockSpec((n_o, n3), lambda m: (0, 0)),
            pl.BlockSpec((n3, n4), lambda m: (0, 0)),
            pl.BlockSpec((tm, n4), lambda m: (m, 0)),
        ],
        out_specs=pl.BlockSpec((tm, n4), lambda m: (m, 0)),
        compiler_params=pltpu.CompilerParams(
            dimension_semantics=("parallel",), vmem_limit_bytes=VMEM_LIMIT),
    )(a2d, wo, bo, w3, w4, residual)


# ---------------------------------------------------------------------------
# fused offset branch: depthwise (k==stride, pad 0) taps + bias + GELU +
#                      48->2 pointwise + tanh * scale   (one kernel)
# ---------------------------------------------------------------------------
def _offset_kernel(p_ref, wdw_ref, bdw_ref, wpw_ref, o_ref, *, scale):
    T = p_ref.shape[0]
    acc = p_ref[0].astype(jnp.float32) * wdw_ref[0] + bdw_ref[...]
    for t in range(1, T):
        acc = acc + p_ref[t].astype(jnp.float32) * wdw_ref[t]
    g = _gelu_exact(acc)
    off = jnp.dot(g, wpw_ref[...], preferred_element_type=jnp.float32)
    o_ref[...] = jnp.tanh(off) * scale


def offset_branch(patches, w_dw, b_dw, w_pw, *, scale):
    T, Mo, C = patches.shape
    tmo = _row_tile(Mo)
    return pl.pallas_call(
        functools.partial(_offset_kernel, scale=scale),
        out_shape=jax.ShapeDtypeStruct((Mo, 2), jnp.float32),
        grid=(Mo // tmo,),
        in_specs=[
            pl.BlockSpec((T, tmo, C), lambda m: (0, m, 0)),
            pl.BlockSpec((T, 1, C), lambda m: (0, 0, 0)),
            pl.BlockSpec((1, C), lambda m: (0, 0)),
            pl.BlockSpec((C, 2), lambda m: (0, 0)),
        ],
        out_specs=pl.BlockSpec((tmo, 2), lambda m: (m, 0)),
        compiler_params=pltpu.CompilerParams(
            dimension_semantics=("parallel",), vmem_limit_bytes=VMEM_LIMIT),
    )(patches, w_dw, b_dw, w_pw)


# ---------------------------------------------------------------------------
# fused CPB relative-position-bias MLP (signed-log + 2 -> C -> C -> o)
#   channels on sublanes, (i, j) pairs lane-dense; intermediates stay in VMEM
# ---------------------------------------------------------------------------
def _cpb_kernel(pos_ref, w0_ref, b0_ref, w1_ref, b1_ref, w2_ref, b2_ref, o_ref):
    pos = pos_ref[0]                                       # (2, N) f32
    sgn = jnp.where(pos > 0, 1.0, jnp.where(pos < 0, -1.0, 0.0))
    sl = sgn * jnp.log(jnp.abs(pos) + 1.0)                 # signed log
    slx, sly = sl[0:1, :], sl[1:2, :]
    w0 = w0_ref[...].astype(jnp.float32)
    h1 = w0[:, 0:1] * slx + w0[:, 1:2] * sly + b0_ref[...]  # (C, N) layer 0 on VPU
    h1 = jnp.maximum(h1, 0.0)
    h2 = jnp.dot(w1_ref[...], h1.astype(jnp.bfloat16),
                 preferred_element_type=jnp.float32) + b1_ref[...]
    h2 = jnp.maximum(h2, 0.0)
    out = jnp.dot(w2_ref[...], h2.astype(jnp.bfloat16),
                  preferred_element_type=jnp.float32) + b2_ref[...]
    o_ref[0] = out


def cpb_bias(pos, w0, b0, w1t, b1, w2t, b2):
    BG, _, N = pos.shape
    C = w0.shape[0]
    o = w2t.shape[0]
    return pl.pallas_call(
        _cpb_kernel,
        out_shape=jax.ShapeDtypeStruct((BG, o, N), jnp.float32),
        grid=(BG,),
        in_specs=[
            pl.BlockSpec((1, 2, N), lambda g: (g, 0, 0)),
            pl.BlockSpec((C, 2), lambda g: (0, 0)),
            pl.BlockSpec((C, 1), lambda g: (0, 0)),
            pl.BlockSpec((C, C), lambda g: (0, 0)),
            pl.BlockSpec((C, 1), lambda g: (0, 0)),
            pl.BlockSpec((o, C), lambda g: (0, 0)),
            pl.BlockSpec((o, 1), lambda g: (0, 0)),
        ],
        out_specs=pl.BlockSpec((1, o, N), lambda g: (g, 0, 0)),
        compiler_params=pltpu.CompilerParams(
            dimension_semantics=("parallel",), vmem_limit_bytes=VMEM_LIMIT),
    )(pos, w0, b0, w1t, b1, w2t, b2)


# ---------------------------------------------------------------------------
# attention core (grid=(B,)): per head -> bilinear sample (interp matmul),
# grouped k/v projection, QK^T + bias, softmax, PV.  All head indexing is on
# LEADING dims, so there is no unaligned lane slicing anywhere.
# TODO(synk): add an I-tiling grid axis for large spatial sizes (blocks grow
#             with I=H*W); not needed at toy sizes.
# ---------------------------------------------------------------------------
def _make_attn_kernel(heads):
    def kernel(itp_ref, xg_ref, wk_ref, wv_ref, q_ref, b_ref, o_ref):
        for h in range(heads):
            itp = itp_ref[0, h].astype(jnp.bfloat16)        # (J, HW)
            xh = xg_ref[0, h]                               # (HW, dh) bf16
            kv = jnp.dot(itp, xh, preferred_element_type=jnp.float32)
            kvb = kv.astype(jnp.bfloat16)
            kh = jnp.dot(kvb, wk_ref[h], preferred_element_type=jnp.float32)
            vh = jnp.dot(kvb, wv_ref[h], preferred_element_type=jnp.float32)
            qh = q_ref[0, h]                                # (I, dh) bf16
            s = jax.lax.dot_general(qh, kh.astype(jnp.bfloat16),
                                    (((1,), (1,)), ((), ())),
                                    preferred_element_type=jnp.float32)  # (I, J)
            s = s + b_ref[0, h]
            s = s - jnp.max(s, axis=-1, keepdims=True)
            p = jnp.exp(s)
            p = p / jnp.sum(p, axis=-1, keepdims=True)      # exact softmax
            o_ref[0, h] = jnp.dot(p.astype(jnp.bfloat16), vh.astype(jnp.bfloat16),
                                  preferred_element_type=jnp.float32
                                  ).astype(o_ref.dtype)
    return kernel


def attention_pallas(interp, xg, wk_g, wv_g, q3, bias):
    B, G, J, HW = interp.shape
    _, heads, I, dh = q3.shape
    dpg = xg.shape[-1]
    return pl.pallas_call(
        _make_attn_kernel(heads),
        out_shape=jax.ShapeDtypeStruct((B, heads, I, dh), jnp.bfloat16),
        grid=(B,),
        in_specs=[
            pl.BlockSpec((1, G, J, HW), lambda b: (b, 0, 0, 0)),
            pl.BlockSpec((1, G, HW, dpg), lambda b: (b, 0, 0, 0)),
            pl.BlockSpec((G, dpg, dpg), lambda b: (0, 0, 0)),
            pl.BlockSpec((G, dpg, dpg), lambda b: (0, 0, 0)),
            pl.BlockSpec((1, heads, I, dh), lambda b: (b, 0, 0, 0)),
            pl.BlockSpec((1, heads, I, J), lambda b: (b, 0, 0, 0)),
        ],
        out_specs=pl.BlockSpec((1, heads, I, dh), lambda b: (b, 0, 0, 0)),
        compiler_params=pltpu.CompilerParams(
            dimension_semantics=("parallel",), vmem_limit_bytes=VMEM_LIMIT),
    )(interp, xg, wk_g, wv_g, q3, bias)


# ---------------------------------------------------------------------------
# bilinear grid_sample as an interpolation-weight matrix (built in XLA, tiny)
# matches F.grid_sample(mode='bilinear', padding_mode='zeros', align_corners=False)
# ---------------------------------------------------------------------------
def build_bilinear_matrix(grid_xy, H, W):
    gx, gy = grid_xy[..., 0], grid_xy[..., 1]               # (BG, J)
    ix = ((gx + 1.0) * W - 1.0) / 2.0
    iy = ((gy + 1.0) * H - 1.0) / 2.0
    ix0, iy0 = jnp.floor(ix), jnp.floor(iy)
    ix1, iy1 = ix0 + 1.0, iy0 + 1.0
    wx1, wy1 = ix - ix0, iy - iy0
    wx0, wy0 = 1.0 - wx1, 1.0 - wy1
    cols = jnp.arange(H * W, dtype=jnp.int32)

    def corner(iy_, ix_, w):
        valid = (ix_ >= 0) & (ix_ <= W - 1) & (iy_ >= 0) & (iy_ <= H - 1)
        idx = (jnp.clip(iy_, 0, H - 1).astype(jnp.int32) * W
               + jnp.clip(ix_, 0, W - 1).astype(jnp.int32))
        onehot = (idx[..., None] == cols).astype(jnp.float32)
        return onehot * (w * valid.astype(jnp.float32))[..., None]

    return (corner(iy0, ix0, wy0 * wx0) + corner(iy0, ix1, wy0 * wx1)
            + corner(iy1, ix0, wy1 * wx0) + corner(iy1, ix1, wy1 * wx1))


# ---------------------------------------------------------------------------
# DeformableAttention2D core (everything except to_q and to_out, which are
# fused into the down/up chain kernels)
# ---------------------------------------------------------------------------
def deformable_attention_core(p, h_flat, q_flat, B, H, W):
    heads, dh = p["heads"], p["dim_head"]
    G, df = p["offset_groups"], p["downsample_factor"]
    assert G == heads, "kernel assumes offset_groups == heads (module default)"
    dim = heads * dh
    dpg = dim // G
    Hs, Ws = H // df, W // df
    I, J = H * W, Hs * Ws
    BG = B * G
    assert p["offset_kernel_size"] == df, "patch layout assumes k == stride, pad 0"

    # ---- offset branch (one fused Pallas kernel) ----
    gq = q_flat.reshape(B, H, W, G, dpg).transpose(0, 3, 1, 2, 4).reshape(BG, H, W, dpg)
    patches = gq.reshape(BG, Hs, df, Ws, df, dpg).transpose(2, 4, 0, 1, 3, 5)
    patches = patches.reshape(df * df, BG * Hs * Ws, dpg)
    off = offset_branch(patches, p["w_off_dw"], p["b_off_dw"], p["w_off_pw"],
                        scale=float(p["offset_scale"]))
    offsets = off.reshape(BG, Hs, Ws, 2)

    # vgrid = grid + offsets, normalized exactly like the reference
    # (reference quirk preserved: x normalized by (Hs-1), y by (Ws-1))
    base_x = jnp.arange(Ws, dtype=jnp.float32)[None, :]
    base_y = jnp.arange(Hs, dtype=jnp.float32)[:, None]
    vx = base_x + offsets[..., 0]
    vy = base_y + offsets[..., 1]
    vx_n = 2.0 * vx / max(Hs - 1, 1) - 1.0
    vy_n = 2.0 * vy / max(Ws - 1, 1) - 1.0
    vgrid_scaled = jnp.stack([vx_n, vy_n], axis=-1)          # (BG, Hs, Ws, 2)
    grid_kv = vgrid_scaled.reshape(BG, J, 2)

    # bilinear sample as a (J, H*W) matrix; grouped source features for k/v
    interp = build_bilinear_matrix(grid_kv, H, W).reshape(B, G, J, H * W)
    xg = h_flat.reshape(B, H * W, G, dpg).transpose(0, 2, 1, 3)   # (B, G, HW, dpg) bf16

    # ---- CPB relative positional bias (single Pallas kernel, lane-dense) ----
    fbx = jnp.broadcast_to(jnp.arange(W, dtype=jnp.float32)[None, :], (H, W))
    fby = jnp.broadcast_to(jnp.arange(H, dtype=jnp.float32)[:, None], (H, W))
    qx_n = 2.0 * fbx / max(H - 1, 1) - 1.0
    qy_n = 2.0 * fby / max(W - 1, 1) - 1.0
    grid_q = jnp.stack([qx_n, qy_n], axis=-1).reshape(I, 2)
    posx = (grid_q[None, :, 0:1] - grid_kv[:, None, :, 0]).reshape(BG, I * J)
    posy = (grid_q[None, :, 1:2] - grid_kv[:, None, :, 1]).reshape(BG, I * J)
    pos = jnp.stack([posx, posy], axis=1)                     # (BG, 2, I*J)
    hb = cpb_bias(pos, p["cpb_w0"], p["cpb_b0"], p["cpb_w1t"], p["cpb_b1"],
                  p["cpb_w2t"], p["cpb_b2"])                  # (BG, 1, I*J) f32
    bias = hb.reshape(B, heads, I, J)                         # free reshape, head = g*o+oo

    # head-major q (one tiny XLA transpose)
    q3 = q_flat.reshape(B, I, heads, dh).transpose(0, 2, 1, 3)

    out = attention_pallas(interp, xg, p["wk_g"], p["wv_g"], q3, bias)
    return out.transpose(0, 2, 1, 3).reshape(B * I, heads * dh)   # (M, inner) bf16


# ---------------------------------------------------------------------------
# HourglassNeck forward
# ---------------------------------------------------------------------------
def hourglass_neck_forward(params, xs):
    """xs is a list/tuple; forward uses xs[0] (matches the PyTorch module)."""
    x_nchw = xs[0]
    B, C, H, W = x_nchw.shape
    x = jnp.transpose(x_nchw, (0, 2, 3, 1)).astype(jnp.float32)   # NCHW -> NHWC
    x2 = x.reshape(B * H * W, C)

    # conv1 -> relu -> conv2 -> relu (+ attention's to_q), all in one kernel
    h_flat, q_flat = down_chain(x2, params["w1"], params["w2"], params["attn"]["wq"])

    attn_flat = deformable_attention_core(params["attn"], h_flat, q_flat, B, H, W)

    # to_out(+bias) -> relu -> conv3 -> relu -> conv4 -> (+residual) -> relu, one kernel
    out2 = up_chain(attn_flat, params["attn"]["wo"], params["attn"]["bo"],
                    params["w3"], params["w4"], x2)
    return jnp.transpose(out2.reshape(B, H, W, C), (0, 3, 1, 2))   # NHWC -> NCHW


# ---------------------------------------------------------------------------
# deterministic parameter init (kernel-friendly layouts, bf16 MXU weights)
# ---------------------------------------------------------------------------
def init_params(key, in_dim=1536, mid_dim=768, out_dim=1536,
                att_dim=384, heads=8, dim_head=48, downsample_factor=3,
                offset_scale=4.0, offset_kernel_size=3):
    offset_groups = heads
    inner = heads * dim_head
    dpg = inner // offset_groups
    kg = att_dim // offset_groups
    cpb_dim = att_dim // 4
    o = heads // offset_groups
    attn_scale = dim_head ** -0.5
    keys = jax.random.split(key, 32)
    it = iter(range(32))

    def w_init(shape, fan_in, dtype=jnp.float32):
        w = jax.random.normal(keys[next(it)], shape, jnp.float32) / jnp.sqrt(float(fan_in))
        return w.astype(dtype)

    def b_init(shape):
        return jax.random.normal(keys[next(it)], shape, jnp.float32) * 0.02

    def blockdiag(wg, dtype=jnp.bfloat16):
        Gn, Kg, Ng = wg.shape
        dense = jnp.zeros((Gn * Kg, Gn * Ng), jnp.float32)
        for g in range(Gn):
            dense = dense.at[g * Kg:(g + 1) * Kg, g * Ng:(g + 1) * Ng].set(wg[g])
        return dense.astype(dtype)

    wq_g = w_init((offset_groups, kg, dpg), kg)
    wk_g = w_init((offset_groups, kg, dpg), kg)
    wv_g = w_init((offset_groups, kg, dpg), kg)

    return {
        "w1": w_init((in_dim, mid_dim), in_dim, jnp.bfloat16),
        "w2": w_init((mid_dim, att_dim), mid_dim, jnp.bfloat16),
        "w3": w_init((att_dim, mid_dim), att_dim, jnp.bfloat16),
        "w4": w_init((mid_dim, out_dim), mid_dim, jnp.bfloat16),
        "attn": {
            "heads": heads, "dim_head": dim_head, "offset_groups": offset_groups,
            "downsample_factor": downsample_factor, "offset_scale": offset_scale,
            "offset_kernel_size": offset_kernel_size,
            # to_q as a dense block-diagonal weight (fused into the down chain)
            "wq": blockdiag(wq_g),
            # grouped k/v weights, attention scale folded into wk at init
            "wk_g": (wk_g * attn_scale).astype(jnp.bfloat16),
            "wv_g": wv_g.astype(jnp.bfloat16),
            "w_off_dw": w_init((offset_kernel_size * offset_kernel_size, 1, dpg),
                               offset_kernel_size * offset_kernel_size),
            "b_off_dw": b_init((1, dpg)),
            "w_off_pw": w_init((dpg, 2), dpg),
            # CPB weights stored bf16 in the transposed (channels-on-sublanes) layout
            "cpb_w0": w_init((cpb_dim, 2), 2, jnp.bfloat16),
            "cpb_b0": b_init((cpb_dim, 1)),
            "cpb_w1t": w_init((cpb_dim, cpb_dim), cpb_dim, jnp.bfloat16),
            "cpb_b1": b_init((cpb_dim, 1)),
            "cpb_w2t": w_init((o, cpb_dim), cpb_dim, jnp.bfloat16),
            "cpb_b2": b_init((o, 1)),
            "wo": w_init((inner, att_dim), inner, jnp.bfloat16),
            "bo": b_init((1, att_dim)),
        },
    }


if __name__ == "__main__":
    key = jax.random.PRNGKey(0)
    pkey, xkey = jax.random.split(key)

    # small spatial/batch; channel widths follow the module defaults
    B, C, H, W = 2, 1536, 12, 12
    params = init_params(pkey, in_dim=C, mid_dim=768, out_dim=C)
    x = jax.random.normal(xkey, (B, C, H, W), jnp.float32)

    out = hourglass_neck_forward(params, [x])                 # forward(x) uses x[0]
    out = jax.block_until_ready(out)

    assert out.shape == (B, C, H, W), out.shape
    assert bool(jnp.all(jnp.isfinite(out)))
    assert bool(jnp.all(out >= 0.0))                          # final ReLU
    print("KERNEL_OK")
</pallas_src>

<mosaic_0001>
module attributes {stable_mosaic.version = 11 : i64} {
  func.func @_down_chain_kernel(%arg0: i32, %arg1: memref<72x1536xf32, #tpu.memory_space<vmem>>, %arg2: memref<1536x768xbf16, #tpu.memory_space<vmem>>, %arg3: memref<768x384xbf16, #tpu.memory_space<vmem>>, %arg4: memref<384x384xbf16, #tpu.memory_space<vmem>>, %arg5: memref<72x384xbf16, #tpu.memory_space<vmem>>, %arg6: memref<72x384xbf16, #tpu.memory_space<vmem>>) attributes {dimension_semantics = [#tpu.dimension_semantics<parallel>], iteration_bounds = array<i64: 4>, scalar_prefetch = 0 : i64, scratch_operands = 0 : i64, tpu.core_type = #tpu.core_type<tc>, window_params = [{transform_indices = @transform_0, window_bounds = array<i64: 72, 1536>}, {pipeline_mode = #tpu.pipeline_mode<synchronous>, transform_indices = @transform_1, window_bounds = array<i64: 1536, 768>}, {pipeline_mode = #tpu.pipeline_mode<synchronous>, transform_indices = @transform_2, window_bounds = array<i64: 768, 384>}, {pipeline_mode = #tpu.pipeline_mode<synchronous>, transform_indices = @transform_3, window_bounds = array<i64: 384, 384>}, {transform_indices = @transform_4, window_bounds = array<i64: 72, 384>}, {transform_indices = @transform_5, window_bounds = array<i64: 72, 384>}]} {
    %c0 = arith.constant 0 : index
    %c0_0 = arith.constant 0 : index
    %0 = vector.load %arg1[%c0, %c0_0] : memref<72x1536xf32, #tpu.memory_space<vmem>>, vector<72x1536xf32>
    %1 = arith.truncf %0 : vector<72x1536xf32> to vector<72x1536xbf16>
    %c0_1 = arith.constant 0 : index
    %c0_2 = arith.constant 0 : index
    %2 = vector.load %arg2[%c0_1, %c0_2] : memref<1536x768xbf16, #tpu.memory_space<vmem>>, vector<1536x768xbf16>
    %cst = arith.constant dense<0.000000e+00> : vector<72x768xf32>
    %3 = tpu.matmul %1, %2, %cst {dimension_numbers = #tpu.dot_dimension_numbers<[1], [0], [0], [1], [0, 0, 1, 1], [], []>} : vector<72x1536xbf16>, vector<1536x768xbf16>, vector<72x768xf32> -> vector<72x768xf32>
    %cst_3 = arith.constant 0.000000e+00 : f32
    %4 = vector.broadcast %cst_3 : f32 to vector<72x768xf32>
    %5 = arith.maximumf %3, %4 : vector<72x768xf32>
    %6 = arith.truncf %5 : vector<72x768xf32> to vector<72x768xbf16>
    %c0_4 = arith.constant 0 : index
    %c0_5 = arith.constant 0 : index
    %7 = vector.load %arg3[%c0_4, %c0_5] : memref<768x384xbf16, #tpu.memory_space<vmem>>, vector<768x384xbf16>
    %cst_6 = arith.constant dense<0.000000e+00> : vector<72x384xf32>
    %8 = tpu.matmul %6, %7, %cst_6 {dimension_numbers = #tpu.dot_dimension_numbers<[1], [0], [0], [1], [0, 0, 1, 1], [], []>} : vector<72x768xbf16>, vector<768x384xbf16>, vector<72x384xf32> -> vector<72x384xf32>
    %cst_7 = arith.constant 0.000000e+00 : f32
    %9 = vector.broadcast %cst_7 : f32 to vector<72x384xf32>
    %10 = arith.maximumf %8, %9 : vector<72x384xf32>
    %11 = arith.truncf %10 : vector<72x384xf32> to vector<72x384xbf16>
    %c0_8 = arith.constant 0 : index
    %c0_9 = arith.constant 0 : index
    %12 = vector.load %arg4[%c0_8, %c0_9] : memref<384x384xbf16, #tpu.memory_space<vmem>>, vector<384x384xbf16>
    %cst_10 = arith.constant dense<0.000000e+00> : vector<72x384xf32>
    %13 = tpu.matmul %11, %12, %cst_10 {dimension_numbers = #tpu.dot_dimension_numbers<[1], [0], [0], [1], [0, 0, 1, 1], [], []>} : vector<72x384xbf16>, vector<384x384xbf16>, vector<72x384xf32> -> vector<72x384xf32>
    %c0_11 = arith.constant 0 : index
    %c0_12 = arith.constant 0 : index
    %14 = vector.load %arg5[%c0_11, %c0_12] : memref<72x384xbf16, #tpu.memory_space<vmem>>, vector<72x384xbf16>
    tpu.vector_store %arg5[%c0_11, %c0_12], %11 {strides = array<i32>} : memref<72x384xbf16, #tpu.memory_space<vmem>>, vector<72x384xbf16>,
    %15 = arith.truncf %13 : vector<72x384xf32> to vector<72x384xbf16>
    %c0_13 = arith.constant 0 : index
    %c0_14 = arith.constant 0 : index
    %16 = vector.load %arg6[%c0_13, %c0_14] : memref<72x384xbf16, #tpu.memory_space<vmem>>, vector<72x384xbf16>
    tpu.vector_store %arg6[%c0_13, %c0_14], %15 {strides = array<i32>} : memref<72x384xbf16, #tpu.memory_space<vmem>>, vector<72x384xbf16>,
    return
  }
  func.func @transform_0(%arg0: i32) -> (i32, i32) {
    %c0_i32 = arith.constant 0 : i32
    %c0_i32_0 = arith.constant 0 : i32
    return %arg0, %c0_i32 : i32, i32
  }
  func.func @transform_1(%arg0: i32) -> (i32, i32) {
    %c0_i32 = arith.constant 0 : i32
    %c0_i32_0 = arith.constant 0 : i32
    %c0_i32_1 = arith.constant 0 : i32
    return %c0_i32, %c0_i32_0 : i32, i32
  }
  func.func @transform_2(%arg0: i32) -> (i32, i32) {
    %c0_i32 = arith.constant 0 : i32
    %c0_i32_0 = arith.constant 0 : i32
    %c0_i32_1 = arith.constant 0 : i32
    return %c0_i32, %c0_i32_0 : i32, i32
  }
  func.func @transform_3(%arg0: i32) -> (i32, i32) {
    %c0_i32 = arith.constant 0 : i32
    %c0_i32_0 = arith.constant 0 : i32
    %c0_i32_1 = arith.constant 0 : i32
    return %c0_i32, %c0_i32_0 : i32, i32
  }
  func.func @transform_4(%arg0: i32) -> (i32, i32) {
    %c0_i32 = arith.constant 0 : i32
    %c0_i32_0 = arith.constant 0 : i32
    return %arg0, %c0_i32 : i32, i32
  }
  func.func @transform_5(%arg0: i32) -> (i32, i32) {
    %c0_i32 = arith.constant 0 : i32
    %c0_i32_0 = arith.constant 0 : i32
    return %arg0, %c0_i32 : i32, i32
  }
}

</mosaic_0001>

<llo_original>
// kernel: tpu_custom_call.1
$region0: #{tpu_custom_call.1}
  #allocation0 [shape = 'u32[]', space=smem, size = 0x4, offset = 0x4, fixed_abs, tag = 'smem constant byte address 0x4 - core index']
  #allocation1 [shape = 'u32[144,128]{1,0:T(1,128)}', space=vmem, size = 0x12000, scoped, tag = 'internal scratch']
  %s0 = inlined_call_operand.hbm [shape: f32[288,1536], index: 0, kind: input, shape index: {}]
  %s1 = inlined_call_operand.hbm [shape: bf16[1536,768], index: 1, kind: input, shape index: {}]
  %s2 = inlined_call_operand.hbm [shape: bf16[768,384], index: 2, kind: input, shape index: {}]
  %s3 = inlined_call_operand.hbm [shape: bf16[384,384], index: 3, kind: input, shape index: {}]
  %s4 = inlined_call_operand.hbm [shape: bf16[288,384], index: 4, kind: output, shape index: {0}]
  %s5 = inlined_call_operand.hbm [shape: bf16[288,384], index: 5, kind: output, shape index: {1}]
  %6 = xla_tuple %s4, %s5
  %s7 = sld [smem:[#allocation0]]
  $region73: #{tpu_custom_call.1} parent=0
    _
  %s9 = ssub.s32 1, %s7
  %s10 = scalar_select 0, %s9, %s7
  $region1: #{tpu_custom_call.1} parent=0
    #allocation2 [shape = 'u8[884736]{0}', space=vmem, size = 0xd8000, scoped, tag = 'input window, operand 0']
    #allocation3 [shape = 's32[2]{0}', space=sflag, size = 0x8, scoped, tag = 'scoped memory for tpu_custom_call.1']
    #allocation4 [shape = 's32[2]{0}', space=sflag, size = 0x8, scoped, tag = 'scoped memory for tpu_custom_call.1']
    #allocation5 [shape = 'u8[2359296]{0}', space=vmem, size = 0x240000, scoped, tag = 'input window, operand 1, single buffered']
    #allocation6 [shape = 's32[1]{0}', space=sflag, size = 0x4, scoped, tag = 'scoped memory for tpu_custom_call.1']
    #allocation7 [shape = 'u8[589824]{0}', space=vmem, size = 0x90000, scoped, tag = 'input window, operand 2, single buffered']
    #allocation8 [shape = 'u8[294912]{0}', space=vmem, size = 0x48000, scoped, tag = 'input window, operand 3, single buffered']
    #allocation9 [shape = 's32[1]{0}', space=sflag, size = 0x4, scoped, tag = 'scoped memory for tpu_custom_call.1']
    #allocation10 [shape = 'u8[110592]{0}', space=vmem, size = 0x1b000, scoped, tag = 'output window, operand 0']
    #allocation11 [shape = 'u8[110592]{0}', space=vmem, size = 0x1b000, scoped, tag = 'output window, operand 1']
    #allocation12 [shape = 's32[2]{0}', space=sflag, size = 0x8, scoped, tag = 'scoped memory for tpu_custom_call.1']
    %11 = vsyncpa [#allocation3], 0
    %s12 = scalar_lea.sflag [#allocation3], 1
    %13 = vsyncpa %s12, 0
    %14 = vsyncpa [#allocation6], 0
    %15 = vsyncpa [#allocation9], 0
    %16 = vsyncpa [#allocation4], 0
    %s17 = scalar_lea.sflag [#allocation4], 1
    %18 = vsyncpa %s17, 0
    %19 = vsyncpa [#allocation12], 0
    %s20 = scalar_lea.sflag [#allocation12], 1
    %21 = vsyncpa %s20, 0
    loop: start=0, step=1, limit=6
    $region2: #{tpu_custom_call.1} parent=1 // loop_pre_header
      _
    $region3: #{tpu_custom_call.1} parent=1 // loop_header
      %s23 = sphi 0, %s27
      %p24 = scmp.ge.s32.totalorder %s23, 6
      %s33 = sphi 0, %s35
      %s36 = sphi 0, %s33
      %s37 = sphi 0, %s36
      %s53 = sphi 0, %s37
      %s57 = sphi 0, %s57
      %s59 = sphi 0, %s57
      %s60 = sphi 0, %s59
      %s74 = sphi 0, %s60
      %s78 = sphi 0, %s78
      %s80 = sphi 0, %s78
      %s81 = sphi 0, %s80
      %s95 = sphi 0, %s81
      %s99 = sphi 0, %s99
      %s101 = sphi 0, %s99
      %s102 = sphi 0, %s101
      %s116 = sphi 0, %s102
      %s122 = sphi 0, %s124
      %s125 = sphi 0, %s122
      %s126 = sphi 0, %s125
      %s142 = sphi 0, %s126
      %s148 = sphi 0, %s150
      %s151 = sphi 0, %s148
      %s152 = sphi 0, %s151
      %s168 = sphi 0, %s152
    $region4: #{tpu_custom_call.1} parent=1 // loop_header_branch
      %26 = sbr.rel (%p24) target = $region8
    $region5: #{tpu_custom_call.1} parent=1 // loop_body
      %s28 = ssub.s32 %s23, 1
      %s29 = ssub.s32 %s23, 2
      %s30 = sadd.s32 %s23, 1
      %s31 = ssub.s32 %s23, %s30
      %p32 = scmp.eq.s32.totalorder %s31, 0
      %s34 = sadd.s32 %s33, 1
      %s35 = scalar_select %p32, %s33, %s34
      %p38 = pneg %p32
      %p39 = scmp.eq.s32.totalorder %s23, 3
      %p40 = por %p38, %p39
      %p41 = scmp.ne.s32.totalorder %s33, %s36
      %p42 = scmp.eq.s32.totalorder %s23, 0
      %p43 = por %p41, %p42
      %p44 = scmp.ne.s32.totalorder %s33, %s36
      %p45 = scmp.eq.s32.totalorder %s28, 3
      %p46 = por %p44, %p45
      %p47 = scmp.ne.s32.totalorder %s36, %s37
      %p48 = scmp.eq.s32.totalorder %s28, 0
      %p49 = por %p47, %p48
      %p50 = scmp.ne.s32.totalorder %s36, %s37
      %p51 = scmp.eq.s32.totalorder %s29, 3
      %p52 = por %p50, %p51
      %p54 = scmp.ne.s32.totalorder %s37, %s53
      %p55 = scmp.eq.s32.totalorder %s29, 0
      %p56 = por %p54, %p55
      %s58 = sadd.s32 %s57, 1
      %p61 = scmp.eq.s32.totalorder %s23, 3
      %p62 = scmp.ne.s32.totalorder %s57, %s59
      %p63 = scmp.eq.s32.totalorder %s23, 0
      %p64 = por %p62, %p63
      %p65 = scmp.ne.s32.totalorder %s57, %s59
      %p66 = scmp.eq.s32.totalorder %s28, 3
      %p67 = por %p65, %p66
      %p68 = scmp.ne.s32.totalorder %s59, %s60
      %p69 = scmp.eq.s32.totalorder %s28, 0
      %p70 = por %p68, %p69
      %p71 = scmp.ne.s32.totalorder %s59, %s60
      %p72 = scmp.eq.s32.totalorder %s29, 3
      %p73 = por %p71, %p72
      %p75 = scmp.ne.s32.totalorder %s60, %s74
      %p76 = scmp.eq.s32.totalorder %s29, 0
      %p77 = por %p75, %p76
      %s79 = sadd.s32 %s78, 1
      %p82 = scmp.eq.s32.totalorder %s23, 3
      %p83 = scmp.ne.s32.totalorder %s78, %s80
      %p84 = scmp.eq.s32.totalorder %s23, 0
      %p85 = por %p83, %p84
      %p86 = scmp.ne.s32.totalorder %s78, %s80
      %p87 = scmp.eq.s32.totalorder %s28, 3
      %p88 = por %p86, %p87
      %p89 = scmp.ne.s32.totalorder %s80, %s81
      %p90 = scmp.eq.s32.totalorder %s28, 0
      %p91 = por %p89, %p90
      %p92 = scmp.ne.s32.totalorder %s80, %s81
      %p93 = scmp.eq.s32.totalorder %s29, 3
      %p94 = por %p92, %p93
      %p96 = scmp.ne.s32.totalorder %s81, %s95
      %p97 = scmp.eq.s32.totalorder %s29, 0
      %p98 = por %p96, %p97
      %s100 = sadd.s32 %s99, 1
      %p103 = scmp.eq.s32.totalorder %s23, 3
      %p104 = scmp.ne.s32.totalorder %s99, %s101
      %p105 = scmp.eq.s32.totalorder %s23, 0
      %p106 = por %p104, %p105
      %p107 = scmp.ne.s32.totalorder %s99, %s101
      %p108 = scmp.eq.s32.totalorder %s28, 3
      %p109 = por %p107, %p108
      %p110 = scmp.ne.s32.totalorder %s101, %s102
      %p111 = scmp.eq.s32.totalorder %s28, 0
      %p112 = por %p110, %p111
      %p113 = scmp.ne.s32.totalorder %s101, %s102
      %p114 = scmp.eq.s32.totalorder %s29, 3
      %p115 = por %p113, %p114
      %p117 = scmp.ne.s32.totalorder %s102, %s116
      %p118 = scmp.eq.s32.totalorder %s29, 0
      %p119 = por %p117, %p118
      %s120 = ssub.s32 %s23, %s30
      %p121 = scmp.eq.s32.totalorder %s120, 0
      %s123 = sadd.s32 %s122, 1
      %s124 = scalar_select %p121, %s122, %s123
      %p127 = pneg %p121
      %p128 = scmp.eq.s32.totalorder %s23, 3
      %p129 = por %p127, %p128
      %p130 = scmp.ne.s32.totalorder %s122, %s125
      %p131 = scmp.eq.s32.totalorder %s23, 0
      %p132 = por %p130, %p131
      %p133 = scmp.ne.s32.totalorder %s122, %s125
      %p134 = scmp.eq.s32.totalorder %s28, 3
      %p135 = por %p133, %p134
      %p136 = scmp.ne.s32.totalorder %s125, %s126
      %p137 = scmp.eq.s32.totalorder %s28, 0
      %p138 = por %p136, %p137
      %p139 = scmp.ne.s32.totalorder %s125, %s126
      %p140 = scmp.eq.s32.totalorder %s29, 3
      %p141 = por %p139, %p140
      %p143 = scmp.ne.s32.totalorder %s126, %s142
      %p144 = scmp.eq.s32.totalorder %s29, 0
      %p145 = por %p143, %p144
      %s146 = ssub.s32 %s23, %s30
      %p147 = scmp.eq.s32.totalorder %s146, 0
      %s149 = sadd.s32 %s148, 1
      %s150 = scalar_select %p147, %s148, %s149
      %p153 = pneg %p147
      %p154 = scmp.eq.s32.totalorder %s23, 3
      %p155 = por %p153, %p154
      %p156 = scmp.ne.s32.totalorder %s148, %s151
      %p157 = scmp.eq.s32.totalorder %s23, 0
      %p158 = por %p156, %p157
      %p159 = scmp.ne.s32.totalorder %s148, %s151
      %p160 = scmp.eq.s32.totalorder %s28, 3
      %p161 = por %p159, %p160
      %p162 = scmp.ne.s32.totalorder %s151, %s152
      %p163 = scmp.eq.s32.totalorder %s28, 0
      %p164 = por %p162, %p163
      %p165 = scmp.ne.s32.totalorder %s151, %s152
      %p166 = scmp.eq.s32.totalorder %s29, 3
      %p167 = por %p165, %p166
      %p169 = scmp.ne.s32.totalorder %s152, %s168
      %p170 = scmp.eq.s32.totalorder %s29, 0
      %p171 = por %p169, %p170
      %p172 = scmp.le.s32.totalorder 1, %s23
      %p173 = scmp.lt.s32.totalorder %s23, 5
      %p174 = pnand %p172, %p173
      %p175 = pneg %p174
      // Predicated region
      $region9: #{tpu_custom_call.1} parent=5 // pred_check
        _
      $region10: #{tpu_custom_call.1} parent=5 // pred_check_branch
        %177 = sbr.rel (%p174) target = $region12
      $region11: #{tpu_custom_call.1} parent=5 // pred_region
        %s178 = ssub.s32 %s23, 1
        // Predicated region
        $region13: #{tpu_custom_call.1} parent=11 // pred_check
          %p179 = pneg %p70
        $region14: #{tpu_custom_call.1} parent=11 // pred_check_branch
          %181 = sbr.rel (%p179) target = $region16
        $region15: #{tpu_custom_call.1} parent=11 // pred_region
          %s183 = ssub.s32 73728, 73728
          %184 = vsyncadd [#allocation6], %s183
          %s185 = sshll.u32 [#allocation5], 4
          %s186 = int_to_ptr.vmem [resolvable:$true] %s185
          %191 = dma.hbm_to_vmem [thread:$0]  %s1, 73728, %s186, [#allocation6], 384, 384, 24
        $region16: #{tpu_custom_call.1} parent=11 // pred_fallthru
          _
        // Predicated region
        $region17: #{tpu_custom_call.1} parent=11 // pred_check
          %p192 = pneg %p91
        $region18: #{tpu_custom_call.1} parent=11 // pred_check_branch
          %194 = sbr.rel (%p192) target = $region20
        $region19: #{tpu_custom_call.1} parent=11 // pred_region
          %s196 = ssub.s32 18432, 18432
          %197 = vsyncadd [#allocation6], %s196
          %s198 = sshll.u32 [#allocation7], 4
          %s199 = int_to_ptr.vmem [resolvable:$true] %s198
          %204 = dma.hbm_to_vmem [thread:$0]  %s2, 18432, %s199, [#allocation6], 192, 192, 12
        $region20: #{tpu_custom_call.1} parent=11 // pred_fallthru
          _
        // Predicated region
        $region21: #{tpu_custom_call.1} parent=11 // pred_check
          %p205 = pneg %p112
        $region22: #{tpu_custom_call.1} parent=11 // pred_check_branch
          %207 = sbr.rel (%p205) target = $region24
        $region23: #{tpu_custom_call.1} parent=11 // pred_region
          %s209 = ssub.s32 9216, 9216
          %210 = vsyncadd [#allocation9], %s209
          %s211 = sshll.u32 [#allocation8], 4
          %s212 = int_to_ptr.vmem [resolvable:$true] %s211
          %217 = dma.hbm_to_vmem [thread:$0]  %s3, 9216, %s212, [#allocation9], 192, 192, 12
        $region24: #{tpu_custom_call.1} parent=11 // pred_fallthru
          _
      $region12: #{tpu_custom_call.1} parent=5 // pred_fallthru
        _
      %p218 = scmp.lt.s32.totalorder %s23, 4
      // Predicated region
      $region25: #{tpu_custom_call.1} parent=5 // pred_check
        %p219 = pneg %p218
      $region26: #{tpu_custom_call.1} parent=5 // pred_check_branch
        %221 = sbr.rel (%p219) target = $region28
      $region27: #{tpu_custom_call.1} parent=5 // pred_region
        // Predicated region
        $region29: #{tpu_custom_call.1} parent=27 // pred_check
          %p222 = pneg %p43
        $region30: #{tpu_custom_call.1} parent=27 // pred_check_branch
          %224 = sbr.rel (%p222) target = $region32
        $region31: #{tpu_custom_call.1} parent=27 // pred_region
          %s225 = sand.u32 %s33, 1
          %s226 = scalar_lea.sflag [#allocation3], %s225
          %s227 = sand.u32 %s33, 1
          %s228 = smul.addr %s227, 864
          %s229 = scalar_lea.vmem [#allocation2], %s228
          %s230 = smul.u32 9, %s23
          %s232 = ssub.s32 13824, 13824
          %233 = vsyncadd %s226, %s232
          %s234 = smul.addr %s230, 12
          %s235 = smul.addr %s234, 128
          %s236 = scalar_lea.hbm %s0, %s235
          %s237 = sshll.u32 %s229, 4
          %s238 = int_to_ptr.vmem [resolvable:$true] %s237
          %243 = dma.hbm_to_vmem [thread:$0]  %s236, 13824, %s238, %s226, 1536, 1536, 96
        $region32: #{tpu_custom_call.1} parent=27 // pred_fallthru
          _
      $region28: #{tpu_custom_call.1} parent=5 // pred_fallthru
        _
      %p244 = scmp.le.s32.totalorder 1, %s23
      %p245 = scmp.lt.s32.totalorder %s23, 5
      %p246 = pnand %p244, %p245
      %p247 = pneg %p246
      // Predicated region
      $region33: #{tpu_custom_call.1} parent=5 // pred_check
        _
      $region34: #{tpu_custom_call.1} parent=5 // pred_check_branch
        %249 = sbr.rel (%p246) target = $region36
      $region35: #{tpu_custom_call.1} parent=5 // pred_region
        %s250 = ssub.s32 %s23, 1
        %s251 = sand.u32 %s36, 1
        %s252 = scalar_lea.sflag [#allocation3], %s251
        %s253 = sand.u32 %s36, 1
        %s254 = smul.addr %s253, 864
        %s255 = scalar_lea.vmem [#allocation2], %s254
        // Predicated region
        $region37: #{tpu_custom_call.1} parent=35 // pred_check
          %p256 = pneg %p49
        $region38: #{tpu_custom_call.1} parent=35 // pred_check_branch
          %258 = sbr.rel (%p256) target = $region40
        $region39: #{tpu_custom_call.1} parent=35 // pred_region
          %259 = dma.done %s252, 13824
        $region40: #{tpu_custom_call.1} parent=35 // pred_fallthru
          _
        // Predicated region
        $region41: #{tpu_custom_call.1} parent=35 // pred_check
          %p260 = pneg %p70
        $region42: #{tpu_custom_call.1} parent=35 // pred_check_branch
          %262 = sbr.rel (%p260) target = $region44
        $region43: #{tpu_custom_call.1} parent=35 // pred_region
          %263 = dma.done [#allocation6], 73728
        $region44: #{tpu_custom_call.1} parent=35 // pred_fallthru
          _
        // Predicated region
        $region45: #{tpu_custom_call.1} parent=35 // pred_check
          %p264 = pneg %p91
        $region46: #{tpu_custom_call.1} parent=35 // pred_check_branch
          %266 = sbr.rel (%p264) target = $region48
        $region47: #{tpu_custom_call.1} parent=35 // pred_region
          %267 = dma.done [#allocation6], 18432
        $region48: #{tpu_custom_call.1} parent=35 // pred_fallthru
          _
        // Predicated region
        $region49: #{tpu_custom_call.1} parent=35 // pred_check
          %p268 = pneg %p112
        $region50: #{tpu_custom_call.1} parent=35 // pred_check_branch
          %270 = sbr.rel (%p268) target = $region52
        $region51: #{tpu_custom_call.1} parent=35 // pred_region
          %271 = dma.done [#allocation9], 9216
        $region52: #{tpu_custom_call.1} parent=35 // pred_fallthru
          _
        %s272 = sand.u32 %s36, 1
        %s273 = scalar_lea.sflag [#allocation3], %s272
        %s274 = sand.u32 %s36, 1
        %s275 = smul.addr %s274, 864
        %s276 = scalar_lea.vmem [#allocation2], %s275
        %p277 = pneg %p49
        %p278 = pneg %p46
        %p279 = pneg %p70
        %p280 = pneg %p67
        %p281 = pneg %p91
        %p282 = pneg %p88
        %p283 = pneg %p112
        %p284 = pneg %p109
        %p285 = pneg %p138
        %p286 = pneg %p135
        %s287 = sand.u32 %s125, 1
        %s288 = scalar_lea.sflag [#allocation4], %s287
        %s289 = sand.u32 %s125, 1
        %s290 = smul.addr %s289, 108
        %s291 = scalar_lea.vmem [#allocation10], %s290
        %p292 = pneg %p164
        %p293 = pneg %p161
        %s294 = sand.u32 %s151, 1
        %s295 = scalar_lea.sflag [#allocation12], %s294
        %s296 = sand.u32 %s151, 1
        %s297 = smul.addr %s296, 108
        %s298 = scalar_lea.vmem [#allocation11], %s297
        %s299 = smul.u32 9, %s28
        %s300 = smul.u32 9, %s28
        %s301 = smul.u32 9, %s28
        %v303 = vld [vmem:[%s255] sm:$0xff]
        %v304 = vld [vmem:[%s255 + $0x8] sm:$0xff]
        %v305 = vld [vmem:[%s255 + $0x10] sm:$0xff]
        %v306 = vld [vmem:[%s255 + $0x18] sm:$0xff]
        %v307 = vld [vmem:[%s255 + $0x20] sm:$0xff]
        %v308 = vld [vmem:[%s255 + $0x28] sm:$0xff]
        %v309 = vld [vmem:[%s255 + $0x30] sm:$0xff]
        %v310 = vld [vmem:[%s255 + $0x38] sm:$0xff]
        %v311 = vld [vmem:[%s255 + $0x40] sm:$0xff]
        %v312 = vld [vmem:[%s255 + $0x48] sm:$0xff]
        %v313 = vld [vmem:[%s255 + $0x50] sm:$0xff]
        %v314 = vld [vmem:[%s255 + $0x58] sm:$0xff]
        %v315 = vld [vmem:[%s255 + $0x60] sm:$0xff]
        %v316 = vld [vmem:[%s255 + $0x68] sm:$0xff]
        %v317 = vld [vmem:[%s255 + $0x70] sm:$0xff]
        %v318 = vld [vmem:[%s255 + $0x78] sm:$0xff]
        %v319 = vld [vmem:[%s255 + $0x80] sm:$0xff]
        %v320 = vld [vmem:[%s255 + $0x88] sm:$0xff]
        %v321 = vld [vmem:[%s255 + $0x90] sm:$0xff]
        %v322 = vld [vmem:[%s255 + $0x98] sm:$0xff]
        %v323 = vld [vmem:[%s255 + $0xa0] sm:$0xff]
        %v324 = vld [vmem:[%s255 + $0xa8] sm:$0xff]
        %v325 = vld [vmem:[%s255 + $0xb0] sm:$0xff]
        %v326 = vld [vmem:[%s255 + $0xb8] sm:$0xff]
        %v327 = vld [vmem:[%s255 + $0xc0] sm:$0xff]
        %v328 = vld [vmem:[%s255 + $0xc8] sm:$0xff]
        %v329 = vld [vmem:[%s255 + $0xd0] sm:$0xff]
        %v330 = vld [vmem:[%s255 + $0xd8] sm:$0xff]
        %v331 = vld [vmem:[%s255 + $0xe0] sm:$0xff]
        %v332 = vld [vmem:[%s255 + $0xe8] sm:$0xff]
        %v333 = vld [vmem:[%s255 + $0xf0] sm:$0xff]
        %v334 = vld [vmem:[%s255 + $0xf8] sm:$0xff]
        %v335 = vld [vmem:[%s255 + $0x100] sm:$0xff]
        %v336 = vld [vmem:[%s255 + $0x108] sm:$0xff]
        %v337 = vld [vmem:[%s255 + $0x110] sm:$0xff]
        %v338 = vld [vmem:[%s255 + $0x118] sm:$0xff]
        %v339 = vld [vmem:[%s255 + $0x120] sm:$0xff]
        %v340 = vld [vmem:[%s255 + $0x128] sm:$0xff]
        %v341 = vld [vmem:[%s255 + $0x130] sm:$0xff]
        %v342 = vld [vmem:[%s255 + $0x138] sm:$0xff]
        %v343 = vld [vmem:[%s255 + $0x140] sm:$0xff]
        %v344 = vld [vmem:[%s255 + $0x148] sm:$0xff]
        %v345 = vld [vmem:[%s255 + $0x150] sm:$0xff]
        %v346 = vld [vmem:[%s255 + $0x158] sm:$0xff]
        %v347 = vld [vmem:[%s255 + $0x160] sm:$0xff]
        %v348 = vld [vmem:[%s255 + $0x168] sm:$0xff]
        %v349 = vld [vmem:[%s255 + $0x170] sm:$0xff]
        %v350 = vld [vmem:[%s255 + $0x178] sm:$0xff]
        %v351 = vld [vmem:[%s255 + $0x180] sm:$0xff]
        %v352 = vld [vmem:[%s255 + $0x188] sm:$0xff]
        %v353 = vld [vmem:[%s255 + $0x190] sm:$0xff]
        %v354 = vld [vmem:[%s255 + $0x198] sm:$0xff]
        %v355 = vld [vmem:[%s255 + $0x1a0] sm:$0xff]
        %v356 = vld [vmem:[%s255 + $0x1a8] sm:$0xff]
        %v357 = vld [vmem:[%s255 + $0x1b0] sm:$0xff]
        %v358 = vld [vmem:[%s255 + $0x1b8] sm:$0xff]
        %v359 = vld [vmem:[%s255 + $0x1c0] sm:$0xff]
        %v360 = vld [vmem:[%s255 + $0x1c8] sm:$0xff]
        %v361 = vld [vmem:[%s255 + $0x1d0] sm:$0xff]
        %v362 = vld [vmem:[%s255 + $0x1d8] sm:$0xff]
        %v363 = vld [vmem:[%s255 + $0x1e0] sm:$0xff]
        %v364 = vld [vmem:[%s255 + $0x1e8] sm:$0xff]
        %v365 = vld [vmem:[%s255 + $0x1f0] sm:$0xff]
        %v366 = vld [vmem:[%s255 + $0x1f8] sm:$0xff]
        %v367 = vld [vmem:[%s255 + $0x200] sm:$0xff]
        %v368 = vld [vmem:[%s255 + $0x208] sm:$0xff]
        %v369 = vld [vmem:[%s255 + $0x210] sm:$0xff]
        %v370 = vld [vmem:[%s255 + $0x218] sm:$0xff]
        %v371 = vld [vmem:[%s255 + $0x220] sm:$0xff]
        %v372 = vld [vmem:[%s255 + $0x228] sm:$0xff]
        %v373 = vld [vmem:[%s255 + $0x230] sm:$0xff]
        %v374 = vld [vmem:[%s255 + $0x238] sm:$0xff]
        %v375 = vld [vmem:[%s255 + $0x240] sm:$0xff]
        %v376 = vld [vmem:[%s255 + $0x248] sm:$0xff]
        %v377 = vld [vmem:[%s255 + $0x250] sm:$0xff]
        %v378 = vld [vmem:[%s255 + $0x258] sm:$0xff]
        %v379 = vld [vmem:[%s255 + $0x260] sm:$0xff]
        %v380 = vld [vmem:[%s255 + $0x268] sm:$0xff]
        %v381 = vld [vmem:[%s255 + $0x270] sm:$0xff]
        %v382 = vld [vmem:[%s255 + $0x278] sm:$0xff]
        %v383 = vld [vmem:[%s255 + $0x280] sm:$0xff]
        %v384 = vld [vmem:[%s255 + $0x288] sm:$0xff]
        %v385 = vld [vmem:[%s255 + $0x290] sm:$0xff]
        %v386 = vld [vmem:[%s255 + $0x298] sm:$0xff]
        %v387 = vld [vmem:[%s255 + $0x2a0] sm:$0xff]
        %v388 = vld [vmem:[%s255 + $0x2a8] sm:$0xff]
        %v389 = vld [vmem:[%s255 + $0x2b0] sm:$0xff]
        %v390 = vld [vmem:[%s255 + $0x2b8] sm:$0xff]
        %v391 = vld [vmem:[%s255 + $0x2c0] sm:$0xff]
        %v392 = vld [vmem:[%s255 + $0x2c8] sm:$0xff]
        %v393 = vld [vmem:[%s255 + $0x2d0] sm:$0xff]
        %v394 = vld [vmem:[%s255 + $0x2d8] sm:$0xff]
        %v395 = vld [vmem:[%s255 + $0x2e0] sm:$0xff]
        %v396 = vld [vmem:[%s255 + $0x2e8] sm:$0xff]
        %v397 = vld [vmem:[%s255 + $0x2f0] sm:$0xff]
        %v398 = vld [vmem:[%s255 + $0x2f8] sm:$0xff]
        %v399 = vld [vmem:[%s255 + $0x300] sm:$0xff]
        %v400 = vld [vmem:[%s255 + $0x308] sm:$0xff]
        %v401 = vld [vmem:[%s255 + $0x310] sm:$0xff]
        %v402 = vld [vmem:[%s255 + $0x318] sm:$0xff]
        %v403 = vld [vmem:[%s255 + $0x320] sm:$0xff]
        %v404 = vld [vmem:[%s255 + $0x328] sm:$0xff]
        %v405 = vld [vmem:[%s255 + $0x330] sm:$0xff]
        %v406 = vld [vmem:[%s255 + $0x338] sm:$0xff]
        %v407 = vld [vmem:[%s255 + $0x340] sm:$0xff]
        %v408 = vld [vmem:[%s255 + $0x348] sm:$0xff]
        %v409 = vld [vmem:[%s255 + $0x350] sm:$0xff]
        %v410 = vld [vmem:[%s255 + $0x358] sm:$0xff]
        %v411 = vpack.c.bf16 %v315, %v303
        %v412 = vpack.c.bf16 %v316, %v304
        %v413 = vpack.c.bf16 %v317, %v305
        %v414 = vpack.c.bf16 %v318, %v306
        %v415 = vpack.c.bf16 %v319, %v307
        %v416 = vpack.c.bf16 %v320, %v308
        %v417 = vpack.c.bf16 %v321, %v309
        %v418 = vpack.c.bf16 %v322, %v310
        %v419 = vpack.c.bf16 %v323, %v311
        %v420 = vpack.c.bf16 %v324, %v312
        %v421 = vpack.c.bf16 %v325, %v313
        %v422 = vpack.c.bf16 %v326, %v314
        %v423 = vpack.c.bf16 %v339, %v327
        %v424 = vpack.c.bf16 %v340, %v328
        %v425 = vpack.c.bf16 %v341, %v329
        %v426 = vpack.c.bf16 %v342, %v330
        %v427 = vpack.c.bf16 %v343, %v331
        %v428 = vpack.c.bf16 %v344, %v332
        %v429 = vpack.c.bf16 %v345, %v333
        %v430 = vpack.c.bf16 %v346, %v334
        %v431 = vpack.c.bf16 %v347, %v335
        %v432 = vpack.c.bf16 %v348, %v336
        %v433 = vpack.c.bf16 %v349, %v337
        %v434 = vpack.c.bf16 %v350, %v338
        %v435 = vpack.c.bf16 %v363, %v351
        %v436 = vpack.c.bf16 %v364, %v352
        %v437 = vpack.c.bf16 %v365, %v353
        %v438 = vpack.c.bf16 %v366, %v354
        %v439 = vpack.c.bf16 %v367, %v355
        %v440 = vpack.c.bf16 %v368, %v356
        %v441 = vpack.c.bf16 %v369, %v357
        %v442 = vpack.c.bf16 %v370, %v358
        %v443 = vpack.c.bf16 %v371, %v359
        %v444 = vpack.c.bf16 %v372, %v360
        %v445 = vpack.c.bf16 %v373, %v361
        %v446 = vpack.c.bf16 %v374, %v362
        %v447 = vpack.c.bf16 %v387, %v375
        %v448 = vpack.c.bf16 %v388, %v376
        %v449 = vpack.c.bf16 %v389, %v377
        %v450 = vpack.c.bf16 %v390, %v378
        %v451 = vpack.c.bf16 %v391, %v379
        %v452 = vpack.c.bf16 %v392, %v380
        %v453 = vpack.c.bf16 %v393, %v381
        %v454 = vpack.c.bf16 %v394, %v382
        %v455 = vpack.c.bf16 %v395, %v383
        %v456 = vpack.c.bf16 %v396, %v384
        %v457 = vpack.c.bf16 %v397, %v385
        %v458 = vpack.c.bf16 %v398, %v386
        %v459 = vpack.c.bf16 %v399, %v399
        %v460 = vpack.c.bf16 %v400, %v400
        %v461 = vpack.c.bf16 %v401, %v401
        %v462 = vpack.c.bf16 %v402, %v402
        %v463 = vpack.c.bf16 %v403, %v403
        %v464 = vpack.c.bf16 %v404, %v404
        %v465 = vpack.c.bf16 %v405, %v405
        %v466 = vpack.c.bf16 %v406, %v406
        %v467 = vpack.c.bf16 %v407, %v407
        %v468 = vpack.c.bf16 %v408, %v408
        %v469 = vpack.c.bf16 %v409, %v409
        %v470 = vpack.c.bf16 %v410, %v410
        %v471 = vld [vmem:[#allocation5] sm:$0xff]
        %v472 = vld [vmem:[#allocation5 + $0x8] sm:$0xff]
        %v473 = vld [vmem:[#allocation5 + $0x10] sm:$0xff]
        %v474 = vld [vmem:[#allocation5 + $0x18] sm:$0xff]
        %v475 = vld [vmem:[#allocation5 + $0x20] sm:$0xff]
        %v476 = vld [vmem:[#allocation5 + $0x28] sm:$0xff]
        %v477 = vld [vmem:[#allocation5 + $0x30] sm:$0xff]
        %v478 = vld [vmem:[#allocation5 + $0x38] sm:$0xff]
        %v479 = vld [vmem:[#allocation5 + $0x40] sm:$0xff]
        %v480 = vld [vmem:[#allocation5 + $0x48] sm:$0xff]
        %v481 = vld [vmem:[#allocation5 + $0x50] sm:$0xff]
        %v482 = vld [vmem:[#allocation5 + $0x58] sm:$0xff]
        %v483 = vld [vmem:[#allocation5 + $0x60] sm:$0xff]
        %v484 = vld [vmem:[#allocation5 + $0x68] sm:$0xff]
        %v485 = vld [vmem:[#allocation5 + $0x70] sm:$0xff]
        %v486 = vld [vmem:[#allocation5 + $0x78] sm:$0xff]
        %v487 = vld [vmem:[#allocation5 + $0x80] sm:$0xff]
        %v488 = vld [vmem:[#allocation5 + $0x88] sm:$0xff]
        %v489 = vld [vmem:[#allocation5 + $0x90] sm:$0xff]
        %v490 = vld [vmem:[#allocation5 + $0x98] sm:$0xff]
        %v491 = vld [vmem:[#allocation5 + $0xa0] sm:$0xff]
        %v492 = vld [vmem:[#allocation5 + $0xa8] sm:$0xff]
        %v493 = vld [vmem:[#allocation5 + $0xb0] sm:$0xff]
        %v494 = vld [vmem:[#allocation5 + $0xb8] sm:$0xff]
        %v495 = vld [vmem:[#allocation5 + $0xc0] sm:$0xff]
        %v496 = vld [vmem:[#allocation5 + $0xc8] sm:$0xff]
        %v497 = vld [vmem:[#allocation5 + $0xd0] sm:$0xff]
        %v498 = vld [vmem:[#allocation5 + $0xd8] sm:$0xff]
        %v499 = vld [vmem:[#allocation5 + $0xe0] sm:$0xff]
        %v500 = vld [vmem:[#allocation5 + $0xe8] sm:$0xff]
        %v501 = vld [vmem:[#allocation5 + $0xf0] sm:$0xff]
        %v502 = vld [vmem:[#allocation5 + $0xf8] sm:$0xff]
        %v503 = vld [vmem:[#allocation5 + $0x100] sm:$0xff]
        %v504 = vld [vmem:[#allocation5 + $0x108] sm:$0xff]
        %v505 = vld [vmem:[#allocation5 + $0x110] sm:$0xff]
        %v506 = vld [vmem:[#allocation5 + $0x118] sm:$0xff]
        %v507 = vld [vmem:[#allocation5 + $0x120] sm:$0xff]
        %v508 = vld [vmem:[#allocation5 + $0x128] sm:$0xff]
        %v509 = vld [vmem:[#allocation5 + $0x130] sm:$0xff]
        %v510 = vld [vmem:[#allocation5 + $0x138] sm:$0xff]
        %v511 = vld [vmem:[#allocation5 + $0x140] sm:$0xff]
        %v512 = vld [vmem:[#allocation5 + $0x148] sm:$0xff]
        %v513 = vld [vmem:[#allocation5 + $0x150] sm:$0xff]
        %v514 = vld [vmem:[#allocation5 + $0x158] sm:$0xff]
        %v515 = vld [vmem:[#allocation5 + $0x160] sm:$0xff]
        %v516 = vld [vmem:[#allocation5 + $0x168] sm:$0xff]
        %v517 = vld [vmem:[#allocation5 + $0x170] sm:$0xff]
        %v518 = vld [vmem:[#allocation5 + $0x178] sm:$0xff]
        %v519 = vld [vmem:[#allocation5 + $0x180] sm:$0xff]
        %v520 = vld [vmem:[#allocation5 + $0x188] sm:$0xff]
        %v521 = vld [vmem:[#allocation5 + $0x190] sm:$0xff]
        %v522 = vld [vmem:[#allocation5 + $0x198] sm:$0xff]
        %v523 = vld [vmem:[#allocation5 + $0x1a0] sm:$0xff]
        %v524 = vld [vmem:[#allocation5 + $0x1a8] sm:$0xff]
        %v525 = vld [vmem:[#allocation5 + $0x1b0] sm:$0xff]
        %v526 = vld [vmem:[#allocation5 + $0x1b8] sm:$0xff]
        %v527 = vld [vmem:[#allocation5 + $0x1c0] sm:$0xff]
        %v528 = vld [vmem:[#allocation5 + $0x1c8] sm:$0xff]
        %v529 = vld [vmem:[#allocation5 + $0x1d0] sm:$0xff]
        %v530 = vld [vmem:[#allocation5 + $0x1d8] sm:$0xff]
        %v531 = vld [vmem:[#allocation5 + $0x1e0] sm:$0xff]
        %v532 = vld [vmem:[#allocation5 + $0x1e8] sm:$0xff]
        %v533 = vld [vmem:[#allocation5 + $0x1f0] sm:$0xff]
        %v534 = vld [vmem:[#allocation5 + $0x1f8] sm:$0xff]
        %v535 = vld [vmem:[#allocation5 + $0x200] sm:$0xff]
        %v536 = vld [vmem:[#allocation5 + $0x208] sm:$0xff]
        %v537 = vld [vmem:[#allocation5 + $0x210] sm:$0xff]
        %v538 = vld [vmem:[#allocation5 + $0x218] sm:$0xff]
        %v539 = vld [vmem:[#allocation5 + $0x220] sm:$0xff]
        %v540 = vld [vmem:[#allocation5 + $0x228] sm:$0xff]
        %v541 = vld [vmem:[#allocation5 + $0x230] sm:$0xff]
        %v542 = vld [vmem:[#allocation5 + $0x238] sm:$0xff]
        %v543 = vld [vmem:[#allocation5 + $0x240] sm:$0xff]
        %v544 = vld [vmem:[#allocation5 + $0x248] sm:$0xff]
        %v545 = vld [vmem:[#allocation5 + $0x250] sm:$0xff]
        %v546 = vld [vmem:[#allocation5 + $0x258] sm:$0xff]
        %v547 = vld [vmem:[#allocation5 + $0x260] sm:$0xff]
        %v548 = vld [vmem:[#allocation5 + $0x268] sm:$0xff]
        %v549 = vld [vmem:[#allocation5 + $0x270] sm:$0xff]
        %v550 = vld [vmem:[#allocation5 + $0x278] sm:$0xff]
        %v551 = vld [vmem:[#allocation5 + $0x280] sm:$0xff]
        %v552 = vld [vmem:[#allocation5 + $0x288] sm:$0xff]
        %v553 = vld [vmem:[#allocation5 + $0x290] sm:$0xff]
        %v554 = vld [vmem:[#allocation5 + $0x298] sm:$0xff]
        %v555 = vld [vmem:[#allocation5 + $0x2a0] sm:$0xff]
        %v556 = vld [vmem:[#allocation5 + $0x2a8] sm:$0xff]
        %v557 = vld [vmem:[#allocation5 + $0x2b0] sm:$0xff]
        %v558 = vld [vmem:[#allocation5 + $0x2b8] sm:$0xff]
        %v559 = vld [vmem:[#allocation5 + $0x2c0] sm:$0xff]
        %v560 = vld [vmem:[#allocation5 + $0x2c8] sm:$0xff]
        %v561 = vld [vmem:[#allocation5 + $0x2d0] sm:$0xff]
        %v562 = vld [vmem:[#allocation5 + $0x2d8] sm:$0xff]
        %v563 = vld [vmem:[#allocation5 + $0x2e0] sm:$0xff]
        %v564 = vld [vmem:[#allocation5 + $0x2e8] sm:$0xff]
        %v565 = vld [vmem:[#allocation5 + $0x2f0] sm:$0xff]
        %v566 = vld [vmem:[#allocation5 + $0x2f8] sm:$0xff]
        %v567 = vld [vmem:[#allocation5 + $0x300] sm:$0xff]
        %v568 = vld [vmem:[#allocation5 + $0x308] sm:$0xff]
        %v569 = vld [vmem:[#allocation5 + $0x310] sm:$0xff]
        %v570 = vld [vmem:[#allocation5 + $0x318] sm:$0xff]
        %v571 = vld [vmem:[#allocation5 + $0x320] sm:$0xff]
        %v572 = vld [vmem:[#allocation5 + $0x328] sm:$0xff]
        %v573 = vld [vmem:[#allocation5 + $0x330] sm:$0xff]
        %v574 = vld [vmem:[#allocation5 + $0x338] sm:$0xff]
        %v575 = vld [vmem:[#allocation5 + $0x340] sm:$0xff]
        %v576 = vld [vmem:[#allocation5 + $0x348] sm:$0xff]
        %v577 = vld [vmem:[#allocation5 + $0x350] sm:$0xff]
        %v578 = vld [vmem:[#allocation5 + $0x358] sm:$0xff]
        %v579 = vld [vmem:[#allocation5 + $0x360] sm:$0xff]
        %v580 = vld [vmem:[#allocation5 + $0x368] sm:$0xff]
        %v581 = vld [vmem:[#allocation5 + $0x370] sm:$0xff]
        %v582 = vld [vmem:[#allocation5 + $0x378] sm:$0xff]
        %v583 = vld [vmem:[#allocation5 + $0x380] sm:$0xff]
        %v584 = vld [vmem:[#allocation5 + $0x388] sm:$0xff]
        %v585 = vld [vmem:[#allocation5 + $0x390] sm:$0xff]
        %v586 = vld [vmem:[#allocation5 + $0x398] sm:$0xff]
        %v587 = vld [vmem:[#allocation5 + $0x3a0] sm:$0xff]
        %v588 = vld [vmem:[#allocation5 + $0x3a8] sm:$0xff]
        %v589 = vld [vmem:[#allocation5 + $0x3b0] sm:$0xff]
        %v590 = vld [vmem:[#allocation5 + $0x3b8] sm:$0xff]
        %v591 = vld [vmem:[#allocation5 + $0x3c0] sm:$0xff]
        %v592 = vld [vmem:[#allocation5 + $0x3c8] sm:$0xff]
        %v593 = vld [vmem:[#allocation5 + $0x3d0] sm:$0xff]
        %v594 = vld [vmem:[#allocation5 + $0x3d8] sm:$0xff]
        %v595 = vld [vmem:[#allocation5 + $0x3e0] sm:$0xff]
        %v596 = vld [vmem:[#allocation5 + $0x3e8] sm:$0xff]
        %v597 = vld [vmem:[#allocation5 + $0x3f0] sm:$0xff]
        %v598 = vld [vmem:[#allocation5 + $0x3f8] sm:$0xff]
        %v599 = vld [vmem:[#allocation5 + $0x400] sm:$0xff]
        %v600 = vld [vmem:[#allocation5 + $0x408] sm:$0xff]
        %v601 = vld [vmem:[#allocation5 + $0x410] sm:$0xff]
        %v602 = vld [vmem:[#allocation5 + $0x418] sm:$0xff]
        %v603 = vld [vmem:[#allocation5 + $0x420] sm:$0xff]
        %v604 = vld [vmem:[#allocation5 + $0x428] sm:$0xff]
        %v605 = vld [vmem:[#allocation5 + $0x430] sm:$0xff]
        %v606 = vld [vmem:[#allocation5 + $0x438] sm:$0xff]
        %v607 = vld [vmem:[#allocation5 + $0x440] sm:$0xff]
        %v608 = vld [vmem:[#allocation5 + $0x448] sm:$0xff]
        %v609 = vld [vmem:[#allocation5 + $0x450] sm:$0xff]
        %v610 = vld [vmem:[#allocation5 + $0x458] sm:$0xff]
        %v611 = vld [vmem:[#allocation5 + $0x460] sm:$0xff]
        %v612 = vld [vmem:[#allocation5 + $0x468] sm:$0xff]
        %v613 = vld [vmem:[#allocation5 + $0x470] sm:$0xff]
        %v614 = vld [vmem:[#allocation5 + $0x478] sm:$0xff]
        %v615 = vld [vmem:[#allocation5 + $0x480] sm:$0xff]
        %v616 = vld [vmem:[#allocation5 + $0x488] sm:$0xff]
        %v617 = vld [vmem:[#allocation5 + $0x490] sm:$0xff]
        %v618 = vld [vmem:[#allocation5 + $0x498] sm:$0xff]
        %v619 = vld [vmem:[#allocation5 + $0x4a0] sm:$0xff]
        %v620 = vld [vmem:[#allocation5 + $0x4a8] sm:$0xff]
        %v621 = vld [vmem:[#allocation5 + $0x4b0] sm:$0xff]
        %v622 = vld [vmem:[#allocation5 + $0x4b8] sm:$0xff]
        %v623 = vld [vmem:[#allocation5 + $0x4c0] sm:$0xff]
        %v624 = vld [vmem:[#allocation5 + $0x4c8] sm:$0xff]
        %v625 = vld [vmem:[#allocation5 + $0x4d0] sm:$0xff]
        %v626 = vld [vmem:[#allocation5 + $0x4d8] sm:$0xff]
        %v627 = vld [vmem:[#allocation5 + $0x4e0] sm:$0xff]
        %v628 = vld [vmem:[#allocation5 + $0x4e8] sm:$0xff]
        %v629 = vld [vmem:[#allocation5 + $0x4f0] sm:$0xff]
        %v630 = vld [vmem:[#allocation5 + $0x4f8] sm:$0xff]
        %v631 = vld [vmem:[#allocation5 + $0x500] sm:$0xff]
        %v632 = vld [vmem:[#allocation5 + $0x508] sm:$0xff]
        %v633 = vld [vmem:[#allocation5 + $0x510] sm:$0xff]
        %v634 = vld [vmem:[#allocation5 + $0x518] sm:$0xff]
        %v635 = vld [vmem:[#allocation5 + $0x520] sm:$0xff]
        %v636 = vld [vmem:[#allocation5 + $0x528] sm:$0xff]
        %v637 = vld [vmem:[#allocation5 + $0x530] sm:$0xff]
        %v638 = vld [vmem:[#allocation5 + $0x538] sm:$0xff]
        %v639 = vld [vmem:[#allocation5 + $0x540] sm:$0xff]
        %v640 = vld [vmem:[#allocation5 + $0x548] sm:$0xff]
        %v641 = vld [vmem:[#allocation5 + $0x550] sm:$0xff]
        %v642 = vld [vmem:[#allocation5 + $0x558] sm:$0xff]
        %v643 = vld [vmem:[#allocation5 + $0x560] sm:$0xff]
        %v644 = vld [vmem:[#allocation5 + $0x568] sm:$0xff]
        %v645 = vld [vmem:[#allocation5 + $0x570] sm:$0xff]
        %v646 = vld [vmem:[#allocation5 + $0x578] sm:$0xff]
        %v647 = vld [vmem:[#allocation5 + $0x580] sm:$0xff]
        %v648 = vld [vmem:[#allocation5 + $0x588] sm:$0xff]
        %v649 = vld [vmem:[#allocation5 + $0x590] sm:$0xff]
        %v650 = vld [vmem:[#allocation5 + $0x598] sm:$0xff]
        %v651 = vld [vmem:[#allocation5 + $0x5a0] sm:$0xff]
        %v652 = vld [vmem:[#allocation5 + $0x5a8] sm:$0xff]
        %v653 = vld [vmem:[#allocation5 + $0x5b0] sm:$0xff]
        %v654 = vld [vmem:[#allocation5 + $0x5b8] sm:$0xff]
        %v655 = vld [vmem:[#allocation5 + $0x5c0] sm:$0xff]
        %v656 = vld [vmem:[#allocation5 + $0x5c8] sm:$0xff]
        %v657 = vld [vmem:[#allocation5 + $0x5d0] sm:$0xff]
        %v658 = vld [vmem:[#allocation5 + $0x5d8] sm:$0xff]
        %v659 = vld [vmem:[#allocation5 + $0x5e0] sm:$0xff]
        %v660 = vld [vmem:[#allocation5 + $0x5e8] sm:$0xff]
        %v661 = vld [vmem:[#allocation5 + $0x5f0] sm:$0xff]
        %v662 = vld [vmem:[#allocation5 + $0x5f8] sm:$0xff]
        %v663 = vld [vmem:[#allocation5 + $0x600] sm:$0xff]
        %v664 = vld [vmem:[#allocation5 + $0x608] sm:$0xff]
        %v665 = vld [vmem:[#allocation5 + $0x610] sm:$0xff]
        %v666 = vld [vmem:[#allocation5 + $0x618] sm:$0xff]
        %v667 = vld [vmem:[#allocation5 + $0x620] sm:$0xff]
        %v668 = vld [vmem:[#allocation5 + $0x628] sm:$0xff]
        %v669 = vld [vmem:[#allocation5 + $0x630] sm:$0xff]
        %v670 = vld [vmem:[#allocation5 + $0x638] sm:$0xff]
        %v671 = vld [vmem:[#allocation5 + $0x640] sm:$0xff]
        %v672 = vld [vmem:[#allocation5 + $0x648] sm:$0xff]
        %v673 = vld [vmem:[#allocation5 + $0x650] sm:$0xff]
        %v674 = vld [vmem:[#allocation5 + $0x658] sm:$0xff]
        %v675 = vld [vmem:[#allocation5 + $0x660] sm:$0xff]
        %v676 = vld [vmem:[#allocation5 + $0x668] sm:$0xff]
        %v677 = vld [vmem:[#allocation5 + $0x670] sm:$0xff]
        %v678 = vld [vmem:[#allocation5 + $0x678] sm:$0xff]
        %v679 = vld [vmem:[#allocation5 + $0x680] sm:$0xff]
        %v680 = vld [vmem:[#allocation5 + $0x688] sm:$0xff]
        %v681 = vld [vmem:[#allocation5 + $0x690] sm:$0xff]
        %v682 = vld [vmem:[#allocation5 + $0x698] sm:$0xff]
        %v683 = vld [vmem:[#allocation5 + $0x6a0] sm:$0xff]
        %v684 = vld [vmem:[#allocation5 + $0x6a8] sm:$0xff]
        %v685 = vld [vmem:[#allocation5 + $0x6b0] sm:$0xff]
        %v686 = vld [vmem:[#allocation5 + $0x6b8] sm:$0xff]
        %v687 = vld [vmem:[#allocation5 + $0x6c0] sm:$0xff]
        %v688 = vld [vmem:[#allocation5 + $0x6c8] sm:$0xff]
        %v689 = vld [vmem:[#allocation5 + $0x6d0] sm:$0xff]
        %v690 = vld [vmem:[#allocation5 + $0x6d8] sm:$0xff]
        %v691 = vld [vmem:[#allocation5 + $0x6e0] sm:$0xff]
        %v692 = vld [vmem:[#allocation5 + $0x6e8] sm:$0xff]
        %v693 = vld [vmem:[#allocation5 + $0x6f0] sm:$0xff]
        %v694 = vld [vmem:[#allocation5 + $0x6f8] sm:$0xff]
        %v695 = vld [vmem:[#allocation5 + $0x700] sm:$0xff]
        %v696 = vld [vmem:[#allocation5 + $0x708] sm:$0xff]
        %v697 = vld [vmem:[#allocation5 + $0x710] sm:$0xff]
        %v698 = vld [vmem:[#allocation5 + $0x718] sm:$0xff]
        %v699 = vld [vmem:[#allocation5 + $0x720] sm:$0xff]
        %v700 = vld [vmem:[#allocation5 + $0x728] sm:$0xff]
        %v701 = vld [vmem:[#allocation5 + $0x730] sm:$0xff]
        %v702 = vld [vmem:[#allocation5 + $0x738] sm:$0xff]
        %v703 = vld [vmem:[#allocation5 + $0x740] sm:$0xff]
        %v704 = vld [vmem:[#allocation5 + $0x748] sm:$0xff]
        %v705 = vld [vmem:[#allocation5 + $0x750] sm:$0xff]
        %v706 = vld [vmem:[#allocation5 + $0x758] sm:$0xff]
        %v707 = vld [vmem:[#allocation5 + $0x760] sm:$0xff]
        %v708 = vld [vmem:[#allocation5 + $0x768] sm:$0xff]
        %v709 = vld [vmem:[#allocation5 + $0x770] sm:$0xff]
        %v710 = vld [vmem:[#allocation5 + $0x778] sm:$0xff]
        %v711 = vld [vmem:[#allocation5 + $0x780] sm:$0xff]
        %v712 = vld [vmem:[#allocation5 + $0x788] sm:$0xff]
        %v713 = vld [vmem:[#allocation5 + $0x790] sm:$0xff]
        %v714 = vld [vmem:[#allocation5 + $0x798] sm:$0xff]
        %v715 = vld [vmem:[#allocation5 + $0x7a0] sm:$0xff]
        %v716 = vld [vmem:[#allocation5 + $0x7a8] sm:$0xff]
        %v717 = vld [vmem:[#allocation5 + $0x7b0] sm:$0xff]
        %v718 = vld [vmem:[#allocation5 + $0x7b8] sm:$0xff]
        %v719 = vld [vmem:[#allocation5 + $0x7c0] sm:$0xff]
        %v720 = vld [vmem:[#allocation5 + $0x7c8] sm:$0xff]
        %v721 = vld [vmem:[#allocation5 + $0x7d0] sm:$0xff]
        %v722 = vld [vmem:[#allocation5 + $0x7d8] sm:$0xff]
        %v723 = vld [vmem:[#allocation5 + $0x7e0] sm:$0xff]
        %v724 = vld [vmem:[#allocation5 + $0x7e8] sm:$0xff]
        %v725 = vld [vmem:[#allocation5 + $0x7f0] sm:$0xff]
        %v726 = vld [vmem:[#allocation5 + $0x7f8] sm:$0xff]
        %v727 = vld [vmem:[#allocation5 + $0x800] sm:$0xff]
        %v728 = vld [vmem:[#allocation5 + $0x808] sm:$0xff]
        %v729 = vld [vmem:[#allocation5 + $0x810] sm:$0xff]
        %v730 = vld [vmem:[#allocation5 + $0x818] sm:$0xff]
        %v731 = vld [vmem:[#allocation5 + $0x820] sm:$0xff]
        %v732 = vld [vmem:[#allocation5 + $0x828] sm:$0xff]
        %v733 = vld [vmem:[#allocation5 + $0x830] sm:$0xff]
        %v734 = vld [vmem:[#allocation5 + $0x838] sm:$0xff]
        %v735 = vld [vmem:[#allocation5 + $0x840] sm:$0xff]
        %v736 = vld [vmem:[#allocation5 + $0x848] sm:$0xff]
        %v737 = vld [vmem:[#allocation5 + $0x850] sm:$0xff]
        %v738 = vld [vmem:[#allocation5 + $0x858] sm:$0xff]
        %v739 = vld [vmem:[#allocation5 + $0x860] sm:$0xff]
        %v740 = vld [vmem:[#allocation5 + $0x868] sm:$0xff]
        %v741 = vld [vmem:[#allocation5 + $0x870] sm:$0xff]
        %v742 = vld [vmem:[#allocation5 + $0x878] sm:$0xff]
        %v743 = vld [vmem:[#allocation5 + $0x880] sm:$0xff]
        %v744 = vld [vmem:[#allocation5 + $0x888] sm:$0xff]
        %v745 = vld [vmem:[#allocation5 + $0x890] sm:$0xff]
        %v746 = vld [vmem:[#allocation5 + $0x898] sm:$0xff]
        %v747 = vld [vmem:[#allocation5 + $0x8a0] sm:$0xff]
        %v748 = vld [vmem:[#allocation5 + $0x8a8] sm:$0xff]
        %v749 = vld [vmem:[#allocation5 + $0x8b0] sm:$0xff]
        %v750 = vld [vmem:[#allocation5 + $0x8b8] sm:$0xff]
        %v751 = vld [vmem:[#allocation5 + $0x8c0] sm:$0xff]
        %v752 = vld [vmem:[#allocation5 + $0x8c8] sm:$0xff]
        %v753 = vld [vmem:[#allocation5 + $0x8d0] sm:$0xff]
        %v754 = vld [vmem:[#allocation5 + $0x8d8] sm:$0xff]
        %v755 = vld [vmem:[#allocation5 + $0x8e0] sm:$0xff]
        %v756 = vld [vmem:[#allocation5 + $0x8e8] sm:$0xff]
        %v757 = vld [vmem:[#allocation5 + $0x8f0] sm:$0xff]
        %v758 = vld [vmem:[#allocation5 + $0x8f8] sm:$0xff]
        %v759 = vld [vmem:[#allocation5 + $0x900] sm:$0xff]
        %v760 = vld [vmem:[#allocation5 + $0x908] sm:$0xff]
        %v761 = vld [vmem:[#allocation5 + $0x910] sm:$0xff]
        %v762 = vld [vmem:[#allocation5 + $0x918] sm:$0xff]
        %v763 = vld [vmem:[#allocation5 + $0x920] sm:$0xff]
        %v764 = vld [vmem:[#allocation5 + $0x928] sm:$0xff]
        %v765 = vld [vmem:[#allocation5 + $0x930] sm:$0xff]
        %v766 = vld [vmem:[#allocation5 + $0x938] sm:$0xff]
        %v767 = vld [vmem:[#allocation5 + $0x940] sm:$0xff]
        %v768 = vld [vmem:[#allocation5 + $0x948] sm:$0xff]
        %v769 = vld [vmem:[#allocation5 + $0x950] sm:$0xff]
        %v770 = vld [vmem:[#allocation5 + $0x958] sm:$0xff]
        %v771 = vld [vmem:[#allocation5 + $0x960] sm:$0xff]
        %v772 = vld [vmem:[#allocation5 + $0x968] sm:$0xff]
        %v773 = vld [vmem:[#allocation5 + $0x970] sm:$0xff]
        %v774 = vld [vmem:[#allocation5 + $0x978] sm:$0xff]
        %v775 = vld [vmem:[#allocation5 + $0x980] sm:$0xff]
        %v776 = vld [vmem:[#allocation5 + $0x988] sm:$0xff]
        %v777 = vld [vmem:[#allocation5 + $0x990] sm:$0xff]
        %v778 = vld [vmem:[#allocation5 + $0x998] sm:$0xff]
        %v779 = vld [vmem:[#allocation5 + $0x9a0] sm:$0xff]
        %v780 = vld [vmem:[#allocation5 + $0x9a8] sm:$0xff]
        %v781 = vld [vmem:[#allocation5 + $0x9b0] sm:$0xff]
        %v782 = vld [vmem:[#allocation5 + $0x9b8] sm:$0xff]
        %v783 = vld [vmem:[#allocation5 + $0x9c0] sm:$0xff]
        %v784 = vld [vmem:[#allocation5 + $0x9c8] sm:$0xff]
        %v785 = vld [vmem:[#allocation5 + $0x9d0] sm:$0xff]
        %v786 = vld [vmem:[#allocation5 + $0x9d8] sm:$0xff]
        %v787 = vld [vmem:[#allocation5 + $0x9e0] sm:$0xff]
        %v788 = vld [vmem:[#allocation5 + $0x9e8] sm:$0xff]
        %v789 = vld [vmem:[#allocation5 + $0x9f0] sm:$0xff]
        %v790 = vld [vmem:[#allocation5 + $0x9f8] sm:$0xff]
        %v791 = vld [vmem:[#allocation5 + $0xa00] sm:$0xff]
        %v792 = vld [vmem:[#allocation5 + $0xa08] sm:$0xff]
        %v793 = vld [vmem:[#allocation5 + $0xa10] sm:$0xff]
        %v794 = vld [vmem:[#allocation5 + $0xa18] sm:$0xff]
        %v795 = vld [vmem:[#allocation5 + $0xa20] sm:$0xff]
        %v796 = vld [vmem:[#allocation5 + $0xa28] sm:$0xff]
        %v797 = vld [vmem:[#allocation5 + $0xa30] sm:$0xff]
        %v798 = vld [vmem:[#allocation5 + $0xa38] sm:$0xff]
        %v799 = vld [vmem:[#allocation5 + $0xa40] sm:$0xff]
        %v800 = vld [vmem:[#allocation5 + $0xa48] sm:$0xff]
        %v801 = vld [vmem:[#allocation5 + $0xa50] sm:$0xff]
        %v802 = vld [vmem:[#allocation5 + $0xa58] sm:$0xff]
        %v803 = vld [vmem:[#allocation5 + $0xa60] sm:$0xff]
        %v804 = vld [vmem:[#allocation5 + $0xa68] sm:$0xff]
        %v805 = vld [vmem:[#allocation5 + $0xa70] sm:$0xff]
        %v806 = vld [vmem:[#allocation5 + $0xa78] sm:$0xff]
        %v807 = vld [vmem:[#allocation5 + $0xa80] sm:$0xff]
        %v808 = vld [vmem:[#allocation5 + $0xa88] sm:$0xff]
        %v809 = vld [vmem:[#allocation5 + $0xa90] sm:$0xff]
        %v810 = vld [vmem:[#allocation5 + $0xa98] sm:$0xff]
        %v811 = vld [vmem:[#allocation5 + $0xaa0] sm:$0xff]
        %v812 = vld [vmem:[#allocation5 + $0xaa8] sm:$0xff]
        %v813 = vld [vmem:[#allocation5 + $0xab0] sm:$0xff]
        %v814 = vld [vmem:[#allocation5 + $0xab8] sm:$0xff]
        %v815 = vld [vmem:[#allocation5 + $0xac0] sm:$0xff]
        %v816 = vld [vmem:[#allocation5 + $0xac8] sm:$0xff]
        %v817 = vld [vmem:[#allocation5 + $0xad0] sm:$0xff]
        %v818 = vld [vmem:[#allocation5 + $0xad8] sm:$0xff]
        %v819 = vld [vmem:[#allocation5 + $0xae0] sm:$0xff]
        %v820 = vld [vmem:[#allocation5 + $0xae8] sm:$0xff]
        %v821 = vld [vmem:[#allocation5 + $0xaf0] sm:$0xff]
        %v822 = vld [vmem:[#allocation5 + $0xaf8] sm:$0xff]
        %v823 = vld [vmem:[#allocation5 + $0xb00] sm:$0xff]
        %v824 = vld [vmem:[#allocation5 + $0xb08] sm:$0xff]
        %v825 = vld [vmem:[#allocation5 + $0xb10] sm:$0xff]
        %v826 = vld [vmem:[#allocation5 + $0xb18] sm:$0xff]
        %v827 = vld [vmem:[#allocation5 + $0xb20] sm:$0xff]
        %v828 = vld [vmem:[#allocation5 + $0xb28] sm:$0xff]
        %v829 = vld [vmem:[#allocation5 + $0xb30] sm:$0xff]
        %v830 = vld [vmem:[#allocation5 + $0xb38] sm:$0xff]
        %v831 = vld [vmem:[#allocation5 + $0xb40] sm:$0xff]
        %v832 = vld [vmem:[#allocation5 + $0xb48] sm:$0xff]
        %v833 = vld [vmem:[#allocation5 + $0xb50] sm:$0xff]
        %v834 = vld [vmem:[#allocation5 + $0xb58] sm:$0xff]
        %v835 = vld [vmem:[#allocation5 + $0xb60] sm:$0xff]
        %v836 = vld [vmem:[#allocation5 + $0xb68] sm:$0xff]
        %v837 = vld [vmem:[#allocation5 + $0xb70] sm:$0xff]
        %v838 = vld [vmem:[#allocation5 + $0xb78] sm:$0xff]
        %v839 = vld [vmem:[#allocation5 + $0xb80] sm:$0xff]
        %v840 = vld [vmem:[#allocation5 + $0xb88] sm:$0xff]
        %v841 = vld [vmem:[#allocation5 + $0xb90] sm:$0xff]
        %v842 = vld [vmem:[#allocation5 + $0xb98] sm:$0xff]
        %v843 = vld [vmem:[#allocation5 + $0xba0] sm:$0xff]
        %v844 = vld [vmem:[#allocation5 + $0xba8] sm:$0xff]
        %v845 = vld [vmem:[#allocation5 + $0xbb0] sm:$0xff]
        %v846 = vld [vmem:[#allocation5 + $0xbb8] sm:$0xff]
        %v847 = vld [vmem:[#allocation5 + $0xbc0] sm:$0xff]
        %v848 = vld [vmem:[#allocation5 + $0xbc8] sm:$0xff]
        %v849 = vld [vmem:[#allocation5 + $0xbd0] sm:$0xff]
        %v850 = vld [vmem:[#allocation5 + $0xbd8] sm:$0xff]
        %v851 = vld [vmem:[#allocation5 + $0xbe0] sm:$0xff]
        %v852 = vld [vmem:[#allocation5 + $0xbe8] sm:$0xff]
        %v853 = vld [vmem:[#allocation5 + $0xbf0] sm:$0xff]
        %v854 = vld [vmem:[#allocation5 + $0xbf8] sm:$0xff]
        %v855 = vld [vmem:[#allocation5 + $0xc00] sm:$0xff]
        %v856 = vld [vmem:[#allocation5 + $0xc08] sm:$0xff]
        %v857 = vld [vmem:[#allocation5 + $0xc10] sm:$0xff]
        %v858 = vld [vmem:[#allocation5 + $0xc18] sm:$0xff]
        %v859 = vld [vmem:[#allocation5 + $0xc20] sm:$0xff]
        %v860 = vld [vmem:[#allocation5 + $0xc28] sm:$0xff]
        %v861 = vld [vmem:[#allocation5 + $0xc30] sm:$0xff]
        %v862 = vld [vmem:[#allocation5 + $0xc38] sm:$0xff]
        %v863 = vld [vmem:[#allocation5 + $0xc40] sm:$0xff]
        %v864 = vld [vmem:[#allocation5 + $0xc48] sm:$0xff]
        %v865 = vld [vmem:[#allocation5 + $0xc50] sm:$0xff]
        %v866 = vld [vmem:[#allocation5 + $0xc58] sm:$0xff]
        %v867 = vld [vmem:[#allocation5 + $0xc60] sm:$0xff]
        %v868 = vld [vmem:[#allocation5 + $0xc68] sm:$0xff]
        %v869 = vld [vmem:[#allocation5 + $0xc70] sm:$0xff]
        %v870 = vld [vmem:[#allocation5 + $0xc78] sm:$0xff]
        %v871 = vld [vmem:[#allocation5 + $0xc80] sm:$0xff]
        %v872 = vld [vmem:[#allocation5 + $0xc88] sm:$0xff]
        %v873 = vld [vmem:[#allocation5 + $0xc90] sm:$0xff]
        %v874 = vld [vmem:[#allocation5 + $0xc98] sm:$0xff]
        %v875 = vld [vmem:[#allocation5 + $0xca0] sm:$0xff]
        %v876 = vld [vmem:[#allocation5 + $0xca8] sm:$0xff]
        %v877 = vld [vmem:[#allocation5 + $0xcb0] sm:$0xff]
        %v878 = vld [vmem:[#allocation5 + $0xcb8] sm:$0xff]
        %v879 = vld [vmem:[#allocation5 + $0xcc0] sm:$0xff]
        %v880 = vld [vmem:[#allocation5 + $0xcc8] sm:$0xff]
        %v881 = vld [vmem:[#allocation5 + $0xcd0] sm:$0xff]
        %v882 = vld [vmem:[#allocation5 + $0xcd8] sm:$0xff]
        %v883 = vld [vmem:[#allocation5 + $0xce0] sm:$0xff]
        %v884 = vld [vmem:[#allocation5 + $0xce8] sm:$0xff]
        %v885 = vld [vmem:[#allocation5 + $0xcf0] sm:$0xff]
        %v886 = vld [vmem:[#allocation5 + $0xcf8] sm:$0xff]
        %v887 = vld [vmem:[#allocation5 + $0xd00] sm:$0xff]
        %v888 = vld [vmem:[#allocation5 + $0xd08] sm:$0xff]
        %v889 = vld [vmem:[#allocation5 + $0xd10] sm:$0xff]
        %v890 = vld [vmem:[#allocation5 + $0xd18] sm:$0xff]
        %v891 = vld [vmem:[#allocation5 + $0xd20] sm:$0xff]
        %v892 = vld [vmem:[#allocation5 + $0xd28] sm:$0xff]
        %v893 = vld [vmem:[#allocation5 + $0xd30] sm:$0xff]
        %v894 = vld [vmem:[#allocation5 + $0xd38] sm:$0xff]
        %v895 = vld [vmem:[#allocation5 + $0xd40] sm:$0xff]
        %v896 = vld [vmem:[#allocation5 + $0xd48] sm:$0xff]
        %v897 = vld [vmem:[#allocation5 + $0xd50] sm:$0xff]
        %v898 = vld [vmem:[#allocation5 + $0xd58] sm:$0xff]
        %v899 = vld [vmem:[#allocation5 + $0xd60] sm:$0xff]
        %v900 = vld [vmem:[#allocation5 + $0xd68] sm:$0xff]
        %v901 = vld [vmem:[#allocation5 + $0xd70] sm:$0xff]
        %v902 = vld [vmem:[#allocation5 + $0xd78] sm:$0xff]
        %v903 = vld [vmem:[#allocation5 + $0xd80] sm:$0xff]
        %v904 = vld [vmem:[#allocation5 + $0xd88] sm:$0xff]
        %v905 = vld [vmem:[#allocation5 + $0xd90] sm:$0xff]
        %v906 = vld [vmem:[#allocation5 + $0xd98] sm:$0xff]
        %v907 = vld [vmem:[#allocation5 + $0xda0] sm:$0xff]
        %v908 = vld [vmem:[#allocation5 + $0xda8] sm:$0xff]
        %v909 = vld [vmem:[#allocation5 + $0xdb0] sm:$0xff]
        %v910 = vld [vmem:[#allocation5 + $0xdb8] sm:$0xff]
        %v911 = vld [vmem:[#allocation5 + $0xdc0] sm:$0xff]
        %v912 = vld [vmem:[#allocation5 + $0xdc8] sm:$0xff]
        %v913 = vld [vmem:[#allocation5 + $0xdd0] sm:$0xff]
        %v914 = vld [vmem:[#allocation5 + $0xdd8] sm:$0xff]
        %v915 = vld [vmem:[#allocation5 + $0xde0] sm:$0xff]
        %v916 = vld [vmem:[#allocation5 + $0xde8] sm:$0xff]
        %v917 = vld [vmem:[#allocation5 + $0xdf0] sm:$0xff]
        %v918 = vld [vmem:[#allocation5 + $0xdf8] sm:$0xff]
        %v919 = vld [vmem:[#allocation5 + $0xe00] sm:$0xff]
        %v920 = vld [vmem:[#allocation5 + $0xe08] sm:$0xff]
        %v921 = vld [vmem:[#allocation5 + $0xe10] sm:$0xff]
        %v922 = vld [vmem:[#allocation5 + $0xe18] sm:$0xff]
        %v923 = vld [vmem:[#allocation5 + $0xe20] sm:$0xff]
        %v924 = vld [vmem:[#allocation5 + $0xe28] sm:$0xff]
        %v925 = vld [vmem:[#allocation5 + $0xe30] sm:$0xff]
        %v926 = vld [vmem:[#allocation5 + $0xe38] sm:$0xff]
        %v927 = vld [vmem:[#allocation5 + $0xe40] sm:$0xff]
        %v928 = vld [vmem:[#allocation5 + $0xe48] sm:$0xff]
        %v929 = vld [vmem:[#allocation5 + $0xe50] sm:$0xff]
        %v930 = vld [vmem:[#allocation5 + $0xe58] sm:$0xff]
        %v931 = vld [vmem:[#allocation5 + $0xe60] sm:$0xff]
        %v932 = vld [vmem:[#allocation5 + $0xe68] sm:$0xff]
        %v933 = vld [vmem:[#allocation5 + $0xe70] sm:$0xff]
        %v934 = vld [vmem:[#allocation5 + $0xe78] sm:$0xff]
        %v935 = vld [vmem:[#allocation5 + $0xe80] sm:$0xff]
        %v936 = vld [vmem:[#allocation5 + $0xe88] sm:$0xff]
        %v937 = vld [vmem:[#allocation5 + $0xe90] sm:$0xff]
        %v938 = vld [vmem:[#allocation5 + $0xe98] sm:$0xff]
        %v939 = vld [vmem:[#allocation5 + $0xea0] sm:$0xff]
        %v940 = vld [vmem:[#allocation5 + $0xea8] sm:$0xff]
        %v941 = vld [vmem:[#allocation5 + $0xeb0] sm:$0xff]
        %v942 = vld [vmem:[#allocation5 + $0xeb8] sm:$0xff]
        %v943 = vld [vmem:[#allocation5 + $0xec0] sm:$0xff]
        %v944 = vld [vmem:[#allocation5 + $0xec8] sm:$0xff]
        %v945 = vld [vmem:[#allocation5 + $0xed0] sm:$0xff]
        %v946 = vld [vmem:[#allocation5 + $0xed8] sm:$0xff]
        %v947 = vld [vmem:[#allocation5 + $0xee0] sm:$0xff]
        %v948 = vld [vmem:[#allocation5 + $0xee8] sm:$0xff]
        %v949 = vld [vmem:[#allocation5 + $0xef0] sm:$0xff]
        %v950 = vld [vmem:[#allocation5 + $0xef8] sm:$0xff]
        %v951 = vld [vmem:[#allocation5 + $0xf00] sm:$0xff]
        %v952 = vld [vmem:[#allocation5 + $0xf08] sm:$0xff]
        %v953 = vld [vmem:[#allocation5 + $0xf10] sm:$0xff]
        %v954 = vld [vmem:[#allocation5 + $0xf18] sm:$0xff]
        %v955 = vld [vmem:[#allocation5 + $0xf20] sm:$0xff]
        %v956 = vld [vmem:[#allocation5 + $0xf28] sm:$0xff]
        %v957 = vld [vmem:[#allocation5 + $0xf30] sm:$0xff]
        %v958 = vld [vmem:[#allocation5 + $0xf38] sm:$0xff]
        %v959 = vld [vmem:[#allocation5 + $0xf40] sm:$0xff]
        %v960 = vld [vmem:[#allocation5 + $0xf48] sm:$0xff]
        %v961 = vld [vmem:[#allocation5 + $0xf50] sm:$0xff]
        %v962 = vld [vmem:[#allocation5 + $0xf58] sm:$0xff]
        %v963 = vld [vmem:[#allocation5 + $0xf60] sm:$0xff]
        %v964 = vld [vmem:[#allocation5 + $0xf68] sm:$0xff]
        %v965 = vld [vmem:[#allocation5 + $0xf70] sm:$0xff]
        %v966 = vld [vmem:[#allocation5 + $0xf78] sm:$0xff]
        %v967 = vld [vmem:[#allocation5 + $0xf80] sm:$0xff]
        %v968 = vld [vmem:[#allocation5 + $0xf88] sm:$0xff]
        %v969 = vld [vmem:[#allocation5 + $0xf90] sm:$0xff]
        %v970 = vld [vmem:[#allocation5 + $0xf98] sm:$0xff]
        %v971 = vld [vmem:[#allocation5 + $0xfa0] sm:$0xff]
        %v972 = vld [vmem:[#allocation5 + $0xfa8] sm:$0xff]
        %v973 = vld [vmem:[#allocation5 + $0xfb0] sm:$0xff]
        %v974 = vld [vmem:[#allocation5 + $0xfb8] sm:$0xff]
        %v975 = vld [vmem:[#allocation5 + $0xfc0] sm:$0xff]
        %v976 = vld [vmem:[#allocation5 + $0xfc8] sm:$0xff]
        %v977 = vld [vmem:[#allocation5 + $0xfd0] sm:$0xff]
        %v978 = vld [vmem:[#allocation5 + $0xfd8] sm:$0xff]
        %v979 = vld [vmem:[#allocation5 + $0xfe0] sm:$0xff]
        %v980 = vld [vmem:[#allocation5 + $0xfe8] sm:$0xff]
        %v981 = vld [vmem:[#allocation5 + $0xff0] sm:$0xff]
        %v982 = vld [vmem:[#allocation5 + $0xff8] sm:$0xff]
        %v983 = vld [vmem:[#allocation5 + $0x1000] sm:$0xff]
        %v984 = vld [vmem:[#allocation5 + $0x1008] sm:$0xff]
        %v985 = vld [vmem:[#allocation5 + $0x1010] sm:$0xff]
        %v986 = vld [vmem:[#allocation5 + $0x1018] sm:$0xff]
        %v987 = vld [vmem:[#allocation5 + $0x1020] sm:$0xff]
        %v988 = vld [vmem:[#allocation5 + $0x1028] sm:$0xff]
        %v989 = vld [vmem:[#allocation5 + $0x1030] sm:$0xff]
        %v990 = vld [vmem:[#allocation5 + $0x1038] sm:$0xff]
        %v991 = vld [vmem:[#allocation5 + $0x1040] sm:$0xff]
        %v992 = vld [vmem:[#allocation5 + $0x1048] sm:$0xff]
        %v993 = vld [vmem:[#allocation5 + $0x1050] sm:$0xff]
        %v994 = vld [vmem:[#allocation5 + $0x1058] sm:$0xff]
        %v995 = vld [vmem:[#allocation5 + $0x1060] sm:$0xff]
        %v996 = vld [vmem:[#allocation5 + $0x1068] sm:$0xff]
        %v997 = vld [vmem:[#allocation5 + $0x1070] sm:$0xff]
        %v998 = vld [vmem:[#allocation5 + $0x1078] sm:$0xff]
        %v999 = vld [vmem:[#allocation5 + $0x1080] sm:$0xff]
        %v1000 = vld [vmem:[#allocation5 + $0x1088] sm:$0xff]
        %v1001 = vld [vmem:[#allocation5 + $0x1090] sm:$0xff]
        %v1002 = vld [vmem:[#allocation5 + $0x1098] sm:$0xff]
        %v1003 = vld [vmem:[#allocation5 + $0x10a0] sm:$0xff]
        %v1004 = vld [vmem:[#allocation5 + $0x10a8] sm:$0xff]
        %v1005 = vld [vmem:[#allocation5 + $0x10b0] sm:$0xff]
        %v1006 = vld [vmem:[#allocation5 + $0x10b8] sm:$0xff]
        %v1007 = vld [vmem:[#allocation5 + $0x10c0] sm:$0xff]
        %v1008 = vld [vmem:[#allocation5 + $0x10c8] sm:$0xff]
        %v1009 = vld [vmem:[#allocation5 + $0x10d0] sm:$0xff]
        %v1010 = vld [vmem:[#allocation5 + $0x10d8] sm:$0xff]
        %v1011 = vld [vmem:[#allocation5 + $0x10e0] sm:$0xff]
        %v1012 = vld [vmem:[#allocation5 + $0x10e8] sm:$0xff]
        %v1013 = vld [vmem:[#allocation5 + $0x10f0] sm:$0xff]
        %v1014 = vld [vmem:[#allocation5 + $0x10f8] sm:$0xff]
        %v1015 = vld [vmem:[#allocation5 + $0x1100] sm:$0xff]
        %v1016 = vld [vmem:[#allocation5 + $0x1108] sm:$0xff]
        %v1017 = vld [vmem:[#allocation5 + $0x1110] sm:$0xff]
        %v1018 = vld [vmem:[#allocation5 + $0x1118] sm:$0xff]
        %v1019 = vld [vmem:[#allocation5 + $0x1120] sm:$0xff]
        %v1020 = vld [vmem:[#allocation5 + $0x1128] sm:$0xff]
        %v1021 = vld [vmem:[#allocation5 + $0x1130] sm:$0xff]
        %v1022 = vld [vmem:[#allocation5 + $0x1138] sm:$0xff]
        %v1023 = vld [vmem:[#allocation5 + $0x1140] sm:$0xff]
        %v1024 = vld [vmem:[#allocation5 + $0x1148] sm:$0xff]
        %v1025 = vld [vmem:[#allocation5 + $0x1150] sm:$0xff]
        %v1026 = vld [vmem:[#allocation5 + $0x1158] sm:$0xff]
        %v1027 = vld [vmem:[#allocation5 + $0x1160] sm:$0xff]
        %v1028 = vld [vmem:[#allocation5 + $0x1168] sm:$0xff]
        %v1029 = vld [vmem:[#allocation5 + $0x1170] sm:$0xff]
        %v1030 = vld [vmem:[#allocation5 + $0x1178] sm:$0xff]
        %v1031 = vld [vmem:[#allocation5 + $0x1180] sm:$0xff]
        %v1032 = vld [vmem:[#allocation5 + $0x1188] sm:$0xff]
        %v1033 = vld [vmem:[#allocation5 + $0x1190] sm:$0xff]
        %v1034 = vld [vmem:[#allocation5 + $0x1198] sm:$0xff]
        %v1035 = vld [vmem:[#allocation5 + $0x11a0] sm:$0xff]
        %v1036 = vld [vmem:[#allocation5 + $0x11a8] sm:$0xff]
        %v1037 = vld [vmem:[#allocation5 + $0x11b0] sm:$0xff]
        %v1038 = vld [vmem:[#allocation5 + $0x11b8] sm:$0xff]
        %v1039 = vld [vmem:[#allocation5 + $0x11c0] sm:$0xff]
        %v1040 = vld [vmem:[#allocation5 + $0x11c8] sm:$0xff]
        %v1041 = vld [vmem:[#allocation5 + $0x11d0] sm:$0xff]
        %v1042 = vld [vmem:[#allocation5 + $0x11d8] sm:$0xff]
        %v1043 = vld [vmem:[#allocation5 + $0x11e0] sm:$0xff]
        %v1044 = vld [vmem:[#allocation5 + $0x11e8] sm:$0xff]
        %v1045 = vld [vmem:[#allocation5 + $0x11f0] sm:$0xff]
        %v1046 = vld [vmem:[#allocation5 + $0x11f8] sm:$0xff]
        %v1623 = vunpack.c.l.b16 %v471
        %v1624 = vunpack.c.h.b16 %v471
        %v1625 = vunpack.c.l.b16 %v472
        %v1626 = vunpack.c.h.b16 %v472
        %v1627 = vunpack.c.l.b16 %v473
        %v1628 = vunpack.c.h.b16 %v473
        %v1629 = vunpack.c.l.b16 %v474
        %v1630 = vunpack.c.h.b16 %v474
        %v1631 = vunpack.c.l.b16 %v475
        %v1632 = vunpack.c.h.b16 %v475
        %v1633 = vunpack.c.l.b16 %v476
        %v1634 = vunpack.c.h.b16 %v476
        %v1635 = vunpack.c.l.b16 %v477
        %v1636 = vunpack.c.h.b16 %v477
        %v1637 = vunpack.c.l.b16 %v478
        %v1638 = vunpack.c.h.b16 %v478
        %v1639 = vunpack.c.l.b16 %v479
        %v1640 = vunpack.c.h.b16 %v479
        %v1641 = vunpack.c.l.b16 %v480
        %v1642 = vunpack.c.h.b16 %v480
        %v1643 = vunpack.c.l.b16 %v481
        %v1644 = vunpack.c.h.b16 %v481
        %v1645 = vunpack.c.l.b16 %v482
        %v1646 = vunpack.c.h.b16 %v482
        %v1647 = vunpack.c.l.b16 %v483
        %v1648 = vunpack.c.h.b16 %v483
        %v1649 = vunpack.c.l.b16 %v484
        %v1650 = vunpack.c.h.b16 %v484
        %v1651 = vunpack.c.l.b16 %v485
        %v1652 = vunpack.c.h.b16 %v485
        %v1653 = vunpack.c.l.b16 %v486
        %v1654 = vunpack.c.h.b16 %v486
        %v1655 = vunpack.c.l.b16 %v487
        %v1656 = vunpack.c.h.b16 %v487
        %v1657 = vunpack.c.l.b16 %v488
        %v1658 = vunpack.c.h.b16 %v488
        %v1659 = vunpack.c.l.b16 %v489
        %v1660 = vunpack.c.h.b16 %v489
        %v1661 = vunpack.c.l.b16 %v490
        %v1662 = vunpack.c.h.b16 %v490
        %v1663 = vunpack.c.l.b16 %v491
        %v1664 = vunpack.c.h.b16 %v491
        %v1665 = vunpack.c.l.b16 %v492
        %v1666 = vunpack.c.h.b16 %v492
        %v1667 = vunpack.c.l.b16 %v493
        %v1668 = vunpack.c.h.b16 %v493
        %v1669 = vunpack.c.l.b16 %v494
        %v1670 = vunpack.c.h.b16 %v494
        %v1671 = vunpack.c.l.b16 %v495
        %v1672 = vunpack.c.h.b16 %v495
        %v1673 = vunpack.c.l.b16 %v496
        %v1674 = vunpack.c.h.b16 %v496
        %v1675 = vunpack.c.l.b16 %v497
        %v1676 = vunpack.c.h.b16 %v497
        %v1677 = vunpack.c.l.b16 %v498
        %v1678 = vunpack.c.h.b16 %v498
        %v1679 = vunpack.c.l.b16 %v499
        %v1680 = vunpack.c.h.b16 %v499
        %v1681 = vunpack.c.l.b16 %v500
        %v1682 = vunpack.c.h.b16 %v500
        %v1683 = vunpack.c.l.b16 %v501
        %v1684 = vunpack.c.h.b16 %v501
        %v1685 = vunpack.c.l.b16 %v502
        %v1686 = vunpack.c.h.b16 %v502
        %v1687 = vunpack.c.l.b16 %v503
        %v1688 = vunpack.c.h.b16 %v503
        %v1689 = vunpack.c.l.b16 %v504
        %v1690 = vunpack.c.h.b16 %v504
        %v1691 = vunpack.c.l.b16 %v505
        %v1692 = vunpack.c.h.b16 %v505
        %v1693 = vunpack.c.l.b16 %v506
        %v1694 = vunpack.c.h.b16 %v506
        %v1695 = vunpack.c.l.b16 %v507
        %v1696 = vunpack.c.h.b16 %v507
        %v1697 = vunpack.c.l.b16 %v508
        %v1698 = vunpack.c.h.b16 %v508
        %v1699 = vunpack.c.l.b16 %v509
        %v1700 = vunpack.c.h.b16 %v509
        %v1701 = vunpack.c.l.b16 %v510
        %v1702 = vunpack.c.h.b16 %v510
        %v1703 = vunpack.c.l.b16 %v511
        %v1704 = vunpack.c.h.b16 %v511
        %v1705 = vunpack.c.l.b16 %v512
        %v1706 = vunpack.c.h.b16 %v512
        %v1707 = vunpack.c.l.b16 %v513
        %v1708 = vunpack.c.h.b16 %v513
        %v1709 = vunpack.c.l.b16 %v514
        %v1710 = vunpack.c.h.b16 %v514
        %v1711 = vunpack.c.l.b16 %v515
        %v1712 = vunpack.c.h.b16 %v515
        %v1713 = vunpack.c.l.b16 %v516
        %v1714 = vunpack.c.h.b16 %v516
        %v1715 = vunpack.c.l.b16 %v517
        %v1716 = vunpack.c.h.b16 %v517
        %v1717 = vunpack.c.l.b16 %v518
        %v1718 = vunpack.c.h.b16 %v518
        %v1719 = vunpack.c.l.b16 %v519
        %v1720 = vunpack.c.h.b16 %v519
        %v1721 = vunpack.c.l.b16 %v520
        %v1722 = vunpack.c.h.b16 %v520
        %v1723 = vunpack.c.l.b16 %v521
        %v1724 = vunpack.c.h.b16 %v521
        %v1725 = vunpack.c.l.b16 %v522
        %v1726 = vunpack.c.h.b16 %v522
        %v1727 = vunpack.c.l.b16 %v523
        %v1728 = vunpack.c.h.b16 %v523
        %v1729 = vunpack.c.l.b16 %v524
        %v1730 = vunpack.c.h.b16 %v524
        %v1731 = vunpack.c.l.b16 %v525
        %v1732 = vunpack.c.h.b16 %v525
        %v1733 = vunpack.c.l.b16 %v526
        %v1734 = vunpack.c.h.b16 %v526
        %v1735 = vunpack.c.l.b16 %v527
        %v1736 = vunpack.c.h.b16 %v527
        %v1737 = vunpack.c.l.b16 %v528
        %v1738 = vunpack.c.h.b16 %v528
        %v1739 = vunpack.c.l.b16 %v529
        %v1740 = vunpack.c.h.b16 %v529
        %v1741 = vunpack.c.l.b16 %v530
        %v1742 = vunpack.c.h.b16 %v530
        %v1743 = vunpack.c.l.b16 %v531
        %v1744 = vunpack.c.h.b16 %v531
        %v1745 = vunpack.c.l.b16 %v532
        %v1746 = vunpack.c.h.b16 %v532
        %v1747 = vunpack.c.l.b16 %v533
        %v1748 = vunpack.c.h.b16 %v533
        %v1749 = vunpack.c.l.b16 %v534
        %v1750 = vunpack.c.h.b16 %v534
        %v1751 = vunpack.c.l.b16 %v535
        %v1752 = vunpack.c.h.b16 %v535
        %v1753 = vunpack.c.l.b16 %v536
        %v1754 = vunpack.c.h.b16 %v536
        %v1755 = vunpack.c.l.b16 %v537
        %v1756 = vunpack.c.h.b16 %v537
        %v1757 = vunpack.c.l.b16 %v538
        %v1758 = vunpack.c.h.b16 %v538
        %v1759 = vunpack.c.l.b16 %v539
        %v1760 = vunpack.c.h.b16 %v539
        %v1761 = vunpack.c.l.b16 %v540
        %v1762 = vunpack.c.h.b16 %v540
        %v1763 = vunpack.c.l.b16 %v541
        %v1764 = vunpack.c.h.b16 %v541
        %v1765 = vunpack.c.l.b16 %v542
        %v1766 = vunpack.c.h.b16 %v542
        %v1767 = vunpack.c.l.b16 %v543
        %v1768 = vunpack.c.h.b16 %v543
        %v1769 = vunpack.c.l.b16 %v544
        %v1770 = vunpack.c.h.b16 %v544
        %v1771 = vunpack.c.l.b16 %v545
        %v1772 = vunpack.c.h.b16 %v545
        %v1773 = vunpack.c.l.b16 %v546
        %v1774 = vunpack.c.h.b16 %v546
        %v1775 = vunpack.c.l.b16 %v547
        %v1776 = vunpack.c.h.b16 %v547
        %v1777 = vunpack.c.l.b16 %v548
        %v1778 = vunpack.c.h.b16 %v548
        %v1779 = vunpack.c.l.b16 %v549
        %v1780 = vunpack.c.h.b16 %v549
        %v1781 = vunpack.c.l.b16 %v550
        %v1782 = vunpack.c.h.b16 %v550
        %v1783 = vunpack.c.l.b16 %v551
        %v1784 = vunpack.c.h.b16 %v551
        %v1785 = vunpack.c.l.b16 %v552
        %v1786 = vunpack.c.h.b16 %v552
        %v1787 = vunpack.c.l.b16 %v553
        %v1788 = vunpack.c.h.b16 %v553
        %v1789 = vunpack.c.l.b16 %v554
        %v1790 = vunpack.c.h.b16 %v554
        %v1791 = vunpack.c.l.b16 %v555
        %v1792 = vunpack.c.h.b16 %v555
        %v1793 = vunpack.c.l.b16 %v556
        %v1794 = vunpack.c.h.b16 %v556
        %v1795 = vunpack.c.l.b16 %v557
        %v1796 = vunpack.c.h.b16 %v557
        %v1797 = vunpack.c.l.b16 %v558
        %v1798 = vunpack.c.h.b16 %v558
        %v1799 = vunpack.c.l.b16 %v559
        %v1800 = vunpack.c.h.b16 %v559
        %v1801 = vunpack.c.l.b16 %v560
        %v1802 = vunpack.c.h.b16 %v560
        %v1803 = vunpack.c.l.b16 %v561
        %v1804 = vunpack.c.h.b16 %v561
        %v1805 = vunpack.c.l.b16 %v562
        %v1806 = vunpack.c.h.b16 %v562
        %v1807 = vunpack.c.l.b16 %v563
        %v1808 = vunpack.c.h.b16 %v563
        %v1809 = vunpack.c.l.b16 %v564
        %v1810 = vunpack.c.h.b16 %v564
        %v1811 = vunpack.c.l.b16 %v565
        %v1812 = vunpack.c.h.b16 %v565
        %v1813 = vunpack.c.l.b16 %v566
        %v1814 = vunpack.c.h.b16 %v566
        %v1815 = vunpack.c.l.b16 %v567
        %v1816 = vunpack.c.h.b16 %v567
        %v1817 = vunpack.c.l.b16 %v568
        %v1818 = vunpack.c.h.b16 %v568
        %v1819 = vunpack.c.l.b16 %v569
        %v1820 = vunpack.c.h.b16 %v569
        %v1821 = vunpack.c.l.b16 %v570
        %v1822 = vunpack.c.h.b16 %v570
        %v1823 = vunpack.c.l.b16 %v571
        %v1824 = vunpack.c.h.b16 %v571
        %v1825 = vunpack.c.l.b16 %v572
        %v1826 = vunpack.c.h.b16 %v572
        %v1827 = vunpack.c.l.b16 %v573
        %v1828 = vunpack.c.h.b16 %v573
        %v1829 = vunpack.c.l.b16 %v574
        %v1830 = vunpack.c.h.b16 %v574
        %v1831 = vunpack.c.l.b16 %v575
        %v1832 = vunpack.c.h.b16 %v575
        %v1833 = vunpack.c.l.b16 %v576
        %v1834 = vunpack.c.h.b16 %v576
        %v1835 = vunpack.c.l.b16 %v577
        %v1836 = vunpack.c.h.b16 %v577
        %v1837 = vunpack.c.l.b16 %v578
        %v1838 = vunpack.c.h.b16 %v578
        %v1839 = vunpack.c.l.b16 %v579
        %v1840 = vunpack.c.h.b16 %v579
        %v1841 = vunpack.c.l.b16 %v580
        %v1842 = vunpack.c.h.b16 %v580
        %v1843 = vunpack.c.l.b16 %v581
        %v1844 = vunpack.c.h.b16 %v581
        %v1845 = vunpack.c.l.b16 %v582
        %v1846 = vunpack.c.h.b16 %v582
        %v1847 = vunpack.c.l.b16 %v583
        %v1848 = vunpack.c.h.b16 %v583
        %v1849 = vunpack.c.l.b16 %v584
        %v1850 = vunpack.c.h.b16 %v584
        %v1851 = vunpack.c.l.b16 %v585
        %v1852 = vunpack.c.h.b16 %v585
        %v1853 = vunpack.c.l.b16 %v586
        %v1854 = vunpack.c.h.b16 %v586
        %v1855 = vunpack.c.l.b16 %v587
        %v1856 = vunpack.c.h.b16 %v587
        %v1857 = vunpack.c.l.b16 %v588
        %v1858 = vunpack.c.h.b16 %v588
        %v1859 = vunpack.c.l.b16 %v589
        %v1860 = vunpack.c.h.b16 %v589
        %v1861 = vunpack.c.l.b16 %v590
        %v1862 = vunpack.c.h.b16 %v590
        %v1863 = vunpack.c.l.b16 %v591
        %v1864 = vunpack.c.h.b16 %v591
        %v1865 = vunpack.c.l.b16 %v592
        %v1866 = vunpack.c.h.b16 %v592
        %v1867 = vunpack.c.l.b16 %v593
        %v1868 = vunpack.c.h.b16 %v593
        %v1869 = vunpack.c.l.b16 %v594
        %v1870 = vunpack.c.h.b16 %v594
        %v1871 = vunpack.c.l.b16 %v595
        %v1872 = vunpack.c.h.b16 %v595
        %v1873 = vunpack.c.l.b16 %v596
        %v1874 = vunpack.c.h.b16 %v596
        %v1875 = vunpack.c.l.b16 %v597
        %v1876 = vunpack.c.h.b16 %v597
        %v1877 = vunpack.c.l.b16 %v598
        %v1878 = vunpack.c.h.b16 %v598
        %v1879 = vunpack.c.l.b16 %v599
        %v1880 = vunpack.c.h.b16 %v599
        %v1881 = vunpack.c.l.b16 %v600
        %v1882 = vunpack.c.h.b16 %v600
        %v1883 = vunpack.c.l.b16 %v601
        %v1884 = vunpack.c.h.b16 %v601
        %v1885 = vunpack.c.l.b16 %v602
        %v1886 = vunpack.c.h.b16 %v602
        %v1887 = vunpack.c.l.b16 %v603
        %v1888 = vunpack.c.h.b16 %v603
        %v1889 = vunpack.c.l.b16 %v604
        %v1890 = vunpack.c.h.b16 %v604
        %v1891 = vunpack.c.l.b16 %v605
        %v1892 = vunpack.c.h.b16 %v605
        %v1893 = vunpack.c.l.b16 %v606
        %v1894 = vunpack.c.h.b16 %v606
        %v1895 = vunpack.c.l.b16 %v607
        %v1896 = vunpack.c.h.b16 %v607
        %v1897 = vunpack.c.l.b16 %v608
        %v1898 = vunpack.c.h.b16 %v608
        %v1899 = vunpack.c.l.b16 %v609
        %v1900 = vunpack.c.h.b16 %v609
        %v1901 = vunpack.c.l.b16 %v610
        %v1902 = vunpack.c.h.b16 %v610
        %v1903 = vunpack.c.l.b16 %v611
        %v1904 = vunpack.c.h.b16 %v611
        %v1905 = vunpack.c.l.b16 %v612
        %v1906 = vunpack.c.h.b16 %v612
        %v1907 = vunpack.c.l.b16 %v613
        %v1908 = vunpack.c.h.b16 %v613
        %v1909 = vunpack.c.l.b16 %v614
        %v1910 = vunpack.c.h.b16 %v614
        %v1911 = vunpack.c.l.b16 %v615
        %v1912 = vunpack.c.h.b16 %v615
        %v1913 = vunpack.c.l.b16 %v616
        %v1914 = vunpack.c.h.b16 %v616
        %v1915 = vunpack.c.l.b16 %v617
        %v1916 = vunpack.c.h.b16 %v617
        %v1917 = vunpack.c.l.b16 %v618
        %v1918 = vunpack.c.h.b16 %v618
        %v1919 = vunpack.c.l.b16 %v619
        %v1920 = vunpack.c.h.b16 %v619
        %v1921 = vunpack.c.l.b16 %v620
        %v1922 = vunpack.c.h.b16 %v620
        %v1923 = vunpack.c.l.b16 %v621
        %v1924 = vunpack.c.h.b16 %v621
        %v1925 = vunpack.c.l.b16 %v622
        %v1926 = vunpack.c.h.b16 %v622
        %v1927 = vunpack.c.l.b16 %v623
        %v1928 = vunpack.c.h.b16 %v623
        %v1929 = vunpack.c.l.b16 %v624
        %v1930 = vunpack.c.h.b16 %v624
        %v1931 = vunpack.c.l.b16 %v625
        %v1932 = vunpack.c.h.b16 %v625
        %v1933 = vunpack.c.l.b16 %v626
        %v1934 = vunpack.c.h.b16 %v626
        %v1935 = vunpack.c.l.b16 %v627
        %v1936 = vunpack.c.h.b16 %v627
        %v1937 = vunpack.c.l.b16 %v628
        %v1938 = vunpack.c.h.b16 %v628
        %v1939 = vunpack.c.l.b16 %v629
        %v1940 = vunpack.c.h.b16 %v629
        %v1941 = vunpack.c.l.b16 %v630
        %v1942 = vunpack.c.h.b16 %v630
        %v1943 = vunpack.c.l.b16 %v631
        %v1944 = vunpack.c.h.b16 %v631
        %v1945 = vunpack.c.l.b16 %v632
        %v1946 = vunpack.c.h.b16 %v632
        %v1947 = vunpack.c.l.b16 %v633
        %v1948 = vunpack.c.h.b16 %v633
        %v1949 = vunpack.c.l.b16 %v634
        %v1950 = vunpack.c.h.b16 %v634
        %v1951 = vunpack.c.l.b16 %v635
        %v1952 = vunpack.c.h.b16 %v635
        %v1953 = vunpack.c.l.b16 %v636
        %v1954 = vunpack.c.h.b16 %v636
        %v1955 = vunpack.c.l.b16 %v637
        %v1956 = vunpack.c.h.b16 %v637
        %v1957 = vunpack.c.l.b16 %v638
        %v1958 = vunpack.c.h.b16 %v638
        %v1959 = vunpack.c.l.b16 %v639
        %v1960 = vunpack.c.h.b16 %v639
        %v1961 = vunpack.c.l.b16 %v640
        %v1962 = vunpack.c.h.b16 %v640
        %v1963 = vunpack.c.l.b16 %v641
        %v1964 = vunpack.c.h.b16 %v641
        %v1965 = vunpack.c.l.b16 %v642
        %v1966 = vunpack.c.h.b16 %v642
        %v1967 = vunpack.c.l.b16 %v643
        %v1968 = vunpack.c.h.b16 %v643
        %v1969 = vunpack.c.l.b16 %v644
        %v1970 = vunpack.c.h.b16 %v644
        %v1971 = vunpack.c.l.b16 %v645
        %v1972 = vunpack.c.h.b16 %v645
        %v1973 = vunpack.c.l.b16 %v646
        %v1974 = vunpack.c.h.b16 %v646
        %v1975 = vunpack.c.l.b16 %v647
        %v1976 = vunpack.c.h.b16 %v647
        %v1977 = vunpack.c.l.b16 %v648
        %v1978 = vunpack.c.h.b16 %v648
        %v1979 = vunpack.c.l.b16 %v649
        %v1980 = vunpack.c.h.b16 %v649
        %v1981 = vunpack.c.l.b16 %v650
        %v1982 = vunpack.c.h.b16 %v650
        %v1983 = vunpack.c.l.b16 %v651
        %v1984 = vunpack.c.h.b16 %v651
        %v1985 = vunpack.c.l.b16 %v652
        %v1986 = vunpack.c.h.b16 %v652
        %v1987 = vunpack.c.l.b16 %v653
        %v1988 = vunpack.c.h.b16 %v653
        %v1989 = vunpack.c.l.b16 %v654
        %v1990 = vunpack.c.h.b16 %v654
        %v1991 = vunpack.c.l.b16 %v655
        %v1992 = vunpack.c.h.b16 %v655
        %v1993 = vunpack.c.l.b16 %v656
        %v1994 = vunpack.c.h.b16 %v656
        %v1995 = vunpack.c.l.b16 %v657
        %v1996 = vunpack.c.h.b16 %v657
        %v1997 = vunpack.c.l.b16 %v658
        %v1998 = vunpack.c.h.b16 %v658
        %v1999 = vunpack.c.l.b16 %v659
        %v2000 = vunpack.c.h.b16 %v659
        %v2001 = vunpack.c.l.b16 %v660
        %v2002 = vunpack.c.h.b16 %v660
        %v2003 = vunpack.c.l.b16 %v661
        %v2004 = vunpack.c.h.b16 %v661
        %v2005 = vunpack.c.l.b16 %v662
        %v2006 = vunpack.c.h.b16 %v662
        %v2007 = vunpack.c.l.b16 %v663
        %v2008 = vunpack.c.h.b16 %v663
        %v2009 = vunpack.c.l.b16 %v664
        %v2010 = vunpack.c.h.b16 %v664
        %v2011 = vunpack.c.l.b16 %v665
        %v2012 = vunpack.c.h.b16 %v665
        %v2013 = vunpack.c.l.b16 %v666
        %v2014 = vunpack.c.h.b16 %v666
        %v2015 = vunpack.c.l.b16 %v667
        %v2016 = vunpack.c.h.b16 %v667
        %v2017 = vunpack.c.l.b16 %v668
        %v2018 = vunpack.c.h.b16 %v668
        %v2019 = vunpack.c.l.b16 %v669
        %v2020 = vunpack.c.h.b16 %v669
        %v2021 = vunpack.c.l.b16 %v670
        %v2022 = vunpack.c.h.b16 %v670
        %v2023 = vunpack.c.l.b16 %v671
        %v2024 = vunpack.c.h.b16 %v671
        %v2025 = vunpack.c.l.b16 %v672
        %v2026 = vunpack.c.h.b16 %v672
        %v2027 = vunpack.c.l.b16 %v673
        %v2028 = vunpack.c.h.b16 %v673
        %v2029 = vunpack.c.l.b16 %v674
        %v2030 = vunpack.c.h.b16 %v674
        %v2031 = vunpack.c.l.b16 %v675
        %v2032 = vunpack.c.h.b16 %v675
        %v2033 = vunpack.c.l.b16 %v676
        %v2034 = vunpack.c.h.b16 %v676
        %v2035 = vunpack.c.l.b16 %v677
        %v2036 = vunpack.c.h.b16 %v677
        %v2037 = vunpack.c.l.b16 %v678
        %v2038 = vunpack.c.h.b16 %v678
        %v2039 = vunpack.c.l.b16 %v679
        %v2040 = vunpack.c.h.b16 %v679
        %v2041 = vunpack.c.l.b16 %v680
        %v2042 = vunpack.c.h.b16 %v680
        %v2043 = vunpack.c.l.b16 %v681
        %v2044 = vunpack.c.h.b16 %v681
        %v2045 = vunpack.c.l.b16 %v682
        %v2046 = vunpack.c.h.b16 %v682
        %v2047 = vunpack.c.l.b16 %v683
        %v2048 = vunpack.c.h.b16 %v683
        %v2049 = vunpack.c.l.b16 %v684
        %v2050 = vunpack.c.h.b16 %v684
        %v2051 = vunpack.c.l.b16 %v685
        %v2052 = vunpack.c.h.b16 %v685
        %v2053 = vunpack.c.l.b16 %v686
        %v2054 = vunpack.c.h.b16 %v686
        %v2055 = vunpack.c.l.b16 %v687
        %v2056 = vunpack.c.h.b16 %v687
        %v2057 = vunpack.c.l.b16 %v688
        %v2058 = vunpack.c.h.b16 %v688
        %v2059 = vunpack.c.l.b16 %v689
        %v2060 = vunpack.c.h.b16 %v689
        %v2061 = vunpack.c.l.b16 %v690
        %v2062 = vunpack.c.h.b16 %v690
        %v2063 = vunpack.c.l.b16 %v691
        %v2064 = vunpack.c.h.b16 %v691
        %v2065 = vunpack.c.l.b16 %v692
        %v2066 = vunpack.c.h.b16 %v692
        %v2067 = vunpack.c.l.b16 %v693
        %v2068 = vunpack.c.h.b16 %v693
        %v2069 = vunpack.c.l.b16 %v694
        %v2070 = vunpack.c.h.b16 %v694
        %v2071 = vunpack.c.l.b16 %v695
        %v2072 = vunpack.c.h.b16 %v695
        %v2073 = vunpack.c.l.b16 %v696
        %v2074 = vunpack.c.h.b16 %v696
        %v2075 = vunpack.c.l.b16 %v697
        %v2076 = vunpack.c.h.b16 %v697
        %v2077 = vunpack.c.l.b16 %v698
        %v2078 = vunpack.c.h.b16 %v698
        %v2079 = vunpack.c.l.b16 %v699
        %v2080 = vunpack.c.h.b16 %v699
        %v2081 = vunpack.c.l.b16 %v700
        %v2082 = vunpack.c.h.b16 %v700
        %v2083 = vunpack.c.l.b16 %v701
        %v2084 = vunpack.c.h.b16 %v701
        %v2085 = vunpack.c.l.b16 %v702
        %v2086 = vunpack.c.h.b16 %v702
        %v2087 = vunpack.c.l.b16 %v703
        %v2088 = vunpack.c.h.b16 %v703
        %v2089 = vunpack.c.l.b16 %v704
        %v2090 = vunpack.c.h.b16 %v704
        %v2091 = vunpack.c.l.b16 %v705
        %v2092 = vunpack.c.h.b16 %v705
        %v2093 = vunpack.c.l.b16 %v706
        %v2094 = vunpack.c.h.b16 %v706
        %v2095 = vunpack.c.l.b16 %v707
        %v2096 = vunpack.c.h.b16 %v707
        %v2097 = vunpack.c.l.b16 %v708
        %v2098 = vunpack.c.h.b16 %v708
        %v2099 = vunpack.c.l.b16 %v709
        %v2100 = vunpack.c.h.b16 %v709
        %v2101 = vunpack.c.l.b16 %v710
        %v2102 = vunpack.c.h.b16 %v710
        %v2103 = vunpack.c.l.b16 %v711
        %v2104 = vunpack.c.h.b16 %v711
        %v2105 = vunpack.c.l.b16 %v712
        %v2106 = vunpack.c.h.b16 %v712
        %v2107 = vunpack.c.l.b16 %v713
        %v2108 = vunpack.c.h.b16 %v713
        %v2109 = vunpack.c.l.b16 %v714
        %v2110 = vunpack.c.h.b16 %v714
        %v2111 = vunpack.c.l.b16 %v715
        %v2112 = vunpack.c.h.b16 %v715
        %v2113 = vunpack.c.l.b16 %v716
        %v2114 = vunpack.c.h.b16 %v716
        %v2115 = vunpack.c.l.b16 %v717
        %v2116 = vunpack.c.h.b16 %v717
        %v2117 = vunpack.c.l.b16 %v718
        %v2118 = vunpack.c.h.b16 %v718
        %v2119 = vunpack.c.l.b16 %v719
        %v2120 = vunpack.c.h.b16 %v719
        %v2121 = vunpack.c.l.b16 %v720
        %v2122 = vunpack.c.h.b16 %v720
        %v2123 = vunpack.c.l.b16 %v721
        %v2124 = vunpack.c.h.b16 %v721
        %v2125 = vunpack.c.l.b16 %v722
        %v2126 = vunpack.c.h.b16 %v722
        %v2127 = vunpack.c.l.b16 %v723
        %v2128 = vunpack.c.h.b16 %v723
        %v2129 = vunpack.c.l.b16 %v724
        %v2130 = vunpack.c.h.b16 %v724
        %v2131 = vunpack.c.l.b16 %v725
        %v2132 = vunpack.c.h.b16 %v725
        %v2133 = vunpack.c.l.b16 %v726
        %v2134 = vunpack.c.h.b16 %v726
        %v2135 = vunpack.c.l.b16 %v727
        %v2136 = vunpack.c.h.b16 %v727
        %v2137 = vunpack.c.l.b16 %v728
        %v2138 = vunpack.c.h.b16 %v728
        %v2139 = vunpack.c.l.b16 %v729
        %v2140 = vunpack.c.h.b16 %v729
        %v2141 = vunpack.c.l.b16 %v730
        %v2142 = vunpack.c.h.b16 %v730
        %v2143 = vunpack.c.l.b16 %v731
        %v2144 = vunpack.c.h.b16 %v731
        %v2145 = vunpack.c.l.b16 %v732
        %v2146 = vunpack.c.h.b16 %v732
        %v2147 = vunpack.c.l.b16 %v733
        %v2148 = vunpack.c.h.b16 %v733
        %v2149 = vunpack.c.l.b16 %v734
        %v2150 = vunpack.c.h.b16 %v734
        %v2151 = vunpack.c.l.b16 %v735
        %v2152 = vunpack.c.h.b16 %v735
        %v2153 = vunpack.c.l.b16 %v736
        %v2154 = vunpack.c.h.b16 %v736
        %v2155 = vunpack.c.l.b16 %v737
        %v2156 = vunpack.c.h.b16 %v737
        %v2157 = vunpack.c.l.b16 %v738
        %v2158 = vunpack.c.h.b16 %v738
        %v2159 = vunpack.c.l.b16 %v739
        %v2160 = vunpack.c.h.b16 %v739
        %v2161 = vunpack.c.l.b16 %v740
        %v2162 = vunpack.c.h.b16 %v740
        %v2163 = vunpack.c.l.b16 %v741
        %v2164 = vunpack.c.h.b16 %v741
        %v2165 = vunpack.c.l.b16 %v742
        %v2166 = vunpack.c.h.b16 %v742
        %v2167 = vunpack.c.l.b16 %v743
        %v2168 = vunpack.c.h.b16 %v743
        %v2169 = vunpack.c.l.b16 %v744
        %v2170 = vunpack.c.h.b16 %v744
        %v2171 = vunpack.c.l.b16 %v745
        %v2172 = vunpack.c.h.b16 %v745
        %v2173 = vunpack.c.l.b16 %v746
        %v2174 = vunpack.c.h.b16 %v746
        %v2175 = vunpack.c.l.b16 %v747
        %v2176 = vunpack.c.h.b16 %v747
        %v2177 = vunpack.c.l.b16 %v748
        %v2178 = vunpack.c.h.b16 %v748
        %v2179 = vunpack.c.l.b16 %v749
        %v2180 = vunpack.c.h.b16 %v749
        %v2181 = vunpack.c.l.b16 %v750
        %v2182 = vunpack.c.h.b16 %v750
        %v2183 = vunpack.c.l.b16 %v751
        %v2184 = vunpack.c.h.b16 %v751
        %v2185 = vunpack.c.l.b16 %v752
        %v2186 = vunpack.c.h.b16 %v752
        %v2187 = vunpack.c.l.b16 %v753
        %v2188 = vunpack.c.h.b16 %v753
        %v2189 = vunpack.c.l.b16 %v754
        %v2190 = vunpack.c.h.b16 %v754
        %v2191 = vunpack.c.l.b16 %v755
        %v2192 = vunpack.c.h.b16 %v755
        %v2193 = vunpack.c.l.b16 %v756
        %v2194 = vunpack.c.h.b16 %v756
        %v2195 = vunpack.c.l.b16 %v757
        %v2196 = vunpack.c.h.b16 %v757
        %v2197 = vunpack.c.l.b16 %v758
        %v2198 = vunpack.c.h.b16 %v758
        %v2199 = vunpack.c.l.b16 %v759
        %v2200 = vunpack.c.h.b16 %v759
        %v2201 = vunpack.c.l.b16 %v760
        %v2202 = vunpack.c.h.b16 %v760
        %v2203 = vunpack.c.l.b16 %v761
        %v2204 = vunpack.c.h.b16 %v761
        %v2205 = vunpack.c.l.b16 %v762
        %v2206 = vunpack.c.h.b16 %v762
        %v2207 = vunpack.c.l.b16 %v763
        %v2208 = vunpack.c.h.b16 %v763
        %v2209 = vunpack.c.l.b16 %v764
        %v2210 = vunpack.c.h.b16 %v764
        %v2211 = vunpack.c.l.b16 %v765
        %v2212 = vunpack.c.h.b16 %v765
        %v2213 = vunpack.c.l.b16 %v766
        %v2214 = vunpack.c.h.b16 %v766
        %v2215 = vunpack.c.l.b16 %v767
        %v2216 = vunpack.c.h.b16 %v767
        %v2217 = vunpack.c.l.b16 %v768
        %v2218 = vunpack.c.h.b16 %v768
        %v2219 = vunpack.c.l.b16 %v769
        %v2220 = vunpack.c.h.b16 %v769
        %v2221 = vunpack.c.l.b16 %v770
        %v2222 = vunpack.c.h.b16 %v770
        %v2223 = vunpack.c.l.b16 %v771
        %v2224 = vunpack.c.h.b16 %v771
        %v2225 = vunpack.c.l.b16 %v772
        %v2226 = vunpack.c.h.b16 %v772
        %v2227 = vunpack.c.l.b16 %v773
        %v2228 = vunpack.c.h.b16 %v773
        %v2229 = vunpack.c.l.b16 %v774
        %v2230 = vunpack.c.h.b16 %v774
        %v2231 = vunpack.c.l.b16 %v775
        %v2232 = vunpack.c.h.b16 %v775
        %v2233 = vunpack.c.l.b16 %v776
        %v2234 = vunpack.c.h.b16 %v776
        %v2235 = vunpack.c.l.b16 %v777
        %v2236 = vunpack.c.h.b16 %v777
        %v2237 = vunpack.c.l.b16 %v778
        %v2238 = vunpack.c.h.b16 %v778
        %v2239 = vunpack.c.l.b16 %v779
        %v2240 = vunpack.c.h.b16 %v779
        %v2241 = vunpack.c.l.b16 %v780
        %v2242 = vunpack.c.h.b16 %v780
        %v2243 = vunpack.c.l.b16 %v781
        %v2244 = vunpack.c.h.b16 %v781
        %v2245 = vunpack.c.l.b16 %v782
        %v2246 = vunpack.c.h.b16 %v782
        %v2247 = vunpack.c.l.b16 %v783
        %v2248 = vunpack.c.h.b16 %v783
        %v2249 = vunpack.c.l.b16 %v784
        %v2250 = vunpack.c.h.b16 %v784
        %v2251 = vunpack.c.l.b16 %v785
        %v2252 = vunpack.c.h.b16 %v785
        %v2253 = vunpack.c.l.b16 %v786
        %v2254 = vunpack.c.h.b16 %v786
        %v2255 = vunpack.c.l.b16 %v787
        %v2256 = vunpack.c.h.b16 %v787
        %v2257 = vunpack.c.l.b16 %v788
        %v2258 = vunpack.c.h.b16 %v788
        %v2259 = vunpack.c.l.b16 %v789
        %v2260 = vunpack.c.h.b16 %v789
        %v2261 = vunpack.c.l.b16 %v790
        %v2262 = vunpack.c.h.b16 %v790
        %v2263 = vunpack.c.l.b16 %v791
        %v2264 = vunpack.c.h.b16 %v791
        %v2265 = vunpack.c.l.b16 %v792
        %v2266 = vunpack.c.h.b16 %v792
        %v2267 = vunpack.c.l.b16 %v793
        %v2268 = vunpack.c.h.b16 %v793
        %v2269 = vunpack.c.l.b16 %v794
        %v2270 = vunpack.c.h.b16 %v794
        %v2271 = vunpack.c.l.b16 %v795
        %v2272 = vunpack.c.h.b16 %v795
        %v2273 = vunpack.c.l.b16 %v796
        %v2274 = vunpack.c.h.b16 %v796
        %v2275 = vunpack.c.l.b16 %v797
        %v2276 = vunpack.c.h.b16 %v797
        %v2277 = vunpack.c.l.b16 %v798
        %v2278 = vunpack.c.h.b16 %v798
        %v2279 = vunpack.c.l.b16 %v799
        %v2280 = vunpack.c.h.b16 %v799
        %v2281 = vunpack.c.l.b16 %v800
        %v2282 = vunpack.c.h.b16 %v800
        %v2283 = vunpack.c.l.b16 %v801
        %v2284 = vunpack.c.h.b16 %v801
        %v2285 = vunpack.c.l.b16 %v802
        %v2286 = vunpack.c.h.b16 %v802
        %v2287 = vunpack.c.l.b16 %v803
        %v2288 = vunpack.c.h.b16 %v803
        %v2289 = vunpack.c.l.b16 %v804
        %v2290 = vunpack.c.h.b16 %v804
        %v2291 = vunpack.c.l.b16 %v805
        %v2292 = vunpack.c.h.b16 %v805
        %v2293 = vunpack.c.l.b16 %v806
        %v2294 = vunpack.c.h.b16 %v806
        %v2295 = vunpack.c.l.b16 %v807
        %v2296 = vunpack.c.h.b16 %v807
        %v2297 = vunpack.c.l.b16 %v808
        %v2298 = vunpack.c.h.b16 %v808
        %v2299 = vunpack.c.l.b16 %v809
        %v2300 = vunpack.c.h.b16 %v809
        %v2301 = vunpack.c.l.b16 %v810
        %v2302 = vunpack.c.h.b16 %v810
        %v2303 = vunpack.c.l.b16 %v811
        %v2304 = vunpack.c.h.b16 %v811
        %v2305 = vunpack.c.l.b16 %v812
        %v2306 = vunpack.c.h.b16 %v812
        %v2307 = vunpack.c.l.b16 %v813
        %v2308 = vunpack.c.h.b16 %v813
        %v2309 = vunpack.c.l.b16 %v814
        %v2310 = vunpack.c.h.b16 %v814
        %v2311 = vunpack.c.l.b16 %v815
        %v2312 = vunpack.c.h.b16 %v815
        %v2313 = vunpack.c.l.b16 %v816
        %v2314 = vunpack.c.h.b16 %v816
        %v2315 = vunpack.c.l.b16 %v817
        %v2316 = vunpack.c.h.b16 %v817
        %v2317 = vunpack.c.l.b16 %v818
        %v2318 = vunpack.c.h.b16 %v818
        %v2319 = vunpack.c.l.b16 %v819
        %v2320 = vunpack.c.h.b16 %v819
        %v2321 = vunpack.c.l.b16 %v820
        %v2322 = vunpack.c.h.b16 %v820
        %v2323 = vunpack.c.l.b16 %v821
        %v2324 = vunpack.c.h.b16 %v821
        %v2325 = vunpack.c.l.b16 %v822
        %v2326 = vunpack.c.h.b16 %v822
        %v2327 = vunpack.c.l.b16 %v823
        %v2328 = vunpack.c.h.b16 %v823
        %v2329 = vunpack.c.l.b16 %v824
        %v2330 = vunpack.c.h.b16 %v824
        %v2331 = vunpack.c.l.b16 %v825
        %v2332 = vunpack.c.h.b16 %v825
        %v2333 = vunpack.c.l.b16 %v826
        %v2334 = vunpack.c.h.b16 %v826
        %v2335 = vunpack.c.l.b16 %v827
        %v2336 = vunpack.c.h.b16 %v827
        %v2337 = vunpack.c.l.b16 %v828
        %v2338 = vunpack.c.h.b16 %v828
        %v2339 = vunpack.c.l.b16 %v829
        %v2340 = vunpack.c.h.b16 %v829
        %v2341 = vunpack.c.l.b16 %v830
        %v2342 = vunpack.c.h.b16 %v830
        %v2343 = vunpack.c.l.b16 %v831
        %v2344 = vunpack.c.h.b16 %v831
        %v2345 = vunpack.c.l.b16 %v832
        %v2346 = vunpack.c.h.b16 %v832
        %v2347 = vunpack.c.l.b16 %v833
        %v2348 = vunpack.c.h.b16 %v833
        %v2349 = vunpack.c.l.b16 %v834
        %v2350 = vunpack.c.h.b16 %v834
        %v2351 = vunpack.c.l.b16 %v835
        %v2352 = vunpack.c.h.b16 %v835
        %v2353 = vunpack.c.l.b16 %v836
        %v2354 = vunpack.c.h.b16 %v836
        %v2355 = vunpack.c.l.b16 %v837
        %v2356 = vunpack.c.h.b16 %v837
        %v2357 = vunpack.c.l.b16 %v838
        %v2358 = vunpack.c.h.b16 %v838
        %v2359 = vunpack.c.l.b16 %v839
        %v2360 = vunpack.c.h.b16 %v839
        %v2361 = vunpack.c.l.b16 %v840
        %v2362 = vunpack.c.h.b16 %v840
        %v2363 = vunpack.c.l.b16 %v841
        %v2364 = vunpack.c.h.b16 %v841
        %v2365 = vunpack.c.l.b16 %v842
        %v2366 = vunpack.c.h.b16 %v842
        %v2367 = vunpack.c.l.b16 %v843
        %v2368 = vunpack.c.h.b16 %v843
        %v2369 = vunpack.c.l.b16 %v844
        %v2370 = vunpack.c.h.b16 %v844
        %v2371 = vunpack.c.l.b16 %v845
        %v2372 = vunpack.c.h.b16 %v845
        %v2373 = vunpack.c.l.b16 %v846
        %v2374 = vunpack.c.h.b16 %v846
        %v2375 = vunpack.c.l.b16 %v847
        %v2376 = vunpack.c.h.b16 %v847
        %v2377 = vunpack.c.l.b16 %v848
        %v2378 = vunpack.c.h.b16 %v848
        %v2379 = vunpack.c.l.b16 %v849
        %v2380 = vunpack.c.h.b16 %v849
        %v2381 = vunpack.c.l.b16 %v850
        %v2382 = vunpack.c.h.b16 %v850
        %v2383 = vunpack.c.l.b16 %v851
        %v2384 = vunpack.c.h.b16 %v851
        %v2385 = vunpack.c.l.b16 %v852
        %v2386 = vunpack.c.h.b16 %v852
        %v2387 = vunpack.c.l.b16 %v853
        %v2388 = vunpack.c.h.b16 %v853
        %v2389 = vunpack.c.l.b16 %v854
        %v2390 = vunpack.c.h.b16 %v854
        %v2391 = vunpack.c.l.b16 %v855
        %v2392 = vunpack.c.h.b16 %v855
        %v2393 = vunpack.c.l.b16 %v856
        %v2394 = vunpack.c.h.b16 %v856
        %v2395 = vunpack.c.l.b16 %v857
        %v2396 = vunpack.c.h.b16 %v857
        %v2397 = vunpack.c.l.b16 %v858
        %v2398 = vunpack.c.h.b16 %v858
        %v2399 = vunpack.c.l.b16 %v859
        %v2400 = vunpack.c.h.b16 %v859
        %v2401 = vunpack.c.l.b16 %v860
        %v2402 = vunpack.c.h.b16 %v860
        %v2403 = vunpack.c.l.b16 %v861
        %v2404 = vunpack.c.h.b16 %v861
        %v2405 = vunpack.c.l.b16 %v862
        %v2406 = vunpack.c.h.b16 %v862
        %v2407 = vunpack.c.l.b16 %v863
        %v2408 = vunpack.c.h.b16 %v863
        %v2409 = vunpack.c.l.b16 %v864
        %v2410 = vunpack.c.h.b16 %v864
        %v2411 = vunpack.c.l.b16 %v865
        %v2412 = vunpack.c.h.b16 %v865
        %v2413 = vunpack.c.l.b16 %v866
        %v2414 = vunpack.c.h.b16 %v866
        %v2415 = vunpack.c.l.b16 %v867
        %v2416 = vunpack.c.h.b16 %v867
        %v2417 = vunpack.c.l.b16 %v868
        %v2418 = vunpack.c.h.b16 %v868
        %v2419 = vunpack.c.l.b16 %v869
        %v2420 = vunpack.c.h.b16 %v869
        %v2421 = vunpack.c.l.b16 %v870
        %v2422 = vunpack.c.h.b16 %v870
        %v2423 = vunpack.c.l.b16 %v871
        %v2424 = vunpack.c.h.b16 %v871
        %v2425 = vunpack.c.l.b16 %v872
        %v2426 = vunpack.c.h.b16 %v872
        %v2427 = vunpack.c.l.b16 %v873
        %v2428 = vunpack.c.h.b16 %v873
        %v2429 = vunpack.c.l.b16 %v874
        %v2430 = vunpack.c.h.b16 %v874
        %v2431 = vunpack.c.l.b16 %v875
        %v2432 = vunpack.c.h.b16 %v875
        %v2433 = vunpack.c.l.b16 %v876
        %v2434 = vunpack.c.h.b16 %v876
        %v2435 = vunpack.c.l.b16 %v877
        %v2436 = vunpack.c.h.b16 %v877
        %v2437 = vunpack.c.l.b16 %v878
        %v2438 = vunpack.c.h.b16 %v878
        %v2439 = vunpack.c.l.b16 %v879
        %v2440 = vunpack.c.h.b16 %v879
        %v2441 = vunpack.c.l.b16 %v880
        %v2442 = vunpack.c.h.b16 %v880
        %v2443 = vunpack.c.l.b16 %v881
        %v2444 = vunpack.c.h.b16 %v881
        %v2445 = vunpack.c.l.b16 %v882
        %v2446 = vunpack.c.h.b16 %v882
        %v2447 = vunpack.c.l.b16 %v883
        %v2448 = vunpack.c.h.b16 %v883
        %v2449 = vunpack.c.l.b16 %v884
        %v2450 = vunpack.c.h.b16 %v884
        %v2451 = vunpack.c.l.b16 %v885
        %v2452 = vunpack.c.h.b16 %v885
        %v2453 = vunpack.c.l.b16 %v886
        %v2454 = vunpack.c.h.b16 %v886
        %v2455 = vunpack.c.l.b16 %v887
        %v2456 = vunpack.c.h.b16 %v887
        %v2457 = vunpack.c.l.b16 %v888
        %v2458 = vunpack.c.h.b16 %v888
        %v2459 = vunpack.c.l.b16 %v889
        %v2460 = vunpack.c.h.b16 %v889
        %v2461 = vunpack.c.l.b16 %v890
        %v2462 = vunpack.c.h.b16 %v890
        %v2463 = vunpack.c.l.b16 %v891
        %v2464 = vunpack.c.h.b16 %v891
        %v2465 = vunpack.c.l.b16 %v892
        %v2466 = vunpack.c.h.b16 %v892
        %v2467 = vunpack.c.l.b16 %v893
        %v2468 = vunpack.c.h.b16 %v893
        %v2469 = vunpack.c.l.b16 %v894
        %v2470 = vunpack.c.h.b16 %v894
        %v2471 = vunpack.c.l.b16 %v895
        %v2472 = vunpack.c.h.b16 %v895
        %v2473 = vunpack.c.l.b16 %v896
        %v2474 = vunpack.c.h.b16 %v896
        %v2475 = vunpack.c.l.b16 %v897
        %v2476 = vunpack.c.h.b16 %v897
        %v2477 = vunpack.c.l.b16 %v898
        %v2478 = vunpack.c.h.b16 %v898
        %v2479 = vunpack.c.l.b16 %v899
        %v2480 = vunpack.c.h.b16 %v899
        %v2481 = vunpack.c.l.b16 %v900
        %v2482 = vunpack.c.h.b16 %v900
        %v2483 = vunpack.c.l.b16 %v901
        %v2484 = vunpack.c.h.b16 %v901
        %v2485 = vunpack.c.l.b16 %v902
        %v2486 = vunpack.c.h.b16 %v902
        %v2487 = vunpack.c.l.b16 %v903
        %v2488 = vunpack.c.h.b16 %v903
        %v2489 = vunpack.c.l.b16 %v904
        %v2490 = vunpack.c.h.b16 %v904
        %v2491 = vunpack.c.l.b16 %v905
        %v2492 = vunpack.c.h.b16 %v905
        %v2493 = vunpack.c.l.b16 %v906
        %v2494 = vunpack.c.h.b16 %v906
        %v2495 = vunpack.c.l.b16 %v907
        %v2496 = vunpack.c.h.b16 %v907
        %v2497 = vunpack.c.l.b16 %v908
        %v2498 = vunpack.c.h.b16 %v908
        %v2499 = vunpack.c.l.b16 %v909
        %v2500 = vunpack.c.h.b16 %v909
        %v2501 = vunpack.c.l.b16 %v910
        %v2502 = vunpack.c.h.b16 %v910
        %v2503 = vunpack.c.l.b16 %v911
        %v2504 = vunpack.c.h.b16 %v911
        %v2505 = vunpack.c.l.b16 %v912
        %v2506 = vunpack.c.h.b16 %v912
        %v2507 = vunpack.c.l.b16 %v913
        %v2508 = vunpack.c.h.b16 %v913
        %v2509 = vunpack.c.l.b16 %v914
        %v2510 = vunpack.c.h.b16 %v914
        %v2511 = vunpack.c.l.b16 %v915
        %v2512 = vunpack.c.h.b16 %v915
        %v2513 = vunpack.c.l.b16 %v916
        %v2514 = vunpack.c.h.b16 %v916
        %v2515 = vunpack.c.l.b16 %v917
        %v2516 = vunpack.c.h.b16 %v917
        %v2517 = vunpack.c.l.b16 %v918
        %v2518 = vunpack.c.h.b16 %v918
        %v2519 = vunpack.c.l.b16 %v919
        %v2520 = vunpack.c.h.b16 %v919
        %v2521 = vunpack.c.l.b16 %v920
        %v2522 = vunpack.c.h.b16 %v920
        %v2523 = vunpack.c.l.b16 %v921
        %v2524 = vunpack.c.h.b16 %v921
        %v2525 = vunpack.c.l.b16 %v922
        %v2526 = vunpack.c.h.b16 %v922
        %v2527 = vunpack.c.l.b16 %v923
        %v2528 = vunpack.c.h.b16 %v923
        %v2529 = vunpack.c.l.b16 %v924
        %v2530 = vunpack.c.h.b16 %v924
        %v2531 = vunpack.c.l.b16 %v925
        %v2532 = vunpack.c.h.b16 %v925
        %v2533 = vunpack.c.l.b16 %v926
        %v2534 = vunpack.c.h.b16 %v926
        %v2535 = vunpack.c.l.b16 %v927
        %v2536 = vunpack.c.h.b16 %v927
        %v2537 = vunpack.c.l.b16 %v928
        %v2538 = vunpack.c.h.b16 %v928
        %v2539 = vunpack.c.l.b16 %v929
        %v2540 = vunpack.c.h.b16 %v929
        %v2541 = vunpack.c.l.b16 %v930
        %v2542 = vunpack.c.h.b16 %v930
        %v2543 = vunpack.c.l.b16 %v931
        %v2544 = vunpack.c.h.b16 %v931
        %v2545 = vunpack.c.l.b16 %v932
        %v2546 = vunpack.c.h.b16 %v932
        %v2547 = vunpack.c.l.b16 %v933
        %v2548 = vunpack.c.h.b16 %v933
        %v2549 = vunpack.c.l.b16 %v934
        %v2550 = vunpack.c.h.b16 %v934
        %v2551 = vunpack.c.l.b16 %v935
        %v2552 = vunpack.c.h.b16 %v935
        %v2553 = vunpack.c.l.b16 %v936
        %v2554 = vunpack.c.h.b16 %v936
        %v2555 = vunpack.c.l.b16 %v937
        %v2556 = vunpack.c.h.b16 %v937
        %v2557 = vunpack.c.l.b16 %v938
        %v2558 = vunpack.c.h.b16 %v938
        %v2559 = vunpack.c.l.b16 %v939
        %v2560 = vunpack.c.h.b16 %v939
        %v2561 = vunpack.c.l.b16 %v940
        %v2562 = vunpack.c.h.b16 %v940
        %v2563 = vunpack.c.l.b16 %v941
        %v2564 = vunpack.c.h.b16 %v941
        %v2565 = vunpack.c.l.b16 %v942
        %v2566 = vunpack.c.h.b16 %v942
        %v2567 = vunpack.c.l.b16 %v943
        %v2568 = vunpack.c.h.b16 %v943
        %v2569 = vunpack.c.l.b16 %v944
        %v2570 = vunpack.c.h.b16 %v944
        %v2571 = vunpack.c.l.b16 %v945
        %v2572 = vunpack.c.h.b16 %v945
        %v2573 = vunpack.c.l.b16 %v946
        %v2574 = vunpack.c.h.b16 %v946
        %v2575 = vunpack.c.l.b16 %v947
        %v2576 = vunpack.c.h.b16 %v947
        %v2577 = vunpack.c.l.b16 %v948
        %v2578 = vunpack.c.h.b16 %v948
        %v2579 = vunpack.c.l.b16 %v949
        %v2580 = vunpack.c.h.b16 %v949
        %v2581 = vunpack.c.l.b16 %v950
        %v2582 = vunpack.c.h.b16 %v950
        %v2583 = vunpack.c.l.b16 %v951
        %v2584 = vunpack.c.h.b16 %v951
        %v2585 = vunpack.c.l.b16 %v952
        %v2586 = vunpack.c.h.b16 %v952
        %v2587 = vunpack.c.l.b16 %v953
        %v2588 = vunpack.c.h.b16 %v953
        %v2589 = vunpack.c.l.b16 %v954
        %v2590 = vunpack.c.h.b16 %v954
        %v2591 = vunpack.c.l.b16 %v955
        %v2592 = vunpack.c.h.b16 %v955
        %v2593 = vunpack.c.l.b16 %v956
        %v2594 = vunpack.c.h.b16 %v956
        %v2595 = vunpack.c.l.b16 %v957
        %v2596 = vunpack.c.h.b16 %v957
        %v2597 = vunpack.c.l.b16 %v958
        %v2598 = vunpack.c.h.b16 %v958
        %v2599 = vunpack.c.l.b16 %v959
        %v2600 = vunpack.c.h.b16 %v959
        %v2601 = vunpack.c.l.b16 %v960
        %v2602 = vunpack.c.h.b16 %v960
        %v2603 = vunpack.c.l.b16 %v961
        %v2604 = vunpack.c.h.b16 %v961
        %v2605 = vunpack.c.l.b16 %v962
        %v2606 = vunpack.c.h.b16 %v962
        %v2607 = vunpack.c.l.b16 %v963
        %v2608 = vunpack.c.h.b16 %v963
        %v2609 = vunpack.c.l.b16 %v964
        %v2610 = vunpack.c.h.b16 %v964
        %v2611 = vunpack.c.l.b16 %v965
        %v2612 = vunpack.c.h.b16 %v965
        %v2613 = vunpack.c.l.b16 %v966
        %v2614 = vunpack.c.h.b16 %v966
        %v2615 = vunpack.c.l.b16 %v967
        %v2616 = vunpack.c.h.b16 %v967
        %v2617 = vunpack.c.l.b16 %v968
        %v2618 = vunpack.c.h.b16 %v968
        %v2619 = vunpack.c.l.b16 %v969
        %v2620 = vunpack.c.h.b16 %v969
        %v2621 = vunpack.c.l.b16 %v970
        %v2622 = vunpack.c.h.b16 %v970
        %v2623 = vunpack.c.l.b16 %v971
        %v2624 = vunpack.c.h.b16 %v971
        %v2625 = vunpack.c.l.b16 %v972
        %v2626 = vunpack.c.h.b16 %v972
        %v2627 = vunpack.c.l.b16 %v973
        %v2628 = vunpack.c.h.b16 %v973
        %v2629 = vunpack.c.l.b16 %v974
        %v2630 = vunpack.c.h.b16 %v974
        %v2631 = vunpack.c.l.b16 %v975
        %v2632 = vunpack.c.h.b16 %v975
        %v2633 = vunpack.c.l.b16 %v976
        %v2634 = vunpack.c.h.b16 %v976
        %v2635 = vunpack.c.l.b16 %v977
        %v2636 = vunpack.c.h.b16 %v977
        %v2637 = vunpack.c.l.b16 %v978
        %v2638 = vunpack.c.h.b16 %v978
        %v2639 = vunpack.c.l.b16 %v979
        %v2640 = vunpack.c.h.b16 %v979
        %v2641 = vunpack.c.l.b16 %v980
        %v2642 = vunpack.c.h.b16 %v980
        %v2643 = vunpack.c.l.b16 %v981
        %v2644 = vunpack.c.h.b16 %v981
        %v2645 = vunpack.c.l.b16 %v982
        %v2646 = vunpack.c.h.b16 %v982
        %v2647 = vunpack.c.l.b16 %v983
        %v2648 = vunpack.c.h.b16 %v983
        %v2649 = vunpack.c.l.b16 %v984
        %v2650 = vunpack.c.h.b16 %v984
        %v2651 = vunpack.c.l.b16 %v985
        %v2652 = vunpack.c.h.b16 %v985
        %v2653 = vunpack.c.l.b16 %v986
        %v2654 = vunpack.c.h.b16 %v986
        %v2655 = vunpack.c.l.b16 %v987
        %v2656 = vunpack.c.h.b16 %v987
        %v2657 = vunpack.c.l.b16 %v988
        %v2658 = vunpack.c.h.b16 %v988
        %v2659 = vunpack.c.l.b16 %v989
        %v2660 = vunpack.c.h.b16 %v989
        %v2661 = vunpack.c.l.b16 %v990
        %v2662 = vunpack.c.h.b16 %v990
        %v2663 = vunpack.c.l.b16 %v991
        %v2664 = vunpack.c.h.b16 %v991
        %v2665 = vunpack.c.l.b16 %v992
        %v2666 = vunpack.c.h.b16 %v992
        %v2667 = vunpack.c.l.b16 %v993
        %v2668 = vunpack.c.h.b16 %v993
        %v2669 = vunpack.c.l.b16 %v994
        %v2670 = vunpack.c.h.b16 %v994
        %v2671 = vunpack.c.l.b16 %v995
        %v2672 = vunpack.c.h.b16 %v995
        %v2673 = vunpack.c.l.b16 %v996
        %v2674 = vunpack.c.h.b16 %v996
        %v2675 = vunpack.c.l.b16 %v997
        %v2676 = vunpack.c.h.b16 %v997
        %v2677 = vunpack.c.l.b16 %v998
        %v2678 = vunpack.c.h.b16 %v998
        %v2679 = vunpack.c.l.b16 %v999
        %v2680 = vunpack.c.h.b16 %v999
        %v2681 = vunpack.c.l.b16 %v1000
        %v2682 = vunpack.c.h.b16 %v1000
        %v2683 = vunpack.c.l.b16 %v1001
        %v2684 = vunpack.c.h.b16 %v1001
        %v2685 = vunpack.c.l.b16 %v1002
        %v2686 = vunpack.c.h.b16 %v1002
        %v2687 = vunpack.c.l.b16 %v1003
        %v2688 = vunpack.c.h.b16 %v1003
        %v2689 = vunpack.c.l.b16 %v1004
        %v2690 = vunpack.c.h.b16 %v1004
        %v2691 = vunpack.c.l.b16 %v1005
        %v2692 = vunpack.c.h.b16 %v1005
        %v2693 = vunpack.c.l.b16 %v1006
        %v2694 = vunpack.c.h.b16 %v1006
        %v2695 = vunpack.c.l.b16 %v1007
        %v2696 = vunpack.c.h.b16 %v1007
        %v2697 = vunpack.c.l.b16 %v1008
        %v2698 = vunpack.c.h.b16 %v1008
        %v2699 = vunpack.c.l.b16 %v1009
        %v2700 = vunpack.c.h.b16 %v1009
        %v2701 = vunpack.c.l.b16 %v1010
        %v2702 = vunpack.c.h.b16 %v1010
        %v2703 = vunpack.c.l.b16 %v1011
        %v2704 = vunpack.c.h.b16 %v1011
        %v2705 = vunpack.c.l.b16 %v1012
        %v2706 = vunpack.c.h.b16 %v1012
        %v2707 = vunpack.c.l.b16 %v1013
        %v2708 = vunpack.c.h.b16 %v1013
        %v2709 = vunpack.c.l.b16 %v1014
        %v2710 = vunpack.c.h.b16 %v1014
        %v2711 = vunpack.c.l.b16 %v1015
        %v2712 = vunpack.c.h.b16 %v1015
        %v2713 = vunpack.c.l.b16 %v1016
        %v2714 = vunpack.c.h.b16 %v1016
        %v2715 = vunpack.c.l.b16 %v1017
        %v2716 = vunpack.c.h.b16 %v1017
        %v2717 = vunpack.c.l.b16 %v1018
        %v2718 = vunpack.c.h.b16 %v1018
        %v2719 = vunpack.c.l.b16 %v1019
        %v2720 = vunpack.c.h.b16 %v1019
        %v2721 = vunpack.c.l.b16 %v1020
        %v2722 = vunpack.c.h.b16 %v1020
        %v2723 = vunpack.c.l.b16 %v1021
        %v2724 = vunpack.c.h.b16 %v1021
        %v2725 = vunpack.c.l.b16 %v1022
        %v2726 = vunpack.c.h.b16 %v1022
        %v2727 = vunpack.c.l.b16 %v1023
        %v2728 = vunpack.c.h.b16 %v1023
        %v2729 = vunpack.c.l.b16 %v1024
        %v2730 = vunpack.c.h.b16 %v1024
        %v2731 = vunpack.c.l.b16 %v1025
        %v2732 = vunpack.c.h.b16 %v1025
        %v2733 = vunpack.c.l.b16 %v1026
        %v2734 = vunpack.c.h.b16 %v1026
        %v2735 = vunpack.c.l.b16 %v1027
        %v2736 = vunpack.c.h.b16 %v1027
        %v2737 = vunpack.c.l.b16 %v1028
        %v2738 = vunpack.c.h.b16 %v1028
        %v2739 = vunpack.c.l.b16 %v1029
        %v2740 = vunpack.c.h.b16 %v1029
        %v2741 = vunpack.c.l.b16 %v1030
        %v2742 = vunpack.c.h.b16 %v1030
        %v2743 = vunpack.c.l.b16 %v1031
        %v2744 = vunpack.c.h.b16 %v1031
        %v2745 = vunpack.c.l.b16 %v1032
        %v2746 = vunpack.c.h.b16 %v1032
        %v2747 = vunpack.c.l.b16 %v1033
        %v2748 = vunpack.c.h.b16 %v1033
        %v2749 = vunpack.c.l.b16 %v1034
        %v2750 = vunpack.c.h.b16 %v1034
        %v2751 = vunpack.c.l.b16 %v1035
        %v2752 = vunpack.c.h.b16 %v1035
        %v2753 = vunpack.c.l.b16 %v1036
        %v2754 = vunpack.c.h.b16 %v1036
        %v2755 = vunpack.c.l.b16 %v1037
        %v2756 = vunpack.c.h.b16 %v1037
        %v2757 = vunpack.c.l.b16 %v1038
        %v2758 = vunpack.c.h.b16 %v1038
        %v2759 = vunpack.c.l.b16 %v1039
        %v2760 = vunpack.c.h.b16 %v1039
        %v2761 = vunpack.c.l.b16 %v1040
        %v2762 = vunpack.c.h.b16 %v1040
        %v2763 = vunpack.c.l.b16 %v1041
        %v2764 = vunpack.c.h.b16 %v1041
        %v2765 = vunpack.c.l.b16 %v1042
        %v2766 = vunpack.c.h.b16 %v1042
        %v2767 = vunpack.c.l.b16 %v1043
        %v2768 = vunpack.c.h.b16 %v1043
        %v2769 = vunpack.c.l.b16 %v1044
        %v2770 = vunpack.c.h.b16 %v1044
        %v2771 = vunpack.c.l.b16 %v1045
        %v2772 = vunpack.c.h.b16 %v1045
        %v2773 = vunpack.c.l.b16 %v1046
        %v2774 = vunpack.c.h.b16 %v1046
        %v2775 = vpack.c.b16 %v1629, %v1623
        %v2776 = vpack.c.b16 %v1630, %v1624
        %v2777 = vpack.c.b16 %v1631, %v1625
        %v2778 = vpack.c.b16 %v1632, %v1626
        %v2779 = vpack.c.b16 %v1633, %v1627
        %v2780 = vpack.c.b16 %v1634, %v1628
        %v2781 = vpack.c.b16 %v1641, %v1635
        %v2782 = vpack.c.b16 %v1642, %v1636
        %v2783 = vpack.c.b16 %v1643, %v1637
        %v2784 = vpack.c.b16 %v1644, %v1638
        %v2785 = vpack.c.b16 %v1645, %v1639
        %v2786 = vpack.c.b16 %v1646, %v1640
        %v2787 = vpack.c.b16 %v1653, %v1647
        %v2788 = vpack.c.b16 %v1654, %v1648
        %v2789 = vpack.c.b16 %v1655, %v1649
        %v2790 = vpack.c.b16 %v1656, %v1650
        %v2791 = vpack.c.b16 %v1657, %v1651
        %v2792 = vpack.c.b16 %v1658, %v1652
        %v2793 = vpack.c.b16 %v1665, %v1659
        %v2794 = vpack.c.b16 %v1666, %v1660
        %v2795 = vpack.c.b16 %v1667, %v1661
        %v2796 = vpack.c.b16 %v1668, %v1662
        %v2797 = vpack.c.b16 %v1669, %v1663
        %v2798 = vpack.c.b16 %v1670, %v1664
        %v2799 = vpack.c.b16 %v1677, %v1671
        %v2800 = vpack.c.b16 %v1678, %v1672
        %v2801 = vpack.c.b16 %v1679, %v1673
        %v2802 = vpack.c.b16 %v1680, %v1674
        %v2803 = vpack.c.b16 %v1681, %v1675
        %v2804 = vpack.c.b16 %v1682, %v1676
        %v2805 = vpack.c.b16 %v1689, %v1683
        %v2806 = vpack.c.b16 %v1690, %v1684
        %v2807 = vpack.c.b16 %v1691, %v1685
        %v2808 = vpack.c.b16 %v1692, %v1686
        %v2809 = vpack.c.b16 %v1693, %v1687
        %v2810 = vpack.c.b16 %v1694, %v1688
        %v2811 = vpack.c.b16 %v1701, %v1695
        %v2812 = vpack.c.b16 %v1702, %v1696
        %v2813 = vpack.c.b16 %v1703, %v1697
        %v2814 = vpack.c.b16 %v1704, %v1698
        %v2815 = vpack.c.b16 %v1705, %v1699
        %v2816 = vpack.c.b16 %v1706, %v1700
        %v2817 = vpack.c.b16 %v1713, %v1707
        %v2818 = vpack.c.b16 %v1714, %v1708
        %v2819 = vpack.c.b16 %v1715, %v1709
        %v2820 = vpack.c.b16 %v1716, %v1710
        %v2821 = vpack.c.b16 %v1717, %v1711
        %v2822 = vpack.c.b16 %v1718, %v1712
        %v2823 = vpack.c.b16 %v1725, %v1719
        %v2824 = vpack.c.b16 %v1726, %v1720
        %v2825 = vpack.c.b16 %v1727, %v1721
        %v2826 = vpack.c.b16 %v1728, %v1722
        %v2827 = vpack.c.b16 %v1729, %v1723
        %v2828 = vpack.c.b16 %v1730, %v1724
        %v2829 = vpack.c.b16 %v1737, %v1731
        %v2830 = vpack.c.b16 %v1738, %v1732
        %v2831 = vpack.c.b16 %v1739, %v1733
        %v2832 = vpack.c.b16 %v1740, %v1734
        %v2833 = vpack.c.b16 %v1741, %v1735
        %v2834 = vpack.c.b16 %v1742, %v1736
        %v2835 = vpack.c.b16 %v1749, %v1743
        %v2836 = vpack.c.b16 %v1750, %v1744
        %v2837 = vpack.c.b16 %v1751, %v1745
        %v2838 = vpack.c.b16 %v1752, %v1746
        %v2839 = vpack.c.b16 %v1753, %v1747
        %v2840 = vpack.c.b16 %v1754, %v1748
        %v2841 = vpack.c.b16 %v1761, %v1755
        %v2842 = vpack.c.b16 %v1762, %v1756
        %v2843 = vpack.c.b16 %v1763, %v1757
        %v2844 = vpack.c.b16 %v1764, %v1758
        %v2845 = vpack.c.b16 %v1765, %v1759
        %v2846 = vpack.c.b16 %v1766, %v1760
        %v2847 = vpack.c.b16 %v1773, %v1767
        %v2848 = vpack.c.b16 %v1774, %v1768
        %v2849 = vpack.c.b16 %v1775, %v1769
        %v2850 = vpack.c.b16 %v1776, %v1770
        %v2851 = vpack.c.b16 %v1777, %v1771
        %v2852 = vpack.c.b16 %v1778, %v1772
        %v2853 = vpack.c.b16 %v1785, %v1779
        %v2854 = vpack.c.b16 %v1786, %v1780
        %v2855 = vpack.c.b16 %v1787, %v1781
        %v2856 = vpack.c.b16 %v1788, %v1782
        %v2857 = vpack.c.b16 %v1789, %v1783
        %v2858 = vpack.c.b16 %v1790, %v1784
        %v2859 = vpack.c.b16 %v1797, %v1791
        %v2860 = vpack.c.b16 %v1798, %v1792
        %v2861 = vpack.c.b16 %v1799, %v1793
        %v2862 = vpack.c.b16 %v1800, %v1794
        %v2863 = vpack.c.b16 %v1801, %v1795
        %v2864 = vpack.c.b16 %v1802, %v1796
        %v2865 = vpack.c.b16 %v1809, %v1803
        %v2866 = vpack.c.b16 %v1810, %v1804
        %v2867 = vpack.c.b16 %v1811, %v1805
        %v2868 = vpack.c.b16 %v1812, %v1806
        %v2869 = vpack.c.b16 %v1813, %v1807
        %v2870 = vpack.c.b16 %v1814, %v1808
        %v2871 = vpack.c.b16 %v1821, %v1815
        %v2872 = vpack.c.b16 %v1822, %v1816
        %v2873 = vpack.c.b16 %v1823, %v1817
        %v2874 = vpack.c.b16 %v1824, %v1818
        %v2875 = vpack.c.b16 %v1825, %v1819
        %v2876 = vpack.c.b16 %v1826, %v1820
        %v2877 = vpack.c.b16 %v1833, %v1827
        %v2878 = vpack.c.b16 %v1834, %v1828
        %v2879 = vpack.c.b16 %v1835, %v1829
        %v2880 = vpack.c.b16 %v1836, %v1830
        %v2881 = vpack.c.b16 %v1837, %v1831
        %v2882 = vpack.c.b16 %v1838, %v1832
        %v2883 = vpack.c.b16 %v1845, %v1839
        %v2884 = vpack.c.b16 %v1846, %v1840
        %v2885 = vpack.c.b16 %v1847, %v1841
        %v2886 = vpack.c.b16 %v1848, %v1842
        %v2887 = vpack.c.b16 %v1849, %v1843
        %v2888 = vpack.c.b16 %v1850, %v1844
        %v2889 = vpack.c.b16 %v1857, %v1851
        %v2890 = vpack.c.b16 %v1858, %v1852
        %v2891 = vpack.c.b16 %v1859, %v1853
        %v2892 = vpack.c.b16 %v1860, %v1854
        %v2893 = vpack.c.b16 %v1861, %v1855
        %v2894 = vpack.c.b16 %v1862, %v1856
        %v2895 = vpack.c.b16 %v1869, %v1863
        %v2896 = vpack.c.b16 %v1870, %v1864
        %v2897 = vpack.c.b16 %v1871, %v1865
        %v2898 = vpack.c.b16 %v1872, %v1866
        %v2899 = vpack.c.b16 %v1873, %v1867
        %v2900 = vpack.c.b16 %v1874, %v1868
        %v2901 = vpack.c.b16 %v1881, %v1875
        %v2902 = vpack.c.b16 %v1882, %v1876
        %v2903 = vpack.c.b16 %v1883, %v1877
        %v2904 = vpack.c.b16 %v1884, %v1878
        %v2905 = vpack.c.b16 %v1885, %v1879
        %v2906 = vpack.c.b16 %v1886, %v1880
        %v2907 = vpack.c.b16 %v1893, %v1887
        %v2908 = vpack.c.b16 %v1894, %v1888
        %v2909 = vpack.c.b16 %v1895, %v1889
        %v2910 = vpack.c.b16 %v1896, %v1890
        %v2911 = vpack.c.b16 %v1897, %v1891
        %v2912 = vpack.c.b16 %v1898, %v1892
        %v2913 = vpack.c.b16 %v1905, %v1899
        %v2914 = vpack.c.b16 %v1906, %v1900
        %v2915 = vpack.c.b16 %v1907, %v1901
        %v2916 = vpack.c.b16 %v1908, %v1902
        %v2917 = vpack.c.b16 %v1909, %v1903
        %v2918 = vpack.c.b16 %v1910, %v1904
        %v2919 = vpack.c.b16 %v1917, %v1911
        %v2920 = vpack.c.b16 %v1918, %v1912
        %v2921 = vpack.c.b16 %v1919, %v1913
        %v2922 = vpack.c.b16 %v1920, %v1914
        %v2923 = vpack.c.b16 %v1921, %v1915
        %v2924 = vpack.c.b16 %v1922, %v1916
        %v2925 = vpack.c.b16 %v1929, %v1923
        %v2926 = vpack.c.b16 %v1930, %v1924
        %v2927 = vpack.c.b16 %v1931, %v1925
        %v2928 = vpack.c.b16 %v1932, %v1926
        %v2929 = vpack.c.b16 %v1933, %v1927
        %v2930 = vpack.c.b16 %v1934, %v1928
        %v2931 = vpack.c.b16 %v1941, %v1935
        %v2932 = vpack.c.b16 %v1942, %v1936
        %v2933 = vpack.c.b16 %v1943, %v1937
        %v2934 = vpack.c.b16 %v1944, %v1938
        %v2935 = vpack.c.b16 %v1945, %v1939
        %v2936 = vpack.c.b16 %v1946, %v1940
        %v2937 = vpack.c.b16 %v1953, %v1947
        %v2938 = vpack.c.b16 %v1954, %v1948
        %v2939 = vpack.c.b16 %v1955, %v1949
        %v2940 = vpack.c.b16 %v1956, %v1950
        %v2941 = vpack.c.b16 %v1957, %v1951
        %v2942 = vpack.c.b16 %v1958, %v1952
        %v2943 = vpack.c.b16 %v1965, %v1959
        %v2944 = vpack.c.b16 %v1966, %v1960
        %v2945 = vpack.c.b16 %v1967, %v1961
        %v2946 = vpack.c.b16 %v1968, %v1962
        %v2947 = vpack.c.b16 %v1969, %v1963
        %v2948 = vpack.c.b16 %v1970, %v1964
        %v2949 = vpack.c.b16 %v1977, %v1971
        %v2950 = vpack.c.b16 %v1978, %v1972
        %v2951 = vpack.c.b16 %v1979, %v1973
        %v2952 = vpack.c.b16 %v1980, %v1974
        %v2953 = vpack.c.b16 %v1981, %v1975
        %v2954 = vpack.c.b16 %v1982, %v1976
        %v2955 = vpack.c.b16 %v1989, %v1983
        %v2956 = vpack.c.b16 %v1990, %v1984
        %v2957 = vpack.c.b16 %v1991, %v1985
        %v2958 = vpack.c.b16 %v1992, %v1986
        %v2959 = vpack.c.b16 %v1993, %v1987
        %v2960 = vpack.c.b16 %v1994, %v1988
        %v2961 = vpack.c.b16 %v2001, %v1995
        %v2962 = vpack.c.b16 %v2002, %v1996
        %v2963 = vpack.c.b16 %v2003, %v1997
        %v2964 = vpack.c.b16 %v2004, %v1998
        %v2965 = vpack.c.b16 %v2005, %v1999
        %v2966 = vpack.c.b16 %v2006, %v2000
        %v2967 = vpack.c.b16 %v2013, %v2007
        %v2968 = vpack.c.b16 %v2014, %v2008
        %v2969 = vpack.c.b16 %v2015, %v2009
        %v2970 = vpack.c.b16 %v2016, %v2010
        %v2971 = vpack.c.b16 %v2017, %v2011
        %v2972 = vpack.c.b16 %v2018, %v2012
        %v2973 = vpack.c.b16 %v2025, %v2019
        %v2974 = vpack.c.b16 %v2026, %v2020
        %v2975 = vpack.c.b16 %v2027, %v2021
        %v2976 = vpack.c.b16 %v2028, %v2022
        %v2977 = vpack.c.b16 %v2029, %v2023
        %v2978 = vpack.c.b16 %v2030, %v2024
        %v2979 = vpack.c.b16 %v2037, %v2031
        %v2980 = vpack.c.b16 %v2038, %v2032
        %v2981 = vpack.c.b16 %v2039, %v2033
        %v2982 = vpack.c.b16 %v2040, %v2034
        %v2983 = vpack.c.b16 %v2041, %v2035
        %v2984 = vpack.c.b16 %v2042, %v2036
        %v2985 = vpack.c.b16 %v2049, %v2043
        %v2986 = vpack.c.b16 %v2050, %v2044
        %v2987 = vpack.c.b16 %v2051, %v2045
        %v2988 = vpack.c.b16 %v2052, %v2046
        %v2989 = vpack.c.b16 %v2053, %v2047
        %v2990 = vpack.c.b16 %v2054, %v2048
        %v2991 = vpack.c.b16 %v2061, %v2055
        %v2992 = vpack.c.b16 %v2062, %v2056
        %v2993 = vpack.c.b16 %v2063, %v2057
        %v2994 = vpack.c.b16 %v2064, %v2058
        %v2995 = vpack.c.b16 %v2065, %v2059
        %v2996 = vpack.c.b16 %v2066, %v2060
        %v2997 = vpack.c.b16 %v2073, %v2067
        %v2998 = vpack.c.b16 %v2074, %v2068
        %v2999 = vpack.c.b16 %v2075, %v2069
        %v3000 = vpack.c.b16 %v2076, %v2070
        %v3001 = vpack.c.b16 %v2077, %v2071
        %v3002 = vpack.c.b16 %v2078, %v2072
        %v3003 = vpack.c.b16 %v2085, %v2079
        %v3004 = vpack.c.b16 %v2086, %v2080
        %v3005 = vpack.c.b16 %v2087, %v2081
        %v3006 = vpack.c.b16 %v2088, %v2082
        %v3007 = vpack.c.b16 %v2089, %v2083
        %v3008 = vpack.c.b16 %v2090, %v2084
        %v3009 = vpack.c.b16 %v2097, %v2091
        %v3010 = vpack.c.b16 %v2098, %v2092
        %v3011 = vpack.c.b16 %v2099, %v2093
        %v3012 = vpack.c.b16 %v2100, %v2094
        %v3013 = vpack.c.b16 %v2101, %v2095
        %v3014 = vpack.c.b16 %v2102, %v2096
        %v3015 = vpack.c.b16 %v2109, %v2103
        %v3016 = vpack.c.b16 %v2110, %v2104
        %v3017 = vpack.c.b16 %v2111, %v2105
        %v3018 = vpack.c.b16 %v2112, %v2106
        %v3019 = vpack.c.b16 %v2113, %v2107
        %v3020 = vpack.c.b16 %v2114, %v2108
        %v3021 = vpack.c.b16 %v2121, %v2115
        %v3022 = vpack.c.b16 %v2122, %v2116
        %v3023 = vpack.c.b16 %v2123, %v2117
        %v3024 = vpack.c.b16 %v2124, %v2118
        %v3025 = vpack.c.b16 %v2125, %v2119
        %v3026 = vpack.c.b16 %v2126, %v2120
        %v3027 = vpack.c.b16 %v2133, %v2127
        %v3028 = vpack.c.b16 %v2134, %v2128
        %v3029 = vpack.c.b16 %v2135, %v2129
        %v3030 = vpack.c.b16 %v2136, %v2130
        %v3031 = vpack.c.b16 %v2137, %v2131
        %v3032 = vpack.c.b16 %v2138, %v2132
        %v3033 = vpack.c.b16 %v2145, %v2139
        %v3034 = vpack.c.b16 %v2146, %v2140
        %v3035 = vpack.c.b16 %v2147, %v2141
        %v3036 = vpack.c.b16 %v2148, %v2142
        %v3037 = vpack.c.b16 %v2149, %v2143
        %v3038 = vpack.c.b16 %v2150, %v2144
        %v3039 = vpack.c.b16 %v2157, %v2151
        %v3040 = vpack.c.b16 %v2158, %v2152
        %v3041 = vpack.c.b16 %v2159, %v2153
        %v3042 = vpack.c.b16 %v2160, %v2154
        %v3043 = vpack.c.b16 %v2161, %v2155
        %v3044 = vpack.c.b16 %v2162, %v2156
        %v3045 = vpack.c.b16 %v2169, %v2163
        %v3046 = vpack.c.b16 %v2170, %v2164
        %v3047 = vpack.c.b16 %v2171, %v2165
        %v3048 = vpack.c.b16 %v2172, %v2166
        %v3049 = vpack.c.b16 %v2173, %v2167
        %v3050 = vpack.c.b16 %v2174, %v2168
        %v3051 = vpack.c.b16 %v2181, %v2175
        %v3052 = vpack.c.b16 %v2182, %v2176
        %v3053 = vpack.c.b16 %v2183, %v2177
        %v3054 = vpack.c.b16 %v2184, %v2178
        %v3055 = vpack.c.b16 %v2185, %v2179
        %v3056 = vpack.c.b16 %v2186, %v2180
        %v3057 = vpack.c.b16 %v2193, %v2187
        %v3058 = vpack.c.b16 %v2194, %v2188
        %v3059 = vpack.c.b16 %v2195, %v2189
        %v3060 = vpack.c.b16 %v2196, %v2190
        %v3061 = vpack.c.b16 %v2197, %v2191
        %v3062 = vpack.c.b16 %v2198, %v2192
        %v3063 = vpack.c.b16 %v2205, %v2199
        %v3064 = vpack.c.b16 %v2206, %v2200
        %v3065 = vpack.c.b16 %v2207, %v2201
        %v3066 = vpack.c.b16 %v2208, %v2202
        %v3067 = vpack.c.b16 %v2209, %v2203
        %v3068 = vpack.c.b16 %v2210, %v2204
        %v3069 = vpack.c.b16 %v2217, %v2211
        %v3070 = vpack.c.b16 %v2218, %v2212
        %v3071 = vpack.c.b16 %v2219, %v2213
        %v3072 = vpack.c.b16 %v2220, %v2214
        %v3073 = vpack.c.b16 %v2221, %v2215
        %v3074 = vpack.c.b16 %v2222, %v2216
        %v3075 = vpack.c.b16 %v2229, %v2223
        %v3076 = vpack.c.b16 %v2230, %v2224
        %v3077 = vpack.c.b16 %v2231, %v2225
        %v3078 = vpack.c.b16 %v2232, %v2226
        %v3079 = vpack.c.b16 %v2233, %v2227
        %v3080 = vpack.c.b16 %v2234, %v2228
        %v3081 = vpack.c.b16 %v2241, %v2235
        %v3082 = vpack.c.b16 %v2242, %v2236
        %v3083 = vpack.c.b16 %v2243, %v2237
        %v3084 = vpack.c.b16 %v2244, %v2238
        %v3085 = vpack.c.b16 %v2245, %v2239
        %v3086 = vpack.c.b16 %v2246, %v2240
        %v3087 = vpack.c.b16 %v2253, %v2247
        %v3088 = vpack.c.b16 %v2254, %v2248
        %v3089 = vpack.c.b16 %v2255, %v2249
        %v3090 = vpack.c.b16 %v2256, %v2250
        %v3091 = vpack.c.b16 %v2257, %v2251
        %v3092 = vpack.c.b16 %v2258, %v2252
        %v3093 = vpack.c.b16 %v2265, %v2259
        %v3094 = vpack.c.b16 %v2266, %v2260
        %v3095 = vpack.c.b16 %v2267, %v2261
        %v3096 = vpack.c.b16 %v2268, %v2262
        %v3097 = vpack.c.b16 %v2269, %v2263
        %v3098 = vpack.c.b16 %v2270, %v2264
        %v3099 = vpack.c.b16 %v2277, %v2271
        %v3100 = vpack.c.b16 %v2278, %v2272
        %v3101 = vpack.c.b16 %v2279, %v2273
        %v3102 = vpack.c.b16 %v2280, %v2274
        %v3103 = vpack.c.b16 %v2281, %v2275
        %v3104 = vpack.c.b16 %v2282, %v2276
        %v3105 = vpack.c.b16 %v2289, %v2283
        %v3106 = vpack.c.b16 %v2290, %v2284
        %v3107 = vpack.c.b16 %v2291, %v2285
        %v3108 = vpack.c.b16 %v2292, %v2286
        %v3109 = vpack.c.b16 %v2293, %v2287
        %v3110 = vpack.c.b16 %v2294, %v2288
        %v3111 = vpack.c.b16 %v2301, %v2295
        %v3112 = vpack.c.b16 %v2302, %v2296
        %v3113 = vpack.c.b16 %v2303, %v2297
        %v3114 = vpack.c.b16 %v2304, %v2298
        %v3115 = vpack.c.b16 %v2305, %v2299
        %v3116 = vpack.c.b16 %v2306, %v2300
        %v3117 = vpack.c.b16 %v2313, %v2307
        %v3118 = vpack.c.b16 %v2314, %v2308
        %v3119 = vpack.c.b16 %v2315, %v2309
        %v3120 = vpack.c.b16 %v2316, %v2310
        %v3121 = vpack.c.b16 %v2317, %v2311
        %v3122 = vpack.c.b16 %v2318, %v2312
        %v3123 = vpack.c.b16 %v2325, %v2319
        %v3124 = vpack.c.b16 %v2326, %v2320
        %v3125 = vpack.c.b16 %v2327, %v2321
        %v3126 = vpack.c.b16 %v2328, %v2322
        %v3127 = vpack.c.b16 %v2329, %v2323
        %v3128 = vpack.c.b16 %v2330, %v2324
        %v3129 = vpack.c.b16 %v2337, %v2331
        %v3130 = vpack.c.b16 %v2338, %v2332
        %v3131 = vpack.c.b16 %v2339, %v2333
        %v3132 = vpack.c.b16 %v2340, %v2334
        %v3133 = vpack.c.b16 %v2341, %v2335
        %v3134 = vpack.c.b16 %v2342, %v2336
        %v3135 = vpack.c.b16 %v2349, %v2343
        %v3136 = vpack.c.b16 %v2350, %v2344
        %v3137 = vpack.c.b16 %v2351, %v2345
        %v3138 = vpack.c.b16 %v2352, %v2346
        %v3139 = vpack.c.b16 %v2353, %v2347
        %v3140 = vpack.c.b16 %v2354, %v2348
        %v3141 = vpack.c.b16 %v2361, %v2355
        %v3142 = vpack.c.b16 %v2362, %v2356
        %v3143 = vpack.c.b16 %v2363, %v2357
        %v3144 = vpack.c.b16 %v2364, %v2358
        %v3145 = vpack.c.b16 %v2365, %v2359
        %v3146 = vpack.c.b16 %v2366, %v2360
        %v3147 = vpack.c.b16 %v2373, %v2367
        %v3148 = vpack.c.b16 %v2374, %v2368
        %v3149 = vpack.c.b16 %v2375, %v2369
        %v3150 = vpack.c.b16 %v2376, %v2370
        %v3151 = vpack.c.b16 %v2377, %v2371
        %v3152 = vpack.c.b16 %v2378, %v2372
        %v3153 = vpack.c.b16 %v2385, %v2379
        %v3154 = vpack.c.b16 %v2386, %v2380
        %v3155 = vpack.c.b16 %v2387, %v2381
        %v3156 = vpack.c.b16 %v2388, %v2382
        %v3157 = vpack.c.b16 %v2389, %v2383
        %v3158 = vpack.c.b16 %v2390, %v2384
        %v3159 = vpack.c.b16 %v2397, %v2391
        %v3160 = vpack.c.b16 %v2398, %v2392
        %v3161 = vpack.c.b16 %v2399, %v2393
        %v3162 = vpack.c.b16 %v2400, %v2394
        %v3163 = vpack.c.b16 %v2401, %v2395
        %v3164 = vpack.c.b16 %v2402, %v2396
        %v3165 = vpack.c.b16 %v2409, %v2403
        %v3166 = vpack.c.b16 %v2410, %v2404
        %v3167 = vpack.c.b16 %v2411, %v2405
        %v3168 = vpack.c.b16 %v2412, %v2406
        %v3169 = vpack.c.b16 %v2413, %v2407
        %v3170 = vpack.c.b16 %v2414, %v2408
        %v3171 = vpack.c.b16 %v2421, %v2415
        %v3172 = vpack.c.b16 %v2422, %v2416
        %v3173 = vpack.c.b16 %v2423, %v2417
        %v3174 = vpack.c.b16 %v2424, %v2418
        %v3175 = vpack.c.b16 %v2425, %v2419
        %v3176 = vpack.c.b16 %v2426, %v2420
        %v3177 = vpack.c.b16 %v2433, %v2427
        %v3178 = vpack.c.b16 %v2434, %v2428
        %v3179 = vpack.c.b16 %v2435, %v2429
        %v3180 = vpack.c.b16 %v2436, %v2430
        %v3181 = vpack.c.b16 %v2437, %v2431
        %v3182 = vpack.c.b16 %v2438, %v2432
        %v3183 = vpack.c.b16 %v2445, %v2439
        %v3184 = vpack.c.b16 %v2446, %v2440
        %v3185 = vpack.c.b16 %v2447, %v2441
        %v3186 = vpack.c.b16 %v2448, %v2442
        %v3187 = vpack.c.b16 %v2449, %v2443
        %v3188 = vpack.c.b16 %v2450, %v2444
        %v3189 = vpack.c.b16 %v2457, %v2451
        %v3190 = vpack.c.b16 %v2458, %v2452
        %v3191 = vpack.c.b16 %v2459, %v2453
        %v3192 = vpack.c.b16 %v2460, %v2454
        %v3193 = vpack.c.b16 %v2461, %v2455
        %v3194 = vpack.c.b16 %v2462, %v2456
        %v3195 = vpack.c.b16 %v2469, %v2463
        %v3196 = vpack.c.b16 %v2470, %v2464
        %v3197 = vpack.c.b16 %v2471, %v2465
        %v3198 = vpack.c.b16 %v2472, %v2466
        %v3199 = vpack.c.b16 %v2473, %v2467
        %v3200 = vpack.c.b16 %v2474, %v2468
        %v3201 = vpack.c.b16 %v2481, %v2475
        %v3202 = vpack.c.b16 %v2482, %v2476
        %v3203 = vpack.c.b16 %v2483, %v2477
        %v3204 = vpack.c.b16 %v2484, %v2478
        %v3205 = vpack.c.b16 %v2485, %v2479
        %v3206 = vpack.c.b16 %v2486, %v2480
        %v3207 = vpack.c.b16 %v2493, %v2487
        %v3208 = vpack.c.b16 %v2494, %v2488
        %v3209 = vpack.c.b16 %v2495, %v2489
        %v3210 = vpack.c.b16 %v2496, %v2490
        %v3211 = vpack.c.b16 %v2497, %v2491
        %v3212 = vpack.c.b16 %v2498, %v2492
        %v3213 = vpack.c.b16 %v2505, %v2499
        %v3214 = vpack.c.b16 %v2506, %v2500
        %v3215 = vpack.c.b16 %v2507, %v2501
        %v3216 = vpack.c.b16 %v2508, %v2502
        %v3217 = vpack.c.b16 %v2509, %v2503
        %v3218 = vpack.c.b16 %v2510, %v2504
        %v3219 = vpack.c.b16 %v2517, %v2511
        %v3220 = vpack.c.b16 %v2518, %v2512
        %v3221 = vpack.c.b16 %v2519, %v2513
        %v3222 = vpack.c.b16 %v2520, %v2514
        %v3223 = vpack.c.b16 %v2521, %v2515
        %v3224 = vpack.c.b16 %v2522, %v2516
        %v3225 = vpack.c.b16 %v2529, %v2523
        %v3226 = vpack.c.b16 %v2530, %v2524
        %v3227 = vpack.c.b16 %v2531, %v2525
        %v3228 = vpack.c.b16 %v2532, %v2526
        %v3229 = vpack.c.b16 %v2533, %v2527
        %v3230 = vpack.c.b16 %v2534, %v2528
        %v3231 = vpack.c.b16 %v2541, %v2535
        %v3232 = vpack.c.b16 %v2542, %v2536
        %v3233 = vpack.c.b16 %v2543, %v2537
        %v3234 = vpack.c.b16 %v2544, %v2538
        %v3235 = vpack.c.b16 %v2545, %v2539
        %v3236 = vpack.c.b16 %v2546, %v2540
        %v3237 = vpack.c.b16 %v2553, %v2547
        %v3238 = vpack.c.b16 %v2554, %v2548
        %v3239 = vpack.c.b16 %v2555, %v2549
        %v3240 = vpack.c.b16 %v2556, %v2550
        %v3241 = vpack.c.b16 %v2557, %v2551
        %v3242 = vpack.c.b16 %v2558, %v2552
        %v3243 = vpack.c.b16 %v2565, %v2559
        %v3244 = vpack.c.b16 %v2566, %v2560
        %v3245 = vpack.c.b16 %v2567, %v2561
        %v3246 = vpack.c.b16 %v2568, %v2562
        %v3247 = vpack.c.b16 %v2569, %v2563
        %v3248 = vpack.c.b16 %v2570, %v2564
        %v3249 = vpack.c.b16 %v2577, %v2571
        %v3250 = vpack.c.b16 %v2578, %v2572
        %v3251 = vpack.c.b16 %v2579, %v2573
        %v3252 = vpack.c.b16 %v2580, %v2574
        %v3253 = vpack.c.b16 %v2581, %v2575
        %v3254 = vpack.c.b16 %v2582, %v2576
        %v3255 = vpack.c.b16 %v2589, %v2583
        %v3256 = vpack.c.b16 %v2590, %v2584
        %v3257 = vpack.c.b16 %v2591, %v2585
        %v3258 = vpack.c.b16 %v2592, %v2586
        %v3259 = vpack.c.b16 %v2593, %v2587
        %v3260 = vpack.c.b16 %v2594, %v2588
        %v3261 = vpack.c.b16 %v2601, %v2595
        %v3262 = vpack.c.b16 %v2602, %v2596
        %v3263 = vpack.c.b16 %v2603, %v2597
        %v3264 = vpack.c.b16 %v2604, %v2598
        %v3265 = vpack.c.b16 %v2605, %v2599
        %v3266 = vpack.c.b16 %v2606, %v2600
        %v3267 = vpack.c.b16 %v2613, %v2607
        %v3268 = vpack.c.b16 %v2614, %v2608
        %v3269 = vpack.c.b16 %v2615, %v2609
        %v3270 = vpack.c.b16 %v2616, %v2610
        %v3271 = vpack.c.b16 %v2617, %v2611
        %v3272 = vpack.c.b16 %v2618, %v2612
        %v3273 = vpack.c.b16 %v2625, %v2619
        %v3274 = vpack.c.b16 %v2626, %v2620
        %v3275 = vpack.c.b16 %v2627, %v2621
        %v3276 = vpack.c.b16 %v2628, %v2622
        %v3277 = vpack.c.b16 %v2629, %v2623
        %v3278 = vpack.c.b16 %v2630, %v2624
        %v3279 = vpack.c.b16 %v2637, %v2631
        %v3280 = vpack.c.b16 %v2638, %v2632
        %v3281 = vpack.c.b16 %v2639, %v2633
        %v3282 = vpack.c.b16 %v2640, %v2634
        %v3283 = vpack.c.b16 %v2641, %v2635
        %v3284 = vpack.c.b16 %v2642, %v2636
        %v3285 = vpack.c.b16 %v2649, %v2643
        %v3286 = vpack.c.b16 %v2650, %v2644
        %v3287 = vpack.c.b16 %v2651, %v2645
        %v3288 = vpack.c.b16 %v2652, %v2646
        %v3289 = vpack.c.b16 %v2653, %v2647
        %v3290 = vpack.c.b16 %v2654, %v2648
        %v3291 = vpack.c.b16 %v2661, %v2655
        %v3292 = vpack.c.b16 %v2662, %v2656
        %v3293 = vpack.c.b16 %v2663, %v2657
        %v3294 = vpack.c.b16 %v2664, %v2658
        %v3295 = vpack.c.b16 %v2665, %v2659
        %v3296 = vpack.c.b16 %v2666, %v2660
        %v3297 = vpack.c.b16 %v2673, %v2667
        %v3298 = vpack.c.b16 %v2674, %v2668
        %v3299 = vpack.c.b16 %v2675, %v2669
        %v3300 = vpack.c.b16 %v2676, %v2670
        %v3301 = vpack.c.b16 %v2677, %v2671
        %v3302 = vpack.c.b16 %v2678, %v2672
        %v3303 = vpack.c.b16 %v2685, %v2679
        %v3304 = vpack.c.b16 %v2686, %v2680
        %v3305 = vpack.c.b16 %v2687, %v2681
        %v3306 = vpack.c.b16 %v2688, %v2682
        %v3307 = vpack.c.b16 %v2689, %v2683
        %v3308 = vpack.c.b16 %v2690, %v2684
        %v3309 = vpack.c.b16 %v2697, %v2691
        %v3310 = vpack.c.b16 %v2698, %v2692
        %v3311 = vpack.c.b16 %v2699, %v2693
        %v3312 = vpack.c.b16 %v2700, %v2694
        %v3313 = vpack.c.b16 %v2701, %v2695
        %v3314 = vpack.c.b16 %v2702, %v2696
        %v3315 = vpack.c.b16 %v2709, %v2703
        %v3316 = vpack.c.b16 %v2710, %v2704
        %v3317 = vpack.c.b16 %v2711, %v2705
        %v3318 = vpack.c.b16 %v2712, %v2706
        %v3319 = vpack.c.b16 %v2713, %v2707
        %v3320 = vpack.c.b16 %v2714, %v2708
        %v3321 = vpack.c.b16 %v2721, %v2715
        %v3322 = vpack.c.b16 %v2722, %v2716
        %v3323 = vpack.c.b16 %v2723, %v2717
        %v3324 = vpack.c.b16 %v2724, %v2718
        %v3325 = vpack.c.b16 %v2725, %v2719
        %v3326 = vpack.c.b16 %v2726, %v2720
        %v3327 = vpack.c.b16 %v2733, %v2727
        %v3328 = vpack.c.b16 %v2734, %v2728
        %v3329 = vpack.c.b16 %v2735, %v2729
        %v3330 = vpack.c.b16 %v2736, %v2730
        %v3331 = vpack.c.b16 %v2737, %v2731
        %v3332 = vpack.c.b16 %v2738, %v2732
        %v3333 = vpack.c.b16 %v2745, %v2739
        %v3334 = vpack.c.b16 %v2746, %v2740
        %v3335 = vpack.c.b16 %v2747, %v2741
        %v3336 = vpack.c.b16 %v2748, %v2742
        %v3337 = vpack.c.b16 %v2749, %v2743
        %v3338 = vpack.c.b16 %v2750, %v2744
        %v3339 = vpack.c.b16 %v2757, %v2751
        %v3340 = vpack.c.b16 %v2758, %v2752
        %v3341 = vpack.c.b16 %v2759, %v2753
        %v3342 = vpack.c.b16 %v2760, %v2754
        %v3343 = vpack.c.b16 %v2761, %v2755
        %v3344 = vpack.c.b16 %v2762, %v2756
        %v3345 = vpack.c.b16 %v2769, %v2763
        %v3346 = vpack.c.b16 %v2770, %v2764
        %v3347 = vpack.c.b16 %v2771, %v2765
        %v3348 = vpack.c.b16 %v2772, %v2766
        %v3349 = vpack.c.b16 %v2773, %v2767
        %v3350 = vpack.c.b16 %v2774, %v2768
        %3927 = vmatprep.subr.bf16.mxu0 %v2776
        %3928 = vmatpush1.bf16.msra.mxu0 %v2775
        %3929 = vmatprep.subr.bf16.mxu0 %v2782
        %3930 = vmatpush1.bf16.msra.mxu0 %v2781
        %3931 = vmatprep.subr.bf16.mxu0 %v2788
        %3932 = vmatpush1.bf16.msra.mxu0 %v2787
        %3933 = vmatprep.subr.bf16.mxu0 %v2794
        %3934 = vmatpush1.bf16.msra.mxu0 %v2793
        %3935 = vmatprep.subr.bf16.mxu0 %v2800
        %3936 = vmatpush1.bf16.msra.mxu0 %v2799
        %3937 = vmatprep.subr.bf16.mxu0 %v2806
        %3938 = vmatpush1.bf16.msra.mxu0 %v2805
        %3939 = vmatprep.subr.bf16.mxu0 %v2812
        %3940 = vmatpush1.bf16.msra.mxu0 %v2811
        %3941 = vmatprep.subr.bf16.mxu0 %v2818
        %3942 = vmatpush1.bf16.msra.mxu0 %v2817
        %3943 = vmatprep.subr.bf16.mxu0 %v2824
        %3944 = vmatpush1.bf16.msra.mxu0 %v2823
        %3945 = vmatprep.subr.bf16.mxu0 %v2830
        %3946 = vmatpush1.bf16.msra.mxu0 %v2829
        %3947 = vmatprep.subr.bf16.mxu0 %v2836
        %3948 = vmatpush1.bf16.msra.mxu0 %v2835
        %3949 = vmatprep.subr.bf16.mxu0 %v2842
        %3950 = vmatpush1.bf16.msra.mxu0 %v2841
        %3951 = vmatprep.subr.bf16.mxu0 %v2848
        %3952 = vmatpush1.bf16.msra.mxu0 %v2847
        %3953 = vmatprep.subr.bf16.mxu0 %v2854
        %3954 = vmatpush1.bf16.msra.mxu0 %v2853
        %3955 = vmatprep.subr.bf16.mxu0 %v2860
        %3956 = vmatpush1.bf16.msra.mxu0 %v2859
        %3957 = vmatprep.subr.bf16.mxu0 %v2866
        %3958 = vmatpush1.bf16.msra.mxu0 %v2865
        %3959 = vmatprep.mubr.bf16.mxu0 %v412
        %3960 = vmatmul.mubr.bf16.gmra.mrb[0].mxu0 %v411
        %v3961 = vpop.f32.mrb[0].mxu0
        %v3962 = vadd.f32 0.0, %v3961
        %v3963 = vpop.f32.mrb[0].mxu0
        %v3964 = vadd.f32 0.0, %v3963
        %v3965 = vpop.f32.mrb[0].mxu0
        %v3966 = vadd.f32 0.0, %v3965
        %v3967 = vpop.f32.mrb[0].mxu0
        %v3968 = vadd.f32 0.0, %v3967
        %3969 = vmatprep.mubr.bf16.mxu0 %v424
        %3970 = vmatmul.mubr.bf16.gmra.mrb[0].mxu0 %v423
        %v3971 = vpop.f32.mrb[0].mxu0
        %v3972 = vadd.f32 0.0, %v3971
        %v3973 = vpop.f32.mrb[0].mxu0
        %v3974 = vadd.f32 0.0, %v3973
        %v3975 = vpop.f32.mrb[0].mxu0
        %v3976 = vadd.f32 0.0, %v3975
        %v3977 = vpop.f32.mrb[0].mxu0
        %v3978 = vadd.f32 0.0, %v3977
        %3979 = vmatprep.mubr.bf16.mxu0 %v436
        %3980 = vmatmul.mubr.bf16.gmra.mrb[0].mxu0 %v435
        %v3981 = vpop.f32.mrb[0].mxu0
        %v3982 = vadd.f32 0.0, %v3981
        %v3983 = vpop.f32.mrb[0].mxu0
        %v3984 = vadd.f32 0.0, %v3983
        %v3985 = vpop.f32.mrb[0].mxu0
        %v3986 = vadd.f32 0.0, %v3985
        %v3987 = vpop.f32.mrb[0].mxu0
        %v3988 = vadd.f32 0.0, %v3987
        %3989 = vmatprep.mubr.bf16.mxu0 %v448
        %3990 = vmatmul.mubr.bf16.gmra.mrb[0].mxu0 %v447
        %v3991 = vpop.f32.mrb[0].mxu0
        %v3992 = vadd.f32 0.0, %v3991
        %v3993 = vpop.f32.mrb[0].mxu0
        %v3994 = vadd.f32 0.0, %v3993
        %v3995 = vpop.f32.mrb[0].mxu0
        %v3996 = vadd.f32 0.0, %v3995
        %v3997 = vpop.f32.mrb[0].mxu0
        %v3998 = vadd.f32 0.0, %v3997
        %3999 = vmatprep.mubr.bf16.mxu0 %v460
        %4000 = vmatmul.mubr.bf16.gmra.mrb[0].mxu0 %v459
        %v4001 = vpop.f32.mrb[0].mxu0
        %v4002 = vadd.f32 0.0, %v4001
        %v4003 = vpop.f32.mrb[0].mxu0
        %v4004 = vadd.f32 0.0, %v4003
        %v4005 = vpop.f32.mrb[0].mxu0
        %v4006 = vpop.f32.mrb[0].mxu0
        %4007 = vdwg.mxu0
        %4008 = vmatprep.subr.bf16.mxu0 %v2872
        %4009 = vmatpush1.bf16.msra.mxu0 %v2871
        %4010 = vmatprep.subr.bf16.mxu0 %v2878
        %4011 = vmatpush1.bf16.msra.mxu0 %v2877
        %4012 = vmatprep.subr.bf16.mxu0 %v2884
        %4013 = vmatpush1.bf16.msra.mxu0 %v2883
        %4014 = vmatprep.subr.bf16.mxu0 %v2890
        %4015 = vmatpush1.bf16.msra.mxu0 %v2889
        %4016 = vmatprep.subr.bf16.mxu0 %v2896
        %4017 = vmatpush1.bf16.msra.mxu0 %v2895
        %4018 = vmatprep.subr.bf16.mxu0 %v2902
        %4019 = vmatpush1.bf16.msra.mxu0 %v2901
        %4020 = vmatprep.subr.bf16.mxu0 %v2908
        %4021 = vmatpush1.bf16.msra.mxu0 %v2907
        %4022 = vmatprep.subr.bf16.mxu0 %v2914
        %4023 = vmatpush1.bf16.msra.mxu0 %v2913
        %4024 = vmatprep.subr.bf16.mxu0 %v2920
        %4025 = vmatpush1.bf16.msra.mxu0 %v2919
        %4026 = vmatprep.subr.bf16.mxu0 %v2926
        %4027 = vmatpush1.bf16.msra.mxu0 %v2925
        %4028 = vmatprep.subr.bf16.mxu0 %v2932
        %4029 = vmatpush1.bf16.msra.mxu0 %v2931
        %4030 = vmatprep.subr.bf16.mxu0 %v2938
        %4031 = vmatpush1.bf16.msra.mxu0 %v2937
        %4032 = vmatprep.subr.bf16.mxu0 %v2944
        %4033 = vmatpush1.bf16.msra.mxu0 %v2943
        %4034 = vmatprep.subr.bf16.mxu0 %v2950
        %4035 = vmatpush1.bf16.msra.mxu0 %v2949
        %4036 = vmatprep.subr.bf16.mxu0 %v2956
        %4037 = vmatpush1.bf16.msra.mxu0 %v2955
        %4038 = vmatprep.subr.bf16.mxu0 %v2962
        %4039 = vmatpush1.bf16.msra.mxu0 %v2961
        %4040 = vmatprep.mubr.bf16.mxu0 %v414
        %4041 = vmatmul.mubr.bf16.gmra.mrb[0].mxu0 %v413
        %v4042 = vpop.f32.mrb[0].mxu0
        %v4043 = vadd.f32 %v3962, %v4042
        %v4044 = vpop.f32.mrb[0].mxu0
        %v4045 = vadd.f32 %v3964, %v4044
        %v4046 = vpop.f32.mrb[0].mxu0
        %v4047 = vadd.f32 %v3966, %v4046
        %v4048 = vpop.f32.mrb[0].mxu0
        %v4049 = vadd.f32 %v3968, %v4048
        %4050 = vmatprep.mubr.bf16.mxu0 %v426
        %4051 = vmatmul.mubr.bf16.gmra.mrb[0].mxu0 %v425
        %v4052 = vpop.f32.mrb[0].mxu0
        %v4053 = vadd.f32 %v3972, %v4052
        %v4054 = vpop.f32.mrb[0].mxu0
        %v4055 = vadd.f32 %v3974, %v4054
        %v4056 = vpop.f32.mrb[0].mxu0
        %v4057 = vadd.f32 %v3976, %v4056
        %v4058 = vpop.f32.mrb[0].mxu0
        %v4059 = vadd.f32 %v3978, %v4058
        %4060 = vmatprep.mubr.bf16.mxu0 %v438
        %4061 = vmatmul.mubr.bf16.gmra.mrb[0].mxu0 %v437
        %v4062 = vpop.f32.mrb[0].mxu0
        %v4063 = vadd.f32 %v3982, %v4062
        %v4064 = vpop.f32.mrb[0].mxu0
        %v4065 = vadd.f32 %v3984, %v4064
        %v4066 = vpop.f32.mrb[0].mxu0
        %v4067 = vadd.f32 %v3986, %v4066
        %v4068 = vpop.f32.mrb[0].mxu0
        %v4069 = vadd.f32 %v3988, %v4068
        %4070 = vmatprep.mubr.bf16.mxu0 %v450
        %4071 = vmatmul.mubr.bf16.gmra.mrb[0].mxu0 %v449
        %v4072 = vpop.f32.mrb[0].mxu0
        %v4073 = vadd.f32 %v3992, %v4072
        %v4074 = vpop.f32.mrb[0].mxu0
        %v4075 = vadd.f32 %v3994, %v4074
        %v4076 = vpop.f32.mrb[0].mxu0
        %v4077 = vadd.f32 %v3996, %v4076
        %v4078 = vpop.f32.mrb[0].mxu0
        %v4079 = vadd.f32 %v3998, %v4078
        %4080 = vmatprep.mubr.bf16.mxu0 %v462
        %4081 = vmatmul.mubr.bf16.gmra.mrb[0].mxu0 %v461
        %v4082 = vpop.f32.mrb[0].mxu0
        %v4083 = vadd.f32 %v4002, %v4082
        %v4084 = vpop.f32.mrb[0].mxu0
        %v4085 = vadd.f32 %v4004, %v4084
        %v4086 = vpop.f32.mrb[0].mxu0
        %v4087 = vpop.f32.mrb[0].mxu0
        %4088 = vdwg.mxu0
        %4089 = vmatprep.subr.bf16.mxu0 %v2968
        %4090 = vmatpush1.bf16.msra.mxu0 %v2967
        %4091 = vmatprep.subr.bf16.mxu0 %v2974
        %4092 = vmatpush1.bf16.msra.mxu0 %v2973
        %4093 = vmatprep.subr.bf16.mxu0 %v2980
        %4094 = vmatpush1.bf16.msra.mxu0 %v2979
        %4095 = vmatprep.subr.bf16.mxu0 %v2986
        %4096 = vmatpush1.bf16.msra.mxu0 %v2985
        %4097 = vmatprep.subr.bf16.mxu0 %v2992
        %4098 = vmatpush1.bf16.msra.mxu0 %v2991
        %4099 = vmatprep.subr.bf16.mxu0 %v2998
        %4100 = vmatpush1.bf16.msra.mxu0 %v2997
        %4101 = vmatprep.subr.bf16.mxu0 %v3004
        %4102 = vmatpush1.bf16.msra.mxu0 %v3003
        %4103 = vmatprep.subr.bf16.mxu0 %v3010
        %4104 = vmatpush1.bf16.msra.mxu0 %v3009
        %4105 = vmatprep.subr.bf16.mxu0 %v3016
        %4106 = vmatpush1.bf16.msra.mxu0 %v3015
        %4107 = vmatprep.subr.bf16.mxu0 %v3022
        %4108 = vmatpush1.bf16.msra.mxu0 %v3021
        %4109 = vmatprep.subr.bf16.mxu0 %v3028
        %4110 = vmatpush1.bf16.msra.mxu0 %v3027
        %4111 = vmatprep.subr.bf16.mxu0 %v3034
        %4112 = vmatpush1.bf16.msra.mxu0 %v3033
        %4113 = vmatprep.subr.bf16.mxu0 %v3040
        %4114 = vmatpush1.bf16.msra.mxu0 %v3039
        %4115 = vmatprep.subr.bf16.mxu0 %v3046
        %4116 = vmatpush1.bf16.msra.mxu0 %v3045
        %4117 = vmatprep.subr.bf16.mxu0 %v3052
        %4118 = vmatpush1.bf16.msra.mxu0 %v3051
        %4119 = vmatprep.subr.bf16.mxu0 %v3058
        %4120 = vmatpush1.bf16.msra.mxu0 %v3057
        %4121 = vmatprep.mubr.bf16.mxu0 %v416
        %4122 = vmatmul.mubr.bf16.gmra.mrb[0].mxu0 %v415
        %v4123 = vpop.f32.mrb[0].mxu0
        %v4124 = vadd.f32 %v4043, %v4123
        %v4125 = vpop.f32.mrb[0].mxu0
        %v4126 = vadd.f32 %v4045, %v4125
        %v4127 = vpop.f32.mrb[0].mxu0
        %v4128 = vadd.f32 %v4047, %v4127
        %v4129 = vpop.f32.mrb[0].mxu0
        %v4130 = vadd.f32 %v4049, %v4129
        %4131 = vmatprep.mubr.bf16.mxu0 %v428
        %4132 = vmatmul.mubr.bf16.gmra.mrb[0].mxu0 %v427
        %v4133 = vpop.f32.mrb[0].mxu0
        %v4134 = vadd.f32 %v4053, %v4133
        %v4135 = vpop.f32.mrb[0].mxu0
        %v4136 = vadd.f32 %v4055, %v4135
        %v4137 = vpop.f32.mrb[0].mxu0
        %v4138 = vadd.f32 %v4057, %v4137
        %v4139 = vpop.f32.mrb[0].mxu0
        %v4140 = vadd.f32 %v4059, %v4139
        %4141 = vmatprep.mubr.bf16.mxu0 %v440
        %4142 = vmatmul.mubr.bf16.gmra.mrb[0].mxu0 %v439
        %v4143 = vpop.f32.mrb[0].mxu0
        %v4144 = vadd.f32 %v4063, %v4143
        %v4145 = vpop.f32.mrb[0].mxu0
        %v4146 = vadd.f32 %v4065, %v4145
        %v4147 = vpop.f32.mrb[0].mxu0
        %v4148 = vadd.f32 %v4067, %v4147
        %v4149 = vpop.f32.mrb[0].mxu0
        %v4150 = vadd.f32 %v4069, %v4149
        %4151 = vmatprep.mubr.bf16.mxu0 %v452
        %4152 = vmatmul.mubr.bf16.gmra.mrb[0].mxu0 %v451
        %v4153 = vpop.f32.mrb[0].mxu0
        %v4154 = vadd.f32 %v4073, %v4153
        %v4155 = vpop.f32.mrb[0].mxu0
        %v4156 = vadd.f32 %v4075, %v4155
        %v4157 = vpop.f32.mrb[0].mxu0
        %v4158 = vadd.f32 %v4077, %v4157
        %v4159 = vpop.f32.mrb[0].mxu0
        %v4160 = vadd.f32 %v4079, %v4159
        %4161 = vmatprep.mubr.bf16.mxu0 %v464
        %4162 = vmatmul.mubr.bf16.gmra.mrb[0].mxu0 %v463
        %v4163 = vpop.f32.mrb[0].mxu0
        %v4164 = vadd.f32 %v4083, %v4163
        %v4165 = vpop.f32.mrb[0].mxu0
        %v4166 = vadd.f32 %v4085, %v4165
        %v4167 = vpop.f32.mrb[0].mxu0
        %v4168 = vpop.f32.mrb[0].mxu0
        %4169 = vdwg.mxu0
        %4170 = vmatprep.subr.bf16.mxu0 %v3064
        %4171 = vmatpush1.bf16.msra.mxu0 %v3063
        %4172 = vmatprep.subr.bf16.mxu0 %v3070
        %4173 = vmatpush1.bf16.msra.mxu0 %v3069
        %4174 = vmatprep.subr.bf16.mxu0 %v3076
        %4175 = vmatpush1.bf16.msra.mxu0 %v3075
        %4176 = vmatprep.subr.bf16.mxu0 %v3082
        %4177 = vmatpush1.bf16.msra.mxu0 %v3081
        %4178 = vmatprep.subr.bf16.mxu0 %v3088
        %4179 = vmatpush1.bf16.msra.mxu0 %v3087
        %4180 = vmatprep.subr.bf16.mxu0 %v3094
        %4181 = vmatpush1.bf16.msra.mxu0 %v3093
        %4182 = vmatprep.subr.bf16.mxu0 %v3100
        %4183 = vmatpush1.bf16.msra.mxu0 %v3099
        %4184 = vmatprep.subr.bf16.mxu0 %v3106
        %4185 = vmatpush1.bf16.msra.mxu0 %v3105
        %4186 = vmatprep.subr.bf16.mxu0 %v3112
        %4187 = vmatpush1.bf16.msra.mxu0 %v3111
        %4188 = vmatprep.subr.bf16.mxu0 %v3118
        %4189 = vmatpush1.bf16.msra.mxu0 %v3117
        %4190 = vmatprep.subr.bf16.mxu0 %v3124
        %4191 = vmatpush1.bf16.msra.mxu0 %v3123
        %4192 = vmatprep.subr.bf16.mxu0 %v3130
        %4193 = vmatpush1.bf16.msra.mxu0 %v3129
        %4194 = vmatprep.subr.bf16.mxu0 %v3136
        %4195 = vmatpush1.bf16.msra.mxu0 %v3135
        %4196 = vmatprep.subr.bf16.mxu0 %v3142
        %4197 = vmatpush1.bf16.msra.mxu0 %v3141
        %4198 = vmatprep.subr.bf16.mxu0 %v3148
        %4199 = vmatpush1.bf16.msra.mxu0 %v3147
        %4200 = vmatprep.subr.bf16.mxu0 %v3154
        %4201 = vmatpush1.bf16.msra.mxu0 %v3153
        %4202 = vmatprep.mubr.bf16.mxu0 %v418
        %4203 = vmatmul.mubr.bf16.gmra.mrb[0].mxu0 %v417
        %v4204 = vpop.f32.mrb[0].mxu0
        %v4205 = vadd.f32 %v4124, %v4204
        %v4206 = vpop.f32.mrb[0].mxu0
        %v4207 = vadd.f32 %v4126, %v4206
        %v4208 = vpop.f32.mrb[0].mxu0
        %v4209 = vadd.f32 %v4128, %v4208
        %v4210 = vpop.f32.mrb[0].mxu0
        %v4211 = vadd.f32 %v4130, %v4210
        %4212 = vmatprep.mubr.bf16.mxu0 %v430
        %4213 = vmatmul.mubr.bf16.gmra.mrb[0].mxu0 %v429
        %v4214 = vpop.f32.mrb[0].mxu0
        %v4215 = vadd.f32 %v4134, %v4214
        %v4216 = vpop.f32.mrb[0].mxu0
        %v4217 = vadd.f32 %v4136, %v4216
        %v4218 = vpop.f32.mrb[0].mxu0
        %v4219 = vadd.f32 %v4138, %v4218
        %v4220 = vpop.f32.mrb[0].mxu0
        %v4221 = vadd.f32 %v4140, %v4220
        %4222 = vmatprep.mubr.bf16.mxu0 %v442
        %4223 = vmatmul.mubr.bf16.gmra.mrb[0].mxu0 %v441
        %v4224 = vpop.f32.mrb[0].mxu0
        %v4225 = vadd.f32 %v4144, %v4224
        %v4226 = vpop.f32.mrb[0].mxu0
        %v4227 = vadd.f32 %v4146, %v4226
        %v4228 = vpop.f32.mrb[0].mxu0
        %v4229 = vadd.f32 %v4148, %v4228
        %v4230 = vpop.f32.mrb[0].mxu0
        %v4231 = vadd.f32 %v4150, %v4230
        %4232 = vmatprep.mubr.bf16.mxu0 %v454
        %4233 = vmatmul.mubr.bf16.gmra.mrb[0].mxu0 %v453
        %v4234 = vpop.f32.mrb[0].mxu0
        %v4235 = vadd.f32 %v4154, %v4234
        %v4236 = vpop.f32.mrb[0].mxu0
        %v4237 = vadd.f32 %v4156, %v4236
        %v4238 = vpop.f32.mrb[0].mxu0
        %v4239 = vadd.f32 %v4158, %v4238
        %v4240 = vpop.f32.mrb[0].mxu0
        %v4241 = vadd.f32 %v4160, %v4240
        %4242 = vmatprep.mubr.bf16.mxu0 %v466
        %4243 = vmatmul.mubr.bf16.gmra.mrb[0].mxu0 %v465
        %v4244 = vpop.f32.mrb[0].mxu0
        %v4245 = vadd.f32 %v4164, %v4244
        %v4246 = vpop.f32.mrb[0].mxu0
        %v4247 = vadd.f32 %v4166, %v4246
        %v4248 = vpop.f32.mrb[0].mxu0
        %v4249 = vpop.f32.mrb[0].mxu0
        %4250 = vdwg.mxu0
        %4251 = vmatprep.subr.bf16.mxu0 %v3160
        %4252 = vmatpush1.bf16.msra.mxu0 %v3159
        %4253 = vmatprep.subr.bf16.mxu0 %v3166
        %4254 = vmatpush1.bf16.msra.mxu0 %v3165
        %4255 = vmatprep.subr.bf16.mxu0 %v3172
        %4256 = vmatpush1.bf16.msra.mxu0 %v3171
        %4257 = vmatprep.subr.bf16.mxu0 %v3178
        %4258 = vmatpush1.bf16.msra.mxu0 %v3177
        %4259 = vmatprep.subr.bf16.mxu0 %v3184
        %4260 = vmatpush1.bf16.msra.mxu0 %v3183
        %4261 = vmatprep.subr.bf16.mxu0 %v3190
        %4262 = vmatpush1.bf16.msra.mxu0 %v3189
        %4263 = vmatprep.subr.bf16.mxu0 %v3196
        %4264 = vmatpush1.bf16.msra.mxu0 %v3195
        %4265 = vmatprep.subr.bf16.mxu0 %v3202
        %4266 = vmatpush1.bf16.msra.mxu0 %v3201
        %4267 = vmatprep.subr.bf16.mxu0 %v3208
        %4268 = vmatpush1.bf16.msra.mxu0 %v3207
        %4269 = vmatprep.subr.bf16.mxu0 %v3214
        %4270 = vmatpush1.bf16.msra.mxu0 %v3213
        %4271 = vmatprep.subr.bf16.mxu0 %v3220
        %4272 = vmatpush1.bf16.msra.mxu0 %v3219
        %4273 = vmatprep.subr.bf16.mxu0 %v3226
        %4274 = vmatpush1.bf16.msra.mxu0 %v3225
        %4275 = vmatprep.subr.bf16.mxu0 %v3232
        %4276 = vmatpush1.bf16.msra.mxu0 %v3231
        %4277 = vmatprep.subr.bf16.mxu0 %v3238
        %4278 = vmatpush1.bf16.msra.mxu0 %v3237
        %4279 = vmatprep.subr.bf16.mxu0 %v3244
        %4280 = vmatpush1.bf16.msra.mxu0 %v3243
        %4281 = vmatprep.subr.bf16.mxu0 %v3250
        %4282 = vmatpush1.bf16.msra.mxu0 %v3249
        %4283 = vmatprep.mubr.bf16.mxu0 %v420
        %4284 = vmatmul.mubr.bf16.gmra.mrb[0].mxu0 %v419
        %v4285 = vpop.f32.mrb[0].mxu0
        %v4286 = vadd.f32 %v4205, %v4285
        %v4287 = vpop.f32.mrb[0].mxu0
        %v4288 = vadd.f32 %v4207, %v4287
        %v4289 = vpop.f32.mrb[0].mxu0
        %v4290 = vadd.f32 %v4209, %v4289
        %v4291 = vpop.f32.mrb[0].mxu0
        %v4292 = vadd.f32 %v4211, %v4291
        %4293 = vmatprep.mubr.bf16.mxu0 %v432
        %4294 = vmatmul.mubr.bf16.gmra.mrb[0].mxu0 %v431
        %v4295 = vpop.f32.mrb[0].mxu0
        %v4296 = vadd.f32 %v4215, %v4295
        %v4297 = vpop.f32.mrb[0].mxu0
        %v4298 = vadd.f32 %v4217, %v4297
        %v4299 = vpop.f32.mrb[0].mxu0
        %v4300 = vadd.f32 %v4219, %v4299
        %v4301 = vpop.f32.mrb[0].mxu0
        %v4302 = vadd.f32 %v4221, %v4301
        %4303 = vmatprep.mubr.bf16.mxu0 %v444
        %4304 = vmatmul.mubr.bf16.gmra.mrb[0].mxu0 %v443
        %v4305 = vpop.f32.mrb[0].mxu0
        %v4306 = vadd.f32 %v4225, %v4305
        %v4307 = vpop.f32.mrb[0].mxu0
        %v4308 = vadd.f32 %v4227, %v4307
        %v4309 = vpop.f32.mrb[0].mxu0
        %v4310 = vadd.f32 %v4229, %v4309
        %v4311 = vpop.f32.mrb[0].mxu0
        %v4312 = vadd.f32 %v4231, %v4311
        %4313 = vmatprep.mubr.bf16.mxu0 %v456
        %4314 = vmatmul.mubr.bf16.gmra.mrb[0].mxu0 %v455
        %v4315 = vpop.f32.mrb[0].mxu0
        %v4316 = vadd.f32 %v4235, %v4315
        %v4317 = vpop.f32.mrb[0].mxu0
        %v4318 = vadd.f32 %v4237, %v4317
        %v4319 = vpop.f32.mrb[0].mxu0
        %v4320 = vadd.f32 %v4239, %v4319
        %v4321 = vpop.f32.mrb[0].mxu0
        %v4322 = vadd.f32 %v4241, %v4321
        %4323 = vmatprep.mubr.bf16.mxu0 %v468
        %4324 = vmatmul.mubr.bf16.gmra.mrb[0].mxu0 %v467
        %v4325 = vpop.f32.mrb[0].mxu0
        %v4326 = vadd.f32 %v4245, %v4325
        %v4327 = vpop.f32.mrb[0].mxu0
        %v4328 = vadd.f32 %v4247, %v4327
        %v4329 = vpop.f32.mrb[0].mxu0
        %v4330 = vpop.f32.mrb[0].mxu0
        %4331 = vdwg.mxu0
        %4332 = vmatprep.subr.bf16.mxu0 %v3256
        %4333 = vmatpush1.bf16.msra.mxu0 %v3255
        %4334 = vmatprep.subr.bf16.mxu0 %v3262
        %4335 = vmatpush1.bf16.msra.mxu0 %v3261
        %4336 = vmatprep.subr.bf16.mxu0 %v3268
        %4337 = vmatpush1.bf16.msra.mxu0 %v3267
        %4338 = vmatprep.subr.bf16.mxu0 %v3274
        %4339 = vmatpush1.bf16.msra.mxu0 %v3273
        %4340 = vmatprep.subr.bf16.mxu0 %v3280
        %4341 = vmatpush1.bf16.msra.mxu0 %v3279
        %4342 = vmatprep.subr.bf16.mxu0 %v3286
        %4343 = vmatpush1.bf16.msra.mxu0 %v3285
        %4344 = vmatprep.subr.bf16.mxu0 %v3292
        %4345 = vmatpush1.bf16.msra.mxu0 %v3291
        %4346 = vmatprep.subr.bf16.mxu0 %v3298
        %4347 = vmatpush1.bf16.msra.mxu0 %v3297
        %4348 = vmatprep.subr.bf16.mxu0 %v3304
        %4349 = vmatpush1.bf16.msra.mxu0 %v3303
        %4350 = vmatprep.subr.bf16.mxu0 %v3310
        %4351 = vmatpush1.bf16.msra.mxu0 %v3309
        %4352 = vmatprep.subr.bf16.mxu0 %v3316
        %4353 = vmatpush1.bf16.msra.mxu0 %v3315
        %4354 = vmatprep.subr.bf16.mxu0 %v3322
        %4355 = vmatpush1.bf16.msra.mxu0 %v3321
        %4356 = vmatprep.subr.bf16.mxu0 %v3328
        %4357 = vmatpush1.bf16.msra.mxu0 %v3327
        %4358 = vmatprep.subr.bf16.mxu0 %v3334
        %4359 = vmatpush1.bf16.msra.mxu0 %v3333
        %4360 = vmatprep.subr.bf16.mxu0 %v3340
        %4361 = vmatpush1.bf16.msra.mxu0 %v3339
        %4362 = vmatprep.subr.bf16.mxu0 %v3346
        %4363 = vmatpush1.bf16.msra.mxu0 %v3345
        %4364 = vmatprep.mubr.bf16.mxu0 %v422
        %4365 = vmatmul.mubr.bf16.gmra.mrb[0].mxu0 %v421
        %v4366 = vpop.f32.mrb[0].mxu0
        %v4367 = vadd.f32 %v4286, %v4366
        %v4368 = vpop.f32.mrb[0].mxu0
        %v4369 = vadd.f32 %v4288, %v4368
        %v4370 = vpop.f32.mrb[0].mxu0
        %v4371 = vadd.f32 %v4290, %v4370
        %v4372 = vpop.f32.mrb[0].mxu0
        %v4373 = vadd.f32 %v4292, %v4372
        %4374 = vmatprep.mubr.bf16.mxu0 %v434
        %4375 = vmatmul.mubr.bf16.gmra.mrb[0].mxu0 %v433
        %v4376 = vpop.f32.mrb[0].mxu0
        %v4377 = vadd.f32 %v4296, %v4376
        %v4378 = vpop.f32.mrb[0].mxu0
        %v4379 = vadd.f32 %v4298, %v4378
        %v4380 = vpop.f32.mrb[0].mxu0
        %v4381 = vadd.f32 %v4300, %v4380
        %v4382 = vpop.f32.mrb[0].mxu0
        %v4383 = vadd.f32 %v4302, %v4382
        %4384 = vmatprep.mubr.bf16.mxu0 %v446
        %4385 = vmatmul.mubr.bf16.gmra.mrb[0].mxu0 %v445
        %v4386 = vpop.f32.mrb[0].mxu0
        %v4387 = vadd.f32 %v4306, %v4386
        %v4388 = vpop.f32.mrb[0].mxu0
        %v4389 = vadd.f32 %v4308, %v4388
        %v4390 = vpop.f32.mrb[0].mxu0
        %v4391 = vadd.f32 %v4310, %v4390
        %v4392 = vpop.f32.mrb[0].mxu0
        %v4393 = vadd.f32 %v4312, %v4392
        %4394 = vmatprep.mubr.bf16.mxu0 %v458
        %4395 = vmatmul.mubr.bf16.gmra.mrb[0].mxu0 %v457
        %v4396 = vpop.f32.mrb[0].mxu0
        %v4397 = vadd.f32 %v4316, %v4396
        %v4398 = vpop.f32.mrb[0].mxu0
        %v4399 = vadd.f32 %v4318, %v4398
        %v4400 = vpop.f32.mrb[0].mxu0
        %v4401 = vadd.f32 %v4320, %v4400
        %v4402 = vpop.f32.mrb[0].mxu0
        %v4403 = vadd.f32 %v4322, %v4402
        %4404 = vmatprep.mubr.bf16.mxu0 %v470
        %4405 = vmatmul.mubr.bf16.gmra.mrb[0].mxu0 %v469
        %v4406 = vpop.f32.mrb[0].mxu0
        %v4407 = vadd.f32 %v4326, %v4406
        %v4408 = vpop.f32.mrb[0].mxu0
        %v4409 = vadd.f32 %v4328, %v4408
        %v4410 = vpop.f32.mrb[0].mxu0
        %v4411 = vpop.f32.mrb[0].mxu0
        %4412 = vdwg.mxu0
        %4413 = vmatprep.subr.bf16.mxu0 %v2778
        %4414 = vmatpush1.bf16.msra.mxu0 %v2777
        %4415 = vmatprep.subr.bf16.mxu0 %v2784
        %4416 = vmatpush1.bf16.msra.mxu0 %v2783
        %4417 = vmatprep.subr.bf16.mxu0 %v2790
        %4418 = vmatpush1.bf16.msra.mxu0 %v2789
        %4419 = vmatprep.subr.bf16.mxu0 %v2796
        %4420 = vmatpush1.bf16.msra.mxu0 %v2795
        %4421 = vmatprep.subr.bf16.mxu0 %v2802
        %4422 = vmatpush1.bf16.msra.mxu0 %v2801
        %4423 = vmatprep.subr.bf16.mxu0 %v2808
        %4424 = vmatpush1.bf16.msra.mxu0 %v2807
        %4425 = vmatprep.subr.bf16.mxu0 %v2814
        %4426 = vmatpush1.bf16.msra.mxu0 %v2813
        %4427 = vmatprep.subr.bf16.mxu0 %v2820
        %4428 = vmatpush1.bf16.msra.mxu0 %v2819
        %4429 = vmatprep.subr.bf16.mxu0 %v2826
        %4430 = vmatpush1.bf16.msra.mxu0 %v2825
        %4431 = vmatprep.subr.bf16.mxu0 %v2832
        %4432 = vmatpush1.bf16.msra.mxu0 %v2831
        %4433 = vmatprep.subr.bf16.mxu0 %v2838
        %4434 = vmatpush1.bf16.msra.mxu0 %v2837
        %4435 = vmatprep.subr.bf16.mxu0 %v2844
        %4436 = vmatpush1.bf16.msra.mxu0 %v2843
        %4437 = vmatprep.subr.bf16.mxu0 %v2850
        %4438 = vmatpush1.bf16.msra.mxu0 %v2849
        %4439 = vmatprep.subr.bf16.mxu0 %v2856
        %4440 = vmatpush1.bf16.msra.mxu0 %v2855
        %4441 = vmatprep.subr.bf16.mxu0 %v2862
        %4442 = vmatpush1.bf16.msra.mxu0 %v2861
        %4443 = vmatprep.subr.bf16.mxu0 %v2868
        %4444 = vmatpush1.bf16.msra.mxu0 %v2867
        %4445 = vmatprep.mubr.bf16.mxu0 %v412
        %4446 = vmatmul.mubr.bf16.gmra.mrb[0].mxu0 %v411
        %v4447 = vpop.f32.mrb[0].mxu0
        %v4448 = vadd.f32 0.0, %v4447
        %v4449 = vpop.f32.mrb[0].mxu0
        %v4450 = vadd.f32 0.0, %v4449
        %v4451 = vpop.f32.mrb[0].mxu0
        %v4452 = vadd.f32 0.0, %v4451
        %v4453 = vpop.f32.mrb[0].mxu0
        %v4454 = vadd.f32 0.0, %v4453
        %4455 = vmatprep.mubr.bf16.mxu0 %v424
        %4456 = vmatmul.mubr.bf16.gmra.mrb[0].mxu0 %v423
        %v4457 = vpop.f32.mrb[0].mxu0
        %v4458 = vadd.f32 0.0, %v4457
        %v4459 = vpop.f32.mrb[0].mxu0
        %v4460 = vadd.f32 0.0, %v4459
        %v4461 = vpop.f32.mrb[0].mxu0
        %v4462 = vadd.f32 0.0, %v4461
        %v4463 = vpop.f32.mrb[0].mxu0
        %v4464 = vadd.f32 0.0, %v4463
        %4465 = vmatprep.mubr.bf16.mxu0 %v436
        %4466 = vmatmul.mubr.bf16.gmra.mrb[0].mxu0 %v435
        %v4467 = vpop.f32.mrb[0].mxu0
        %v4468 = vadd.f32 0.0, %v4467
        %v4469 = vpop.f32.mrb[0].mxu0
        %v4470 = vadd.f32 0.0, %v4469
        %v4471 = vpop.f32.mrb[0].mxu0
        %v4472 = vadd.f32 0.0, %v4471
        %v4473 = vpop.f32.mrb[0].mxu0
        %v4474 = vadd.f32 0.0, %v4473
        %4475 = vmatprep.mubr.bf16.mxu0 %v448
        %4476 = vmatmul.mubr.bf16.gmra.mrb[0].mxu0 %v447
        %v4477 = vpop.f32.mrb[0].mxu0
        %v4478 = vadd.f32 0.0, %v4477
        %v4479 = vpop.f32.mrb[0].mxu0
        %v4480 = vadd.f32 0.0, %v4479
        %v4481 = vpop.f32.mrb[0].mxu0
        %v4482 = vadd.f32 0.0, %v4481
        %v4483 = vpop.f32.mrb[0].mxu0
        %v4484 = vadd.f32 0.0, %v4483
        %4485 = vmatprep.mubr.bf16.mxu0 %v460
        %4486 = vmatmul.mubr.bf16.gmra.mrb[0].mxu0 %v459
        %v4487 = vpop.f32.mrb[0].mxu0
        %v4488 = vadd.f32 0.0, %v4487
        %v4489 = vpop.f32.mrb[0].mxu0
        %v4490 = vadd.f32 0.0, %v4489
        %v4491 = vpop.f32.mrb[0].mxu0
        %v4492 = vpop.f32.mrb[0].mxu0
        %4493 = vdwg.mxu0
        %4494 = vmatprep.subr.bf16.mxu0 %v2874
        %4495 = vmatpush1.bf16.msra.mxu0 %v2873
        %4496 = vmatprep.subr.bf16.mxu0 %v2880
        %4497 = vmatpush1.bf16.msra.mxu0 %v2879
        %4498 = vmatprep.subr.bf16.mxu0 %v2886
        %4499 = vmatpush1.bf16.msra.mxu0 %v2885
        %4500 = vmatprep.subr.bf16.mxu0 %v2892
        %4501 = vmatpush1.bf16.msra.mxu0 %v2891
        %4502 = vmatprep.subr.bf16.mxu0 %v2898
        %4503 = vmatpush1.bf16.msra.mxu0 %v2897
        %4504 = vmatprep.subr.bf16.mxu0 %v2904
        %4505 = vmatpush1.bf16.msra.mxu0 %v2903
        %4506 = vmatprep.subr.bf16.mxu0 %v2910
        %4507 = vmatpush1.bf16.msra.mxu0 %v2909
        %4508 = vmatprep.subr.bf16.mxu0 %v2916
        %4509 = vmatpush1.bf16.msra.mxu0 %v2915
        %4510 = vmatprep.subr.bf16.mxu0 %v2922
        %4511 = vmatpush1.bf16.msra.mxu0 %v2921
        %4512 = vmatprep.subr.bf16.mxu0 %v2928
        %4513 = vmatpush1.bf16.msra.mxu0 %v2927
        %4514 = vmatprep.subr.bf16.mxu0 %v2934
        %4515 = vmatpush1.bf16.msra.mxu0 %v2933
        %4516 = vmatprep.subr.bf16.mxu0 %v2940
        %4517 = vmatpush1.bf16.msra.mxu0 %v2939
        %4518 = vmatprep.subr.bf16.mxu0 %v2946
        %4519 = vmatpush1.bf16.msra.mxu0 %v2945
        %4520 = vmatprep.subr.bf16.mxu0 %v2952
        %4521 = vmatpush1.bf16.msra.mxu0 %v2951
        %4522 = vmatprep.subr.bf16.mxu0 %v2958
        %4523 = vmatpush1.bf16.msra.mxu0 %v2957
        %4524 = vmatprep.subr.bf16.mxu0 %v2964
        %4525 = vmatpush1.bf16.msra.mxu0 %v2963
        %4526 = vmatprep.mubr.bf16.mxu0 %v414
        %4527 = vmatmul.mubr.bf16.gmra.mrb[0].mxu0 %v413
        %v4528 = vpop.f32.mrb[0].mxu0
        %v4529 = vadd.f32 %v4448, %v4528
        %v4530 = vpop.f32.mrb[0].mxu0
        %v4531 = vadd.f32 %v4450, %v4530
        %v4532 = vpop.f32.mrb[0].mxu0
        %v4533 = vadd.f32 %v4452, %v4532
        %v4534 = vpop.f32.mrb[0].mxu0
        %v4535 = vadd.f32 %v4454, %v4534
        %4536 = vmatprep.mubr.bf16.mxu0 %v426
        %4537 = vmatmul.mubr.bf16.gmra.mrb[0].mxu0 %v425
        %v4538 = vpop.f32.mrb[0].mxu0
        %v4539 = vadd.f32 %v4458, %v4538
        %v4540 = vpop.f32.mrb[0].mxu0
        %v4541 = vadd.f32 %v4460, %v4540
        %v4542 = vpop.f32.mrb[0].mxu0
        %v4543 = vadd.f32 %v4462, %v4542
        %v4544 = vpop.f32.mrb[0].mxu0
        %v4545 = vadd.f32 %v4464, %v4544
        %4546 = vmatprep.mubr.bf16.mxu0 %v438
        %4547 = vmatmul.mubr.bf16.gmra.mrb[0].mxu0 %v437
        %v4548 = vpop.f32.mrb[0].mxu0
        %v4549 = vadd.f32 %v4468, %v4548
        %v4550 = vpop.f32.mrb[0].mxu0
        %v4551 = vadd.f32 %v4470, %v4550
        %v4552 = vpop.f32.mrb[0].mxu0
        %v4553 = vadd.f32 %v4472, %v4552
        %v4554 = vpop.f32.mrb[0].mxu0
        %v4555 = vadd.f32 %v4474, %v4554
        %4556 = vmatprep.mubr.bf16.mxu0 %v450
        %4557 = vmatmul.mubr.bf16.gmra.mrb[0].mxu0 %v449
        %v4558 = vpop.f32.mrb[0].mxu0
        %v4559 = vadd.f32 %v4478, %v4558
        %v4560 = vpop.f32.mrb[0].mxu0
        %v4561 = vadd.f32 %v4480, %v4560
        %v4562 = vpop.f32.mrb[0].mxu0
        %v4563 = vadd.f32 %v4482, %v4562
        %v4564 = vpop.f32.mrb[0].mxu0
        %v4565 = vadd.f32 %v4484, %v4564
        %4566 = vmatprep.mubr.bf16.mxu0 %v462
        %4567 = vmatmul.mubr.bf16.gmra.mrb[0].mxu0 %v461
        %v4568 = vpop.f32.mrb[0].mxu0
        %v4569 = vadd.f32 %v4488, %v4568
        %v4570 = vpop.f32.mrb[0].mxu0
        %v4571 = vadd.f32 %v4490, %v4570
        %v4572 = vpop.f32.mrb[0].mxu0
        %v4573 = vpop.f32.mrb[0].mxu0
        %4574 = vdwg.mxu0
        %4575 = vmatprep.subr.bf16.mxu0 %v2970
        %4576 = vmatpush1.bf16.msra.mxu0 %v2969
        %4577 = vmatprep.subr.bf16.mxu0 %v2976
        %4578 = vmatpush1.bf16.msra.mxu0 %v2975
        %4579 = vmatprep.subr.bf16.mxu0 %v2982
        %4580 = vmatpush1.bf16.msra.mxu0 %v2981
        %4581 = vmatprep.subr.bf16.mxu0 %v2988
        %4582 = vmatpush1.bf16.msra.mxu0 %v2987
        %4583 = vmatprep.subr.bf16.mxu0 %v2994
        %4584 = vmatpush1.bf16.msra.mxu0 %v2993
        %4585 = vmatprep.subr.bf16.mxu0 %v3000
        %4586 = vmatpush1.bf16.msra.mxu0 %v2999
        %4587 = vmatprep.subr.bf16.mxu0 %v3006
        %4588 = vmatpush1.bf16.msra.mxu0 %v3005
        %4589 = vmatprep.subr.bf16.mxu0 %v3012
        %4590 = vmatpush1.bf16.msra.mxu0 %v3011
        %4591 = vmatprep.subr.bf16.mxu0 %v3018
        %4592 = vmatpush1.bf16.msra.mxu0 %v3017
        %4593 = vmatprep.subr.bf16.mxu0 %v3024
        %4594 = vmatpush1.bf16.msra.mxu0 %v3023
        %4595 = vmatprep.subr.bf16.mxu0 %v3030
        %4596 = vmatpush1.bf16.msra.mxu0 %v3029
        %4597 = vmatprep.subr.bf16.mxu0 %v3036
        %4598 = vmatpush1.bf16.msra.mxu0 %v3035
        %4599 = vmatprep.subr.bf16.mxu0 %v3042
        %4600 = vmatpush1.bf16.msra.mxu0 %v3041
        %4601 = vmatprep.subr.bf16.mxu0 %v3048
        %4602 = vmatpush1.bf16.msra.mxu0 %v3047
        %4603 = vmatprep.subr.bf16.mxu0 %v3054
        %4604 = vmatpush1.bf16.msra.mxu0 %v3053
        %4605 = vmatprep.subr.bf16.mxu0 %v3060
        %4606 = vmatpush1.bf16.msra.mxu0 %v3059
        %4607 = vmatprep.mubr.bf16.mxu0 %v416
        %4608 = vmatmul.mubr.bf16.gmra.mrb[0].mxu0 %v415
        %v4609 = vpop.f32.mrb[0].mxu0
        %v4610 = vadd.f32 %v4529, %v4609
        %v4611 = vpop.f32.mrb[0].mxu0
        %v4612 = vadd.f32 %v4531, %v4611
        %v4613 = vpop.f32.mrb[0].mxu0
        %v4614 = vadd.f32 %v4533, %v4613
        %v4615 = vpop.f32.mrb[0].mxu0
        %v4616 = vadd.f32 %v4535, %v4615
        %4617 = vmatprep.mubr.bf16.mxu0 %v428
        %4618 = vmatmul.mubr.bf16.gmra.mrb[0].mxu0 %v427
        %v4619 = vpop.f32.mrb[0].mxu0
        %v4620 = vadd.f32 %v4539, %v4619
        %v4621 = vpop.f32.mrb[0].mxu0
        %v4622 = vadd.f32 %v4541, %v4621
        %v4623 = vpop.f32.mrb[0].mxu0
        %v4624 = vadd.f32 %v4543, %v4623
        %v4625 = vpop.f32.mrb[0].mxu0
        %v4626 = vadd.f32 %v4545, %v4625
        %4627 = vmatprep.mubr.bf16.mxu0 %v440
        %4628 = vmatmul.mubr.bf16.gmra.mrb[0].mxu0 %v439
        %v4629 = vpop.f32.mrb[0].mxu0
        %v4630 = vadd.f32 %v4549, %v4629
        %v4631 = vpop.f32.mrb[0].mxu0
        %v4632 = vadd.f32 %v4551, %v4631
        %v4633 = vpop.f32.mrb[0].mxu0
        %v4634 = vadd.f32 %v4553, %v4633
        %v4635 = vpop.f32.mrb[0].mxu0
        %v4636 = vadd.f32 %v4555, %v4635
        %4637 = vmatprep.mubr.bf16.mxu0 %v452
        %4638 = vmatmul.mubr.bf16.gmra.mrb[0].mxu0 %v451
        %v4639 = vpop.f32.mrb[0].mxu0
        %v4640 = vadd.f32 %v4559, %v4639
        %v4641 = vpop.f32.mrb[0].mxu0
        %v4642 = vadd.f32 %v4561, %v4641
        %v4643 = vpop.f32.mrb[0].mxu0
        %v4644 = vadd.f32 %v4563, %v4643
        %v4645 = vpop.f32.mrb[0].mxu0
        %v4646 = vadd.f32 %v4565, %v4645
        %4647 = vmatprep.mubr.bf16.mxu0 %v464
        %4648 = vmatmul.mubr.bf16.gmra.mrb[0].mxu0 %v463
        %v4649 = vpop.f32.mrb[0].mxu0
        %v4650 = vadd.f32 %v4569, %v4649
        %v4651 = vpop.f32.mrb[0].mxu0
        %v4652 = vadd.f32 %v4571, %v4651
        %v4653 = vpop.f32.mrb[0].mxu0
        %v4654 = vpop.f32.mrb[0].mxu0
        %4655 = vdwg.mxu0
        %4656 = vmatprep.subr.bf16.mxu0 %v3066
        %4657 = vmatpush1.bf16.msra.mxu0 %v3065
        %4658 = vmatprep.subr.bf16.mxu0 %v3072
        %4659 = vmatpush1.bf16.msra.mxu0 %v3071
        %4660 = vmatprep.subr.bf16.mxu0 %v3078
        %4661 = vmatpush1.bf16.msra.mxu0 %v3077
        %4662 = vmatprep.subr.bf16.mxu0 %v3084
        %4663 = vmatpush1.bf16.msra.mxu0 %v3083
        %4664 = vmatprep.subr.bf16.mxu0 %v3090
        %4665 = vmatpush1.bf16.msra.mxu0 %v3089
        %4666 = vmatprep.subr.bf16.mxu0 %v3096
        %4667 = vmatpush1.bf16.msra.mxu0 %v3095
        %4668 = vmatprep.subr.bf16.mxu0 %v3102
        %4669 = vmatpush1.bf16.msra.mxu0 %v3101
        %4670 = vmatprep.subr.bf16.mxu0 %v3108
        %4671 = vmatpush1.bf16.msra.mxu0 %v3107
        %4672 = vmatprep.subr.bf16.mxu0 %v3114
        %4673 = vmatpush1.bf16.msra.mxu0 %v3113
        %4674 = vmatprep.subr.bf16.mxu0 %v3120
        %4675 = vmatpush1.bf16.msra.mxu0 %v3119
        %4676 = vmatprep.subr.bf16.mxu0 %v3126
        %4677 = vmatpush1.bf16.msra.mxu0 %v3125
        %4678 = vmatprep.subr.bf16.mxu0 %v3132
        %4679 = vmatpush1.bf16.msra.mxu0 %v3131
        %4680 = vmatprep.subr.bf16.mxu0 %v3138
        %4681 = vmatpush1.bf16.msra.mxu0 %v3137
        %4682 = vmatprep.subr.bf16.mxu0 %v3144
        %4683 = vmatpush1.bf16.msra.mxu0 %v3143
        %4684 = vmatprep.subr.bf16.mxu0 %v3150
        %4685 = vmatpush1.bf16.msra.mxu0 %v3149
        %4686 = vmatprep.subr.bf16.mxu0 %v3156
        %4687 = vmatpush1.bf16.msra.mxu0 %v3155
        %4688 = vmatprep.mubr.bf16.mxu0 %v418
        %4689 = vmatmul.mubr.bf16.gmra.mrb[0].mxu0 %v417
        %v4690 = vpop.f32.mrb[0].mxu0
        %v4691 = vadd.f32 %v4610, %v4690
        %v4692 = vpop.f32.mrb[0].mxu0
        %v4693 = vadd.f32 %v4612, %v4692
        %v4694 = vpop.f32.mrb[0].mxu0
        %v4695 = vadd.f32 %v4614, %v4694
        %v4696 = vpop.f32.mrb[0].mxu0
        %v4697 = vadd.f32 %v4616, %v4696
        %4698 = vmatprep.mubr.bf16.mxu0 %v430
        %4699 = vmatmul.mubr.bf16.gmra.mrb[0].mxu0 %v429
        %v4700 = vpop.f32.mrb[0].mxu0
        %v4701 = vadd.f32 %v4620, %v4700
        %v4702 = vpop.f32.mrb[0].mxu0
        %v4703 = vadd.f32 %v4622, %v4702
        %v4704 = vpop.f32.mrb[0].mxu0
        %v4705 = vadd.f32 %v4624, %v4704
        %v4706 = vpop.f32.mrb[0].mxu0
        %v4707 = vadd.f32 %v4626, %v4706
        %4708 = vmatprep.mubr.bf16.mxu0 %v442
        %4709 = vmatmul.mubr.bf16.gmra.mrb[0].mxu0 %v441
        %v4710 = vpop.f32.mrb[0].mxu0
        %v4711 = vadd.f32 %v4630, %v4710
        %v4712 = vpop.f32.mrb[0].mxu0
        %v4713 = vadd.f32 %v4632, %v4712
        %v4714 = vpop.f32.mrb[0].mxu0
        %v4715 = vadd.f32 %v4634, %v4714
        %v4716 = vpop.f32.mrb[0].mxu0
        %v4717 = vadd.f32 %v4636, %v4716
        %4718 = vmatprep.mubr.bf16.mxu0 %v454
        %4719 = vmatmul.mubr.bf16.gmra.mrb[0].mxu0 %v453
        %v4720 = vpop.f32.mrb[0].mxu0
        %v4721 = vadd.f32 %v4640, %v4720
        %v4722 = vpop.f32.mrb[0].mxu0
        %v4723 = vadd.f32 %v4642, %v4722
        %v4724 = vpop.f32.mrb[0].mxu0
        %v4725 = vadd.f32 %v4644, %v4724
        %v4726 = vpop.f32.mrb[0].mxu0
        %v4727 = vadd.f32 %v4646, %v4726
        %4728 = vmatprep.mubr.bf16.mxu0 %v466
        %4729 = vmatmul.mubr.bf16.gmra.mrb[0].mxu0 %v465
        %v4730 = vpop.f32.mrb[0].mxu0
        %v4731 = vadd.f32 %v4650, %v4730
        %v4732 = vpop.f32.mrb[0].mxu0
        %v4733 = vadd.f32 %v4652, %v4732
        %v4734 = vpop.f32.mrb[0].mxu0
        %v4735 = vpop.f32.mrb[0].mxu0
        %4736 = vdwg.mxu0
        %4737 = vmatprep.subr.bf16.mxu0 %v3162
        %4738 = vmatpush1.bf16.msra.mxu0 %v3161
        %4739 = vmatprep.subr.bf16.mxu0 %v3168
        %4740 = vmatpush1.bf16.msra.mxu0 %v3167
        %4741 = vmatprep.subr.bf16.mxu0 %v3174
        %4742 = vmatpush1.bf16.msra.mxu0 %v3173
        %4743 = vmatprep.subr.bf16.mxu0 %v3180
        %4744 = vmatpush1.bf16.msra.mxu0 %v3179
        %4745 = vmatprep.subr.bf16.mxu0 %v3186
        %4746 = vmatpush1.bf16.msra.mxu0 %v3185
        %4747 = vmatprep.subr.bf16.mxu0 %v3192
        %4748 = vmatpush1.bf16.msra.mxu0 %v3191
        %4749 = vmatprep.subr.bf16.mxu0 %v3198
        %4750 = vmatpush1.bf16.msra.mxu0 %v3197
        %4751 = vmatprep.subr.bf16.mxu0 %v3204
        %4752 = vmatpush1.bf16.msra.mxu0 %v3203
        %4753 = vmatprep.subr.bf16.mxu0 %v3210
        %4754 = vmatpush1.bf16.msra.mxu0 %v3209
        %4755 = vmatprep.subr.bf16.mxu0 %v3216
        %4756 = vmatpush1.bf16.msra.mxu0 %v3215
        %4757 = vmatprep.subr.bf16.mxu0 %v3222
        %4758 = vmatpush1.bf16.msra.mxu0 %v3221
        %4759 = vmatprep.subr.bf16.mxu0 %v3228
        %4760 = vmatpush1.bf16.msra.mxu0 %v3227
        %4761 = vmatprep.subr.bf16.mxu0 %v3234
        %4762 = vmatpush1.bf16.msra.mxu0 %v3233
        %4763 = vmatprep.subr.bf16.mxu0 %v3240
        %4764 = vmatpush1.bf16.msra.mxu0 %v3239
        %4765 = vmatprep.subr.bf16.mxu0 %v3246
        %4766 = vmatpush1.bf16.msra.mxu0 %v3245
        %4767 = vmatprep.subr.bf16.mxu0 %v3252
        %4768 = vmatpush1.bf16.msra.mxu0 %v3251
        %4769 = vmatprep.mubr.bf16.mxu0 %v420
        %4770 = vmatmul.mubr.bf16.gmra.mrb[0].mxu0 %v419
        %v4771 = vpop.f32.mrb[0].mxu0
        %v4772 = vadd.f32 %v4691, %v4771
        %v4773 = vpop.f32.mrb[0].mxu0
        %v4774 = vadd.f32 %v4693, %v4773
        %v4775 = vpop.f32.mrb[0].mxu0
        %v4776 = vadd.f32 %v4695, %v4775
        %v4777 = vpop.f32.mrb[0].mxu0
        %v4778 = vadd.f32 %v4697, %v4777
        %4779 = vmatprep.mubr.bf16.mxu0 %v432
        %4780 = vmatmul.mubr.bf16.gmra.mrb[0].mxu0 %v431
        %v4781 = vpop.f32.mrb[0].mxu0
        %v4782 = vadd.f32 %v4701, %v4781
        %v4783 = vpop.f32.mrb[0].mxu0
        %v4784 = vadd.f32 %v4703, %v4783
        %v4785 = vpop.f32.mrb[0].mxu0
        %v4786 = vadd.f32 %v4705, %v4785
        %v4787 = vpop.f32.mrb[0].mxu0
        %v4788 = vadd.f32 %v4707, %v4787
        %4789 = vmatprep.mubr.bf16.mxu0 %v444
        %4790 = vmatmul.mubr.bf16.gmra.mrb[0].mxu0 %v443
        %v4791 = vpop.f32.mrb[0].mxu0
        %v4792 = vadd.f32 %v4711, %v4791
        %v4793 = vpop.f32.mrb[0].mxu0
        %v4794 = vadd.f32 %v4713, %v4793
        %v4795 = vpop.f32.mrb[0].mxu0
        %v4796 = vadd.f32 %v4715, %v4795
        %v4797 = vpop.f32.mrb[0].mxu0
        %v4798 = vadd.f32 %v4717, %v4797
        %4799 = vmatprep.mubr.bf16.mxu0 %v456
        %4800 = vmatmul.mubr.bf16.gmra.mrb[0].mxu0 %v455
        %v4801 = vpop.f32.mrb[0].mxu0
        %v4802 = vadd.f32 %v4721, %v4801
        %v4803 = vpop.f32.mrb[0].mxu0
        %v4804 = vadd.f32 %v4723, %v4803
        %v4805 = vpop.f32.mrb[0].mxu0
        %v4806 = vadd.f32 %v4725, %v4805
        %v4807 = vpop.f32.mrb[0].mxu0
        %v4808 = vadd.f32 %v4727, %v4807
        %4809 = vmatprep.mubr.bf16.mxu0 %v468
        %4810 = vmatmul.mubr.bf16.gmra.mrb[0].mxu0 %v467
        %v4811 = vpop.f32.mrb[0].mxu0
        %v4812 = vadd.f32 %v4731, %v4811
        %v4813 = vpop.f32.mrb[0].mxu0
        %v4814 = vadd.f32 %v4733, %v4813
        %v4815 = vpop.f32.mrb[0].mxu0
        %v4816 = vpop.f32.mrb[0].mxu0
        %4817 = vdwg.mxu0
        %4818 = vmatprep.subr.bf16.mxu0 %v3258
        %4819 = vmatpush1.bf16.msra.mxu0 %v3257
        %4820 = vmatprep.subr.bf16.mxu0 %v3264
        %4821 = vmatpush1.bf16.msra.mxu0 %v3263
        %4822 = vmatprep.subr.bf16.mxu0 %v3270
        %4823 = vmatpush1.bf16.msra.mxu0 %v3269
        %4824 = vmatprep.subr.bf16.mxu0 %v3276
        %4825 = vmatpush1.bf16.msra.mxu0 %v3275
        %4826 = vmatprep.subr.bf16.mxu0 %v3282
        %4827 = vmatpush1.bf16.msra.mxu0 %v3281
        %4828 = vmatprep.subr.bf16.mxu0 %v3288
        %4829 = vmatpush1.bf16.msra.mxu0 %v3287
        %4830 = vmatprep.subr.bf16.mxu0 %v3294
        %4831 = vmatpush1.bf16.msra.mxu0 %v3293
        %4832 = vmatprep.subr.bf16.mxu0 %v3300
        %4833 = vmatpush1.bf16.msra.mxu0 %v3299
        %4834 = vmatprep.subr.bf16.mxu0 %v3306
        %4835 = vmatpush1.bf16.msra.mxu0 %v3305
        %4836 = vmatprep.subr.bf16.mxu0 %v3312
        %4837 = vmatpush1.bf16.msra.mxu0 %v3311
        %4838 = vmatprep.subr.bf16.mxu0 %v3318
        %4839 = vmatpush1.bf16.msra.mxu0 %v3317
        %4840 = vmatprep.subr.bf16.mxu0 %v3324
        %4841 = vmatpush1.bf16.msra.mxu0 %v3323
        %4842 = vmatprep.subr.bf16.mxu0 %v3330
        %4843 = vmatpush1.bf16.msra.mxu0 %v3329
        %4844 = vmatprep.subr.bf16.mxu0 %v3336
        %4845 = vmatpush1.bf16.msra.mxu0 %v3335
        %4846 = vmatprep.subr.bf16.mxu0 %v3342
        %4847 = vmatpush1.bf16.msra.mxu0 %v3341
        %4848 = vmatprep.subr.bf16.mxu0 %v3348
        %4849 = vmatpush1.bf16.msra.mxu0 %v3347
        %4850 = vmatprep.mubr.bf16.mxu0 %v422
        %4851 = vmatmul.mubr.bf16.gmra.mrb[0].mxu0 %v421
        %v4852 = vpop.f32.mrb[0].mxu0
        %v4853 = vadd.f32 %v4772, %v4852
        %v4854 = vpop.f32.mrb[0].mxu0
        %v4855 = vadd.f32 %v4774, %v4854
        %v4856 = vpop.f32.mrb[0].mxu0
        %v4857 = vadd.f32 %v4776, %v4856
        %v4858 = vpop.f32.mrb[0].mxu0
        %v4859 = vadd.f32 %v4778, %v4858
        %4860 = vmatprep.mubr.bf16.mxu0 %v434
        %4861 = vmatmul.mubr.bf16.gmra.mrb[0].mxu0 %v433
        %v4862 = vpop.f32.mrb[0].mxu0
        %v4863 = vadd.f32 %v4782, %v4862
        %v4864 = vpop.f32.mrb[0].mxu0
        %v4865 = vadd.f32 %v4784, %v4864
        %v4866 = vpop.f32.mrb[0].mxu0
        %v4867 = vadd.f32 %v4786, %v4866
        %v4868 = vpop.f32.mrb[0].mxu0
        %v4869 = vadd.f32 %v4788, %v4868
        %4870 = vmatprep.mubr.bf16.mxu0 %v446
        %4871 = vmatmul.mubr.bf16.gmra.mrb[0].mxu0 %v445
        %v4872 = vpop.f32.mrb[0].mxu0
        %v4873 = vadd.f32 %v4792, %v4872
        %v4874 = vpop.f32.mrb[0].mxu0
        %v4875 = vadd.f32 %v4794, %v4874
        %v4876 = vpop.f32.mrb[0].mxu0
        %v4877 = vadd.f32 %v4796, %v4876
        %v4878 = vpop.f32.mrb[0].mxu0
        %v4879 = vadd.f32 %v4798, %v4878
        %4880 = vmatprep.mubr.bf16.mxu0 %v458
        %4881 = vmatmul.mubr.bf16.gmra.mrb[0].mxu0 %v457
        %v4882 = vpop.f32.mrb[0].mxu0
        %v4883 = vadd.f32 %v4802, %v4882
        %v4884 = vpop.f32.mrb[0].mxu0
        %v4885 = vadd.f32 %v4804, %v4884
        %v4886 = vpop.f32.mrb[0].mxu0
        %v4887 = vadd.f32 %v4806, %v4886
        %v4888 = vpop.f32.mrb[0].mxu0
        %v4889 = vadd.f32 %v4808, %v4888
        %4890 = vmatprep.mubr.bf16.mxu0 %v470
        %4891 = vmatmul.mubr.bf16.gmra.mrb[0].mxu0 %v469
        %v4892 = vpop.f32.mrb[0].mxu0
        %v4893 = vadd.f32 %v4812, %v4892
        %v4894 = vpop.f32.mrb[0].mxu0
        %v4895 = vadd.f32 %v4814, %v4894
        %v4896 = vpop.f32.mrb[0].mxu0
        %v4897 = vpop.f32.mrb[0].mxu0
        %4898 = vdwg.mxu0
        %4899 = vmatprep.subr.bf16.mxu0 %v2780
        %4900 = vmatpush1.bf16.msra.mxu0 %v2779
        %4901 = vmatprep.subr.bf16.mxu0 %v2786
        %4902 = vmatpush1.bf16.msra.mxu0 %v2785
        %4903 = vmatprep.subr.bf16.mxu0 %v2792
        %4904 = vmatpush1.bf16.msra.mxu0 %v2791
        %4905 = vmatprep.subr.bf16.mxu0 %v2798
        %4906 = vmatpush1.bf16.msra.mxu0 %v2797
        %4907 = vmatprep.subr.bf16.mxu0 %v2804
        %4908 = vmatpush1.bf16.msra.mxu0 %v2803
        %4909 = vmatprep.subr.bf16.mxu0 %v2810
        %4910 = vmatpush1.bf16.msra.mxu0 %v2809
        %4911 = vmatprep.subr.bf16.mxu0 %v2816
        %4912 = vmatpush1.bf16.msra.mxu0 %v2815
        %4913 = vmatprep.subr.bf16.mxu0 %v2822
        %4914 = vmatpush1.bf16.msra.mxu0 %v2821
        %4915 = vmatprep.subr.bf16.mxu0 %v2828
        %4916 = vmatpush1.bf16.msra.mxu0 %v2827
        %4917 = vmatprep.subr.bf16.mxu0 %v2834
        %4918 = vmatpush1.bf16.msra.mxu0 %v2833
        %4919 = vmatprep.subr.bf16.mxu0 %v2840
        %4920 = vmatpush1.bf16.msra.mxu0 %v2839
        %4921 = vmatprep.subr.bf16.mxu0 %v2846
        %4922 = vmatpush1.bf16.msra.mxu0 %v2845
        %4923 = vmatprep.subr.bf16.mxu0 %v2852
        %4924 = vmatpush1.bf16.msra.mxu0 %v2851
        %4925 = vmatprep.subr.bf16.mxu0 %v2858
        %4926 = vmatpush1.bf16.msra.mxu0 %v2857
        %4927 = vmatprep.subr.bf16.mxu0 %v2864
        %4928 = vmatpush1.bf16.msra.mxu0 %v2863
        %4929 = vmatprep.subr.bf16.mxu0 %v2870
        %4930 = vmatpush1.bf16.msra.mxu0 %v2869
        %4931 = vmatprep.mubr.bf16.mxu0 %v412
        %4932 = vmatmul.mubr.bf16.gmra.mrb[0].mxu0 %v411
        %v4933 = vpop.f32.mrb[0].mxu0
        %v4934 = vadd.f32 0.0, %v4933
        %v4935 = vpop.f32.mrb[0].mxu0
        %v4936 = vadd.f32 0.0, %v4935
        %v4937 = vpop.f32.mrb[0].mxu0
        %v4938 = vadd.f32 0.0, %v4937
        %v4939 = vpop.f32.mrb[0].mxu0
        %v4940 = vadd.f32 0.0, %v4939
        %4941 = vmatprep.mubr.bf16.mxu0 %v424
        %4942 = vmatmul.mubr.bf16.gmra.mrb[0].mxu0 %v423
        %v4943 = vpop.f32.mrb[0].mxu0
        %v4944 = vadd.f32 0.0, %v4943
        %v4945 = vpop.f32.mrb[0].mxu0
        %v4946 = vadd.f32 0.0, %v4945
        %v4947 = vpop.f32.mrb[0].mxu0
        %v4948 = vadd.f32 0.0, %v4947
        %v4949 = vpop.f32.mrb[0].mxu0
        %v4950 = vadd.f32 0.0, %v4949
        %4951 = vmatprep.mubr.bf16.mxu0 %v436
        %4952 = vmatmul.mubr.bf16.gmra.mrb[0].mxu0 %v435
        %v4953 = vpop.f32.mrb[0].mxu0
        %v4954 = vadd.f32 0.0, %v4953
        %v4955 = vpop.f32.mrb[0].mxu0
        %v4956 = vadd.f32 0.0, %v4955
        %v4957 = vpop.f32.mrb[0].mxu0
        %v4958 = vadd.f32 0.0, %v4957
        %v4959 = vpop.f32.mrb[0].mxu0
        %v4960 = vadd.f32 0.0, %v4959
        %4961 = vmatprep.mubr.bf16.mxu0 %v448
        %4962 = vmatmul.mubr.bf16.gmra.mrb[0].mxu0 %v447
        %v4963 = vpop.f32.mrb[0].mxu0
        %v4964 = vadd.f32 0.0, %v4963
        %v4965 = vpop.f32.mrb[0].mxu0
        %v4966 = vadd.f32 0.0, %v4965
        %v4967 = vpop.f32.mrb[0].mxu0
        %v4968 = vadd.f32 0.0, %v4967
        %v4969 = vpop.f32.mrb[0].mxu0
        %v4970 = vadd.f32 0.0, %v4969
        %4971 = vmatprep.mubr.bf16.mxu0 %v460
        %4972 = vmatmul.mubr.bf16.gmra.mrb[0].mxu0 %v459
        %v4973 = vpop.f32.mrb[0].mxu0
        %v4974 = vadd.f32 0.0, %v4973
        %v4975 = vpop.f32.mrb[0].mxu0
        %v4976 = vadd.f32 0.0, %v4975
        %v4977 = vpop.f32.mrb[0].mxu0
        %v4978 = vpop.f32.mrb[0].mxu0
        %4979 = vdwg.mxu0
        %4980 = vmatprep.subr.bf16.mxu0 %v2876
        %4981 = vmatpush1.bf16.msra.mxu0 %v2875
        %4982 = vmatprep.subr.bf16.mxu0 %v2882
        %4983 = vmatpush1.bf16.msra.mxu0 %v2881
        %4984 = vmatprep.subr.bf16.mxu0 %v2888
        %4985 = vmatpush1.bf16.msra.mxu0 %v2887
        %4986 = vmatprep.subr.bf16.mxu0 %v2894
        %4987 = vmatpush1.bf16.msra.mxu0 %v2893
        %4988 = vmatprep.subr.bf16.mxu0 %v2900
        %4989 = vmatpush1.bf16.msra.mxu0 %v2899
        %4990 = vmatprep.subr.bf16.mxu0 %v2906
        %4991 = vmatpush1.bf16.msra.mxu0 %v2905
        %4992 = vmatprep.subr.bf16.mxu0 %v2912
        %4993 = vmatpush1.bf16.msra.mxu0 %v2911
        %4994 = vmatprep.subr.bf16.mxu0 %v2918
        %4995 = vmatpush1.bf16.msra.mxu0 %v2917
        %4996 = vmatprep.subr.bf16.mxu0 %v2924
        %4997 = vmatpush1.bf16.msra.mxu0 %v2923
        %4998 = vmatprep.subr.bf16.mxu0 %v2930
        %4999 = vmatpush1.bf16.msra.mxu0 %v2929
        %5000 = vmatprep.subr.bf16.mxu0 %v2936
        %5001 = vmatpush1.bf16.msra.mxu0 %v2935
        %5002 = vmatprep.subr.bf16.mxu0 %v2942
        %5003 = vmatpush1.bf16.msra.mxu0 %v2941
        %5004 = vmatprep.subr.bf16.mxu0 %v2948
        %5005 = vmatpush1.bf16.msra.mxu0 %v2947
        %5006 = vmatprep.subr.bf16.mxu0 %v2954
        %5007 = vmatpush1.bf16.msra.mxu0 %v2953
        %5008 = vmatprep.subr.bf16.mxu0 %v2960
        %5009 = vmatpush1.bf16.msra.mxu0 %v2959
        %5010 = vmatprep.subr.bf16.mxu0 %v2966
        %5011 = vmatpush1.bf16.msra.mxu0 %v2965
        %5012 = vmatprep.mubr.bf16.mxu0 %v414
        %5013 = vmatmul.mubr.bf16.gmra.mrb[0].mxu0 %v413
        %v5014 = vpop.f32.mrb[0].mxu0
        %v5015 = vadd.f32 %v4934, %v5014
        %v5016 = vpop.f32.mrb[0].mxu0
        %v5017 = vadd.f32 %v4936, %v5016
        %v5018 = vpop.f32.mrb[0].mxu0
        %v5019 = vadd.f32 %v4938, %v5018
        %v5020 = vpop.f32.mrb[0].mxu0
        %v5021 = vadd.f32 %v4940, %v5020
        %5022 = vmatprep.mubr.bf16.mxu0 %v426
        %5023 = vmatmul.mubr.bf16.gmra.mrb[0].mxu0 %v425
        %v5024 = vpop.f32.mrb[0].mxu0
        %v5025 = vadd.f32 %v4944, %v5024
        %v5026 = vpop.f32.mrb[0].mxu0
        %v5027 = vadd.f32 %v4946, %v5026
        %v5028 = vpop.f32.mrb[0].mxu0
        %v5029 = vadd.f32 %v4948, %v5028
        %v5030 = vpop.f32.mrb[0].mxu0
        %v5031 = vadd.f32 %v4950, %v5030
        %5032 = vmatprep.mubr.bf16.mxu0 %v438
        %5033 = vmatmul.mubr.bf16.gmra.mrb[0].mxu0 %v437
        %v5034 = vpop.f32.mrb[0].mxu0
        %v5035 = vadd.f32 %v4954, %v5034
        %v5036 = vpop.f32.mrb[0].mxu0
        %v5037 = vadd.f32 %v4956, %v5036
        %v5038 = vpop.f32.mrb[0].mxu0
        %v5039 = vadd.f32 %v4958, %v5038
        %v5040 = vpop.f32.mrb[0].mxu0
        %v5041 = vadd.f32 %v4960, %v5040
        %5042 = vmatprep.mubr.bf16.mxu0 %v450
        %5043 = vmatmul.mubr.bf16.gmra.mrb[0].mxu0 %v449
        %v5044 = vpop.f32.mrb[0].mxu0
        %v5045 = vadd.f32 %v4964, %v5044
        %v5046 = vpop.f32.mrb[0].mxu0
        %v5047 = vadd.f32 %v4966, %v5046
        %v5048 = vpop.f32.mrb[0].mxu0
        %v5049 = vadd.f32 %v4968, %v5048
        %v5050 = vpop.f32.mrb[0].mxu0
        %v5051 = vadd.f32 %v4970, %v5050
        %5052 = vmatprep.mubr.bf16.mxu0 %v462
        %5053 = vmatmul.mubr.bf16.gmra.mrb[0].mxu0 %v461
        %v5054 = vpop.f32.mrb[0].mxu0
        %v5055 = vadd.f32 %v4974, %v5054
        %v5056 = vpop.f32.mrb[0].mxu0
        %v5057 = vadd.f32 %v4976, %v5056
        %v5058 = vpop.f32.mrb[0].mxu0
        %v5059 = vpop.f32.mrb[0].mxu0
        %5060 = vdwg.mxu0
        %5061 = vmatprep.subr.bf16.mxu0 %v2972
        %5062 = vmatpush1.bf16.msra.mxu0 %v2971
        %5063 = vmatprep.subr.bf16.mxu0 %v2978
        %5064 = vmatpush1.bf16.msra.mxu0 %v2977
        %5065 = vmatprep.subr.bf16.mxu0 %v2984
        %5066 = vmatpush1.bf16.msra.mxu0 %v2983
        %5067 = vmatprep.subr.bf16.mxu0 %v2990
        %5068 = vmatpush1.bf16.msra.mxu0 %v2989
        %5069 = vmatprep.subr.bf16.mxu0 %v2996
        %5070 = vmatpush1.bf16.msra.mxu0 %v2995
        %5071 = vmatprep.subr.bf16.mxu0 %v3002
        %5072 = vmatpush1.bf16.msra.mxu0 %v3001
        %5073 = vmatprep.subr.bf16.mxu0 %v3008
        %5074 = vmatpush1.bf16.msra.mxu0 %v3007
        %5075 = vmatprep.subr.bf16.mxu0 %v3014
        %5076 = vmatpush1.bf16.msra.mxu0 %v3013
        %5077 = vmatprep.subr.bf16.mxu0 %v3020
        %5078 = vmatpush1.bf16.msra.mxu0 %v3019
        %5079 = vmatprep.subr.bf16.mxu0 %v3026
        %5080 = vmatpush1.bf16.msra.mxu0 %v3025
        %5081 = vmatprep.subr.bf16.mxu0 %v3032
        %5082 = vmatpush1.bf16.msra.mxu0 %v3031
        %5083 = vmatprep.subr.bf16.mxu0 %v3038
        %5084 = vmatpush1.bf16.msra.mxu0 %v3037
        %5085 = vmatprep.subr.bf16.mxu0 %v3044
        %5086 = vmatpush1.bf16.msra.mxu0 %v3043
        %5087 = vmatprep.subr.bf16.mxu0 %v3050
        %5088 = vmatpush1.bf16.msra.mxu0 %v3049
        %5089 = vmatprep.subr.bf16.mxu0 %v3056
        %5090 = vmatpush1.bf16.msra.mxu0 %v3055
        %5091 = vmatprep.subr.bf16.mxu0 %v3062
        %5092 = vmatpush1.bf16.msra.mxu0 %v3061
        %5093 = vmatprep.mubr.bf16.mxu0 %v416
        %5094 = vmatmul.mubr.bf16.gmra.mrb[0].mxu0 %v415
        %v5095 = vpop.f32.mrb[0].mxu0
        %v5096 = vadd.f32 %v5015, %v5095
        %v5097 = vpop.f32.mrb[0].mxu0
        %v5098 = vadd.f32 %v5017, %v5097
        %v5099 = vpop.f32.mrb[0].mxu0
        %v5100 = vadd.f32 %v5019, %v5099
        %v5101 = vpop.f32.mrb[0].mxu0
        %v5102 = vadd.f32 %v5021, %v5101
        %5103 = vmatprep.mubr.bf16.mxu0 %v428
        %5104 = vmatmul.mubr.bf16.gmra.mrb[0].mxu0 %v427
        %v5105 = vpop.f32.mrb[0].mxu0
        %v5106 = vadd.f32 %v5025, %v5105
        %v5107 = vpop.f32.mrb[0].mxu0
        %v5108 = vadd.f32 %v5027, %v5107
        %v5109 = vpop.f32.mrb[0].mxu0
        %v5110 = vadd.f32 %v5029, %v5109
        %v5111 = vpop.f32.mrb[0].mxu0
        %v5112 = vadd.f32 %v5031, %v5111
        %5113 = vmatprep.mubr.bf16.mxu0 %v440
        %5114 = vmatmul.mubr.bf16.gmra.mrb[0].mxu0 %v439
        %v5115 = vpop.f32.mrb[0].mxu0
        %v5116 = vadd.f32 %v5035, %v5115
        %v5117 = vpop.f32.mrb[0].mxu0
        %v5118 = vadd.f32 %v5037, %v5117
        %v5119 = vpop.f32.mrb[0].mxu0
        %v5120 = vadd.f32 %v5039, %v5119
        %v5121 = vpop.f32.mrb[0].mxu0
        %v5122 = vadd.f32 %v5041, %v5121
        %5123 = vmatprep.mubr.bf16.mxu0 %v452
        %5124 = vmatmul.mubr.bf16.gmra.mrb[0].mxu0 %v451
        %v5125 = vpop.f32.mrb[0].mxu0
        %v5126 = vadd.f32 %v5045, %v5125
        %v5127 = vpop.f32.mrb[0].mxu0
        %v5128 = vadd.f32 %v5047, %v5127
        %v5129 = vpop.f32.mrb[0].mxu0
        %v5130 = vadd.f32 %v5049, %v5129
        %v5131 = vpop.f32.mrb[0].mxu0
        %v5132 = vadd.f32 %v5051, %v5131
        %5133 = vmatprep.mubr.bf16.mxu0 %v464
        %5134 = vmatmul.mubr.bf16.gmra.mrb[0].mxu0 %v463
        %v5135 = vpop.f32.mrb[0].mxu0
        %v5136 = vadd.f32 %v5055, %v5135
        %v5137 = vpop.f32.mrb[0].mxu0
        %v5138 = vadd.f32 %v5057, %v5137
        %v5139 = vpop.f32.mrb[0].mxu0
        %v5140 = vpop.f32.mrb[0].mxu0
        %5141 = vdwg.mxu0
        %5142 = vmatprep.subr.bf16.mxu0 %v3068
        %5143 = vmatpush1.bf16.msra.mxu0 %v3067
        %5144 = vmatprep.subr.bf16.mxu0 %v3074
        %5145 = vmatpush1.bf16.msra.mxu0 %v3073
        %5146 = vmatprep.subr.bf16.mxu0 %v3080
        %5147 = vmatpush1.bf16.msra.mxu0 %v3079
        %5148 = vmatprep.subr.bf16.mxu0 %v3086
        %5149 = vmatpush1.bf16.msra.mxu0 %v3085
        %5150 = vmatprep.subr.bf16.mxu0 %v3092
        %5151 = vmatpush1.bf16.msra.mxu0 %v3091
        %5152 = vmatprep.subr.bf16.mxu0 %v3098
        %5153 = vmatpush1.bf16.msra.mxu0 %v3097
        %5154 = vmatprep.subr.bf16.mxu0 %v3104
        %5155 = vmatpush1.bf16.msra.mxu0 %v3103
        %5156 = vmatprep.subr.bf16.mxu0 %v3110
        %5157 = vmatpush1.bf16.msra.mxu0 %v3109
        %5158 = vmatprep.subr.bf16.mxu0 %v3116
        %5159 = vmatpush1.bf16.msra.mxu0 %v3115
        %5160 = vmatprep.subr.bf16.mxu0 %v3122
        %5161 = vmatpush1.bf16.msra.mxu0 %v3121
        %5162 = vmatprep.subr.bf16.mxu0 %v3128
        %5163 = vmatpush1.bf16.msra.mxu0 %v3127
        %5164 = vmatprep.subr.bf16.mxu0 %v3134
        %5165 = vmatpush1.bf16.msra.mxu0 %v3133
        %5166 = vmatprep.subr.bf16.mxu0 %v3140
        %5167 = vmatpush1.bf16.msra.mxu0 %v3139
        %5168 = vmatprep.subr.bf16.mxu0 %v3146
        %5169 = vmatpush1.bf16.msra.mxu0 %v3145
        %5170 = vmatprep.subr.bf16.mxu0 %v3152
        %5171 = vmatpush1.bf16.msra.mxu0 %v3151
        %5172 = vmatprep.subr.bf16.mxu0 %v3158
        %5173 = vmatpush1.bf16.msra.mxu0 %v3157
        %5174 = vmatprep.mubr.bf16.mxu0 %v418
        %5175 = vmatmul.mubr.bf16.gmra.mrb[0].mxu0 %v417
        %v5176 = vpop.f32.mrb[0].mxu0
        %v5177 = vadd.f32 %v5096, %v5176
        %v5178 = vpop.f32.mrb[0].mxu0
        %v5179 = vadd.f32 %v5098, %v5178
        %v5180 = vpop.f32.mrb[0].mxu0
        %v5181 = vadd.f32 %v5100, %v5180
        %v5182 = vpop.f32.mrb[0].mxu0
        %v5183 = vadd.f32 %v5102, %v5182
        %5184 = vmatprep.mubr.bf16.mxu0 %v430
        %5185 = vmatmul.mubr.bf16.gmra.mrb[0].mxu0 %v429
        %v5186 = vpop.f32.mrb[0].mxu0
        %v5187 = vadd.f32 %v5106, %v5186
        %v5188 = vpop.f32.mrb[0].mxu0
        %v5189 = vadd.f32 %v5108, %v5188
        %v5190 = vpop.f32.mrb[0].mxu0
        %v5191 = vadd.f32 %v5110, %v5190
        %v5192 = vpop.f32.mrb[0].mxu0
        %v5193 = vadd.f32 %v5112, %v5192
        %5194 = vmatprep.mubr.bf16.mxu0 %v442
        %5195 = vmatmul.mubr.bf16.gmra.mrb[0].mxu0 %v441
        %v5196 = vpop.f32.mrb[0].mxu0
        %v5197 = vadd.f32 %v5116, %v5196
        %v5198 = vpop.f32.mrb[0].mxu0
        %v5199 = vadd.f32 %v5118, %v5198
        %v5200 = vpop.f32.mrb[0].mxu0
        %v5201 = vadd.f32 %v5120, %v5200
        %v5202 = vpop.f32.mrb[0].mxu0
        %v5203 = vadd.f32 %v5122, %v5202
        %5204 = vmatprep.mubr.bf16.mxu0 %v454
        %5205 = vmatmul.mubr.bf16.gmra.mrb[0].mxu0 %v453
        %v5206 = vpop.f32.mrb[0].mxu0
        %v5207 = vadd.f32 %v5126, %v5206
        %v5208 = vpop.f32.mrb[0].mxu0
        %v5209 = vadd.f32 %v5128, %v5208
        %v5210 = vpop.f32.mrb[0].mxu0
        %v5211 = vadd.f32 %v5130, %v5210
        %v5212 = vpop.f32.mrb[0].mxu0
        %v5213 = vadd.f32 %v5132, %v5212
        %5214 = vmatprep.mubr.bf16.mxu0 %v466
        %5215 = vmatmul.mubr.bf16.gmra.mrb[0].mxu0 %v465
        %v5216 = vpop.f32.mrb[0].mxu0
        %v5217 = vadd.f32 %v5136, %v5216
        %v5218 = vpop.f32.mrb[0].mxu0
        %v5219 = vadd.f32 %v5138, %v5218
        %v5220 = vpop.f32.mrb[0].mxu0
        %v5221 = vpop.f32.mrb[0].mxu0
        %5222 = vdwg.mxu0
        %5223 = vmatprep.subr.bf16.mxu0 %v3164
        %5224 = vmatpush1.bf16.msra.mxu0 %v3163
        %5225 = vmatprep.subr.bf16.mxu0 %v3170
        %5226 = vmatpush1.bf16.msra.mxu0 %v3169
        %5227 = vmatprep.subr.bf16.mxu0 %v3176
        %5228 = vmatpush1.bf16.msra.mxu0 %v3175
        %5229 = vmatprep.subr.bf16.mxu0 %v3182
        %5230 = vmatpush1.bf16.msra.mxu0 %v3181
        %5231 = vmatprep.subr.bf16.mxu0 %v3188
        %5232 = vmatpush1.bf16.msra.mxu0 %v3187
        %5233 = vmatprep.subr.bf16.mxu0 %v3194
        %5234 = vmatpush1.bf16.msra.mxu0 %v3193
        %5235 = vmatprep.subr.bf16.mxu0 %v3200
        %5236 = vmatpush1.bf16.msra.mxu0 %v3199
        %5237 = vmatprep.subr.bf16.mxu0 %v3206
        %5238 = vmatpush1.bf16.msra.mxu0 %v3205
        %5239 = vmatprep.subr.bf16.mxu0 %v3212
        %5240 = vmatpush1.bf16.msra.mxu0 %v3211
        %5241 = vmatprep.subr.bf16.mxu0 %v3218
        %5242 = vmatpush1.bf16.msra.mxu0 %v3217
        %5243 = vmatprep.subr.bf16.mxu0 %v3224
        %5244 = vmatpush1.bf16.msra.mxu0 %v3223
        %5245 = vmatprep.subr.bf16.mxu0 %v3230
        %5246 = vmatpush1.bf16.msra.mxu0 %v3229
        %5247 = vmatprep.subr.bf16.mxu0 %v3236
        %5248 = vmatpush1.bf16.msra.mxu0 %v3235
        %5249 = vmatprep.subr.bf16.mxu0 %v3242
        %5250 = vmatpush1.bf16.msra.mxu0 %v3241
        %5251 = vmatprep.subr.bf16.mxu0 %v3248
        %5252 = vmatpush1.bf16.msra.mxu0 %v3247
        %5253 = vmatprep.subr.bf16.mxu0 %v3254
        %5254 = vmatpush1.bf16.msra.mxu0 %v3253
        %5255 = vmatprep.mubr.bf16.mxu0 %v420
        %5256 = vmatmul.mubr.bf16.gmra.mrb[0].mxu0 %v419
        %v5257 = vpop.f32.mrb[0].mxu0
        %v5258 = vadd.f32 %v5177, %v5257
        %v5259 = vpop.f32.mrb[0].mxu0
        %v5260 = vadd.f32 %v5179, %v5259
        %v5261 = vpop.f32.mrb[0].mxu0
        %v5262 = vadd.f32 %v5181, %v5261
        %v5263 = vpop.f32.mrb[0].mxu0
        %v5264 = vadd.f32 %v5183, %v5263
        %5265 = vmatprep.mubr.bf16.mxu0 %v432
        %5266 = vmatmul.mubr.bf16.gmra.mrb[0].mxu0 %v431
        %v5267 = vpop.f32.mrb[0].mxu0
        %v5268 = vadd.f32 %v5187, %v5267
        %v5269 = vpop.f32.mrb[0].mxu0
        %v5270 = vadd.f32 %v5189, %v5269
        %v5271 = vpop.f32.mrb[0].mxu0
        %v5272 = vadd.f32 %v5191, %v5271
        %v5273 = vpop.f32.mrb[0].mxu0
        %v5274 = vadd.f32 %v5193, %v5273
        %5275 = vmatprep.mubr.bf16.mxu0 %v444
        %5276 = vmatmul.mubr.bf16.gmra.mrb[0].mxu0 %v443
        %v5277 = vpop.f32.mrb[0].mxu0
        %v5278 = vadd.f32 %v5197, %v5277
        %v5279 = vpop.f32.mrb[0].mxu0
        %v5280 = vadd.f32 %v5199, %v5279
        %v5281 = vpop.f32.mrb[0].mxu0
        %v5282 = vadd.f32 %v5201, %v5281
        %v5283 = vpop.f32.mrb[0].mxu0
        %v5284 = vadd.f32 %v5203, %v5283
        %5285 = vmatprep.mubr.bf16.mxu0 %v456
        %5286 = vmatmul.mubr.bf16.gmra.mrb[0].mxu0 %v455
        %v5287 = vpop.f32.mrb[0].mxu0
        %v5288 = vadd.f32 %v5207, %v5287
        %v5289 = vpop.f32.mrb[0].mxu0
        %v5290 = vadd.f32 %v5209, %v5289
        %v5291 = vpop.f32.mrb[0].mxu0
        %v5292 = vadd.f32 %v5211, %v5291
        %v5293 = vpop.f32.mrb[0].mxu0
        %v5294 = vadd.f32 %v5213, %v5293
        %5295 = vmatprep.mubr.bf16.mxu0 %v468
        %5296 = vmatmul.mubr.bf16.gmra.mrb[0].mxu0 %v467
        %v5297 = vpop.f32.mrb[0].mxu0
        %v5298 = vadd.f32 %v5217, %v5297
        %v5299 = vpop.f32.mrb[0].mxu0
        %v5300 = vadd.f32 %v5219, %v5299
        %v5301 = vpop.f32.mrb[0].mxu0
        %v5302 = vpop.f32.mrb[0].mxu0
        %5303 = vdwg.mxu0
        %5304 = vmatprep.subr.bf16.mxu0 %v3260
        %5305 = vmatpush1.bf16.msra.mxu0 %v3259
        %5306 = vmatprep.subr.bf16.mxu0 %v3266
        %5307 = vmatpush1.bf16.msra.mxu0 %v3265
        %5308 = vmatprep.subr.bf16.mxu0 %v3272
        %5309 = vmatpush1.bf16.msra.mxu0 %v3271
        %5310 = vmatprep.subr.bf16.mxu0 %v3278
        %5311 = vmatpush1.bf16.msra.mxu0 %v3277
        %5312 = vmatprep.subr.bf16.mxu0 %v3284
        %5313 = vmatpush1.bf16.msra.mxu0 %v3283
        %5314 = vmatprep.subr.bf16.mxu0 %v3290
        %5315 = vmatpush1.bf16.msra.mxu0 %v3289
        %5316 = vmatprep.subr.bf16.mxu0 %v3296
        %5317 = vmatpush1.bf16.msra.mxu0 %v3295
        %5318 = vmatprep.subr.bf16.mxu0 %v3302
        %5319 = vmatpush1.bf16.msra.mxu0 %v3301
        %5320 = vmatprep.subr.bf16.mxu0 %v3308
        %5321 = vmatpush1.bf16.msra.mxu0 %v3307
        %5322 = vmatprep.subr.bf16.mxu0 %v3314
        %5323 = vmatpush1.bf16.msra.mxu0 %v3313
        %5324 = vmatprep.subr.bf16.mxu0 %v3320
        %5325 = vmatpush1.bf16.msra.mxu0 %v3319
        %5326 = vmatprep.subr.bf16.mxu0 %v3326
        %5327 = vmatpush1.bf16.msra.mxu0 %v3325
        %5328 = vmatprep.subr.bf16.mxu0 %v3332
        %5329 = vmatpush1.bf16.msra.mxu0 %v3331
        %5330 = vmatprep.subr.bf16.mxu0 %v3338
        %5331 = vmatpush1.bf16.msra.mxu0 %v3337
        %5332 = vmatprep.subr.bf16.mxu0 %v3344
        %5333 = vmatpush1.bf16.msra.mxu0 %v3343
        %5334 = vmatprep.subr.bf16.mxu0 %v3350
        %5335 = vmatpush1.bf16.msra.mxu0 %v3349
        %5336 = vmatprep.mubr.bf16.mxu0 %v422
        %5337 = vmatmul.mubr.bf16.gmra.mrb[0].mxu0 %v421
        %v5338 = vpop.f32.mrb[0].mxu0
        %v5339 = vadd.f32 %v5258, %v5338
        %v5340 = vpop.f32.mrb[0].mxu0
        %v5341 = vadd.f32 %v5260, %v5340
        %v5342 = vpop.f32.mrb[0].mxu0
        %v5343 = vadd.f32 %v5262, %v5342
        %v5344 = vpop.f32.mrb[0].mxu0
        %v5345 = vadd.f32 %v5264, %v5344
        %5346 = vmatprep.mubr.bf16.mxu0 %v434
        %5347 = vmatmul.mubr.bf16.gmra.mrb[0].mxu0 %v433
        %v5348 = vpop.f32.mrb[0].mxu0
        %v5349 = vadd.f32 %v5268, %v5348
        %v5350 = vpop.f32.mrb[0].mxu0
        %v5351 = vadd.f32 %v5270, %v5350
        %v5352 = vpop.f32.mrb[0].mxu0
        %v5353 = vadd.f32 %v5272, %v5352
        %v5354 = vpop.f32.mrb[0].mxu0
        %v5355 = vadd.f32 %v5274, %v5354
        %5356 = vmatprep.mubr.bf16.mxu0 %v446
        %5357 = vmatmul.mubr.bf16.gmra.mrb[0].mxu0 %v445
        %v5358 = vpop.f32.mrb[0].mxu0
        %v5359 = vadd.f32 %v5278, %v5358
        %v5360 = vpop.f32.mrb[0].mxu0
        %v5361 = vadd.f32 %v5280, %v5360
        %v5362 = vpop.f32.mrb[0].mxu0
        %v5363 = vadd.f32 %v5282, %v5362
        %v5364 = vpop.f32.mrb[0].mxu0
        %v5365 = vadd.f32 %v5284, %v5364
        %5366 = vmatprep.mubr.bf16.mxu0 %v458
        %5367 = vmatmul.mubr.bf16.gmra.mrb[0].mxu0 %v457
        %v5368 = vpop.f32.mrb[0].mxu0
        %v5369 = vadd.f32 %v5288, %v5368
        %v5370 = vpop.f32.mrb[0].mxu0
        %v5371 = vadd.f32 %v5290, %v5370
        %v5372 = vpop.f32.mrb[0].mxu0
        %v5373 = vadd.f32 %v5292, %v5372
        %v5374 = vpop.f32.mrb[0].mxu0
        %v5375 = vadd.f32 %v5294, %v5374
        %5376 = vmatprep.mubr.bf16.mxu0 %v470
        %5377 = vmatmul.mubr.bf16.gmra.mrb[0].mxu0 %v469
        %v5378 = vpop.f32.mrb[0].mxu0
        %v5379 = vadd.f32 %v5298, %v5378
        %v5380 = vpop.f32.mrb[0].mxu0
        %v5381 = vadd.f32 %v5300, %v5380
        %v5382 = vpop.f32.mrb[0].mxu0
        %v5383 = vpop.f32.mrb[0].mxu0
        %5384 = vdwg.mxu0
        %v5385 = vmax.f32 %v4367, 0.0
        %v5386 = vmax.f32 %v4369, 0.0
        %v5387 = vmax.f32 %v4853, 0.0
        %v5388 = vmax.f32 %v4855, 0.0
        %v5389 = vmax.f32 %v5339, 0.0
        %v5390 = vmax.f32 %v5341, 0.0
        %v5391 = vmax.f32 %v4371, 0.0
        %v5392 = vmax.f32 %v4373, 0.0
        %v5393 = vmax.f32 %v4857, 0.0
        %v5394 = vmax.f32 %v4859, 0.0
        %v5395 = vmax.f32 %v5343, 0.0
        %v5396 = vmax.f32 %v5345, 0.0
        %v5397 = vmax.f32 %v4377, 0.0
        %v5398 = vmax.f32 %v4379, 0.0
        %v5399 = vmax.f32 %v4863, 0.0
        %v5400 = vmax.f32 %v4865, 0.0
        %v5401 = vmax.f32 %v5349, 0.0
        %v5402 = vmax.f32 %v5351, 0.0
        %v5403 = vmax.f32 %v4381, 0.0
        %v5404 = vmax.f32 %v4383, 0.0
        %v5405 = vmax.f32 %v4867, 0.0
        %v5406 = vmax.f32 %v4869, 0.0
        %v5407 = vmax.f32 %v5353, 0.0
        %v5408 = vmax.f32 %v5355, 0.0
        %v5409 = vmax.f32 %v4387, 0.0
        %v5410 = vmax.f32 %v4389, 0.0
        %v5411 = vmax.f32 %v4873, 0.0
        %v5412 = vmax.f32 %v4875, 0.0
        %v5413 = vmax.f32 %v5359, 0.0
        %v5414 = vmax.f32 %v5361, 0.0
        %v5415 = vmax.f32 %v4391, 0.0
        %v5416 = vmax.f32 %v4393, 0.0
        %v5417 = vmax.f32 %v4877, 0.0
        %v5418 = vmax.f32 %v4879, 0.0
        %v5419 = vmax.f32 %v5363, 0.0
        %v5420 = vmax.f32 %v5365, 0.0
        %v5421 = vmax.f32 %v4397, 0.0
        %v5422 = vmax.f32 %v4399, 0.0
        %v5423 = vmax.f32 %v4883, 0.0
        %v5424 = vmax.f32 %v4885, 0.0
        %v5425 = vmax.f32 %v5369, 0.0
        %v5426 = vmax.f32 %v5371, 0.0
        %v5427 = vmax.f32 %v4401, 0.0
        %v5428 = vmax.f32 %v4403, 0.0
        %v5429 = vmax.f32 %v4887, 0.0
        %v5430 = vmax.f32 %v4889, 0.0
        %v5431 = vmax.f32 %v5373, 0.0
        %v5432 = vmax.f32 %v5375, 0.0
        %v5433 = vmax.f32 %v4407, 0.0
        %v5434 = vmax.f32 %v4409, 0.0
        %v5435 = vmax.f32 %v4893, 0.0
        %v5436 = vmax.f32 %v4895, 0.0
        %v5437 = vmax.f32 %v5379, 0.0
        %v5438 = vmax.f32 %v5381, 0.0
        %v5439 = vpack.c.bf16 %v5391, %v5385
        %v5440 = vpack.c.bf16 %v5392, %v5386
        %v5441 = vpack.c.bf16 %v5393, %v5387
        %v5442 = vpack.c.bf16 %v5394, %v5388
        %v5443 = vpack.c.bf16 %v5395, %v5389
        %v5444 = vpack.c.bf16 %v5396, %v5390
        %v5445 = vpack.c.bf16 %v5403, %v5397
        %v5446 = vpack.c.bf16 %v5404, %v5398
        %v5447 = vpack.c.bf16 %v5405, %v5399
        %v5448 = vpack.c.bf16 %v5406, %v5400
        %v5449 = vpack.c.bf16 %v5407, %v5401
        %v5450 = vpack.c.bf16 %v5408, %v5402
        %v5451 = vpack.c.bf16 %v5415, %v5409
        %v5452 = vpack.c.bf16 %v5416, %v5410
        %v5453 = vpack.c.bf16 %v5417, %v5411
        %v5454 = vpack.c.bf16 %v5418, %v5412
        %v5455 = vpack.c.bf16 %v5419, %v5413
        %v5456 = vpack.c.bf16 %v5420, %v5414
        %v5457 = vpack.c.bf16 %v5427, %v5421
        %v5458 = vpack.c.bf16 %v5428, %v5422
        %v5459 = vpack.c.bf16 %v5429, %v5423
        %v5460 = vpack.c.bf16 %v5430, %v5424
        %v5461 = vpack.c.bf16 %v5431, %v5425
        %v5462 = vpack.c.bf16 %v5432, %v5426
        %v5463 = vpack.c.bf16 %v5433, %v5433
        %v5464 = vpack.c.bf16 %v5434, %v5434
        %v5465 = vpack.c.bf16 %v5435, %v5435
        %v5466 = vpack.c.bf16 %v5436, %v5436
        %v5467 = vpack.c.bf16 %v5437, %v5437
        %v5468 = vpack.c.bf16 %v5438, %v5438
        %v5469 = vld [vmem:[#allocation7] sm:$0xff]
        %v5470 = vld [vmem:[#allocation7 + $0x8] sm:$0xf]
        %v5471 = vld [vmem:[#allocation7 + $0xc] sm:$0xff]
        %v5472 = vld [vmem:[#allocation7 + $0x14] sm:$0xf]
        %v5473 = vld [vmem:[#allocation7 + $0x18] sm:$0xff]
        %v5474 = vld [vmem:[#allocation7 + $0x20] sm:$0xf]
        %v5475 = vld [vmem:[#allocation7 + $0x24] sm:$0xff]
        %v5476 = vld [vmem:[#allocation7 + $0x2c] sm:$0xf]
        %v5477 = vld [vmem:[#allocation7 + $0x30] sm:$0xff]
        %v5478 = vld [vmem:[#allocation7 + $0x38] sm:$0xf]
        %v5479 = vld [vmem:[#allocation7 + $0x3c] sm:$0xff]
        %v5480 = vld [vmem:[#allocation7 + $0x44] sm:$0xf]
        %v5481 = vld [vmem:[#allocation7 + $0x48] sm:$0xff]
        %v5482 = vld [vmem:[#allocation7 + $0x50] sm:$0xf]
        %v5483 = vld [vmem:[#allocation7 + $0x54] sm:$0xff]
        %v5484 = vld [vmem:[#allocation7 + $0x5c] sm:$0xf]
        %v5485 = vld [vmem:[#allocation7 + $0x60] sm:$0xff]
        %v5486 = vld [vmem:[#allocation7 + $0x68] sm:$0xf]
        %v5487 = vld [vmem:[#allocation7 + $0x6c] sm:$0xff]
        %v5488 = vld [vmem:[#allocation7 + $0x74] sm:$0xf]
        %v5489 = vld [vmem:[#allocation7 + $0x78] sm:$0xff]
        %v5490 = vld [vmem:[#allocation7 + $0x80] sm:$0xf]
        %v5491 = vld [vmem:[#allocation7 + $0x84] sm:$0xff]
        %v5492 = vld [vmem:[#allocation7 + $0x8c] sm:$0xf]
        %v5493 = vld [vmem:[#allocation7 + $0x90] sm:$0xff]
        %v5494 = vld [vmem:[#allocation7 + $0x98] sm:$0xf]
        %v5495 = vld [vmem:[#allocation7 + $0x9c] sm:$0xff]
        %v5496 = vld [vmem:[#allocation7 + $0xa4] sm:$0xf]
        %v5497 = vld [vmem:[#allocation7 + $0xa8] sm:$0xff]
        %v5498 = vld [vmem:[#allocation7 + $0xb0] sm:$0xf]
        %v5499 = vld [vmem:[#allocation7 + $0xb4] sm:$0xff]
        %v5500 = vld [vmem:[#allocation7 + $0xbc] sm:$0xf]
        %v5501 = vld [vmem:[#allocation7 + $0xc0] sm:$0xff]
        %v5502 = vld [vmem:[#allocation7 + $0xc8] sm:$0xf]
        %v5503 = vld [vmem:[#allocation7 + $0xcc] sm:$0xff]
        %v5504 = vld [vmem:[#allocation7 + $0xd4] sm:$0xf]
        %v5505 = vld [vmem:[#allocation7 + $0xd8] sm:$0xff]
        %v5506 = vld [vmem:[#allocation7 + $0xe0] sm:$0xf]
        %v5507 = vld [vmem:[#allocation7 + $0xe4] sm:$0xff]
        %v5508 = vld [vmem:[#allocation7 + $0xec] sm:$0xf]
        %v5509 = vld [vmem:[#allocation7 + $0xf0] sm:$0xff]
        %v5510 = vld [vmem:[#allocation7 + $0xf8] sm:$0xf]
        %v5511 = vld [vmem:[#allocation7 + $0xfc] sm:$0xff]
        %v5512 = vld [vmem:[#allocation7 + $0x104] sm:$0xf]
        %v5513 = vld [vmem:[#allocation7 + $0x108] sm:$0xff]
        %v5514 = vld [vmem:[#allocation7 + $0x110] sm:$0xf]
        %v5515 = vld [vmem:[#allocation7 + $0x114] sm:$0xff]
        %v5516 = vld [vmem:[#allocation7 + $0x11c] sm:$0xf]
        %v5517 = vld [vmem:[#allocation7 + $0x120] sm:$0xff]
        %v5518 = vld [vmem:[#allocation7 + $0x128] sm:$0xf]
        %v5519 = vld [vmem:[#allocation7 + $0x12c] sm:$0xff]
        %v5520 = vld [vmem:[#allocation7 + $0x134] sm:$0xf]
        %v5521 = vld [vmem:[#allocation7 + $0x138] sm:$0xff]
        %v5522 = vld [vmem:[#allocation7 + $0x140] sm:$0xf]
        %v5523 = vld [vmem:[#allocation7 + $0x144] sm:$0xff]
        %v5524 = vld [vmem:[#allocation7 + $0x14c] sm:$0xf]
        %v5525 = vld [vmem:[#allocation7 + $0x150] sm:$0xff]
        %v5526 = vld [vmem:[#allocation7 + $0x158] sm:$0xf]
        %v5527 = vld [vmem:[#allocation7 + $0x15c] sm:$0xff]
        %v5528 = vld [vmem:[#allocation7 + $0x164] sm:$0xf]
        %v5529 = vld [vmem:[#allocation7 + $0x168] sm:$0xff]
        %v5530 = vld [vmem:[#allocation7 + $0x170] sm:$0xf]
        %v5531 = vld [vmem:[#allocation7 + $0x174] sm:$0xff]
        %v5532 = vld [vmem:[#allocation7 + $0x17c] sm:$0xf]
        %v5533 = vld [vmem:[#allocation7 + $0x180] sm:$0xff]
        %v5534 = vld [vmem:[#allocation7 + $0x188] sm:$0xf]
        %v5535 = vld [vmem:[#allocation7 + $0x18c] sm:$0xff]
        %v5536 = vld [vmem:[#allocation7 + $0x194] sm:$0xf]
        %v5537 = vld [vmem:[#allocation7 + $0x198] sm:$0xff]
        %v5538 = vld [vmem:[#allocation7 + $0x1a0] sm:$0xf]
        %v5539 = vld [vmem:[#allocation7 + $0x1a4] sm:$0xff]
        %v5540 = vld [vmem:[#allocation7 + $0x1ac] sm:$0xf]
        %v5541 = vld [vmem:[#allocation7 + $0x1b0] sm:$0xff]
        %v5542 = vld [vmem:[#allocation7 + $0x1b8] sm:$0xf]
        %v5543 = vld [vmem:[#allocation7 + $0x1bc] sm:$0xff]
        %v5544 = vld [vmem:[#allocation7 + $0x1c4] sm:$0xf]
        %v5545 = vld [vmem:[#allocation7 + $0x1c8] sm:$0xff]
        %v5546 = vld [vmem:[#allocation7 + $0x1d0] sm:$0xf]
        %v5547 = vld [vmem:[#allocation7 + $0x1d4] sm:$0xff]
        %v5548 = vld [vmem:[#allocation7 + $0x1dc] sm:$0xf]
        %v5549 = vld [vmem:[#allocation7 + $0x1e0] sm:$0xff]
        %v5550 = vld [vmem:[#allocation7 + $0x1e8] sm:$0xf]
        %v5551 = vld [vmem:[#allocation7 + $0x1ec] sm:$0xff]
        %v5552 = vld [vmem:[#allocation7 + $0x1f4] sm:$0xf]
        %v5553 = vld [vmem:[#allocation7 + $0x1f8] sm:$0xff]
        %v5554 = vld [vmem:[#allocation7 + $0x200] sm:$0xf]
        %v5555 = vld [vmem:[#allocation7 + $0x204] sm:$0xff]
        %v5556 = vld [vmem:[#allocation7 + $0x20c] sm:$0xf]
        %v5557 = vld [vmem:[#allocation7 + $0x210] sm:$0xff]
        %v5558 = vld [vmem:[#allocation7 + $0x218] sm:$0xf]
        %v5559 = vld [vmem:[#allocation7 + $0x21c] sm:$0xff]
        %v5560 = vld [vmem:[#allocation7 + $0x224] sm:$0xf]
        %v5561 = vld [vmem:[#allocation7 + $0x228] sm:$0xff]
        %v5562 = vld [vmem:[#allocation7 + $0x230] sm:$0xf]
        %v5563 = vld [vmem:[#allocation7 + $0x234] sm:$0xff]
        %v5564 = vld [vmem:[#allocation7 + $0x23c] sm:$0xf]
        %v5565 = vld [vmem:[#allocation7 + $0x240] sm:$0xff]
        %v5566 = vld [vmem:[#allocation7 + $0x248] sm:$0xf]
        %v5567 = vld [vmem:[#allocation7 + $0x24c] sm:$0xff]
        %v5568 = vld [vmem:[#allocation7 + $0x254] sm:$0xf]
        %v5569 = vld [vmem:[#allocation7 + $0x258] sm:$0xff]
        %v5570 = vld [vmem:[#allocation7 + $0x260] sm:$0xf]
        %v5571 = vld [vmem:[#allocation7 + $0x264] sm:$0xff]
        %v5572 = vld [vmem:[#allocation7 + $0x26c] sm:$0xf]
        %v5573 = vld [vmem:[#allocation7 + $0x270] sm:$0xff]
        %v5574 = vld [vmem:[#allocation7 + $0x278] sm:$0xf]
        %v5575 = vld [vmem:[#allocation7 + $0x27c] sm:$0xff]
        %v5576 = vld [vmem:[#allocation7 + $0x284] sm:$0xf]
        %v5577 = vld [vmem:[#allocation7 + $0x288] sm:$0xff]
        %v5578 = vld [vmem:[#allocation7 + $0x290] sm:$0xf]
        %v5579 = vld [vmem:[#allocation7 + $0x294] sm:$0xff]
        %v5580 = vld [vmem:[#allocation7 + $0x29c] sm:$0xf]
        %v5581 = vld [vmem:[#allocation7 + $0x2a0] sm:$0xff]
        %v5582 = vld [vmem:[#allocation7 + $0x2a8] sm:$0xf]
        %v5583 = vld [vmem:[#allocation7 + $0x2ac] sm:$0xff]
        %v5584 = vld [vmem:[#allocation7 + $0x2b4] sm:$0xf]
        %v5585 = vld [vmem:[#allocation7 + $0x2b8] sm:$0xff]
        %v5586 = vld [vmem:[#allocation7 + $0x2c0] sm:$0xf]
        %v5587 = vld [vmem:[#allocation7 + $0x2c4] sm:$0xff]
        %v5588 = vld [vmem:[#allocation7 + $0x2cc] sm:$0xf]
        %v5589 = vld [vmem:[#allocation7 + $0x2d0] sm:$0xff]
        %v5590 = vld [vmem:[#allocation7 + $0x2d8] sm:$0xf]
        %v5591 = vld [vmem:[#allocation7 + $0x2dc] sm:$0xff]
        %v5592 = vld [vmem:[#allocation7 + $0x2e4] sm:$0xf]
        %v5593 = vld [vmem:[#allocation7 + $0x2e8] sm:$0xff]
        %v5594 = vld [vmem:[#allocation7 + $0x2f0] sm:$0xf]
        %v5595 = vld [vmem:[#allocation7 + $0x2f4] sm:$0xff]
        %v5596 = vld [vmem:[#allocation7 + $0x2fc] sm:$0xf]
        %v5597 = vld [vmem:[#allocation7 + $0x300] sm:$0xff]
        %v5598 = vld [vmem:[#allocation7 + $0x308] sm:$0xf]
        %v5599 = vld [vmem:[#allocation7 + $0x30c] sm:$0xff]
        %v5600 = vld [vmem:[#allocation7 + $0x314] sm:$0xf]
        %v5601 = vld [vmem:[#allocation7 + $0x318] sm:$0xff]
        %v5602 = vld [vmem:[#allocation7 + $0x320] sm:$0xf]
        %v5603 = vld [vmem:[#allocation7 + $0x324] sm:$0xff]
        %v5604 = vld [vmem:[#allocation7 + $0x32c] sm:$0xf]
        %v5605 = vld [vmem:[#allocation7 + $0x330] sm:$0xff]
        %v5606 = vld [vmem:[#allocation7 + $0x338] sm:$0xf]
        %v5607 = vld [vmem:[#allocation7 + $0x33c] sm:$0xff]
        %v5608 = vld [vmem:[#allocation7 + $0x344] sm:$0xf]
        %v5609 = vld [vmem:[#allocation7 + $0x348] sm:$0xff]
        %v5610 = vld [vmem:[#allocation7 + $0x350] sm:$0xf]
        %v5611 = vld [vmem:[#allocation7 + $0x354] sm:$0xff]
        %v5612 = vld [vmem:[#allocation7 + $0x35c] sm:$0xf]
        %v5613 = vld [vmem:[#allocation7 + $0x360] sm:$0xff]
        %v5614 = vld [vmem:[#allocation7 + $0x368] sm:$0xf]
        %v5615 = vld [vmem:[#allocation7 + $0x36c] sm:$0xff]
        %v5616 = vld [vmem:[#allocation7 + $0x374] sm:$0xf]
        %v5617 = vld [vmem:[#allocation7 + $0x378] sm:$0xff]
        %v5618 = vld [vmem:[#allocation7 + $0x380] sm:$0xf]
        %v5619 = vld [vmem:[#allocation7 + $0x384] sm:$0xff]
        %v5620 = vld [vmem:[#allocation7 + $0x38c] sm:$0xf]
        %v5621 = vld [vmem:[#allocation7 + $0x390] sm:$0xff]
        %v5622 = vld [vmem:[#allocation7 + $0x398] sm:$0xf]
        %v5623 = vld [vmem:[#allocation7 + $0x39c] sm:$0xff]
        %v5624 = vld [vmem:[#allocation7 + $0x3a4] sm:$0xf]
        %v5625 = vld [vmem:[#allocation7 + $0x3a8] sm:$0xff]
        %v5626 = vld [vmem:[#allocation7 + $0x3b0] sm:$0xf]
        %v5627 = vld [vmem:[#allocation7 + $0x3b4] sm:$0xff]
        %v5628 = vld [vmem:[#allocation7 + $0x3bc] sm:$0xf]
        %v5629 = vld [vmem:[#allocation7 + $0x3c0] sm:$0xff]
        %v5630 = vld [vmem:[#allocation7 + $0x3c8] sm:$0xf]
        %v5631 = vld [vmem:[#allocation7 + $0x3cc] sm:$0xff]
        %v5632 = vld [vmem:[#allocation7 + $0x3d4] sm:$0xf]
        %v5633 = vld [vmem:[#allocation7 + $0x3d8] sm:$0xff]
        %v5634 = vld [vmem:[#allocation7 + $0x3e0] sm:$0xf]
        %v5635 = vld [vmem:[#allocation7 + $0x3e4] sm:$0xff]
        %v5636 = vld [vmem:[#allocation7 + $0x3ec] sm:$0xf]
        %v5637 = vld [vmem:[#allocation7 + $0x3f0] sm:$0xff]
        %v5638 = vld [vmem:[#allocation7 + $0x3f8] sm:$0xf]
        %v5639 = vld [vmem:[#allocation7 + $0x3fc] sm:$0xff]
        %v5640 = vld [vmem:[#allocation7 + $0x404] sm:$0xf]
        %v5641 = vld [vmem:[#allocation7 + $0x408] sm:$0xff]
        %v5642 = vld [vmem:[#allocation7 + $0x410] sm:$0xf]
        %v5643 = vld [vmem:[#allocation7 + $0x414] sm:$0xff]
        %v5644 = vld [vmem:[#allocation7 + $0x41c] sm:$0xf]
        %v5645 = vld [vmem:[#allocation7 + $0x420] sm:$0xff]
        %v5646 = vld [vmem:[#allocation7 + $0x428] sm:$0xf]
        %v5647 = vld [vmem:[#allocation7 + $0x42c] sm:$0xff]
        %v5648 = vld [vmem:[#allocation7 + $0x434] sm:$0xf]
        %v5649 = vld [vmem:[#allocation7 + $0x438] sm:$0xff]
        %v5650 = vld [vmem:[#allocation7 + $0x440] sm:$0xf]
        %v5651 = vld [vmem:[#allocation7 + $0x444] sm:$0xff]
        %v5652 = vld [vmem:[#allocation7 + $0x44c] sm:$0xf]
        %v5653 = vld [vmem:[#allocation7 + $0x450] sm:$0xff]
        %v5654 = vld [vmem:[#allocation7 + $0x458] sm:$0xf]
        %v5655 = vld [vmem:[#allocation7 + $0x45c] sm:$0xff]
        %v5656 = vld [vmem:[#allocation7 + $0x464] sm:$0xf]
        %v5657 = vld [vmem:[#allocation7 + $0x468] sm:$0xff]
        %v5658 = vld [vmem:[#allocation7 + $0x470] sm:$0xf]
        %v5659 = vld [vmem:[#allocation7 + $0x474] sm:$0xff]
        %v5660 = vld [vmem:[#allocation7 + $0x47c] sm:$0xf]
        %v5853 = vunpack.c.l.b16 %v5469
        %v5854 = vunpack.c.h.b16 %v5469
        %v5855 = vunpack.c.l.b16 %v5470
        %v5856 = vunpack.c.l.b16 %v5471
        %v5857 = vunpack.c.h.b16 %v5471
        %v5858 = vunpack.c.l.b16 %v5472
        %v5859 = vunpack.c.l.b16 %v5473
        %v5860 = vunpack.c.h.b16 %v5473
        %v5861 = vunpack.c.l.b16 %v5474
        %v5862 = vunpack.c.l.b16 %v5475
        %v5863 = vunpack.c.h.b16 %v5475
        %v5864 = vunpack.c.l.b16 %v5476
        %v5865 = vunpack.c.l.b16 %v5477
        %v5866 = vunpack.c.h.b16 %v5477
        %v5867 = vunpack.c.l.b16 %v5478
        %v5868 = vunpack.c.l.b16 %v5479
        %v5869 = vunpack.c.h.b16 %v5479
        %v5870 = vunpack.c.l.b16 %v5480
        %v5871 = vunpack.c.l.b16 %v5481
        %v5872 = vunpack.c.h.b16 %v5481
        %v5873 = vunpack.c.l.b16 %v5482
        %v5874 = vunpack.c.l.b16 %v5483
        %v5875 = vunpack.c.h.b16 %v5483
        %v5876 = vunpack.c.l.b16 %v5484
        %v5877 = vunpack.c.l.b16 %v5485
        %v5878 = vunpack.c.h.b16 %v5485
        %v5879 = vunpack.c.l.b16 %v5486
        %v5880 = vunpack.c.l.b16 %v5487
        %v5881 = vunpack.c.h.b16 %v5487
        %v5882 = vunpack.c.l.b16 %v5488
        %v5883 = vunpack.c.l.b16 %v5489
        %v5884 = vunpack.c.h.b16 %v5489
        %v5885 = vunpack.c.l.b16 %v5490
        %v5886 = vunpack.c.l.b16 %v5491
        %v5887 = vunpack.c.h.b16 %v5491
        %v5888 = vunpack.c.l.b16 %v5492
        %v5889 = vunpack.c.l.b16 %v5493
        %v5890 = vunpack.c.h.b16 %v5493
        %v5891 = vunpack.c.l.b16 %v5494
        %v5892 = vunpack.c.l.b16 %v5495
        %v5893 = vunpack.c.h.b16 %v5495
        %v5894 = vunpack.c.l.b16 %v5496
        %v5895 = vunpack.c.l.b16 %v5497
        %v5896 = vunpack.c.h.b16 %v5497
        %v5897 = vunpack.c.l.b16 %v5498
        %v5898 = vunpack.c.l.b16 %v5499
        %v5899 = vunpack.c.h.b16 %v5499
        %v5900 = vunpack.c.l.b16 %v5500
        %v5901 = vunpack.c.l.b16 %v5501
        %v5902 = vunpack.c.h.b16 %v5501
        %v5903 = vunpack.c.l.b16 %v5502
        %v5904 = vunpack.c.l.b16 %v5503
        %v5905 = vunpack.c.h.b16 %v5503
        %v5906 = vunpack.c.l.b16 %v5504
        %v5907 = vunpack.c.l.b16 %v5505
        %v5908 = vunpack.c.h.b16 %v5505
        %v5909 = vunpack.c.l.b16 %v5506
        %v5910 = vunpack.c.l.b16 %v5507
        %v5911 = vunpack.c.h.b16 %v5507
        %v5912 = vunpack.c.l.b16 %v5508
        %v5913 = vunpack.c.l.b16 %v5509
        %v5914 = vunpack.c.h.b16 %v5509
        %v5915 = vunpack.c.l.b16 %v5510
        %v5916 = vunpack.c.l.b16 %v5511
        %v5917 = vunpack.c.h.b16 %v5511
        %v5918 = vunpack.c.l.b16 %v5512
        %v5919 = vunpack.c.l.b16 %v5513
        %v5920 = vunpack.c.h.b16 %v5513
        %v5921 = vunpack.c.l.b16 %v5514
        %v5922 = vunpack.c.l.b16 %v5515
        %v5923 = vunpack.c.h.b16 %v5515
        %v5924 = vunpack.c.l.b16 %v5516
        %v5925 = vunpack.c.l.b16 %v5517
        %v5926 = vunpack.c.h.b16 %v5517
        %v5927 = vunpack.c.l.b16 %v5518
        %v5928 = vunpack.c.l.b16 %v5519
        %v5929 = vunpack.c.h.b16 %v5519
        %v5930 = vunpack.c.l.b16 %v5520
        %v5931 = vunpack.c.l.b16 %v5521
        %v5932 = vunpack.c.h.b16 %v5521
        %v5933 = vunpack.c.l.b16 %v5522
        %v5934 = vunpack.c.l.b16 %v5523
        %v5935 = vunpack.c.h.b16 %v5523
        %v5936 = vunpack.c.l.b16 %v5524
        %v5937 = vunpack.c.l.b16 %v5525
        %v5938 = vunpack.c.h.b16 %v5525
        %v5939 = vunpack.c.l.b16 %v5526
        %v5940 = vunpack.c.l.b16 %v5527
        %v5941 = vunpack.c.h.b16 %v5527
        %v5942 = vunpack.c.l.b16 %v5528
        %v5943 = vunpack.c.l.b16 %v5529
        %v5944 = vunpack.c.h.b16 %v5529
        %v5945 = vunpack.c.l.b16 %v5530
        %v5946 = vunpack.c.l.b16 %v5531
        %v5947 = vunpack.c.h.b16 %v5531
        %v5948 = vunpack.c.l.b16 %v5532
        %v5949 = vunpack.c.l.b16 %v5533
        %v5950 = vunpack.c.h.b16 %v5533
        %v5951 = vunpack.c.l.b16 %v5534
        %v5952 = vunpack.c.l.b16 %v5535
        %v5953 = vunpack.c.h.b16 %v5535
        %v5954 = vunpack.c.l.b16 %v5536
        %v5955 = vunpack.c.l.b16 %v5537
        %v5956 = vunpack.c.h.b16 %v5537
        %v5957 = vunpack.c.l.b16 %v5538
        %v5958 = vunpack.c.l.b16 %v5539
        %v5959 = vunpack.c.h.b16 %v5539
        %v5960 = vunpack.c.l.b16 %v5540
        %v5961 = vunpack.c.l.b16 %v5541
        %v5962 = vunpack.c.h.b16 %v5541
        %v5963 = vunpack.c.l.b16 %v5542
        %v5964 = vunpack.c.l.b16 %v5543
        %v5965 = vunpack.c.h.b16 %v5543
        %v5966 = vunpack.c.l.b16 %v5544
        %v5967 = vunpack.c.l.b16 %v5545
        %v5968 = vunpack.c.h.b16 %v5545
        %v5969 = vunpack.c.l.b16 %v5546
        %v5970 = vunpack.c.l.b16 %v5547
        %v5971 = vunpack.c.h.b16 %v5547
        %v5972 = vunpack.c.l.b16 %v5548
        %v5973 = vunpack.c.l.b16 %v5549
        %v5974 = vunpack.c.h.b16 %v5549
        %v5975 = vunpack.c.l.b16 %v5550
        %v5976 = vunpack.c.l.b16 %v5551
        %v5977 = vunpack.c.h.b16 %v5551
        %v5978 = vunpack.c.l.b16 %v5552
        %v5979 = vunpack.c.l.b16 %v5553
        %v5980 = vunpack.c.h.b16 %v5553
        %v5981 = vunpack.c.l.b16 %v5554
        %v5982 = vunpack.c.l.b16 %v5555
        %v5983 = vunpack.c.h.b16 %v5555
        %v5984 = vunpack.c.l.b16 %v5556
        %v5985 = vunpack.c.l.b16 %v5557
        %v5986 = vunpack.c.h.b16 %v5557
        %v5987 = vunpack.c.l.b16 %v5558
        %v5988 = vunpack.c.l.b16 %v5559
        %v5989 = vunpack.c.h.b16 %v5559
        %v5990 = vunpack.c.l.b16 %v5560
        %v5991 = vunpack.c.l.b16 %v5561
        %v5992 = vunpack.c.h.b16 %v5561
        %v5993 = vunpack.c.l.b16 %v5562
        %v5994 = vunpack.c.l.b16 %v5563
        %v5995 = vunpack.c.h.b16 %v5563
        %v5996 = vunpack.c.l.b16 %v5564
        %v5997 = vunpack.c.l.b16 %v5565
        %v5998 = vunpack.c.h.b16 %v5565
        %v5999 = vunpack.c.l.b16 %v5566
        %v6000 = vunpack.c.l.b16 %v5567
        %v6001 = vunpack.c.h.b16 %v5567
        %v6002 = vunpack.c.l.b16 %v5568
        %v6003 = vunpack.c.l.b16 %v5569
        %v6004 = vunpack.c.h.b16 %v5569
        %v6005 = vunpack.c.l.b16 %v5570
        %v6006 = vunpack.c.l.b16 %v5571
        %v6007 = vunpack.c.h.b16 %v5571
        %v6008 = vunpack.c.l.b16 %v5572
        %v6009 = vunpack.c.l.b16 %v5573
        %v6010 = vunpack.c.h.b16 %v5573
        %v6011 = vunpack.c.l.b16 %v5574
        %v6012 = vunpack.c.l.b16 %v5575
        %v6013 = vunpack.c.h.b16 %v5575
        %v6014 = vunpack.c.l.b16 %v5576
        %v6015 = vunpack.c.l.b16 %v5577
        %v6016 = vunpack.c.h.b16 %v5577
        %v6017 = vunpack.c.l.b16 %v5578
        %v6018 = vunpack.c.l.b16 %v5579
        %v6019 = vunpack.c.h.b16 %v5579
        %v6020 = vunpack.c.l.b16 %v5580
        %v6021 = vunpack.c.l.b16 %v5581
        %v6022 = vunpack.c.h.b16 %v5581
        %v6023 = vunpack.c.l.b16 %v5582
        %v6024 = vunpack.c.l.b16 %v5583
        %v6025 = vunpack.c.h.b16 %v5583
        %v6026 = vunpack.c.l.b16 %v5584
        %v6027 = vunpack.c.l.b16 %v5585
        %v6028 = vunpack.c.h.b16 %v5585
        %v6029 = vunpack.c.l.b16 %v5586
        %v6030 = vunpack.c.l.b16 %v5587
        %v6031 = vunpack.c.h.b16 %v5587
        %v6032 = vunpack.c.l.b16 %v5588
        %v6033 = vunpack.c.l.b16 %v5589
        %v6034 = vunpack.c.h.b16 %v5589
        %v6035 = vunpack.c.l.b16 %v5590
        %v6036 = vunpack.c.l.b16 %v5591
        %v6037 = vunpack.c.h.b16 %v5591
        %v6038 = vunpack.c.l.b16 %v5592
        %v6039 = vunpack.c.l.b16 %v5593
        %v6040 = vunpack.c.h.b16 %v5593
        %v6041 = vunpack.c.l.b16 %v5594
        %v6042 = vunpack.c.l.b16 %v5595
        %v6043 = vunpack.c.h.b16 %v5595
        %v6044 = vunpack.c.l.b16 %v5596
        %v6045 = vunpack.c.l.b16 %v5597
        %v6046 = vunpack.c.h.b16 %v5597
        %v6047 = vunpack.c.l.b16 %v5598
        %v6048 = vunpack.c.l.b16 %v5599
        %v6049 = vunpack.c.h.b16 %v5599
        %v6050 = vunpack.c.l.b16 %v5600
        %v6051 = vunpack.c.l.b16 %v5601
        %v6052 = vunpack.c.h.b16 %v5601
        %v6053 = vunpack.c.l.b16 %v5602
        %v6054 = vunpack.c.l.b16 %v5603
        %v6055 = vunpack.c.h.b16 %v5603
        %v6056 = vunpack.c.l.b16 %v5604
        %v6057 = vunpack.c.l.b16 %v5605
        %v6058 = vunpack.c.h.b16 %v5605
        %v6059 = vunpack.c.l.b16 %v5606
        %v6060 = vunpack.c.l.b16 %v5607
        %v6061 = vunpack.c.h.b16 %v5607
        %v6062 = vunpack.c.l.b16 %v5608
        %v6063 = vunpack.c.l.b16 %v5609
        %v6064 = vunpack.c.h.b16 %v5609
        %v6065 = vunpack.c.l.b16 %v5610
        %v6066 = vunpack.c.l.b16 %v5611
        %v6067 = vunpack.c.h.b16 %v5611
        %v6068 = vunpack.c.l.b16 %v5612
        %v6069 = vunpack.c.l.b16 %v5613
        %v6070 = vunpack.c.h.b16 %v5613
        %v6071 = vunpack.c.l.b16 %v5614
        %v6072 = vunpack.c.l.b16 %v5615
        %v6073 = vunpack.c.h.b16 %v5615
        %v6074 = vunpack.c.l.b16 %v5616
        %v6075 = vunpack.c.l.b16 %v5617
        %v6076 = vunpack.c.h.b16 %v5617
        %v6077 = vunpack.c.l.b16 %v5618
        %v6078 = vunpack.c.l.b16 %v5619
        %v6079 = vunpack.c.h.b16 %v5619
        %v6080 = vunpack.c.l.b16 %v5620
        %v6081 = vunpack.c.l.b16 %v5621
        %v6082 = vunpack.c.h.b16 %v5621
        %v6083 = vunpack.c.l.b16 %v5622
        %v6084 = vunpack.c.l.b16 %v5623
        %v6085 = vunpack.c.h.b16 %v5623
        %v6086 = vunpack.c.l.b16 %v5624
        %v6087 = vunpack.c.l.b16 %v5625
        %v6088 = vunpack.c.h.b16 %v5625
        %v6089 = vunpack.c.l.b16 %v5626
        %v6090 = vunpack.c.l.b16 %v5627
        %v6091 = vunpack.c.h.b16 %v5627
        %v6092 = vunpack.c.l.b16 %v5628
        %v6093 = vunpack.c.l.b16 %v5629
        %v6094 = vunpack.c.h.b16 %v5629
        %v6095 = vunpack.c.l.b16 %v5630
        %v6096 = vunpack.c.l.b16 %v5631
        %v6097 = vunpack.c.h.b16 %v5631
        %v6098 = vunpack.c.l.b16 %v5632
        %v6099 = vunpack.c.l.b16 %v5633
        %v6100 = vunpack.c.h.b16 %v5633
        %v6101 = vunpack.c.l.b16 %v5634
        %v6102 = vunpack.c.l.b16 %v5635
        %v6103 = vunpack.c.h.b16 %v5635
        %v6104 = vunpack.c.l.b16 %v5636
        %v6105 = vunpack.c.l.b16 %v5637
        %v6106 = vunpack.c.h.b16 %v5637
        %v6107 = vunpack.c.l.b16 %v5638
        %v6108 = vunpack.c.l.b16 %v5639
        %v6109 = vunpack.c.h.b16 %v5639
        %v6110 = vunpack.c.l.b16 %v5640
        %v6111 = vunpack.c.l.b16 %v5641
        %v6112 = vunpack.c.h.b16 %v5641
        %v6113 = vunpack.c.l.b16 %v5642
        %v6114 = vunpack.c.l.b16 %v5643
        %v6115 = vunpack.c.h.b16 %v5643
        %v6116 = vunpack.c.l.b16 %v5644
        %v6117 = vunpack.c.l.b16 %v5645
        %v6118 = vunpack.c.h.b16 %v5645
        %v6119 = vunpack.c.l.b16 %v5646
        %v6120 = vunpack.c.l.b16 %v5647
        %v6121 = vunpack.c.h.b16 %v5647
        %v6122 = vunpack.c.l.b16 %v5648
        %v6123 = vunpack.c.l.b16 %v5649
        %v6124 = vunpack.c.h.b16 %v5649
        %v6125 = vunpack.c.l.b16 %v5650
        %v6126 = vunpack.c.l.b16 %v5651
        %v6127 = vunpack.c.h.b16 %v5651
        %v6128 = vunpack.c.l.b16 %v5652
        %v6129 = vunpack.c.l.b16 %v5653
        %v6130 = vunpack.c.h.b16 %v5653
        %v6131 = vunpack.c.l.b16 %v5654
        %v6132 = vunpack.c.l.b16 %v5655
        %v6133 = vunpack.c.h.b16 %v5655
        %v6134 = vunpack.c.l.b16 %v5656
        %v6135 = vunpack.c.l.b16 %v5657
        %v6136 = vunpack.c.h.b16 %v5657
        %v6137 = vunpack.c.l.b16 %v5658
        %v6138 = vunpack.c.l.b16 %v5659
        %v6139 = vunpack.c.h.b16 %v5659
        %v6140 = vunpack.c.l.b16 %v5660
        %v6141 = vpack.c.b16 %v5856, %v5853
        %v6142 = vpack.c.b16 %v5857, %v5854
        %v6143 = vpack.c.b16 %v5858, %v5855
        %v6144 = vpack.c.b16 %v5862, %v5859
        %v6145 = vpack.c.b16 %v5863, %v5860
        %v6146 = vpack.c.b16 %v5864, %v5861
        %v6147 = vpack.c.b16 %v5868, %v5865
        %v6148 = vpack.c.b16 %v5869, %v5866
        %v6149 = vpack.c.b16 %v5870, %v5867
        %v6150 = vpack.c.b16 %v5874, %v5871
        %v6151 = vpack.c.b16 %v5875, %v5872
        %v6152 = vpack.c.b16 %v5876, %v5873
        %v6153 = vpack.c.b16 %v5880, %v5877
        %v6154 = vpack.c.b16 %v5881, %v5878
        %v6155 = vpack.c.b16 %v5882, %v5879
        %v6156 = vpack.c.b16 %v5886, %v5883
        %v6157 = vpack.c.b16 %v5887, %v5884
        %v6158 = vpack.c.b16 %v5888, %v5885
        %v6159 = vpack.c.b16 %v5892, %v5889
        %v6160 = vpack.c.b16 %v5893, %v5890
        %v6161 = vpack.c.b16 %v5894, %v5891
        %v6162 = vpack.c.b16 %v5898, %v5895
        %v6163 = vpack.c.b16 %v5899, %v5896
        %v6164 = vpack.c.b16 %v5900, %v5897
        %v6165 = vpack.c.b16 %v5904, %v5901
        %v6166 = vpack.c.b16 %v5905, %v5902
        %v6167 = vpack.c.b16 %v5906, %v5903
        %v6168 = vpack.c.b16 %v5910, %v5907
        %v6169 = vpack.c.b16 %v5911, %v5908
        %v6170 = vpack.c.b16 %v5912, %v5909
        %v6171 = vpack.c.b16 %v5916, %v5913
        %v6172 = vpack.c.b16 %v5917, %v5914
        %v6173 = vpack.c.b16 %v5918, %v5915
        %v6174 = vpack.c.b16 %v5922, %v5919
        %v6175 = vpack.c.b16 %v5923, %v5920
        %v6176 = vpack.c.b16 %v5924, %v5921
        %v6177 = vpack.c.b16 %v5928, %v5925
        %v6178 = vpack.c.b16 %v5929, %v5926
        %v6179 = vpack.c.b16 %v5930, %v5927
        %v6180 = vpack.c.b16 %v5934, %v5931
        %v6181 = vpack.c.b16 %v5935, %v5932
        %v6182 = vpack.c.b16 %v5936, %v5933
        %v6183 = vpack.c.b16 %v5940, %v5937
        %v6184 = vpack.c.b16 %v5941, %v5938
        %v6185 = vpack.c.b16 %v5942, %v5939
        %v6186 = vpack.c.b16 %v5946, %v5943
        %v6187 = vpack.c.b16 %v5947, %v5944
        %v6188 = vpack.c.b16 %v5948, %v5945
        %v6189 = vpack.c.b16 %v5952, %v5949
        %v6190 = vpack.c.b16 %v5953, %v5950
        %v6191 = vpack.c.b16 %v5954, %v5951
        %v6192 = vpack.c.b16 %v5958, %v5955
        %v6193 = vpack.c.b16 %v5959, %v5956
        %v6194 = vpack.c.b16 %v5960, %v5957
        %v6195 = vpack.c.b16 %v5964, %v5961
        %v6196 = vpack.c.b16 %v5965, %v5962
        %v6197 = vpack.c.b16 %v5966, %v5963
        %v6198 = vpack.c.b16 %v5970, %v5967
        %v6199 = vpack.c.b16 %v5971, %v5968
        %v6200 = vpack.c.b16 %v5972, %v5969
        %v6201 = vpack.c.b16 %v5976, %v5973
        %v6202 = vpack.c.b16 %v5977, %v5974
        %v6203 = vpack.c.b16 %v5978, %v5975
        %v6204 = vpack.c.b16 %v5982, %v5979
        %v6205 = vpack.c.b16 %v5983, %v5980
        %v6206 = vpack.c.b16 %v5984, %v5981
        %v6207 = vpack.c.b16 %v5988, %v5985
        %v6208 = vpack.c.b16 %v5989, %v5986
        %v6209 = vpack.c.b16 %v5990, %v5987
        %v6210 = vpack.c.b16 %v5994, %v5991
        %v6211 = vpack.c.b16 %v5995, %v5992
        %v6212 = vpack.c.b16 %v5996, %v5993
        %v6213 = vpack.c.b16 %v6000, %v5997
        %v6214 = vpack.c.b16 %v6001, %v5998
        %v6215 = vpack.c.b16 %v6002, %v5999
        %v6216 = vpack.c.b16 %v6006, %v6003
        %v6217 = vpack.c.b16 %v6007, %v6004
        %v6218 = vpack.c.b16 %v6008, %v6005
        %v6219 = vpack.c.b16 %v6012, %v6009
        %v6220 = vpack.c.b16 %v6013, %v6010
        %v6221 = vpack.c.b16 %v6014, %v6011
        %v6222 = vpack.c.b16 %v6018, %v6015
        %v6223 = vpack.c.b16 %v6019, %v6016
        %v6224 = vpack.c.b16 %v6020, %v6017
        %v6225 = vpack.c.b16 %v6024, %v6021
        %v6226 = vpack.c.b16 %v6025, %v6022
        %v6227 = vpack.c.b16 %v6026, %v6023
        %v6228 = vpack.c.b16 %v6030, %v6027
        %v6229 = vpack.c.b16 %v6031, %v6028
        %v6230 = vpack.c.b16 %v6032, %v6029
        %v6231 = vpack.c.b16 %v6036, %v6033
        %v6232 = vpack.c.b16 %v6037, %v6034
        %v6233 = vpack.c.b16 %v6038, %v6035
        %v6234 = vpack.c.b16 %v6042, %v6039
        %v6235 = vpack.c.b16 %v6043, %v6040
        %v6236 = vpack.c.b16 %v6044, %v6041
        %v6237 = vpack.c.b16 %v6048, %v6045
        %v6238 = vpack.c.b16 %v6049, %v6046
        %v6239 = vpack.c.b16 %v6050, %v6047
        %v6240 = vpack.c.b16 %v6054, %v6051
        %v6241 = vpack.c.b16 %v6055, %v6052
        %v6242 = vpack.c.b16 %v6056, %v6053
        %v6243 = vpack.c.b16 %v6060, %v6057
        %v6244 = vpack.c.b16 %v6061, %v6058
        %v6245 = vpack.c.b16 %v6062, %v6059
        %v6246 = vpack.c.b16 %v6066, %v6063
        %v6247 = vpack.c.b16 %v6067, %v6064
        %v6248 = vpack.c.b16 %v6068, %v6065
        %v6249 = vpack.c.b16 %v6072, %v6069
        %v6250 = vpack.c.b16 %v6073, %v6070
        %v6251 = vpack.c.b16 %v6074, %v6071
        %v6252 = vpack.c.b16 %v6078, %v6075
        %v6253 = vpack.c.b16 %v6079, %v6076
        %v6254 = vpack.c.b16 %v6080, %v6077
        %v6255 = vpack.c.b16 %v6084, %v6081
        %v6256 = vpack.c.b16 %v6085, %v6082
        %v6257 = vpack.c.b16 %v6086, %v6083
        %v6258 = vpack.c.b16 %v6090, %v6087
        %v6259 = vpack.c.b16 %v6091, %v6088
        %v6260 = vpack.c.b16 %v6092, %v6089
        %v6261 = vpack.c.b16 %v6096, %v6093
        %v6262 = vpack.c.b16 %v6097, %v6094
        %v6263 = vpack.c.b16 %v6098, %v6095
        %v6264 = vpack.c.b16 %v6102, %v6099
        %v6265 = vpack.c.b16 %v6103, %v6100
        %v6266 = vpack.c.b16 %v6104, %v6101
        %v6267 = vpack.c.b16 %v6108, %v6105
        %v6268 = vpack.c.b16 %v6109, %v6106
        %v6269 = vpack.c.b16 %v6110, %v6107
        %v6270 = vpack.c.b16 %v6114, %v6111
        %v6271 = vpack.c.b16 %v6115, %v6112
        %v6272 = vpack.c.b16 %v6116, %v6113
        %v6273 = vpack.c.b16 %v6120, %v6117
        %v6274 = vpack.c.b16 %v6121, %v6118
        %v6275 = vpack.c.b16 %v6122, %v6119
        %v6276 = vpack.c.b16 %v6126, %v6123
        %v6277 = vpack.c.b16 %v6127, %v6124
        %v6278 = vpack.c.b16 %v6128, %v6125
        %v6279 = vpack.c.b16 %v6132, %v6129
        %v6280 = vpack.c.b16 %v6133, %v6130
        %v6281 = vpack.c.b16 %v6134, %v6131
        %v6282 = vpack.c.b16 %v6138, %v6135
        %v6283 = vpack.c.b16 %v6139, %v6136
        %v6284 = vpack.c.b16 %v6140, %v6137
        %6429 = vmatprep.subr.bf16.mxu0 %v6142
        %6430 = vmatpush1.bf16.msra.mxu0 %v6141
        %6431 = vmatprep.subr.bf16.mxu0 %v6145
        %6432 = vmatpush1.bf16.msra.mxu0 %v6144
        %6433 = vmatprep.subr.bf16.mxu0 %v6148
        %6434 = vmatpush1.bf16.msra.mxu0 %v6147
        %6435 = vmatprep.subr.bf16.mxu0 %v6151
        %6436 = vmatpush1.bf16.msra.mxu0 %v6150
        %6437 = vmatprep.subr.bf16.mxu0 %v6154
        %6438 = vmatpush1.bf16.msra.mxu0 %v6153
        %6439 = vmatprep.subr.bf16.mxu0 %v6157
        %6440 = vmatpush1.bf16.msra.mxu0 %v6156
        %6441 = vmatprep.subr.bf16.mxu0 %v6160
        %6442 = vmatpush1.bf16.msra.mxu0 %v6159
        %6443 = vmatprep.subr.bf16.mxu0 %v6163
        %6444 = vmatpush1.bf16.msra.mxu0 %v6162
        %6445 = vmatprep.subr.bf16.mxu0 %v6166
        %6446 = vmatpush1.bf16.msra.mxu0 %v6165
        %6447 = vmatprep.subr.bf16.mxu0 %v6169
        %6448 = vmatpush1.bf16.msra.mxu0 %v6168
        %6449 = vmatprep.subr.bf16.mxu0 %v6172
        %6450 = vmatpush1.bf16.msra.mxu0 %v6171
        %6451 = vmatprep.subr.bf16.mxu0 %v6175
        %6452 = vmatpush1.bf16.msra.mxu0 %v6174
        %6453 = vmatprep.subr.bf16.mxu0 %v6178
        %6454 = vmatpush1.bf16.msra.mxu0 %v6177
        %6455 = vmatprep.subr.bf16.mxu0 %v6181
        %6456 = vmatpush1.bf16.msra.mxu0 %v6180
        %6457 = vmatprep.subr.bf16.mxu0 %v6184
        %6458 = vmatpush1.bf16.msra.mxu0 %v6183
        %6459 = vmatprep.subr.bf16.mxu0 %v6187
        %6460 = vmatpush1.bf16.msra.mxu0 %v6186
        %6461 = vmatprep.mubr.bf16.mxu0 %v5440
        %6462 = vmatmul.mubr.bf16.gmra.mrb[0].mxu0 %v5439
        %v6463 = vpop.f32.mrb[0].mxu0
        %v6464 = vadd.f32 0.0, %v6463
        %v6465 = vpop.f32.mrb[0].mxu0
        %v6466 = vadd.f32 0.0, %v6465
        %v6467 = vpop.f32.mrb[0].mxu0
        %v6468 = vadd.f32 0.0, %v6467
        %v6469 = vpop.f32.mrb[0].mxu0
        %v6470 = vadd.f32 0.0, %v6469
        %6471 = vmatprep.mubr.bf16.mxu0 %v5446
        %6472 = vmatmul.mubr.bf16.gmra.mrb[0].mxu0 %v5445
        %v6473 = vpop.f32.mrb[0].mxu0
        %v6474 = vadd.f32 0.0, %v6473
        %v6475 = vpop.f32.mrb[0].mxu0
        %v6476 = vadd.f32 0.0, %v6475
        %v6477 = vpop.f32.mrb[0].mxu0
        %v6478 = vadd.f32 0.0, %v6477
        %v6479 = vpop.f32.mrb[0].mxu0
        %v6480 = vadd.f32 0.0, %v6479
        %6481 = vmatprep.mubr.bf16.mxu0 %v5452
        %6482 = vmatmul.mubr.bf16.gmra.mrb[0].mxu0 %v5451
        %v6483 = vpop.f32.mrb[0].mxu0
        %v6484 = vadd.f32 0.0, %v6483
        %v6485 = vpop.f32.mrb[0].mxu0
        %v6486 = vadd.f32 0.0, %v6485
        %v6487 = vpop.f32.mrb[0].mxu0
        %v6488 = vadd.f32 0.0, %v6487
        %v6489 = vpop.f32.mrb[0].mxu0
        %v6490 = vadd.f32 0.0, %v6489
        %6491 = vmatprep.mubr.bf16.mxu0 %v5458
        %6492 = vmatmul.mubr.bf16.gmra.mrb[0].mxu0 %v5457
        %v6493 = vpop.f32.mrb[0].mxu0
        %v6494 = vadd.f32 0.0, %v6493
        %v6495 = vpop.f32.mrb[0].mxu0
        %v6496 = vadd.f32 0.0, %v6495
        %v6497 = vpop.f32.mrb[0].mxu0
        %v6498 = vadd.f32 0.0, %v6497
        %v6499 = vpop.f32.mrb[0].mxu0
        %v6500 = vadd.f32 0.0, %v6499
        %6501 = vmatprep.mubr.bf16.mxu0 %v5464
        %6502 = vmatmul.mubr.bf16.gmra.mrb[0].mxu0 %v5463
        %v6503 = vpop.f32.mrb[0].mxu0
        %v6504 = vadd.f32 0.0, %v6503
        %v6505 = vpop.f32.mrb[0].mxu0
        %v6506 = vadd.f32 0.0, %v6505
        %v6507 = vpop.f32.mrb[0].mxu0
        %v6508 = vpop.f32.mrb[0].mxu0
        %6509 = vdwg.mxu0
        %6510 = vmatprep.subr.bf16.mxu0 %v6190
        %6511 = vmatpush1.bf16.msra.mxu0 %v6189
        %6512 = vmatprep.subr.bf16.mxu0 %v6193
        %6513 = vmatpush1.bf16.msra.mxu0 %v6192
        %6514 = vmatprep.subr.bf16.mxu0 %v6196
        %6515 = vmatpush1.bf16.msra.mxu0 %v6195
        %6516 = vmatprep.subr.bf16.mxu0 %v6199
        %6517 = vmatpush1.bf16.msra.mxu0 %v6198
        %6518 = vmatprep.subr.bf16.mxu0 %v6202
        %6519 = vmatpush1.bf16.msra.mxu0 %v6201
        %6520 = vmatprep.subr.bf16.mxu0 %v6205
        %6521 = vmatpush1.bf16.msra.mxu0 %v6204
        %6522 = vmatprep.subr.bf16.mxu0 %v6208
        %6523 = vmatpush1.bf16.msra.mxu0 %v6207
        %6524 = vmatprep.subr.bf16.mxu0 %v6211
        %6525 = vmatpush1.bf16.msra.mxu0 %v6210
        %6526 = vmatprep.subr.bf16.mxu0 %v6214
        %6527 = vmatpush1.bf16.msra.mxu0 %v6213
        %6528 = vmatprep.subr.bf16.mxu0 %v6217
        %6529 = vmatpush1.bf16.msra.mxu0 %v6216
        %6530 = vmatprep.subr.bf16.mxu0 %v6220
        %6531 = vmatpush1.bf16.msra.mxu0 %v6219
        %6532 = vmatprep.subr.bf16.mxu0 %v6223
        %6533 = vmatpush1.bf16.msra.mxu0 %v6222
        %6534 = vmatprep.subr.bf16.mxu0 %v6226
        %6535 = vmatpush1.bf16.msra.mxu0 %v6225
        %6536 = vmatprep.subr.bf16.mxu0 %v6229
        %6537 = vmatpush1.bf16.msra.mxu0 %v6228
        %6538 = vmatprep.subr.bf16.mxu0 %v6232
        %6539 = vmatpush1.bf16.msra.mxu0 %v6231
        %6540 = vmatprep.subr.bf16.mxu0 %v6235
        %6541 = vmatpush1.bf16.msra.mxu0 %v6234
        %6542 = vmatprep.mubr.bf16.mxu0 %v5442
        %6543 = vmatmul.mubr.bf16.gmra.mrb[0].mxu0 %v5441
        %v6544 = vpop.f32.mrb[0].mxu0
        %v6545 = vadd.f32 %v6464, %v6544
        %v6546 = vpop.f32.mrb[0].mxu0
        %v6547 = vadd.f32 %v6466, %v6546
        %v6548 = vpop.f32.mrb[0].mxu0
        %v6549 = vadd.f32 %v6468, %v6548
        %v6550 = vpop.f32.mrb[0].mxu0
        %v6551 = vadd.f32 %v6470, %v6550
        %6552 = vmatprep.mubr.bf16.mxu0 %v5448
        %6553 = vmatmul.mubr.bf16.gmra.mrb[0].mxu0 %v5447
        %v6554 = vpop.f32.mrb[0].mxu0
        %v6555 = vadd.f32 %v6474, %v6554
        %v6556 = vpop.f32.mrb[0].mxu0
        %v6557 = vadd.f32 %v6476, %v6556
        %v6558 = vpop.f32.mrb[0].mxu0
        %v6559 = vadd.f32 %v6478, %v6558
        %v6560 = vpop.f32.mrb[0].mxu0
        %v6561 = vadd.f32 %v6480, %v6560
        %6562 = vmatprep.mubr.bf16.mxu0 %v5454
        %6563 = vmatmul.mubr.bf16.gmra.mrb[0].mxu0 %v5453
        %v6564 = vpop.f32.mrb[0].mxu0
        %v6565 = vadd.f32 %v6484, %v6564
        %v6566 = vpop.f32.mrb[0].mxu0
        %v6567 = vadd.f32 %v6486, %v6566
        %v6568 = vpop.f32.mrb[0].mxu0
        %v6569 = vadd.f32 %v6488, %v6568
        %v6570 = vpop.f32.mrb[0].mxu0
        %v6571 = vadd.f32 %v6490, %v6570
        %6572 = vmatprep.mubr.bf16.mxu0 %v5460
        %6573 = vmatmul.mubr.bf16.gmra.mrb[0].mxu0 %v5459
        %v6574 = vpop.f32.mrb[0].mxu0
        %v6575 = vadd.f32 %v6494, %v6574
        %v6576 = vpop.f32.mrb[0].mxu0
        %v6577 = vadd.f32 %v6496, %v6576
        %v6578 = vpop.f32.mrb[0].mxu0
        %v6579 = vadd.f32 %v6498, %v6578
        %v6580 = vpop.f32.mrb[0].mxu0
        %v6581 = vadd.f32 %v6500, %v6580
        %6582 = vmatprep.mubr.bf16.mxu0 %v5466
        %6583 = vmatmul.mubr.bf16.gmra.mrb[0].mxu0 %v5465
        %v6584 = vpop.f32.mrb[0].mxu0
        %v6585 = vadd.f32 %v6504, %v6584
        %v6586 = vpop.f32.mrb[0].mxu0
        %v6587 = vadd.f32 %v6506, %v6586
        %v6588 = vpop.f32.mrb[0].mxu0
        %v6589 = vpop.f32.mrb[0].mxu0
        %6590 = vdwg.mxu0
        %6591 = vmatprep.subr.bf16.mxu0 %v6238
        %6592 = vmatpush1.bf16.msra.mxu0 %v6237
        %6593 = vmatprep.subr.bf16.mxu0 %v6241
        %6594 = vmatpush1.bf16.msra.mxu0 %v6240
        %6595 = vmatprep.subr.bf16.mxu0 %v6244
        %6596 = vmatpush1.bf16.msra.mxu0 %v6243
        %6597 = vmatprep.subr.bf16.mxu0 %v6247
        %6598 = vmatpush1.bf16.msra.mxu0 %v6246
        %6599 = vmatprep.subr.bf16.mxu0 %v6250
        %6600 = vmatpush1.bf16.msra.mxu0 %v6249
        %6601 = vmatprep.subr.bf16.mxu0 %v6253
        %6602 = vmatpush1.bf16.msra.mxu0 %v6252
        %6603 = vmatprep.subr.bf16.mxu0 %v6256
        %6604 = vmatpush1.bf16.msra.mxu0 %v6255
        %6605 = vmatprep.subr.bf16.mxu0 %v6259
        %6606 = vmatpush1.bf16.msra.mxu0 %v6258
        %6607 = vmatprep.subr.bf16.mxu0 %v6262
        %6608 = vmatpush1.bf16.msra.mxu0 %v6261
        %6609 = vmatprep.subr.bf16.mxu0 %v6265
        %6610 = vmatpush1.bf16.msra.mxu0 %v6264
        %6611 = vmatprep.subr.bf16.mxu0 %v6268
        %6612 = vmatpush1.bf16.msra.mxu0 %v6267
        %6613 = vmatprep.subr.bf16.mxu0 %v6271
        %6614 = vmatpush1.bf16.msra.mxu0 %v6270
        %6615 = vmatprep.subr.bf16.mxu0 %v6274
        %6616 = vmatpush1.bf16.msra.mxu0 %v6273
        %6617 = vmatprep.subr.bf16.mxu0 %v6277
        %6618 = vmatpush1.bf16.msra.mxu0 %v6276
        %6619 = vmatprep.subr.bf16.mxu0 %v6280
        %6620 = vmatpush1.bf16.msra.mxu0 %v6279
        %6621 = vmatprep.subr.bf16.mxu0 %v6283
        %6622 = vmatpush1.bf16.msra.mxu0 %v6282
        %6623 = vmatprep.mubr.bf16.mxu0 %v5444
        %6624 = vmatmul.mubr.bf16.gmra.mrb[0].mxu0 %v5443
        %v6625 = vpop.f32.mrb[0].mxu0
        %v6626 = vadd.f32 %v6545, %v6625
        %v6627 = vpop.f32.mrb[0].mxu0
        %v6628 = vadd.f32 %v6547, %v6627
        %v6629 = vpop.f32.mrb[0].mxu0
        %v6630 = vadd.f32 %v6549, %v6629
        %v6631 = vpop.f32.mrb[0].mxu0
        %v6632 = vadd.f32 %v6551, %v6631
        %6633 = vmatprep.mubr.bf16.mxu0 %v5450
        %6634 = vmatmul.mubr.bf16.gmra.mrb[0].mxu0 %v5449
        %v6635 = vpop.f32.mrb[0].mxu0
        %v6636 = vadd.f32 %v6555, %v6635
        %v6637 = vpop.f32.mrb[0].mxu0
        %v6638 = vadd.f32 %v6557, %v6637
        %v6639 = vpop.f32.mrb[0].mxu0
        %v6640 = vadd.f32 %v6559, %v6639
        %v6641 = vpop.f32.mrb[0].mxu0
        %v6642 = vadd.f32 %v6561, %v6641
        %6643 = vmatprep.mubr.bf16.mxu0 %v5456
        %6644 = vmatmul.mubr.bf16.gmra.mrb[0].mxu0 %v5455
        %v6645 = vpop.f32.mrb[0].mxu0
        %v6646 = vadd.f32 %v6565, %v6645
        %v6647 = vpop.f32.mrb[0].mxu0
        %v6648 = vadd.f32 %v6567, %v6647
        %v6649 = vpop.f32.mrb[0].mxu0
        %v6650 = vadd.f32 %v6569, %v6649
        %v6651 = vpop.f32.mrb[0].mxu0
        %v6652 = vadd.f32 %v6571, %v6651
        %6653 = vmatprep.mubr.bf16.mxu0 %v5462
        %6654 = vmatmul.mubr.bf16.gmra.mrb[0].mxu0 %v5461
        %v6655 = vpop.f32.mrb[0].mxu0
        %v6656 = vadd.f32 %v6575, %v6655
        %v6657 = vpop.f32.mrb[0].mxu0
        %v6658 = vadd.f32 %v6577, %v6657
        %v6659 = vpop.f32.mrb[0].mxu0
        %v6660 = vadd.f32 %v6579, %v6659
        %v6661 = vpop.f32.mrb[0].mxu0
        %v6662 = vadd.f32 %v6581, %v6661
        %6663 = vmatprep.mubr.bf16.mxu0 %v5468
        %6664 = vmatmul.mubr.bf16.gmra.mrb[0].mxu0 %v5467
        %v6665 = vpop.f32.mrb[0].mxu0
        %v6666 = vadd.f32 %v6585, %v6665
        %v6667 = vpop.f32.mrb[0].mxu0
        %v6668 = vadd.f32 %v6587, %v6667
        %v6669 = vpop.f32.mrb[0].mxu0
        %v6670 = vpop.f32.mrb[0].mxu0
        %6671 = vdwg.mxu0
        %6672 = vmatprep.subr.bf16.mxu0 0
        %6673 = vmatpush1.bf16.msra.mxu0 %v6143
        %6674 = vmatprep.subr.bf16.mxu0 0
        %6675 = vmatpush1.bf16.msra.mxu0 %v6146
        %6676 = vmatprep.subr.bf16.mxu0 0
        %6677 = vmatpush1.bf16.msra.mxu0 %v6149
        %6678 = vmatprep.subr.bf16.mxu0 0
        %6679 = vmatpush1.bf16.msra.mxu0 %v6152
        %6680 = vmatprep.subr.bf16.mxu0 0
        %6681 = vmatpush1.bf16.msra.mxu0 %v6155
        %6682 = vmatprep.subr.bf16.mxu0 0
        %6683 = vmatpush1.bf16.msra.mxu0 %v6158
        %6684 = vmatprep.subr.bf16.mxu0 0
        %6685 = vmatpush1.bf16.msra.mxu0 %v6161
        %6686 = vmatprep.subr.bf16.mxu0 0
        %6687 = vmatpush1.bf16.msra.mxu0 %v6164
        %6688 = vmatprep.subr.bf16.mxu0 0
        %6689 = vmatpush1.bf16.msra.mxu0 %v6167
        %6690 = vmatprep.subr.bf16.mxu0 0
        %6691 = vmatpush1.bf16.msra.mxu0 %v6170
        %6692 = vmatprep.subr.bf16.mxu0 0
        %6693 = vmatpush1.bf16.msra.mxu0 %v6173
        %6694 = vmatprep.subr.bf16.mxu0 0
        %6695 = vmatpush1.bf16.msra.mxu0 %v6176
        %6696 = vmatprep.subr.bf16.mxu0 0
        %6697 = vmatpush1.bf16.msra.mxu0 %v6179
        %6698 = vmatprep.subr.bf16.mxu0 0
        %6699 = vmatpush1.bf16.msra.mxu0 %v6182
        %6700 = vmatprep.subr.bf16.mxu0 0
        %6701 = vmatpush1.bf16.msra.mxu0 %v6185
        %6702 = vmatprep.subr.bf16.mxu0 0
        %6703 = vmatpush1.bf16.msra.mxu0 %v6188
        %6704 = vmatprep.mubr.bf16.mxu0 %v5440
        %6705 = vmatmul.mubr.bf16.gmra.mrb[0].mxu0 %v5439
        %v6706 = vpop.f32.mrb[0].mxu0
        %v6707 = vadd.f32 0.0, %v6706
        %v6708 = vpop.f32.mrb[0].mxu0
        %v6709 = vpop.f32.mrb[0].mxu0
        %v6710 = vadd.f32 0.0, %v6709
        %v6711 = vpop.f32.mrb[0].mxu0
        %6712 = vmatprep.mubr.bf16.mxu0 %v5446
        %6713 = vmatmul.mubr.bf16.gmra.mrb[0].mxu0 %v5445
        %v6714 = vpop.f32.mrb[0].mxu0
        %v6715 = vadd.f32 0.0, %v6714
        %v6716 = vpop.f32.mrb[0].mxu0
        %v6717 = vpop.f32.mrb[0].mxu0
        %v6718 = vadd.f32 0.0, %v6717
        %v6719 = vpop.f32.mrb[0].mxu0
        %6720 = vmatprep.mubr.bf16.mxu0 %v5452
        %6721 = vmatmul.mubr.bf16.gmra.mrb[0].mxu0 %v5451
        %v6722 = vpop.f32.mrb[0].mxu0
        %v6723 = vadd.f32 0.0, %v6722
        %v6724 = vpop.f32.mrb[0].mxu0
        %v6725 = vpop.f32.mrb[0].mxu0
        %v6726 = vadd.f32 0.0, %v6725
        %v6727 = vpop.f32.mrb[0].mxu0
        %6728 = vmatprep.mubr.bf16.mxu0 %v5458
        %6729 = vmatmul.mubr.bf16.gmra.mrb[0].mxu0 %v5457
        %v6730 = vpop.f32.mrb[0].mxu0
        %v6731 = vadd.f32 0.0, %v6730
        %v6732 = vpop.f32.mrb[0].mxu0
        %v6733 = vpop.f32.mrb[0].mxu0
        %v6734 = vadd.f32 0.0, %v6733
        %v6735 = vpop.f32.mrb[0].mxu0
        %6736 = vmatprep.mubr.bf16.mxu0 %v5464
        %6737 = vmatmul.mubr.bf16.gmra.mrb[0].mxu0 %v5463
        %v6738 = vpop.f32.mrb[0].mxu0
        %v6739 = vadd.f32 0.0, %v6738
        %v6740 = vpop.f32.mrb[0].mxu0
        %v6741 = vpop.f32.mrb[0].mxu0
        %v6742 = vpop.f32.mrb[0].mxu0
        %6743 = vdwg.mxu0
        %6744 = vmatprep.subr.bf16.mxu0 0
        %6745 = vmatpush1.bf16.msra.mxu0 %v6191
        %6746 = vmatprep.subr.bf16.mxu0 0
        %6747 = vmatpush1.bf16.msra.mxu0 %v6194
        %6748 = vmatprep.subr.bf16.mxu0 0
        %6749 = vmatpush1.bf16.msra.mxu0 %v6197
        %6750 = vmatprep.subr.bf16.mxu0 0
        %6751 = vmatpush1.bf16.msra.mxu0 %v6200
        %6752 = vmatprep.subr.bf16.mxu0 0
        %6753 = vmatpush1.bf16.msra.mxu0 %v6203
        %6754 = vmatprep.subr.bf16.mxu0 0
        %6755 = vmatpush1.bf16.msra.mxu0 %v6206
        %6756 = vmatprep.subr.bf16.mxu0 0
        %6757 = vmatpush1.bf16.msra.mxu0 %v6209
        %6758 = vmatprep.subr.bf16.mxu0 0
        %6759 = vmatpush1.bf16.msra.mxu0 %v6212
        %6760 = vmatprep.subr.bf16.mxu0 0
        %6761 = vmatpush1.bf16.msra.mxu0 %v6215
        %6762 = vmatprep.subr.bf16.mxu0 0
        %6763 = vmatpush1.bf16.msra.mxu0 %v6218
        %6764 = vmatprep.subr.bf16.mxu0 0
        %6765 = vmatpush1.bf16.msra.mxu0 %v6221
        %6766 = vmatprep.subr.bf16.mxu0 0
        %6767 = vmatpush1.bf16.msra.mxu0 %v6224
        %6768 = vmatprep.subr.bf16.mxu0 0
        %6769 = vmatpush1.bf16.msra.mxu0 %v6227
        %6770 = vmatprep.subr.bf16.mxu0 0
        %6771 = vmatpush1.bf16.msra.mxu0 %v6230
        %6772 = vmatprep.subr.bf16.mxu0 0
        %6773 = vmatpush1.bf16.msra.mxu0 %v6233
        %6774 = vmatprep.subr.bf16.mxu0 0
        %6775 = vmatpush1.bf16.msra.mxu0 %v6236
        %6776 = vmatprep.mubr.bf16.mxu0 %v5442
        %6777 = vmatmul.mubr.bf16.gmra.mrb[0].mxu0 %v5441
        %v6778 = vpop.f32.mrb[0].mxu0
        %v6779 = vadd.f32 %v6707, %v6778
        %v6780 = vpop.f32.mrb[0].mxu0
        %v6781 = vpop.f32.mrb[0].mxu0
        %v6782 = vadd.f32 %v6710, %v6781
        %v6783 = vpop.f32.mrb[0].mxu0
        %6784 = vmatprep.mubr.bf16.mxu0 %v5448
        %6785 = vmatmul.mubr.bf16.gmra.mrb[0].mxu0 %v5447
        %v6786 = vpop.f32.mrb[0].mxu0
        %v6787 = vadd.f32 %v6715, %v6786
        %v6788 = vpop.f32.mrb[0].mxu0
        %v6789 = vpop.f32.mrb[0].mxu0
        %v6790 = vadd.f32 %v6718, %v6789
        %v6791 = vpop.f32.mrb[0].mxu0
        %6792 = vmatprep.mubr.bf16.mxu0 %v5454
        %6793 = vmatmul.mubr.bf16.gmra.mrb[0].mxu0 %v5453
        %v6794 = vpop.f32.mrb[0].mxu0
        %v6795 = vadd.f32 %v6723, %v6794
        %v6796 = vpop.f32.mrb[0].mxu0
        %v6797 = vpop.f32.mrb[0].mxu0
        %v6798 = vadd.f32 %v6726, %v6797
        %v6799 = vpop.f32.mrb[0].mxu0
        %6800 = vmatprep.mubr.bf16.mxu0 %v5460
        %6801 = vmatmul.mubr.bf16.gmra.mrb[0].mxu0 %v5459
        %v6802 = vpop.f32.mrb[0].mxu0
        %v6803 = vadd.f32 %v6731, %v6802
        %v6804 = vpop.f32.mrb[0].mxu0
        %v6805 = vpop.f32.mrb[0].mxu0
        %v6806 = vadd.f32 %v6734, %v6805
        %v6807 = vpop.f32.mrb[0].mxu0
        %6808 = vmatprep.mubr.bf16.mxu0 %v5466
        %6809 = vmatmul.mubr.bf16.gmra.mrb[0].mxu0 %v5465
        %v6810 = vpop.f32.mrb[0].mxu0
        %v6811 = vadd.f32 %v6739, %v6810
        %v6812 = vpop.f32.mrb[0].mxu0
        %v6813 = vpop.f32.mrb[0].mxu0
        %v6814 = vpop.f32.mrb[0].mxu0
        %6815 = vdwg.mxu0
        %6816 = vmatprep.subr.bf16.mxu0 0
        %6817 = vmatpush1.bf16.msra.mxu0 %v6239
        %6818 = vmatprep.subr.bf16.mxu0 0
        %6819 = vmatpush1.bf16.msra.mxu0 %v6242
        %6820 = vmatprep.subr.bf16.mxu0 0
        %6821 = vmatpush1.bf16.msra.mxu0 %v6245
        %6822 = vmatprep.subr.bf16.mxu0 0
        %6823 = vmatpush1.bf16.msra.mxu0 %v6248
        %6824 = vmatprep.subr.bf16.mxu0 0
        %6825 = vmatpush1.bf16.msra.mxu0 %v6251
        %6826 = vmatprep.subr.bf16.mxu0 0
        %6827 = vmatpush1.bf16.msra.mxu0 %v6254
        %6828 = vmatprep.subr.bf16.mxu0 0
        %6829 = vmatpush1.bf16.msra.mxu0 %v6257
        %6830 = vmatprep.subr.bf16.mxu0 0
        %6831 = vmatpush1.bf16.msra.mxu0 %v6260
        %6832 = vmatprep.subr.bf16.mxu0 0
        %6833 = vmatpush1.bf16.msra.mxu0 %v6263
        %6834 = vmatprep.subr.bf16.mxu0 0
        %6835 = vmatpush1.bf16.msra.mxu0 %v6266
        %6836 = vmatprep.subr.bf16.mxu0 0
        %6837 = vmatpush1.bf16.msra.mxu0 %v6269
        %6838 = vmatprep.subr.bf16.mxu0 0
        %6839 = vmatpush1.bf16.msra.mxu0 %v6272
        %6840 = vmatprep.subr.bf16.mxu0 0
        %6841 = vmatpush1.bf16.msra.mxu0 %v6275
        %6842 = vmatprep.subr.bf16.mxu0 0
        %6843 = vmatpush1.bf16.msra.mxu0 %v6278
        %6844 = vmatprep.subr.bf16.mxu0 0
        %6845 = vmatpush1.bf16.msra.mxu0 %v6281
        %6846 = vmatprep.subr.bf16.mxu0 0
        %6847 = vmatpush1.bf16.msra.mxu0 %v6284
        %6848 = vmatprep.mubr.bf16.mxu0 %v5444
        %6849 = vmatmul.mubr.bf16.gmra.mrb[0].mxu0 %v5443
        %v6850 = vpop.f32.mrb[0].mxu0
        %v6851 = vadd.f32 %v6779, %v6850
        %v6852 = vpop.f32.mrb[0].mxu0
        %v6853 = vpop.f32.mrb[0].mxu0
        %v6854 = vadd.f32 %v6782, %v6853
        %v6855 = vpop.f32.mrb[0].mxu0
        %6856 = vmatprep.mubr.bf16.mxu0 %v5450
        %6857 = vmatmul.mubr.bf16.gmra.mrb[0].mxu0 %v5449
        %v6858 = vpop.f32.mrb[0].mxu0
        %v6859 = vadd.f32 %v6787, %v6858
        %v6860 = vpop.f32.mrb[0].mxu0
        %v6861 = vpop.f32.mrb[0].mxu0
        %v6862 = vadd.f32 %v6790, %v6861
        %v6863 = vpop.f32.mrb[0].mxu0
        %6864 = vmatprep.mubr.bf16.mxu0 %v5456
        %6865 = vmatmul.mubr.bf16.gmra.mrb[0].mxu0 %v5455
        %v6866 = vpop.f32.mrb[0].mxu0
        %v6867 = vadd.f32 %v6795, %v6866
        %v6868 = vpop.f32.mrb[0].mxu0
        %v6869 = vpop.f32.mrb[0].mxu0
        %v6870 = vadd.f32 %v6798, %v6869
        %v6871 = vpop.f32.mrb[0].mxu0
        %6872 = vmatprep.mubr.bf16.mxu0 %v5462
        %6873 = vmatmul.mubr.bf16.gmra.mrb[0].mxu0 %v5461
        %v6874 = vpop.f32.mrb[0].mxu0
        %v6875 = vadd.f32 %v6803, %v6874
        %v6876 = vpop.f32.mrb[0].mxu0
        %v6877 = vpop.f32.mrb[0].mxu0
        %v6878 = vadd.f32 %v6806, %v6877
        %v6879 = vpop.f32.mrb[0].mxu0
        %6880 = vmatprep.mubr.bf16.mxu0 %v5468
        %6881 = vmatmul.mubr.bf16.gmra.mrb[0].mxu0 %v5467
        %v6882 = vpop.f32.mrb[0].mxu0
        %v6883 = vadd.f32 %v6811, %v6882
        %v6884 = vpop.f32.mrb[0].mxu0
        %v6885 = vpop.f32.mrb[0].mxu0
        %v6886 = vpop.f32.mrb[0].mxu0
        %6887 = vdwg.mxu0
        %v6888 = vmax.f32 %v6626, 0.0
        %v6889 = vmax.f32 %v6628, 0.0
        %v6890 = vmax.f32 %v6851, 0.0
        %v6891 = vmax.f32 %v6630, 0.0
        %v6892 = vmax.f32 %v6632, 0.0
        %v6893 = vmax.f32 %v6854, 0.0
        %v6894 = vmax.f32 %v6636, 0.0
        %v6895 = vmax.f32 %v6638, 0.0
        %v6896 = vmax.f32 %v6859, 0.0
        %v6897 = vmax.f32 %v6640, 0.0
        %v6898 = vmax.f32 %v6642, 0.0
        %v6899 = vmax.f32 %v6862, 0.0
        %v6900 = vmax.f32 %v6646, 0.0
        %v6901 = vmax.f32 %v6648, 0.0
        %v6902 = vmax.f32 %v6867, 0.0
        %v6903 = vmax.f32 %v6650, 0.0
        %v6904 = vmax.f32 %v6652, 0.0
        %v6905 = vmax.f32 %v6870, 0.0
        %v6906 = vmax.f32 %v6656, 0.0
        %v6907 = vmax.f32 %v6658, 0.0
        %v6908 = vmax.f32 %v6875, 0.0
        %v6909 = vmax.f32 %v6660, 0.0
        %v6910 = vmax.f32 %v6662, 0.0
        %v6911 = vmax.f32 %v6878, 0.0
        %v6912 = vmax.f32 %v6666, 0.0
        %v6913 = vmax.f32 %v6668, 0.0
        %v6914 = vmax.f32 %v6883, 0.0
        %v6915 = vpack.c.bf16 %v6891, %v6888
        %v6916 = vpack.c.bf16 %v6892, %v6889
        %v6917 = vpack.c.bf16 %v6893, %v6890
        %v6918 = vpack.c.bf16 %v6897, %v6894
        %v6919 = vpack.c.bf16 %v6898, %v6895
        %v6920 = vpack.c.bf16 %v6899, %v6896
        %v6921 = vpack.c.bf16 %v6903, %v6900
        %v6922 = vpack.c.bf16 %v6904, %v6901
        %v6923 = vpack.c.bf16 %v6905, %v6902
        %v6924 = vpack.c.bf16 %v6909, %v6906
        %v6925 = vpack.c.bf16 %v6910, %v6907
        %v6926 = vpack.c.bf16 %v6911, %v6908
        %v6927 = vpack.c.bf16 %v6912, %v6912
        %v6928 = vpack.c.bf16 %v6913, %v6913
        %v6929 = vpack.c.bf16 %v6914, %v6914
        %v6930 = vld [vmem:[#allocation8] sm:$0xff]
        %v6931 = vld [vmem:[#allocation8 + $0x8] sm:$0xf]
        %v6932 = vld [vmem:[#allocation8 + $0xc] sm:$0xff]
        %v6933 = vld [vmem:[#allocation8 + $0x14] sm:$0xf]
        %v6934 = vld [vmem:[#allocation8 + $0x18] sm:$0xff]
        %v6935 = vld [vmem:[#allocation8 + $0x20] sm:$0xf]
        %v6936 = vld [vmem:[#allocation8 + $0x24] sm:$0xff]
        %v6937 = vld [vmem:[#allocation8 + $0x2c] sm:$0xf]
        %v6938 = vld [vmem:[#allocation8 + $0x30] sm:$0xff]
        %v6939 = vld [vmem:[#allocation8 + $0x38] sm:$0xf]
        %v6940 = vld [vmem:[#allocation8 + $0x3c] sm:$0xff]
        %v6941 = vld [vmem:[#allocation8 + $0x44] sm:$0xf]
        %v6942 = vld [vmem:[#allocation8 + $0x48] sm:$0xff]
        %v6943 = vld [vmem:[#allocation8 + $0x50] sm:$0xf]
        %v6944 = vld [vmem:[#allocation8 + $0x54] sm:$0xff]
        %v6945 = vld [vmem:[#allocation8 + $0x5c] sm:$0xf]
        %v6946 = vld [vmem:[#allocation8 + $0x60] sm:$0xff]
        %v6947 = vld [vmem:[#allocation8 + $0x68] sm:$0xf]
        %v6948 = vld [vmem:[#allocation8 + $0x6c] sm:$0xff]
        %v6949 = vld [vmem:[#allocation8 + $0x74] sm:$0xf]
        %v6950 = vld [vmem:[#allocation8 + $0x78] sm:$0xff]
        %v6951 = vld [vmem:[#allocation8 + $0x80] sm:$0xf]
        %v6952 = vld [vmem:[#allocation8 + $0x84] sm:$0xff]
        %v6953 = vld [vmem:[#allocation8 + $0x8c] sm:$0xf]
        %v6954 = vld [vmem:[#allocation8 + $0x90] sm:$0xff]
        %v6955 = vld [vmem:[#allocation8 + $0x98] sm:$0xf]
        %v6956 = vld [vmem:[#allocation8 + $0x9c] sm:$0xff]
        %v6957 = vld [vmem:[#allocation8 + $0xa4] sm:$0xf]
        %v6958 = vld [vmem:[#allocation8 + $0xa8] sm:$0xff]
        %v6959 = vld [vmem:[#allocation8 + $0xb0] sm:$0xf]
        %v6960 = vld [vmem:[#allocation8 + $0xb4] sm:$0xff]
        %v6961 = vld [vmem:[#allocation8 + $0xbc] sm:$0xf]
        %v6962 = vld [vmem:[#allocation8 + $0xc0] sm:$0xff]
        %v6963 = vld [vmem:[#allocation8 + $0xc8] sm:$0xf]
        %v6964 = vld [vmem:[#allocation8 + $0xcc] sm:$0xff]
        %v6965 = vld [vmem:[#allocation8 + $0xd4] sm:$0xf]
        %v6966 = vld [vmem:[#allocation8 + $0xd8] sm:$0xff]
        %v6967 = vld [vmem:[#allocation8 + $0xe0] sm:$0xf]
        %v6968 = vld [vmem:[#allocation8 + $0xe4] sm:$0xff]
        %v6969 = vld [vmem:[#allocation8 + $0xec] sm:$0xf]
        %v6970 = vld [vmem:[#allocation8 + $0xf0] sm:$0xff]
        %v6971 = vld [vmem:[#allocation8 + $0xf8] sm:$0xf]
        %v6972 = vld [vmem:[#allocation8 + $0xfc] sm:$0xff]
        %v6973 = vld [vmem:[#allocation8 + $0x104] sm:$0xf]
        %v6974 = vld [vmem:[#allocation8 + $0x108] sm:$0xff]
        %v6975 = vld [vmem:[#allocation8 + $0x110] sm:$0xf]
        %v6976 = vld [vmem:[#allocation8 + $0x114] sm:$0xff]
        %v6977 = vld [vmem:[#allocation8 + $0x11c] sm:$0xf]
        %v6978 = vld [vmem:[#allocation8 + $0x120] sm:$0xff]
        %v6979 = vld [vmem:[#allocation8 + $0x128] sm:$0xf]
        %v6980 = vld [vmem:[#allocation8 + $0x12c] sm:$0xff]
        %v6981 = vld [vmem:[#allocation8 + $0x134] sm:$0xf]
        %v6982 = vld [vmem:[#allocation8 + $0x138] sm:$0xff]
        %v6983 = vld [vmem:[#allocation8 + $0x140] sm:$0xf]
        %v6984 = vld [vmem:[#allocation8 + $0x144] sm:$0xff]
        %v6985 = vld [vmem:[#allocation8 + $0x14c] sm:$0xf]
        %v6986 = vld [vmem:[#allocation8 + $0x150] sm:$0xff]
        %v6987 = vld [vmem:[#allocation8 + $0x158] sm:$0xf]
        %v6988 = vld [vmem:[#allocation8 + $0x15c] sm:$0xff]
        %v6989 = vld [vmem:[#allocation8 + $0x164] sm:$0xf]
        %v6990 = vld [vmem:[#allocation8 + $0x168] sm:$0xff]
        %v6991 = vld [vmem:[#allocation8 + $0x170] sm:$0xf]
        %v6992 = vld [vmem:[#allocation8 + $0x174] sm:$0xff]
        %v6993 = vld [vmem:[#allocation8 + $0x17c] sm:$0xf]
        %v6994 = vld [vmem:[#allocation8 + $0x180] sm:$0xff]
        %v6995 = vld [vmem:[#allocation8 + $0x188] sm:$0xf]
        %v6996 = vld [vmem:[#allocation8 + $0x18c] sm:$0xff]
        %v6997 = vld [vmem:[#allocation8 + $0x194] sm:$0xf]
        %v6998 = vld [vmem:[#allocation8 + $0x198] sm:$0xff]
        %v6999 = vld [vmem:[#allocation8 + $0x1a0] sm:$0xf]
        %v7000 = vld [vmem:[#allocation8 + $0x1a4] sm:$0xff]
        %v7001 = vld [vmem:[#allocation8 + $0x1ac] sm:$0xf]
        %v7002 = vld [vmem:[#allocation8 + $0x1b0] sm:$0xff]
        %v7003 = vld [vmem:[#allocation8 + $0x1b8] sm:$0xf]
        %v7004 = vld [vmem:[#allocation8 + $0x1bc] sm:$0xff]
        %v7005 = vld [vmem:[#allocation8 + $0x1c4] sm:$0xf]
        %v7006 = vld [vmem:[#allocation8 + $0x1c8] sm:$0xff]
        %v7007 = vld [vmem:[#allocation8 + $0x1d0] sm:$0xf]
        %v7008 = vld [vmem:[#allocation8 + $0x1d4] sm:$0xff]
        %v7009 = vld [vmem:[#allocation8 + $0x1dc] sm:$0xf]
        %v7010 = vld [vmem:[#allocation8 + $0x1e0] sm:$0xff]
        %v7011 = vld [vmem:[#allocation8 + $0x1e8] sm:$0xf]
        %v7012 = vld [vmem:[#allocation8 + $0x1ec] sm:$0xff]
        %v7013 = vld [vmem:[#allocation8 + $0x1f4] sm:$0xf]
        %v7014 = vld [vmem:[#allocation8 + $0x1f8] sm:$0xff]
        %v7015 = vld [vmem:[#allocation8 + $0x200] sm:$0xf]
        %v7016 = vld [vmem:[#allocation8 + $0x204] sm:$0xff]
        %v7017 = vld [vmem:[#allocation8 + $0x20c] sm:$0xf]
        %v7018 = vld [vmem:[#allocation8 + $0x210] sm:$0xff]
        %v7019 = vld [vmem:[#allocation8 + $0x218] sm:$0xf]
        %v7020 = vld [vmem:[#allocation8 + $0x21c] sm:$0xff]
        %v7021 = vld [vmem:[#allocation8 + $0x224] sm:$0xf]
        %v7022 = vld [vmem:[#allocation8 + $0x228] sm:$0xff]
        %v7023 = vld [vmem:[#allocation8 + $0x230] sm:$0xf]
        %v7024 = vld [vmem:[#allocation8 + $0x234] sm:$0xff]
        %v7025 = vld [vmem:[#allocation8 + $0x23c] sm:$0xf]
        %v7122 = vunpack.c.l.b16 %v6930
        %v7123 = vunpack.c.h.b16 %v6930
        %v7124 = vunpack.c.l.b16 %v6931
        %v7125 = vunpack.c.l.b16 %v6932
        %v7126 = vunpack.c.h.b16 %v6932
        %v7127 = vunpack.c.l.b16 %v6933
        %v7128 = vunpack.c.l.b16 %v6934
        %v7129 = vunpack.c.h.b16 %v6934
        %v7130 = vunpack.c.l.b16 %v6935
        %v7131 = vunpack.c.l.b16 %v6936
        %v7132 = vunpack.c.h.b16 %v6936
        %v7133 = vunpack.c.l.b16 %v6937
        %v7134 = vunpack.c.l.b16 %v6938
        %v7135 = vunpack.c.h.b16 %v6938
        %v7136 = vunpack.c.l.b16 %v6939
        %v7137 = vunpack.c.l.b16 %v6940
        %v7138 = vunpack.c.h.b16 %v6940
        %v7139 = vunpack.c.l.b16 %v6941
        %v7140 = vunpack.c.l.b16 %v6942
        %v7141 = vunpack.c.h.b16 %v6942
        %v7142 = vunpack.c.l.b16 %v6943
        %v7143 = vunpack.c.l.b16 %v6944
        %v7144 = vunpack.c.h.b16 %v6944
        %v7145 = vunpack.c.l.b16 %v6945
        %v7146 = vunpack.c.l.b16 %v6946
        %v7147 = vunpack.c.h.b16 %v6946
        %v7148 = vunpack.c.l.b16 %v6947
        %v7149 = vunpack.c.l.b16 %v6948
        %v7150 = vunpack.c.h.b16 %v6948
        %v7151 = vunpack.c.l.b16 %v6949
        %v7152 = vunpack.c.l.b16 %v6950
        %v7153 = vunpack.c.h.b16 %v6950
        %v7154 = vunpack.c.l.b16 %v6951
        %v7155 = vunpack.c.l.b16 %v6952
        %v7156 = vunpack.c.h.b16 %v6952
        %v7157 = vunpack.c.l.b16 %v6953
        %v7158 = vunpack.c.l.b16 %v6954
        %v7159 = vunpack.c.h.b16 %v6954
        %v7160 = vunpack.c.l.b16 %v6955
        %v7161 = vunpack.c.l.b16 %v6956
        %v7162 = vunpack.c.h.b16 %v6956
        %v7163 = vunpack.c.l.b16 %v6957
        %v7164 = vunpack.c.l.b16 %v6958
        %v7165 = vunpack.c.h.b16 %v6958
        %v7166 = vunpack.c.l.b16 %v6959
        %v7167 = vunpack.c.l.b16 %v6960
        %v7168 = vunpack.c.h.b16 %v6960
        %v7169 = vunpack.c.l.b16 %v6961
        %v7170 = vunpack.c.l.b16 %v6962
        %v7171 = vunpack.c.h.b16 %v6962
        %v7172 = vunpack.c.l.b16 %v6963
        %v7173 = vunpack.c.l.b16 %v6964
        %v7174 = vunpack.c.h.b16 %v6964
        %v7175 = vunpack.c.l.b16 %v6965
        %v7176 = vunpack.c.l.b16 %v6966
        %v7177 = vunpack.c.h.b16 %v6966
        %v7178 = vunpack.c.l.b16 %v6967
        %v7179 = vunpack.c.l.b16 %v6968
        %v7180 = vunpack.c.h.b16 %v6968
        %v7181 = vunpack.c.l.b16 %v6969
        %v7182 = vunpack.c.l.b16 %v6970
        %v7183 = vunpack.c.h.b16 %v6970
        %v7184 = vunpack.c.l.b16 %v6971
        %v7185 = vunpack.c.l.b16 %v6972
        %v7186 = vunpack.c.h.b16 %v6972
        %v7187 = vunpack.c.l.b16 %v6973
        %v7188 = vunpack.c.l.b16 %v6974
        %v7189 = vunpack.c.h.b16 %v6974
        %v7190 = vunpack.c.l.b16 %v6975
        %v7191 = vunpack.c.l.b16 %v6976
        %v7192 = vunpack.c.h.b16 %v6976
        %v7193 = vunpack.c.l.b16 %v6977
        %v7194 = vunpack.c.l.b16 %v6978
        %v7195 = vunpack.c.h.b16 %v6978
        %v7196 = vunpack.c.l.b16 %v6979
        %v7197 = vunpack.c.l.b16 %v6980
        %v7198 = vunpack.c.h.b16 %v6980
        %v7199 = vunpack.c.l.b16 %v6981
        %v7200 = vunpack.c.l.b16 %v6982
        %v7201 = vunpack.c.h.b16 %v6982
        %v7202 = vunpack.c.l.b16 %v6983
        %v7203 = vunpack.c.l.b16 %v6984
        %v7204 = vunpack.c.h.b16 %v6984
        %v7205 = vunpack.c.l.b16 %v6985
        %v7206 = vunpack.c.l.b16 %v6986
        %v7207 = vunpack.c.h.b16 %v6986
        %v7208 = vunpack.c.l.b16 %v6987
        %v7209 = vunpack.c.l.b16 %v6988
        %v7210 = vunpack.c.h.b16 %v6988
        %v7211 = vunpack.c.l.b16 %v6989
        %v7212 = vunpack.c.l.b16 %v6990
        %v7213 = vunpack.c.h.b16 %v6990
        %v7214 = vunpack.c.l.b16 %v6991
        %v7215 = vunpack.c.l.b16 %v6992
        %v7216 = vunpack.c.h.b16 %v6992
        %v7217 = vunpack.c.l.b16 %v6993
        %v7218 = vunpack.c.l.b16 %v6994
        %v7219 = vunpack.c.h.b16 %v6994
        %v7220 = vunpack.c.l.b16 %v6995
        %v7221 = vunpack.c.l.b16 %v6996
        %v7222 = vunpack.c.h.b16 %v6996
        %v7223 = vunpack.c.l.b16 %v6997
        %v7224 = vunpack.c.l.b16 %v6998
        %v7225 = vunpack.c.h.b16 %v6998
        %v7226 = vunpack.c.l.b16 %v6999
        %v7227 = vunpack.c.l.b16 %v7000
        %v7228 = vunpack.c.h.b16 %v7000
        %v7229 = vunpack.c.l.b16 %v7001
        %v7230 = vunpack.c.l.b16 %v7002
        %v7231 = vunpack.c.h.b16 %v7002
        %v7232 = vunpack.c.l.b16 %v7003
        %v7233 = vunpack.c.l.b16 %v7004
        %v7234 = vunpack.c.h.b16 %v7004
        %v7235 = vunpack.c.l.b16 %v7005
        %v7236 = vunpack.c.l.b16 %v7006
        %v7237 = vunpack.c.h.b16 %v7006
        %v7238 = vunpack.c.l.b16 %v7007
        %v7239 = vunpack.c.l.b16 %v7008
        %v7240 = vunpack.c.h.b16 %v7008
        %v7241 = vunpack.c.l.b16 %v7009
        %v7242 = vunpack.c.l.b16 %v7010
        %v7243 = vunpack.c.h.b16 %v7010
        %v7244 = vunpack.c.l.b16 %v7011
        %v7245 = vunpack.c.l.b16 %v7012
        %v7246 = vunpack.c.h.b16 %v7012
        %v7247 = vunpack.c.l.b16 %v7013
        %v7248 = vunpack.c.l.b16 %v7014
        %v7249 = vunpack.c.h.b16 %v7014
        %v7250 = vunpack.c.l.b16 %v7015
        %v7251 = vunpack.c.l.b16 %v7016
        %v7252 = vunpack.c.h.b16 %v7016
        %v7253 = vunpack.c.l.b16 %v7017
        %v7254 = vunpack.c.l.b16 %v7018
        %v7255 = vunpack.c.h.b16 %v7018
        %v7256 = vunpack.c.l.b16 %v7019
        %v7257 = vunpack.c.l.b16 %v7020
        %v7258 = vunpack.c.h.b16 %v7020
        %v7259 = vunpack.c.l.b16 %v7021
        %v7260 = vunpack.c.l.b16 %v7022
        %v7261 = vunpack.c.h.b16 %v7022
        %v7262 = vunpack.c.l.b16 %v7023
        %v7263 = vunpack.c.l.b16 %v7024
        %v7264 = vunpack.c.h.b16 %v7024
        %v7265 = vunpack.c.l.b16 %v7025
        %v7266 = vpack.c.b16 %v7125, %v7122
        %v7267 = vpack.c.b16 %v7126, %v7123
        %v7268 = vpack.c.b16 %v7127, %v7124
        %v7269 = vpack.c.b16 %v7131, %v7128
        %v7270 = vpack.c.b16 %v7132, %v7129
        %v7271 = vpack.c.b16 %v7133, %v7130
        %v7272 = vpack.c.b16 %v7137, %v7134
        %v7273 = vpack.c.b16 %v7138, %v7135
        %v7274 = vpack.c.b16 %v7139, %v7136
        %v7275 = vpack.c.b16 %v7143, %v7140
        %v7276 = vpack.c.b16 %v7144, %v7141
        %v7277 = vpack.c.b16 %v7145, %v7142
        %v7278 = vpack.c.b16 %v7149, %v7146
        %v7279 = vpack.c.b16 %v7150, %v7147
        %v7280 = vpack.c.b16 %v7151, %v7148
        %v7281 = vpack.c.b16 %v7155, %v7152
        %v7282 = vpack.c.b16 %v7156, %v7153
        %v7283 = vpack.c.b16 %v7157, %v7154
        %v7284 = vpack.c.b16 %v7161, %v7158
        %v7285 = vpack.c.b16 %v7162, %v7159
        %v7286 = vpack.c.b16 %v7163, %v7160
        %v7287 = vpack.c.b16 %v7167, %v7164
        %v7288 = vpack.c.b16 %v7168, %v7165
        %v7289 = vpack.c.b16 %v7169, %v7166
        %v7290 = vpack.c.b16 %v7173, %v7170
        %v7291 = vpack.c.b16 %v7174, %v7171
        %v7292 = vpack.c.b16 %v7175, %v7172
        %v7293 = vpack.c.b16 %v7179, %v7176
        %v7294 = vpack.c.b16 %v7180, %v7177
        %v7295 = vpack.c.b16 %v7181, %v7178
        %v7296 = vpack.c.b16 %v7185, %v7182
        %v7297 = vpack.c.b16 %v7186, %v7183
        %v7298 = vpack.c.b16 %v7187, %v7184
        %v7299 = vpack.c.b16 %v7191, %v7188
        %v7300 = vpack.c.b16 %v7192, %v7189
        %v7301 = vpack.c.b16 %v7193, %v7190
        %v7302 = vpack.c.b16 %v7197, %v7194
        %v7303 = vpack.c.b16 %v7198, %v7195
        %v7304 = vpack.c.b16 %v7199, %v7196
        %v7305 = vpack.c.b16 %v7203, %v7200
        %v7306 = vpack.c.b16 %v7204, %v7201
        %v7307 = vpack.c.b16 %v7205, %v7202
        %v7308 = vpack.c.b16 %v7209, %v7206
        %v7309 = vpack.c.b16 %v7210, %v7207
        %v7310 = vpack.c.b16 %v7211, %v7208
        %v7311 = vpack.c.b16 %v7215, %v7212
        %v7312 = vpack.c.b16 %v7216, %v7213
        %v7313 = vpack.c.b16 %v7217, %v7214
        %v7314 = vpack.c.b16 %v7221, %v7218
        %v7315 = vpack.c.b16 %v7222, %v7219
        %v7316 = vpack.c.b16 %v7223, %v7220
        %v7317 = vpack.c.b16 %v7227, %v7224
        %v7318 = vpack.c.b16 %v7228, %v7225
        %v7319 = vpack.c.b16 %v7229, %v7226
        %v7320 = vpack.c.b16 %v7233, %v7230
        %v7321 = vpack.c.b16 %v7234, %v7231
        %v7322 = vpack.c.b16 %v7235, %v7232
        %v7323 = vpack.c.b16 %v7239, %v7236
        %v7324 = vpack.c.b16 %v7240, %v7237
        %v7325 = vpack.c.b16 %v7241, %v7238
        %v7326 = vpack.c.b16 %v7245, %v7242
        %v7327 = vpack.c.b16 %v7246, %v7243
        %v7328 = vpack.c.b16 %v7247, %v7244
        %v7329 = vpack.c.b16 %v7251, %v7248
        %v7330 = vpack.c.b16 %v7252, %v7249
        %v7331 = vpack.c.b16 %v7253, %v7250
        %v7332 = vpack.c.b16 %v7257, %v7254
        %v7333 = vpack.c.b16 %v7258, %v7255
        %v7334 = vpack.c.b16 %v7259, %v7256
        %v7335 = vpack.c.b16 %v7263, %v7260
        %v7336 = vpack.c.b16 %v7264, %v7261
        %v7337 = vpack.c.b16 %v7265, %v7262
        %7410 = vmatprep.subr.bf16.mxu0 %v7267
        %7411 = vmatpush1.bf16.msra.mxu0 %v7266
        %7412 = vmatprep.subr.bf16.mxu0 %v7270
        %7413 = vmatpush1.bf16.msra.mxu0 %v7269
        %7414 = vmatprep.subr.bf16.mxu0 %v7273
        %7415 = vmatpush1.bf16.msra.mxu0 %v7272
        %7416 = vmatprep.subr.bf16.mxu0 %v7276
        %7417 = vmatpush1.bf16.msra.mxu0 %v7275
        %7418 = vmatprep.subr.bf16.mxu0 %v7279
        %7419 = vmatpush1.bf16.msra.mxu0 %v7278
        %7420 = vmatprep.subr.bf16.mxu0 %v7282
        %7421 = vmatpush1.bf16.msra.mxu0 %v7281
        %7422 = vmatprep.subr.bf16.mxu0 %v7285
        %7423 = vmatpush1.bf16.msra.mxu0 %v7284
        %7424 = vmatprep.subr.bf16.mxu0 %v7288
        %7425 = vmatpush1.bf16.msra.mxu0 %v7287
        %7426 = vmatprep.subr.bf16.mxu0 %v7291
        %7427 = vmatpush1.bf16.msra.mxu0 %v7290
        %7428 = vmatprep.subr.bf16.mxu0 %v7294
        %7429 = vmatpush1.bf16.msra.mxu0 %v7293
        %7430 = vmatprep.subr.bf16.mxu0 %v7297
        %7431 = vmatpush1.bf16.msra.mxu0 %v7296
        %7432 = vmatprep.subr.bf16.mxu0 %v7300
        %7433 = vmatpush1.bf16.msra.mxu0 %v7299
        %7434 = vmatprep.subr.bf16.mxu0 %v7303
        %7435 = vmatpush1.bf16.msra.mxu0 %v7302
        %7436 = vmatprep.subr.bf16.mxu0 %v7306
        %7437 = vmatpush1.bf16.msra.mxu0 %v7305
        %7438 = vmatprep.subr.bf16.mxu0 %v7309
        %7439 = vmatpush1.bf16.msra.mxu0 %v7308
        %7440 = vmatprep.subr.bf16.mxu0 %v7312
        %7441 = vmatpush1.bf16.msra.mxu0 %v7311
        %7442 = vmatprep.mubr.bf16.mxu0 %v6916
        %7443 = vmatmul.mubr.bf16.gmra.mrb[0].mxu0 %v6915
        %v7444 = vpop.f32.mrb[0].mxu0
        %v7445 = vadd.f32 0.0, %v7444
        %v7446 = vpop.f32.mrb[0].mxu0
        %v7447 = vadd.f32 0.0, %v7446
        %v7448 = vpop.f32.mrb[0].mxu0
        %v7449 = vadd.f32 0.0, %v7448
        %v7450 = vpop.f32.mrb[0].mxu0
        %v7451 = vadd.f32 0.0, %v7450
        %7452 = vmatprep.mubr.bf16.mxu0 %v6919
        %7453 = vmatmul.mubr.bf16.gmra.mrb[0].mxu0 %v6918
        %v7454 = vpop.f32.mrb[0].mxu0
        %v7455 = vadd.f32 0.0, %v7454
        %v7456 = vpop.f32.mrb[0].mxu0
        %v7457 = vadd.f32 0.0, %v7456
        %v7458 = vpop.f32.mrb[0].mxu0
        %v7459 = vadd.f32 0.0, %v7458
        %v7460 = vpop.f32.mrb[0].mxu0
        %v7461 = vadd.f32 0.0, %v7460
        %7462 = vmatprep.mubr.bf16.mxu0 %v6922
        %7463 = vmatmul.mubr.bf16.gmra.mrb[0].mxu0 %v6921
        %v7464 = vpop.f32.mrb[0].mxu0
        %v7465 = vadd.f32 0.0, %v7464
        %v7466 = vpop.f32.mrb[0].mxu0
        %v7467 = vadd.f32 0.0, %v7466
        %v7468 = vpop.f32.mrb[0].mxu0
        %v7469 = vadd.f32 0.0, %v7468
        %v7470 = vpop.f32.mrb[0].mxu0
        %v7471 = vadd.f32 0.0, %v7470
        %7472 = vmatprep.mubr.bf16.mxu0 %v6925
        %7473 = vmatmul.mubr.bf16.gmra.mrb[0].mxu0 %v6924
        %v7474 = vpop.f32.mrb[0].mxu0
        %v7475 = vadd.f32 0.0, %v7474
        %v7476 = vpop.f32.mrb[0].mxu0
        %v7477 = vadd.f32 0.0, %v7476
        %v7478 = vpop.f32.mrb[0].mxu0
        %v7479 = vadd.f32 0.0, %v7478
        %v7480 = vpop.f32.mrb[0].mxu0
        %v7481 = vadd.f32 0.0, %v7480
        %7482 = vmatprep.mubr.bf16.mxu0 %v6928
        %7483 = vmatmul.mubr.bf16.gmra.mrb[0].mxu0 %v6927
        %v7484 = vpop.f32.mrb[0].mxu0
        %v7485 = vadd.f32 0.0, %v7484
        %v7486 = vpop.f32.mrb[0].mxu0
        %v7487 = vadd.f32 0.0, %v7486
        %v7488 = vpop.f32.mrb[0].mxu0
        %v7489 = vpop.f32.mrb[0].mxu0
        %7490 = vdwg.mxu0
        %7491 = vmatprep.subr.bf16.mxu0 %v7315
        %7492 = vmatpush1.bf16.msra.mxu0 %v7314
        %7493 = vmatprep.subr.bf16.mxu0 %v7318
        %7494 = vmatpush1.bf16.msra.mxu0 %v7317
        %7495 = vmatprep.subr.bf16.mxu0 %v7321
        %7496 = vmatpush1.bf16.msra.mxu0 %v7320
        %7497 = vmatprep.subr.bf16.mxu0 %v7324
        %7498 = vmatpush1.bf16.msra.mxu0 %v7323
        %7499 = vmatprep.subr.bf16.mxu0 %v7327
        %7500 = vmatpush1.bf16.msra.mxu0 %v7326
        %7501 = vmatprep.subr.bf16.mxu0 %v7330
        %7502 = vmatpush1.bf16.msra.mxu0 %v7329
        %7503 = vmatprep.subr.bf16.mxu0 %v7333
        %7504 = vmatpush1.bf16.msra.mxu0 %v7332
        %7505 = vmatprep.subr.bf16.mxu0 %v7336
        %7506 = vmatpush1.bf16.msra.mxu0 %v7335
        %7507 = vmatprep.subr.bf16.mxu0 0
        %7508 = vmatpush1.bf16.msra.mxu0 0
        %7509 = vmatprep.subr.bf16.mxu0 0
        %7510 = vmatpush1.bf16.msra.mxu0 0
        %7511 = vmatprep.subr.bf16.mxu0 0
        %7512 = vmatpush1.bf16.msra.mxu0 0
        %7513 = vmatprep.subr.bf16.mxu0 0
        %7514 = vmatpush1.bf16.msra.mxu0 0
        %7515 = vmatprep.subr.bf16.mxu0 0
        %7516 = vmatpush1.bf16.msra.mxu0 0
        %7517 = vmatprep.subr.bf16.mxu0 0
        %7518 = vmatpush1.bf16.msra.mxu0 0
        %7519 = vmatprep.subr.bf16.mxu0 0
        %7520 = vmatpush1.bf16.msra.mxu0 0
        %7521 = vmatprep.subr.bf16.mxu0 0
        %7522 = vmatpush1.bf16.msra.mxu0 0
        %7523 = vmatprep.mubr.bf16.mxu0 0
        %7524 = vmatmul.mubr.bf16.gmra.mrb[0].mxu0 %v6917
        %v7525 = vpop.f32.mrb[0].mxu0
        %v7526 = vadd.f32 %v7445, %v7525
        %v7527 = vpop.f32.mrb[0].mxu0
        %v7528 = vadd.f32 %v7447, %v7527
        %v7529 = vpop.f32.mrb[0].mxu0
        %v7530 = vadd.f32 %v7449, %v7529
        %v7531 = vpop.f32.mrb[0].mxu0
        %v7532 = vadd.f32 %v7451, %v7531
        %7533 = vmatprep.mubr.bf16.mxu0 0
        %7534 = vmatmul.mubr.bf16.gmra.mrb[0].mxu0 %v6920
        %v7535 = vpop.f32.mrb[0].mxu0
        %v7536 = vadd.f32 %v7455, %v7535
        %v7537 = vpop.f32.mrb[0].mxu0
        %v7538 = vadd.f32 %v7457, %v7537
        %v7539 = vpop.f32.mrb[0].mxu0
        %v7540 = vadd.f32 %v7459, %v7539
        %v7541 = vpop.f32.mrb[0].mxu0
        %v7542 = vadd.f32 %v7461, %v7541
        %7543 = vmatprep.mubr.bf16.mxu0 0
        %7544 = vmatmul.mubr.bf16.gmra.mrb[0].mxu0 %v6923
        %v7545 = vpop.f32.mrb[0].mxu0
        %v7546 = vadd.f32 %v7465, %v7545
        %v7547 = vpop.f32.mrb[0].mxu0
        %v7548 = vadd.f32 %v7467, %v7547
        %v7549 = vpop.f32.mrb[0].mxu0
        %v7550 = vadd.f32 %v7469, %v7549
        %v7551 = vpop.f32.mrb[0].mxu0
        %v7552 = vadd.f32 %v7471, %v7551
        %7553 = vmatprep.mubr.bf16.mxu0 0
        %7554 = vmatmul.mubr.bf16.gmra.mrb[0].mxu0 %v6926
        %v7555 = vpop.f32.mrb[0].mxu0
        %v7556 = vadd.f32 %v7475, %v7555
        %v7557 = vpop.f32.mrb[0].mxu0
        %v7558 = vadd.f32 %v7477, %v7557
        %v7559 = vpop.f32.mrb[0].mxu0
        %v7560 = vadd.f32 %v7479, %v7559
        %v7561 = vpop.f32.mrb[0].mxu0
        %v7562 = vadd.f32 %v7481, %v7561
        %7563 = vmatprep.mubr.bf16.mxu0 0
        %7564 = vmatmul.mubr.bf16.gmra.mrb[0].mxu0 %v6929
        %v7565 = vpop.f32.mrb[0].mxu0
        %v7566 = vadd.f32 %v7485, %v7565
        %v7567 = vpop.f32.mrb[0].mxu0
        %v7568 = vadd.f32 %v7487, %v7567
        %v7569 = vpop.f32.mrb[0].mxu0
        %v7570 = vpop.f32.mrb[0].mxu0
        %7571 = vdwg.mxu0
        %7572 = vmatprep.subr.bf16.mxu0 0
        %7573 = vmatpush1.bf16.msra.mxu0 %v7268
        %7574 = vmatprep.subr.bf16.mxu0 0
        %7575 = vmatpush1.bf16.msra.mxu0 %v7271
        %7576 = vmatprep.subr.bf16.mxu0 0
        %7577 = vmatpush1.bf16.msra.mxu0 %v7274
        %7578 = vmatprep.subr.bf16.mxu0 0
        %7579 = vmatpush1.bf16.msra.mxu0 %v7277
        %7580 = vmatprep.subr.bf16.mxu0 0
        %7581 = vmatpush1.bf16.msra.mxu0 %v7280
        %7582 = vmatprep.subr.bf16.mxu0 0
        %7583 = vmatpush1.bf16.msra.mxu0 %v7283
        %7584 = vmatprep.subr.bf16.mxu0 0
        %7585 = vmatpush1.bf16.msra.mxu0 %v7286
        %7586 = vmatprep.subr.bf16.mxu0 0
        %7587 = vmatpush1.bf16.msra.mxu0 %v7289
        %7588 = vmatprep.subr.bf16.mxu0 0
        %7589 = vmatpush1.bf16.msra.mxu0 %v7292
        %7590 = vmatprep.subr.bf16.mxu0 0
        %7591 = vmatpush1.bf16.msra.mxu0 %v7295
        %7592 = vmatprep.subr.bf16.mxu0 0
        %7593 = vmatpush1.bf16.msra.mxu0 %v7298
        %7594 = vmatprep.subr.bf16.mxu0 0
        %7595 = vmatpush1.bf16.msra.mxu0 %v7301
        %7596 = vmatprep.subr.bf16.mxu0 0
        %7597 = vmatpush1.bf16.msra.mxu0 %v7304
        %7598 = vmatprep.subr.bf16.mxu0 0
        %7599 = vmatpush1.bf16.msra.mxu0 %v7307
        %7600 = vmatprep.subr.bf16.mxu0 0
        %7601 = vmatpush1.bf16.msra.mxu0 %v7310
        %7602 = vmatprep.subr.bf16.mxu0 0
        %7603 = vmatpush1.bf16.msra.mxu0 %v7313
        %7604 = vmatprep.mubr.bf16.mxu0 %v6916
        %7605 = vmatmul.mubr.bf16.gmra.mrb[0].mxu0 %v6915
        %v7606 = vpop.f32.mrb[0].mxu0
        %v7607 = vadd.f32 0.0, %v7606
        %v7608 = vpop.f32.mrb[0].mxu0
        %v7609 = vpop.f32.mrb[0].mxu0
        %v7610 = vadd.f32 0.0, %v7609
        %v7611 = vpop.f32.mrb[0].mxu0
        %7612 = vmatprep.mubr.bf16.mxu0 %v6919
        %7613 = vmatmul.mubr.bf16.gmra.mrb[0].mxu0 %v6918
        %v7614 = vpop.f32.mrb[0].mxu0
        %v7615 = vadd.f32 0.0, %v7614
        %v7616 = vpop.f32.mrb[0].mxu0
        %v7617 = vpop.f32.mrb[0].mxu0
        %v7618 = vadd.f32 0.0, %v7617
        %v7619 = vpop.f32.mrb[0].mxu0
        %7620 = vmatprep.mubr.bf16.mxu0 %v6922
        %7621 = vmatmul.mubr.bf16.gmra.mrb[0].mxu0 %v6921
        %v7622 = vpop.f32.mrb[0].mxu0
        %v7623 = vadd.f32 0.0, %v7622
        %v7624 = vpop.f32.mrb[0].mxu0
        %v7625 = vpop.f32.mrb[0].mxu0
        %v7626 = vadd.f32 0.0, %v7625
        %v7627 = vpop.f32.mrb[0].mxu0
        %7628 = vmatprep.mubr.bf16.mxu0 %v6925
        %7629 = vmatmul.mubr.bf16.gmra.mrb[0].mxu0 %v6924
        %v7630 = vpop.f32.mrb[0].mxu0
        %v7631 = vadd.f32 0.0, %v7630
        %v7632 = vpop.f32.mrb[0].mxu0
        %v7633 = vpop.f32.mrb[0].mxu0
        %v7634 = vadd.f32 0.0, %v7633
        %v7635 = vpop.f32.mrb[0].mxu0
        %7636 = vmatprep.mubr.bf16.mxu0 %v6928
        %7637 = vmatmul.mubr.bf16.gmra.mrb[0].mxu0 %v6927
        %v7638 = vpop.f32.mrb[0].mxu0
        %v7639 = vadd.f32 0.0, %v7638
        %v7640 = vpop.f32.mrb[0].mxu0
        %v7641 = vpop.f32.mrb[0].mxu0
        %v7642 = vpop.f32.mrb[0].mxu0
        %7643 = vdwg.mxu0
        %7644 = vmatprep.subr.bf16.mxu0 0
        %7645 = vmatpush1.bf16.msra.mxu0 %v7316
        %7646 = vmatprep.subr.bf16.mxu0 0
        %7647 = vmatpush1.bf16.msra.mxu0 %v7319
        %7648 = vmatprep.subr.bf16.mxu0 0
        %7649 = vmatpush1.bf16.msra.mxu0 %v7322
        %7650 = vmatprep.subr.bf16.mxu0 0
        %7651 = vmatpush1.bf16.msra.mxu0 %v7325
        %7652 = vmatprep.subr.bf16.mxu0 0
        %7653 = vmatpush1.bf16.msra.mxu0 %v7328
        %7654 = vmatprep.subr.bf16.mxu0 0
        %7655 = vmatpush1.bf16.msra.mxu0 %v7331
        %7656 = vmatprep.subr.bf16.mxu0 0
        %7657 = vmatpush1.bf16.msra.mxu0 %v7334
        %7658 = vmatprep.subr.bf16.mxu0 0
        %7659 = vmatpush1.bf16.msra.mxu0 %v7337
        %7660 = vmatprep.subr.bf16.mxu0 0
        %7661 = vmatpush1.bf16.msra.mxu0 0
        %7662 = vmatprep.subr.bf16.mxu0 0
        %7663 = vmatpush1.bf16.msra.mxu0 0
        %7664 = vmatprep.subr.bf16.mxu0 0
        %7665 = vmatpush1.bf16.msra.mxu0 0
        %7666 = vmatprep.subr.bf16.mxu0 0
        %7667 = vmatpush1.bf16.msra.mxu0 0
        %7668 = vmatprep.subr.bf16.mxu0 0
        %7669 = vmatpush1.bf16.msra.mxu0 0
        %7670 = vmatprep.subr.bf16.mxu0 0
        %7671 = vmatpush1.bf16.msra.mxu0 0
        %7672 = vmatprep.subr.bf16.mxu0 0
        %7673 = vmatpush1.bf16.msra.mxu0 0
        %7674 = vmatprep.subr.bf16.mxu0 0
        %7675 = vmatpush1.bf16.msra.mxu0 0
        %7676 = vmatprep.mubr.bf16.mxu0 0
        %7677 = vmatmul.mubr.bf16.gmra.mrb[0].mxu0 %v6917
        %v7678 = vpop.f32.mrb[0].mxu0
        %v7679 = vadd.f32 %v7607, %v7678
        %v7680 = vpop.f32.mrb[0].mxu0
        %v7681 = vpop.f32.mrb[0].mxu0
        %v7682 = vadd.f32 %v7610, %v7681
        %v7683 = vpop.f32.mrb[0].mxu0
        %7684 = vmatprep.mubr.bf16.mxu0 0
        %7685 = vmatmul.mubr.bf16.gmra.mrb[0].mxu0 %v6920
        %v7686 = vpop.f32.mrb[0].mxu0
        %v7687 = vadd.f32 %v7615, %v7686
        %v7688 = vpop.f32.mrb[0].mxu0
        %v7689 = vpop.f32.mrb[0].mxu0
        %v7690 = vadd.f32 %v7618, %v7689
        %v7691 = vpop.f32.mrb[0].mxu0
        %7692 = vmatprep.mubr.bf16.mxu0 0
        %7693 = vmatmul.mubr.bf16.gmra.mrb[0].mxu0 %v6923
        %v7694 = vpop.f32.mrb[0].mxu0
        %v7695 = vadd.f32 %v7623, %v7694
        %v7696 = vpop.f32.mrb[0].mxu0
        %v7697 = vpop.f32.mrb[0].mxu0
        %v7698 = vadd.f32 %v7626, %v7697
        %v7699 = vpop.f32.mrb[0].mxu0
        %7700 = vmatprep.mubr.bf16.mxu0 0
        %7701 = vmatmul.mubr.bf16.gmra.mrb[0].mxu0 %v6926
        %v7702 = vpop.f32.mrb[0].mxu0
        %v7703 = vadd.f32 %v7631, %v7702
        %v7704 = vpop.f32.mrb[0].mxu0
        %v7705 = vpop.f32.mrb[0].mxu0
        %v7706 = vadd.f32 %v7634, %v7705
        %v7707 = vpop.f32.mrb[0].mxu0
        %7708 = vmatprep.mubr.bf16.mxu0 0
        %7709 = vmatmul.mubr.bf16.gmra.mrb[0].mxu0 %v6929
        %v7710 = vpop.f32.mrb[0].mxu0
        %v7711 = vadd.f32 %v7639, %v7710
        %v7712 = vpop.f32.mrb[0].mxu0
        %v7713 = vpop.f32.mrb[0].mxu0
        %v7714 = vpop.f32.mrb[0].mxu0
        %7715 = vdwg.mxu0
        %v7731 = vunpack.c.l.b16 %v6915
        %v7732 = vunpack.c.l.b16 %v6916
        %v7733 = vunpack.c.l.b16 %v6917
        %v7734 = vunpack.c.h.b16 %v6915
        %v7735 = vunpack.c.h.b16 %v6916
        %v7736 = vunpack.c.h.b16 %v6917
        %v7737 = vunpack.c.l.b16 %v6918
        %v7738 = vunpack.c.l.b16 %v6919
        %v7739 = vunpack.c.l.b16 %v6920
        %v7740 = vunpack.c.h.b16 %v6918
        %v7741 = vunpack.c.h.b16 %v6919
        %v7742 = vunpack.c.h.b16 %v6920
        %v7743 = vunpack.c.l.b16 %v6921
        %v7744 = vunpack.c.l.b16 %v6922
        %v7745 = vunpack.c.l.b16 %v6923
        %v7746 = vunpack.c.h.b16 %v6921
        %v7747 = vunpack.c.h.b16 %v6922
        %v7748 = vunpack.c.h.b16 %v6923
        %v7749 = vunpack.c.l.b16 %v6924
        %v7750 = vunpack.c.l.b16 %v6925
        %v7751 = vunpack.c.l.b16 %v6926
        %v7752 = vunpack.c.h.b16 %v6924
        %v7753 = vunpack.c.h.b16 %v6925
        %v7754 = vunpack.c.h.b16 %v6926
        %v7755 = vunpack.c.l.b16 %v6927
        %v7756 = vunpack.c.l.b16 %v6928
        %v7757 = vunpack.c.l.b16 %v6929
        %v7758 = vpack.c.b16 %v7732, %v7731
        %v7759 = vpack.c.b16 %v7733, %v7733
        %v7760 = vpack.c.b16 %v7735, %v7734
        %v7761 = vpack.c.b16 %v7736, %v7736
        %v7762 = vpack.c.b16 %v7738, %v7737
        %v7763 = vpack.c.b16 %v7739, %v7739
        %v7764 = vpack.c.b16 %v7741, %v7740
        %v7765 = vpack.c.b16 %v7742, %v7742
        %v7766 = vpack.c.b16 %v7744, %v7743
        %v7767 = vpack.c.b16 %v7745, %v7745
        %v7768 = vpack.c.b16 %v7747, %v7746
        %v7769 = vpack.c.b16 %v7748, %v7748
        %v7770 = vpack.c.b16 %v7750, %v7749
        %v7771 = vpack.c.b16 %v7751, %v7751
        %v7772 = vpack.c.b16 %v7753, %v7752
        %v7773 = vpack.c.b16 %v7754, %v7754
        %v7774 = vpack.c.b16 %v7756, %v7755
        %v7775 = vpack.c.b16 %v7757, %v7757
        %7794 = vst [vmem:[%s291] sm:$0xff] %v7758
        %7795 = vst [vmem:[%s291 + $0x8] sm:$0xf] %v7759
        %7796 = vst [vmem:[%s291 + $0xc] sm:$0xff] %v7760
        %7797 = vst [vmem:[%s291 + $0x14] sm:$0xf] %v7761
        %7798 = vst [vmem:[%s291 + $0x18] sm:$0xff] %v7762
        %7799 = vst [vmem:[%s291 + $0x20] sm:$0xf] %v7763
        %7800 = vst [vmem:[%s291 + $0x24] sm:$0xff] %v7764
        %7801 = vst [vmem:[%s291 + $0x2c] sm:$0xf] %v7765
        %7802 = vst [vmem:[%s291 + $0x30] sm:$0xff] %v7766
        %7803 = vst [vmem:[%s291 + $0x38] sm:$0xf] %v7767
        %7804 = vst [vmem:[%s291 + $0x3c] sm:$0xff] %v7768
        %7805 = vst [vmem:[%s291 + $0x44] sm:$0xf] %v7769
        %7806 = vst [vmem:[%s291 + $0x48] sm:$0xff] %v7770
        %7807 = vst [vmem:[%s291 + $0x50] sm:$0xf] %v7771
        %7808 = vst [vmem:[%s291 + $0x54] sm:$0xff] %v7772
        %7809 = vst [vmem:[%s291 + $0x5c] sm:$0xf] %v7773
        %7810 = vst [vmem:[%s291 + $0x60] sm:$0xff] %v7774
        %7811 = vst [vmem:[%s291 + $0x68] sm:$0xf] %v7775
        %v7812 = vpack.c.bf16 %v7530, %v7526
        %v7813 = vpack.c.bf16 %v7532, %v7528
        %v7814 = vpack.c.bf16 %v7682, %v7679
        %v7815 = vpack.c.bf16 %v7540, %v7536
        %v7816 = vpack.c.bf16 %v7542, %v7538
        %v7817 = vpack.c.bf16 %v7690, %v7687
        %v7818 = vpack.c.bf16 %v7550, %v7546
        %v7819 = vpack.c.bf16 %v7552, %v7548
        %v7820 = vpack.c.bf16 %v7698, %v7695
        %v7821 = vpack.c.bf16 %v7560, %v7556
        %v7822 = vpack.c.bf16 %v7562, %v7558
        %v7823 = vpack.c.bf16 %v7706, %v7703
        %v7824 = vpack.c.bf16 %v7566, %v7566
        %v7825 = vpack.c.bf16 %v7568, %v7568
        %v7826 = vpack.c.bf16 %v7711, %v7711
        %v7842 = vunpack.c.l.b16 %v7812
        %v7843 = vunpack.c.l.b16 %v7813
        %v7844 = vunpack.c.l.b16 %v7814
        %v7845 = vunpack.c.h.b16 %v7812
        %v7846 = vunpack.c.h.b16 %v7813
        %v7847 = vunpack.c.h.b16 %v7814
        %v7848 = vunpack.c.l.b16 %v7815
        %v7849 = vunpack.c.l.b16 %v7816
        %v7850 = vunpack.c.l.b16 %v7817
        %v7851 = vunpack.c.h.b16 %v7815
        %v7852 = vunpack.c.h.b16 %v7816
        %v7853 = vunpack.c.h.b16 %v7817
        %v7854 = vunpack.c.l.b16 %v7818
        %v7855 = vunpack.c.l.b16 %v7819
        %v7856 = vunpack.c.l.b16 %v7820
        %v7857 = vunpack.c.h.b16 %v7818
        %v7858 = vunpack.c.h.b16 %v7819
        %v7859 = vunpack.c.h.b16 %v7820
        %v7860 = vunpack.c.l.b16 %v7821
        %v7861 = vunpack.c.l.b16 %v7822
        %v7862 = vunpack.c.l.b16 %v7823
        %v7863 = vunpack.c.h.b16 %v7821
        %v7864 = vunpack.c.h.b16 %v7822
        %v7865 = vunpack.c.h.b16 %v7823
        %v7866 = vunpack.c.l.b16 %v7824
        %v7867 = vunpack.c.l.b16 %v7825
        %v7868 = vunpack.c.l.b16 %v7826
        %v7869 = vpack.c.b16 %v7843, %v7842
        %v7870 = vpack.c.b16 %v7844, %v7844
        %v7871 = vpack.c.b16 %v7846, %v7845
        %v7872 = vpack.c.b16 %v7847, %v7847
        %v7873 = vpack.c.b16 %v7849, %v7848
        %v7874 = vpack.c.b16 %v7850, %v7850
        %v7875 = vpack.c.b16 %v7852, %v7851
        %v7876 = vpack.c.b16 %v7853, %v7853
        %v7877 = vpack.c.b16 %v7855, %v7854
        %v7878 = vpack.c.b16 %v7856, %v7856
        %v7879 = vpack.c.b16 %v7858, %v7857
        %v7880 = vpack.c.b16 %v7859, %v7859
        %v7881 = vpack.c.b16 %v7861, %v7860
        %v7882 = vpack.c.b16 %v7862, %v7862
        %v7883 = vpack.c.b16 %v7864, %v7863
        %v7884 = vpack.c.b16 %v7865, %v7865
        %v7885 = vpack.c.b16 %v7867, %v7866
        %v7886 = vpack.c.b16 %v7868, %v7868
        %7905 = vst [vmem:[%s298] sm:$0xff] %v7869
        %7906 = vst [vmem:[%s298 + $0x8] sm:$0xf] %v7870
        %7907 = vst [vmem:[%s298 + $0xc] sm:$0xff] %v7871
        %7908 = vst [vmem:[%s298 + $0x14] sm:$0xf] %v7872
        %7909 = vst [vmem:[%s298 + $0x18] sm:$0xff] %v7873
        %7910 = vst [vmem:[%s298 + $0x20] sm:$0xf] %v7874
        %7911 = vst [vmem:[%s298 + $0x24] sm:$0xff] %v7875
        %7912 = vst [vmem:[%s298 + $0x2c] sm:$0xf] %v7876
        %7913 = vst [vmem:[%s298 + $0x30] sm:$0xff] %v7877
        %7914 = vst [vmem:[%s298 + $0x38] sm:$0xf] %v7878
        %7915 = vst [vmem:[%s298 + $0x3c] sm:$0xff] %v7879
        %7916 = vst [vmem:[%s298 + $0x44] sm:$0xf] %v7880
        %7917 = vst [vmem:[%s298 + $0x48] sm:$0xff] %v7881
        %7918 = vst [vmem:[%s298 + $0x50] sm:$0xf] %v7882
        %7919 = vst [vmem:[%s298 + $0x54] sm:$0xff] %v7883
        %7920 = vst [vmem:[%s298 + $0x5c] sm:$0xf] %v7884
        %7921 = vst [vmem:[%s298 + $0x60] sm:$0xff] %v7885
        %7922 = vst [vmem:[%s298 + $0x68] sm:$0xf] %v7886
        %s7923 = sand.u32 %s125, 1
        %s7924 = scalar_lea.sflag [#allocation4], %s7923
        %s7925 = sand.u32 %s125, 1
        %s7926 = smul.addr %s7925, 108
        %s7927 = scalar_lea.vmem [#allocation10], %s7926
        %s7928 = sand.u32 %s151, 1
        %s7929 = scalar_lea.sflag [#allocation12], %s7928
        %s7930 = sand.u32 %s151, 1
        %s7931 = smul.addr %s7930, 108
        %s7932 = scalar_lea.vmem [#allocation11], %s7931
        // Predicated region
        $region53: #{tpu_custom_call.1} parent=35 // pred_check
          %p7933 = pneg %p135
        $region54: #{tpu_custom_call.1} parent=35 // pred_check_branch
          %7935 = sbr.rel (%p7933) target = $region56
        $region55: #{tpu_custom_call.1} parent=35 // pred_region
          %s7936 = smul.u32 9, %s28
          %s7938 = ssub.s32 1728, 1728
          %7939 = vsyncadd %s7924, %s7938
          %s7940 = smul.addr %s7936, 3
          %s7941 = smul.addr %s7940, 64
          %s7942 = scalar_lea.hbm %s4, %s7941
          %s7943 = sshll.u32 %s7927, 4
          %s7944 = int_to_ptr.vmem [resolvable:$true] %s7943
          %7949 = dma.vmem_to_hbm [thread:$0]  %s7944, 1728, %s7942, %s7924, 192, 192, 12
        $region56: #{tpu_custom_call.1} parent=35 // pred_fallthru
          _
        // Predicated region
        $region57: #{tpu_custom_call.1} parent=35 // pred_check
          %p7950 = pneg %p161
        $region58: #{tpu_custom_call.1} parent=35 // pred_check_branch
          %7952 = sbr.rel (%p7950) target = $region60
        $region59: #{tpu_custom_call.1} parent=35 // pred_region
          %s7953 = smul.u32 9, %s28
          %s7955 = ssub.s32 1728, 1728
          %7956 = vsyncadd %s7929, %s7955
          %s7957 = smul.addr %s7953, 3
          %s7958 = smul.addr %s7957, 64
          %s7959 = scalar_lea.hbm %s5, %s7958
          %s7960 = sshll.u32 %s7932, 4
          %s7961 = int_to_ptr.vmem [resolvable:$true] %s7960
          %7966 = dma.vmem_to_hbm [thread:$0]  %s7961, 1728, %s7959, %s7929, 192, 192, 12
        $region60: #{tpu_custom_call.1} parent=35 // pred_fallthru
          _
      $region36: #{tpu_custom_call.1} parent=5 // pred_fallthru
        _
      %p7967 = scmp.le.s32.totalorder 2, %s23
      // Predicated region
      $region61: #{tpu_custom_call.1} parent=5 // pred_check
        %p7968 = pneg %p7967
      $region62: #{tpu_custom_call.1} parent=5 // pred_check_branch
        %7970 = sbr.rel (%p7968) target = $region64
      $region63: #{tpu_custom_call.1} parent=5 // pred_region
        %s7971 = ssub.s32 %s23, 2
        // Predicated region
        $region65: #{tpu_custom_call.1} parent=63 // pred_check
          %p7972 = pneg %p141
        $region66: #{tpu_custom_call.1} parent=63 // pred_check_branch
          %7974 = sbr.rel (%p7972) target = $region68
        $region67: #{tpu_custom_call.1} parent=63 // pred_region
          %s7975 = sand.u32 %s126, 1
          %s7976 = scalar_lea.sflag [#allocation4], %s7975
          %s7977 = sand.u32 %s126, 1
          %s7978 = smul.addr %s7977, 108
          %s7979 = scalar_lea.vmem [#allocation10], %s7978
          %7980 = dma.done %s7976, 1728
        $region68: #{tpu_custom_call.1} parent=63 // pred_fallthru
          _
        // Predicated region
        $region69: #{tpu_custom_call.1} parent=63 // pred_check
          %p7981 = pneg %p167
        $region70: #{tpu_custom_call.1} parent=63 // pred_check_branch
          %7983 = sbr.rel (%p7981) target = $region72
        $region71: #{tpu_custom_call.1} parent=63 // pred_region
          %s7984 = sand.u32 %s152, 1
          %s7985 = scalar_lea.sflag [#allocation12], %s7984
          %s7986 = sand.u32 %s152, 1
          %s7987 = smul.addr %s7986, 108
          %s7988 = scalar_lea.vmem [#allocation11], %s7987
          %7989 = dma.done %s7985, 1728
        $region72: #{tpu_custom_call.1} parent=63 // pred_fallthru
          _
      $region64: #{tpu_custom_call.1} parent=5 // pred_fallthru
        _
    $region6: #{tpu_custom_call.1} parent=1 // loop_footer
      %s27 = sadd.s32 1, %s23
    $region7: #{tpu_custom_call.1} parent=1 // loop_footer_branch
      %22 = sbr.rel target = $region3
    $region8: #{tpu_custom_call.1} parent=1 // loop_exit
      _
    %7990 = vsyncpa [#allocation3], 1
    %s7991 = scalar_lea.sflag [#allocation3], 1
    %7992 = vsyncpa %s7991, 1
    %7993 = vsyncpa [#allocation6], 1
    %7994 = vsyncpa [#allocation9], 1
    %7995 = vsyncpa [#allocation4], 1
    %s7996 = scalar_lea.sflag [#allocation4], 1
    %7997 = vsyncpa %s7996, 1
    %7998 = vsyncpa [#allocation12], 1
    %s7999 = scalar_lea.sflag [#allocation12], 1
    %8000 = vsyncpa %s7999, 1

</llo_original>
